<compile_context>
chip_gen: v7x
topology: tpu7x:2x2x1
jax: 0.10.0
libtpu: 0.0.40
codegen_flags: <defaults>
</compile_context>

<pallas_src>
import functools

import numpy as np
import jax
import jax.numpy as jnp
from jax import lax
from jax.experimental import pallas as pl
from jax.experimental.pallas import tpu as pltpu


# Tap order t = 3*(dy+1) + (dx+1); conv-weight column t*C + ci <-> torch W[co, ci, dy+1, dx+1].
_TAPS = tuple((dy, dx) for dy in (-1, 0, 1) for dx in (-1, 0, 1))


# ---------------------------------------------------------------------------
# Fused kernel: both branches + GPG attention for one batch element per grid step
# ---------------------------------------------------------------------------
def _sf_gpg_kernel(pix_ref, dwt_ref, mask_ref,
                   cw_ref, cb_ref,
                   caw1_ref, cab1_ref, caw2_ref, cab2_ref,
                   wqkv_ref, wo_ref,
                   fused_ref, odwt_ref,
                   col_ref, q_ref, k_ref, v_ref, attn_ref,
                   *, H, W, TQ):
    C = pix_ref.shape[1]          # channels (sublane axis)
    N = pix_ref.shape[2]          # H*W     (lane axis)
    Dh = q_ref.shape[0]

    # ---- 3x3 SAME conv as ONE im2col matmul --------------------------------
    def conv3x3(x, w_bf16, b, relu):
        # x: (C, N) f32.  For tap (dy, dx), output pixel n = h*W + w reads input
        # pixel n + dy*W + dx -> a lane roll (XLU) + a (1, N) zero-border mask.
        for t, (dy, dx) in enumerate(_TAPS):
            off = dy * W + dx
            if dy == 0 and dx == 0:
                tap = x
            else:
                tap = pltpu.roll(x, shift=(-off) % N, axis=1)
                tap = tap * mask_ref[t]
            # cast to bf16 once at materialization; sublane-aligned, full-lane store.
            col_ref[t * C:(t + 1) * C, :] = tap.astype(jnp.bfloat16)
        acc = jnp.dot(w_bf16, col_ref[...],                    # (C_out, 9C) x (9C, N)
                      preferred_element_type=jnp.float32)
        acc = acc + b                                          # (C_out, 1) bias
        return jnp.maximum(acc, 0.0) if relu else acc

    # ---- common.ResBlock + common.ResBlockAttn branch -----------------------
    def branch(x0, br):
        h1 = conv3x3(x0, cw_ref[br, 0], cb_ref[br, 0], relu=True)
        x1 = x0 + conv3x3(h1, cw_ref[br, 1], cb_ref[br, 1], relu=False)
        h2 = conv3x3(x1, cw_ref[br, 2], cb_ref[br, 2], relu=True)
        y = conv3x3(h2, cw_ref[br, 3], cb_ref[br, 3], relu=False)
        g = jnp.mean(y, axis=1, keepdims=True)                 # (C, 1) global avg pool
        a = jnp.maximum(jnp.dot(caw1_ref[br], g,
                                preferred_element_type=jnp.float32) + cab1_ref[br], 0.0)
        s = jax.nn.sigmoid(jnp.dot(caw2_ref[br], a,
                                   preferred_element_type=jnp.float32) + cab2_ref[br])
        return x1 + y * s                                      # (C, 1) channel gate

    pix = pix_ref[0]                                           # (C, N)
    dwt = dwt_ref[0]
    out_pix = branch(pix, 0)
    out_dwt = branch(dwt, 1)
    odwt_ref[0] = out_dwt

    # ---- GPG: fused QKV projection of concat(pix, dwt) channels -------------
    z = jnp.concatenate([out_pix.astype(jnp.bfloat16),
                         out_dwt.astype(jnp.bfloat16)], axis=0)            # (2C, N)
    qkv = jnp.dot(wqkv_ref[...], z, preferred_element_type=jnp.float32)    # (3Dh, N)
    q_ref[...] = qkv[0:Dh].astype(jnp.bfloat16)        # 1/sqrt(Dh) folded into Wq rows
    k_ref[...] = qkv[Dh:2 * Dh].astype(jnp.bfloat16)
    v_ref[...] = qkv[2 * Dh:3 * Dh].astype(jnp.bfloat16)

    # ---- spatial softmax attention, blocked over 128-query chunks ----------
    def q_block(i, carry):
        start = pl.multiple_of(i * TQ, TQ)
        q_c = q_ref[:, pl.ds(start, TQ)]                                   # (Dh, TQ)
        sc = lax.dot_general(q_c, k_ref[...], (((0,), (0,)), ((), ())),
                             preferred_element_type=jnp.float32)           # (TQ, N)
        sc = sc - jnp.max(sc, axis=-1, keepdims=True)
        p = jnp.exp(sc)
        p = p * pl.reciprocal(jnp.sum(p, axis=-1, keepdims=True), approx=True)
        o_c = lax.dot_general(v_ref[...], p.astype(jnp.bfloat16),
                              (((1,), (1,)), ((), ())),
                              preferred_element_type=jnp.float32)          # (Dh, TQ)
        attn_ref[:, pl.ds(start, TQ)] = o_c.astype(jnp.bfloat16)
        return carry

    lax.fori_loop(0, N // TQ, q_block, 0)
    # TODO(synk): for H*W >> 1024 switch to flash-style streaming over KV blocks
    #             (v7x 64 MiB VMEM) instead of full-key-row chunks.

    # output projection + residual onto the pix branch
    fused_ref[0] = out_pix + jnp.dot(wo_ref[...], attn_ref[...],
                                     preferred_element_type=jnp.float32)


# ---------------------------------------------------------------------------
# Wrapper: one pallas_call for the whole forward
# ---------------------------------------------------------------------------
def _tap_masks(H, W):
    """(9, 1, H*W) f32 validity masks for the 3x3 SAME-conv taps."""
    h = np.arange(H).reshape(H, 1)
    w = np.arange(W).reshape(1, W)
    m = []
    for dy, dx in _TAPS:
        ok = (h + dy >= 0) & (h + dy < H) & (w + dx >= 0) & (w + dx < W)
        m.append(ok.reshape(1, H * W))
    return jnp.asarray(np.stack(m, axis=0).astype(np.float32))


def sf_gpg_forward(params, in_pix_nchw, in_dwt_nchw):
    B, C, H, W = in_pix_nchw.shape
    N = H * W
    assert N % 128 == 0 and C % 16 == 0, "need lane-dense spatial dim and 16-aligned channels"
    # PyTorch NCHW -> (B, C, H*W): channels on sublanes, spatial on lanes. Pure reshape.
    pix = in_pix_nchw.reshape(B, C, N).astype(jnp.float32)
    dwt = in_dwt_nchw.reshape(B, C, N).astype(jnp.float32)

    Cr = params["ca_w1"].shape[1]
    Dh = params["wo"].shape[1]
    TQ = 128
    masks = _tap_masks(H, W)

    kernel = functools.partial(_sf_gpg_kernel, H=H, W=W, TQ=TQ)
    fused, out_dwt = pl.pallas_call(
        kernel,
        out_shape=(jax.ShapeDtypeStruct((B, C, N), jnp.float32),
                   jax.ShapeDtypeStruct((B, C, N), jnp.float32)),
        grid_spec=pltpu.PrefetchScalarGridSpec(
            num_scalar_prefetch=0,
            grid=(B,),
            in_specs=[
                pl.BlockSpec((1, C, N), lambda b: (b, 0, 0)),            # pix
                pl.BlockSpec((1, C, N), lambda b: (b, 0, 0)),            # dwt
                pl.BlockSpec((9, 1, N), lambda b: (0, 0, 0)),            # conv border masks
                pl.BlockSpec((2, 4, C, 9 * C), lambda b: (0, 0, 0, 0)),  # conv weights
                pl.BlockSpec((2, 4, C, 1), lambda b: (0, 0, 0, 0)),      # conv biases
                pl.BlockSpec((2, Cr, C), lambda b: (0, 0, 0)),           # CA fc1 w
                pl.BlockSpec((2, Cr, 1), lambda b: (0, 0, 0)),           # CA fc1 b
                pl.BlockSpec((2, C, Cr), lambda b: (0, 0, 0)),           # CA fc2 w
                pl.BlockSpec((2, C, 1), lambda b: (0, 0, 0)),            # CA fc2 b
                pl.BlockSpec((3 * Dh, 2 * C), lambda b: (0, 0)),         # fused Wq|Wk|Wv
                pl.BlockSpec((C, Dh), lambda b: (0, 0)),                 # Wo
            ],
            out_specs=[
                pl.BlockSpec((1, C, N), lambda b: (b, 0, 0)),            # fused
                pl.BlockSpec((1, C, N), lambda b: (b, 0, 0)),            # out_dwt
            ],
            scratch_shapes=[
                pltpu.VMEM((9 * C, N), jnp.bfloat16),   # im2col (rebuilt per conv)
                pltpu.VMEM((Dh, N), jnp.bfloat16),      # q
                pltpu.VMEM((Dh, N), jnp.bfloat16),      # k
                pltpu.VMEM((Dh, N), jnp.bfloat16),      # v
                pltpu.VMEM((Dh, N), jnp.bfloat16),      # attention output
            ],
        ),
        compiler_params=pltpu.CompilerParams(dimension_semantics=("parallel",)),
    )(pix, dwt, masks,
      params["conv_w"], params["conv_b"],
      params["ca_w1"], params["ca_b1"], params["ca_w2"], params["ca_b2"],
      params["wqkv"], params["wo"])

    return fused.reshape(B, C, H, W), out_dwt.reshape(B, C, H, W)


# ---------------------------------------------------------------------------
# Parameter init (deterministic, synthetic). Branch 0 = img, branch 1 = dwt.
# conv_w[br, conv, co, t*C + ci] <-> torch weight[co, ci, dy+1, dx+1] with
# t = 3*(dy+1) + (dx+1) (matches the kernel's im2col row order).
# ---------------------------------------------------------------------------
def init_params(key, dim, reduction=4):
    cr = max(dim // reduction, 1)
    dh = dim
    ks = jax.random.split(key, 8)
    conv_w = 0.05 * jax.random.normal(ks[0], (2, 4, dim, 9 * dim), jnp.float32)
    conv_b = 0.01 * jax.random.normal(ks[1], (2, 4, dim, 1), jnp.float32)
    ca_w1 = 0.05 * jax.random.normal(ks[2], (2, cr, dim), jnp.float32)
    ca_b1 = jnp.zeros((2, cr, 1), jnp.float32)
    ca_w2 = 0.05 * jax.random.normal(ks[3], (2, dim, cr), jnp.float32)
    ca_b2 = jnp.zeros((2, dim, 1), jnp.float32)
    # Fused QKV: rows [0:dh]=Wq (1/sqrt(dh) folded in f32, before bf16 cast),
    # [dh:2dh]=Wk, [2dh:3dh]=Wv; columns [0:dim]=pix half, [dim:2dim]=dwt half.
    wq = (0.05 / (dh ** 0.5)) * jax.random.normal(ks[4], (dh, 2 * dim), jnp.float32)
    wk = 0.05 * jax.random.normal(ks[5], (dh, 2 * dim), jnp.float32)
    wv = 0.05 * jax.random.normal(ks[6], (dh, 2 * dim), jnp.float32)
    wqkv = jnp.concatenate([wq, wk, wv], axis=0)
    wo = 0.05 * jax.random.normal(ks[7], (dim, dh), jnp.float32)
    return dict(
        conv_w=conv_w.astype(jnp.bfloat16), conv_b=conv_b,
        ca_w1=ca_w1, ca_b1=ca_b1, ca_w2=ca_w2, ca_b2=ca_b2,
        wqkv=wqkv.astype(jnp.bfloat16), wo=wo.astype(jnp.bfloat16))


if __name__ == "__main__":
    B, C, H, W = 2, 32, 16, 16          # dim_imgfeat = dim_dwtfeat = 32
    key = jax.random.PRNGKey(0)
    k_pix, k_dwt, k_par = jax.random.split(key, 3)
    in_pix = jax.random.normal(k_pix, (B, C, H, W), jnp.float32)   # NCHW like PyTorch
    in_dwt = jax.random.normal(k_dwt, (B, C, H, W), jnp.float32)
    params = init_params(k_par, C)

    fwd = jax.jit(sf_gpg_forward)
    fused, out_dwt = fwd(params, in_pix, in_dwt)
    jax.block_until_ready((fused, out_dwt))
    assert fused.shape == (B, C, H, W) and out_dwt.shape == (B, C, H, W)
    assert bool(jnp.isfinite(fused).all()) and bool(jnp.isfinite(out_dwt).all())
    print("KERNEL_OK")
</pallas_src>

<mosaic_0001>
module attributes {stable_mosaic.version = 11 : i64} {
  func.func @_sf_gpg_kernel(%arg0: i32, %arg1: memref<1x32x256xf32, #tpu.memory_space<vmem>>, %arg2: memref<1x32x256xf32, #tpu.memory_space<vmem>>, %arg3: memref<9x1x256xf32, #tpu.memory_space<vmem>>, %arg4: memref<2x4x32x288xbf16, #tpu.memory_space<vmem>>, %arg5: memref<2x4x32x1xf32, #tpu.memory_space<vmem>>, %arg6: memref<2x8x32xf32, #tpu.memory_space<vmem>>, %arg7: memref<2x8x1xf32, #tpu.memory_space<vmem>>, %arg8: memref<2x32x8xf32, #tpu.memory_space<vmem>>, %arg9: memref<2x32x1xf32, #tpu.memory_space<vmem>>, %arg10: memref<96x64xbf16, #tpu.memory_space<vmem>>, %arg11: memref<32x32xbf16, #tpu.memory_space<vmem>>, %arg12: memref<1x32x256xf32, #tpu.memory_space<vmem>>, %arg13: memref<1x32x256xf32, #tpu.memory_space<vmem>>, %arg14: memref<288x256xbf16, #tpu.memory_space<vmem>>, %arg15: memref<32x256xbf16, #tpu.memory_space<vmem>>, %arg16: memref<32x256xbf16, #tpu.memory_space<vmem>>, %arg17: memref<32x256xbf16, #tpu.memory_space<vmem>>, %arg18: memref<32x256xbf16, #tpu.memory_space<vmem>>) attributes {dimension_semantics = [#tpu.dimension_semantics<parallel>], iteration_bounds = array<i64: 2>, scalar_prefetch = 0 : i64, scratch_operands = 5 : i64, tpu.core_type = #tpu.core_type<tc>, window_params = [{transform_indices = @transform_0, window_bounds = array<i64: 1, 32, 256>}, {transform_indices = @transform_1, window_bounds = array<i64: 1, 32, 256>}, {pipeline_mode = #tpu.pipeline_mode<synchronous>, transform_indices = @transform_2, window_bounds = array<i64: 9, 1, 256>}, {pipeline_mode = #tpu.pipeline_mode<synchronous>, transform_indices = @transform_3, window_bounds = array<i64: 2, 4, 32, 288>}, {pipeline_mode = #tpu.pipeline_mode<synchronous>, transform_indices = @transform_4, window_bounds = array<i64: 2, 4, 32, 1>}, {pipeline_mode = #tpu.pipeline_mode<synchronous>, transform_indices = @transform_5, window_bounds = array<i64: 2, 8, 32>}, {pipeline_mode = #tpu.pipeline_mode<synchronous>, transform_indices = @transform_6, window_bounds = array<i64: 2, 8, 1>}, {pipeline_mode = #tpu.pipeline_mode<synchronous>, transform_indices = @transform_7, window_bounds = array<i64: 2, 32, 8>}, {pipeline_mode = #tpu.pipeline_mode<synchronous>, transform_indices = @transform_8, window_bounds = array<i64: 2, 32, 1>}, {pipeline_mode = #tpu.pipeline_mode<synchronous>, transform_indices = @transform_9, window_bounds = array<i64: 96, 64>}, {pipeline_mode = #tpu.pipeline_mode<synchronous>, transform_indices = @transform_10, window_bounds = array<i64: 32, 32>}, {transform_indices = @transform_11, window_bounds = array<i64: 1, 32, 256>}, {transform_indices = @transform_12, window_bounds = array<i64: 1, 32, 256>}]} {
    %c0 = arith.constant 0 : index
    %c0_0 = arith.constant 0 : index
    %c0_1 = arith.constant 0 : index
    %0 = vector.load %arg1[%c0, %c0_0, %c0_1] : memref<1x32x256xf32, #tpu.memory_space<vmem>>, vector<1x32x256xf32>
    %1 = vector.shape_cast %0 : vector<1x32x256xf32> to vector<32x256xf32>
    %c0_2 = arith.constant 0 : index
    %c0_3 = arith.constant 0 : index
    %c0_4 = arith.constant 0 : index
    %2 = vector.load %arg2[%c0_2, %c0_3, %c0_4] : memref<1x32x256xf32, #tpu.memory_space<vmem>>, vector<1x32x256xf32>
    %3 = vector.shape_cast %2 : vector<1x32x256xf32> to vector<32x256xf32>
    %c0_5 = arith.constant 0 : index
    %c0_6 = arith.constant 0 : index
    %c0_7 = arith.constant 0 : index
    %c0_8 = arith.constant 0 : index
    %4 = vector.load %arg4[%c0_5, %c0_6, %c0_7, %c0_8] : memref<2x4x32x288xbf16, #tpu.memory_space<vmem>>, vector<1x1x32x288xbf16>
    %5 = vector.shape_cast %4 : vector<1x1x32x288xbf16> to vector<32x288xbf16>
    %c0_9 = arith.constant 0 : index
    %c0_10 = arith.constant 0 : index
    %c0_11 = arith.constant 0 : index
    %c0_12 = arith.constant 0 : index
    %6 = vector.load %arg5[%c0_9, %c0_10, %c0_11, %c0_12] : memref<2x4x32x1xf32, #tpu.memory_space<vmem>>, vector<1x1x32x1xf32>
    %7 = vector.shape_cast %6 : vector<1x1x32x1xf32> to vector<32x1xf32>
    %c17_i32 = arith.constant 17 : i32
    %8 = tpu.dynamic_rotate %1 by %c17_i32 dim 1 : vector<32x256xf32>, i32 -> vector<32x256xf32>
    %c0_13 = arith.constant 0 : index
    %c0_14 = arith.constant 0 : index
    %c0_15 = arith.constant 0 : index
    %9 = vector.load %arg3[%c0_13, %c0_14, %c0_15] : memref<9x1x256xf32, #tpu.memory_space<vmem>>, vector<1x1x256xf32>
    %10 = vector.shape_cast %9 : vector<1x1x256xf32> to vector<1x256xf32>
    %11 = vector.broadcast %10 : vector<1x256xf32> to vector<32x256xf32>
    %12 = arith.mulf %8, %11 : vector<32x256xf32>
    %13 = arith.truncf %12 : vector<32x256xf32> to vector<32x256xbf16>
    %c0_16 = arith.constant 0 : index
    %c0_17 = arith.constant 0 : index
    %14 = vector.load %arg14[%c0_16, %c0_17] : memref<288x256xbf16, #tpu.memory_space<vmem>>, vector<32x256xbf16>
    tpu.vector_store %arg14[%c0_16, %c0_17], %13 {strides = array<i32>} : memref<288x256xbf16, #tpu.memory_space<vmem>>, vector<32x256xbf16>,
    %c16_i32 = arith.constant 16 : i32
    %15 = tpu.dynamic_rotate %1 by %c16_i32 dim 1 : vector<32x256xf32>, i32 -> vector<32x256xf32>
    %c1 = arith.constant 1 : index
    %c0_18 = arith.constant 0 : index
    %c0_19 = arith.constant 0 : index
    %16 = vector.load %arg3[%c1, %c0_18, %c0_19] : memref<9x1x256xf32, #tpu.memory_space<vmem>>, vector<1x1x256xf32>
    %17 = vector.shape_cast %16 : vector<1x1x256xf32> to vector<1x256xf32>
    %18 = vector.broadcast %17 : vector<1x256xf32> to vector<32x256xf32>
    %19 = arith.mulf %15, %18 : vector<32x256xf32>
    %20 = arith.truncf %19 : vector<32x256xf32> to vector<32x256xbf16>
    %c32 = arith.constant 32 : index
    %c0_20 = arith.constant 0 : index
    %21 = vector.load %arg14[%c32, %c0_20] : memref<288x256xbf16, #tpu.memory_space<vmem>>, vector<32x256xbf16>
    tpu.vector_store %arg14[%c32, %c0_20], %20 {strides = array<i32>} : memref<288x256xbf16, #tpu.memory_space<vmem>>, vector<32x256xbf16>,
    %c15_i32 = arith.constant 15 : i32
    %22 = tpu.dynamic_rotate %1 by %c15_i32 dim 1 : vector<32x256xf32>, i32 -> vector<32x256xf32>
    %c2 = arith.constant 2 : index
    %c0_21 = arith.constant 0 : index
    %c0_22 = arith.constant 0 : index
    %23 = vector.load %arg3[%c2, %c0_21, %c0_22] : memref<9x1x256xf32, #tpu.memory_space<vmem>>, vector<1x1x256xf32>
    %24 = vector.shape_cast %23 : vector<1x1x256xf32> to vector<1x256xf32>
    %25 = vector.broadcast %24 : vector<1x256xf32> to vector<32x256xf32>
    %26 = arith.mulf %22, %25 : vector<32x256xf32>
    %27 = arith.truncf %26 : vector<32x256xf32> to vector<32x256xbf16>
    %c64 = arith.constant 64 : index
    %c0_23 = arith.constant 0 : index
    %28 = vector.load %arg14[%c64, %c0_23] : memref<288x256xbf16, #tpu.memory_space<vmem>>, vector<32x256xbf16>
    tpu.vector_store %arg14[%c64, %c0_23], %27 {strides = array<i32>} : memref<288x256xbf16, #tpu.memory_space<vmem>>, vector<32x256xbf16>,
    %c1_i32 = arith.constant 1 : i32
    %29 = tpu.dynamic_rotate %1 by %c1_i32 dim 1 : vector<32x256xf32>, i32 -> vector<32x256xf32>
    %c3 = arith.constant 3 : index
    %c0_24 = arith.constant 0 : index
    %c0_25 = arith.constant 0 : index
    %30 = vector.load %arg3[%c3, %c0_24, %c0_25] : memref<9x1x256xf32, #tpu.memory_space<vmem>>, vector<1x1x256xf32>
    %31 = vector.shape_cast %30 : vector<1x1x256xf32> to vector<1x256xf32>
    %32 = vector.broadcast %31 : vector<1x256xf32> to vector<32x256xf32>
    %33 = arith.mulf %29, %32 : vector<32x256xf32>
    %34 = arith.truncf %33 : vector<32x256xf32> to vector<32x256xbf16>
    %c96 = arith.constant 96 : index
    %c0_26 = arith.constant 0 : index
    %35 = vector.load %arg14[%c96, %c0_26] : memref<288x256xbf16, #tpu.memory_space<vmem>>, vector<32x256xbf16>
    tpu.vector_store %arg14[%c96, %c0_26], %34 {strides = array<i32>} : memref<288x256xbf16, #tpu.memory_space<vmem>>, vector<32x256xbf16>,
    %36 = arith.truncf %1 : vector<32x256xf32> to vector<32x256xbf16>
    %c128 = arith.constant 128 : index
    %c0_27 = arith.constant 0 : index
    %37 = vector.load %arg14[%c128, %c0_27] : memref<288x256xbf16, #tpu.memory_space<vmem>>, vector<32x256xbf16>
    tpu.vector_store %arg14[%c128, %c0_27], %36 {strides = array<i32>} : memref<288x256xbf16, #tpu.memory_space<vmem>>, vector<32x256xbf16>,
    %c255_i32 = arith.constant 255 : i32
    %38 = tpu.dynamic_rotate %1 by %c255_i32 dim 1 : vector<32x256xf32>, i32 -> vector<32x256xf32>
    %c5 = arith.constant 5 : index
    %c0_28 = arith.constant 0 : index
    %c0_29 = arith.constant 0 : index
    %39 = vector.load %arg3[%c5, %c0_28, %c0_29] : memref<9x1x256xf32, #tpu.memory_space<vmem>>, vector<1x1x256xf32>
    %40 = vector.shape_cast %39 : vector<1x1x256xf32> to vector<1x256xf32>
    %41 = vector.broadcast %40 : vector<1x256xf32> to vector<32x256xf32>
    %42 = arith.mulf %38, %41 : vector<32x256xf32>
    %43 = arith.truncf %42 : vector<32x256xf32> to vector<32x256xbf16>
    %c160 = arith.constant 160 : index
    %c0_30 = arith.constant 0 : index
    %44 = vector.load %arg14[%c160, %c0_30] : memref<288x256xbf16, #tpu.memory_space<vmem>>, vector<32x256xbf16>
    tpu.vector_store %arg14[%c160, %c0_30], %43 {strides = array<i32>} : memref<288x256xbf16, #tpu.memory_space<vmem>>, vector<32x256xbf16>,
    %c241_i32 = arith.constant 241 : i32
    %45 = tpu.dynamic_rotate %1 by %c241_i32 dim 1 : vector<32x256xf32>, i32 -> vector<32x256xf32>
    %c6 = arith.constant 6 : index
    %c0_31 = arith.constant 0 : index
    %c0_32 = arith.constant 0 : index
    %46 = vector.load %arg3[%c6, %c0_31, %c0_32] : memref<9x1x256xf32, #tpu.memory_space<vmem>>, vector<1x1x256xf32>
    %47 = vector.shape_cast %46 : vector<1x1x256xf32> to vector<1x256xf32>
    %48 = vector.broadcast %47 : vector<1x256xf32> to vector<32x256xf32>
    %49 = arith.mulf %45, %48 : vector<32x256xf32>
    %50 = arith.truncf %49 : vector<32x256xf32> to vector<32x256xbf16>
    %c192 = arith.constant 192 : index
    %c0_33 = arith.constant 0 : index
    %51 = vector.load %arg14[%c192, %c0_33] : memref<288x256xbf16, #tpu.memory_space<vmem>>, vector<32x256xbf16>
    tpu.vector_store %arg14[%c192, %c0_33], %50 {strides = array<i32>} : memref<288x256xbf16, #tpu.memory_space<vmem>>, vector<32x256xbf16>,
    %c240_i32 = arith.constant 240 : i32
    %52 = tpu.dynamic_rotate %1 by %c240_i32 dim 1 : vector<32x256xf32>, i32 -> vector<32x256xf32>
    %c7 = arith.constant 7 : index
    %c0_34 = arith.constant 0 : index
    %c0_35 = arith.constant 0 : index
    %53 = vector.load %arg3[%c7, %c0_34, %c0_35] : memref<9x1x256xf32, #tpu.memory_space<vmem>>, vector<1x1x256xf32>
    %54 = vector.shape_cast %53 : vector<1x1x256xf32> to vector<1x256xf32>
    %55 = vector.broadcast %54 : vector<1x256xf32> to vector<32x256xf32>
    %56 = arith.mulf %52, %55 : vector<32x256xf32>
    %57 = arith.truncf %56 : vector<32x256xf32> to vector<32x256xbf16>
    %c224 = arith.constant 224 : index
    %c0_36 = arith.constant 0 : index
    %58 = vector.load %arg14[%c224, %c0_36] : memref<288x256xbf16, #tpu.memory_space<vmem>>, vector<32x256xbf16>
    tpu.vector_store %arg14[%c224, %c0_36], %57 {strides = array<i32>} : memref<288x256xbf16, #tpu.memory_space<vmem>>, vector<32x256xbf16>,
    %c239_i32 = arith.constant 239 : i32
    %59 = tpu.dynamic_rotate %1 by %c239_i32 dim 1 : vector<32x256xf32>, i32 -> vector<32x256xf32>
    %c8 = arith.constant 8 : index
    %c0_37 = arith.constant 0 : index
    %c0_38 = arith.constant 0 : index
    %60 = vector.load %arg3[%c8, %c0_37, %c0_38] : memref<9x1x256xf32, #tpu.memory_space<vmem>>, vector<1x1x256xf32>
    %61 = vector.shape_cast %60 : vector<1x1x256xf32> to vector<1x256xf32>
    %62 = vector.broadcast %61 : vector<1x256xf32> to vector<32x256xf32>
    %63 = arith.mulf %59, %62 : vector<32x256xf32>
    %64 = arith.truncf %63 : vector<32x256xf32> to vector<32x256xbf16>
    %c256 = arith.constant 256 : index
    %c0_39 = arith.constant 0 : index
    %65 = vector.load %arg14[%c256, %c0_39] : memref<288x256xbf16, #tpu.memory_space<vmem>>, vector<32x256xbf16>
    tpu.vector_store %arg14[%c256, %c0_39], %64 {strides = array<i32>} : memref<288x256xbf16, #tpu.memory_space<vmem>>, vector<32x256xbf16>,
    %c0_40 = arith.constant 0 : index
    %c0_41 = arith.constant 0 : index
    %66 = vector.load %arg14[%c0_40, %c0_41] : memref<288x256xbf16, #tpu.memory_space<vmem>>, vector<288x256xbf16>
    %cst = arith.constant dense<0.000000e+00> : vector<32x256xf32>
    %67 = tpu.matmul %5, %66, %cst {dimension_numbers = #tpu.dot_dimension_numbers<[1], [0], [0], [1], [0, 0, 1, 1], [], []>} : vector<32x288xbf16>, vector<288x256xbf16>, vector<32x256xf32> -> vector<32x256xf32>
    %68 = vector.broadcast %7 : vector<32x1xf32> to vector<32x256xf32>
    %69 = arith.addf %67, %68 : vector<32x256xf32>
    %cst_42 = arith.constant 0.000000e+00 : f32
    %70 = vector.broadcast %cst_42 : f32 to vector<32x256xf32>
    %71 = arith.maximumf %69, %70 : vector<32x256xf32>
    %c0_43 = arith.constant 0 : index
    %c1_44 = arith.constant 1 : index
    %c0_45 = arith.constant 0 : index
    %c0_46 = arith.constant 0 : index
    %72 = vector.load %arg4[%c0_43, %c1_44, %c0_45, %c0_46] : memref<2x4x32x288xbf16, #tpu.memory_space<vmem>>, vector<1x1x32x288xbf16>
    %73 = vector.shape_cast %72 : vector<1x1x32x288xbf16> to vector<32x288xbf16>
    %c0_47 = arith.constant 0 : index
    %c1_48 = arith.constant 1 : index
    %c0_49 = arith.constant 0 : index
    %c0_50 = arith.constant 0 : index
    %74 = vector.load %arg5[%c0_47, %c1_48, %c0_49, %c0_50] : memref<2x4x32x1xf32, #tpu.memory_space<vmem>>, vector<1x1x32x1xf32>
    %75 = vector.shape_cast %74 : vector<1x1x32x1xf32> to vector<32x1xf32>
    %c17_i32_51 = arith.constant 17 : i32
    %76 = tpu.dynamic_rotate %71 by %c17_i32_51 dim 1 : vector<32x256xf32>, i32 -> vector<32x256xf32>
    %c0_52 = arith.constant 0 : index
    %c0_53 = arith.constant 0 : index
    %c0_54 = arith.constant 0 : index
    %77 = vector.load %arg3[%c0_52, %c0_53, %c0_54] : memref<9x1x256xf32, #tpu.memory_space<vmem>>, vector<1x1x256xf32>
    %78 = vector.shape_cast %77 : vector<1x1x256xf32> to vector<1x256xf32>
    %79 = vector.broadcast %78 : vector<1x256xf32> to vector<32x256xf32>
    %80 = arith.mulf %76, %79 : vector<32x256xf32>
    %81 = arith.truncf %80 : vector<32x256xf32> to vector<32x256xbf16>
    %c0_55 = arith.constant 0 : index
    %c0_56 = arith.constant 0 : index
    %82 = vector.load %arg14[%c0_55, %c0_56] : memref<288x256xbf16, #tpu.memory_space<vmem>>, vector<32x256xbf16>
    tpu.vector_store %arg14[%c0_55, %c0_56], %81 {strides = array<i32>} : memref<288x256xbf16, #tpu.memory_space<vmem>>, vector<32x256xbf16>,
    %c16_i32_57 = arith.constant 16 : i32
    %83 = tpu.dynamic_rotate %71 by %c16_i32_57 dim 1 : vector<32x256xf32>, i32 -> vector<32x256xf32>
    %c1_58 = arith.constant 1 : index
    %c0_59 = arith.constant 0 : index
    %c0_60 = arith.constant 0 : index
    %84 = vector.load %arg3[%c1_58, %c0_59, %c0_60] : memref<9x1x256xf32, #tpu.memory_space<vmem>>, vector<1x1x256xf32>
    %85 = vector.shape_cast %84 : vector<1x1x256xf32> to vector<1x256xf32>
    %86 = vector.broadcast %85 : vector<1x256xf32> to vector<32x256xf32>
    %87 = arith.mulf %83, %86 : vector<32x256xf32>
    %88 = arith.truncf %87 : vector<32x256xf32> to vector<32x256xbf16>
    %c32_61 = arith.constant 32 : index
    %c0_62 = arith.constant 0 : index
    %89 = vector.load %arg14[%c32_61, %c0_62] : memref<288x256xbf16, #tpu.memory_space<vmem>>, vector<32x256xbf16>
    tpu.vector_store %arg14[%c32_61, %c0_62], %88 {strides = array<i32>} : memref<288x256xbf16, #tpu.memory_space<vmem>>, vector<32x256xbf16>,
    %c15_i32_63 = arith.constant 15 : i32
    %90 = tpu.dynamic_rotate %71 by %c15_i32_63 dim 1 : vector<32x256xf32>, i32 -> vector<32x256xf32>
    %c2_64 = arith.constant 2 : index
    %c0_65 = arith.constant 0 : index
    %c0_66 = arith.constant 0 : index
    %91 = vector.load %arg3[%c2_64, %c0_65, %c0_66] : memref<9x1x256xf32, #tpu.memory_space<vmem>>, vector<1x1x256xf32>
    %92 = vector.shape_cast %91 : vector<1x1x256xf32> to vector<1x256xf32>
    %93 = vector.broadcast %92 : vector<1x256xf32> to vector<32x256xf32>
    %94 = arith.mulf %90, %93 : vector<32x256xf32>
    %95 = arith.truncf %94 : vector<32x256xf32> to vector<32x256xbf16>
    %c64_67 = arith.constant 64 : index
    %c0_68 = arith.constant 0 : index
    %96 = vector.load %arg14[%c64_67, %c0_68] : memref<288x256xbf16, #tpu.memory_space<vmem>>, vector<32x256xbf16>
    tpu.vector_store %arg14[%c64_67, %c0_68], %95 {strides = array<i32>} : memref<288x256xbf16, #tpu.memory_space<vmem>>, vector<32x256xbf16>,
    %c1_i32_69 = arith.constant 1 : i32
    %97 = tpu.dynamic_rotate %71 by %c1_i32_69 dim 1 : vector<32x256xf32>, i32 -> vector<32x256xf32>
    %c3_70 = arith.constant 3 : index
    %c0_71 = arith.constant 0 : index
    %c0_72 = arith.constant 0 : index
    %98 = vector.load %arg3[%c3_70, %c0_71, %c0_72] : memref<9x1x256xf32, #tpu.memory_space<vmem>>, vector<1x1x256xf32>
    %99 = vector.shape_cast %98 : vector<1x1x256xf32> to vector<1x256xf32>
    %100 = vector.broadcast %99 : vector<1x256xf32> to vector<32x256xf32>
    %101 = arith.mulf %97, %100 : vector<32x256xf32>
    %102 = arith.truncf %101 : vector<32x256xf32> to vector<32x256xbf16>
    %c96_73 = arith.constant 96 : index
    %c0_74 = arith.constant 0 : index
    %103 = vector.load %arg14[%c96_73, %c0_74] : memref<288x256xbf16, #tpu.memory_space<vmem>>, vector<32x256xbf16>
    tpu.vector_store %arg14[%c96_73, %c0_74], %102 {strides = array<i32>} : memref<288x256xbf16, #tpu.memory_space<vmem>>, vector<32x256xbf16>,
    %104 = arith.truncf %71 : vector<32x256xf32> to vector<32x256xbf16>
    %c128_75 = arith.constant 128 : index
    %c0_76 = arith.constant 0 : index
    %105 = vector.load %arg14[%c128_75, %c0_76] : memref<288x256xbf16, #tpu.memory_space<vmem>>, vector<32x256xbf16>
    tpu.vector_store %arg14[%c128_75, %c0_76], %104 {strides = array<i32>} : memref<288x256xbf16, #tpu.memory_space<vmem>>, vector<32x256xbf16>,
    %c255_i32_77 = arith.constant 255 : i32
    %106 = tpu.dynamic_rotate %71 by %c255_i32_77 dim 1 : vector<32x256xf32>, i32 -> vector<32x256xf32>
    %c5_78 = arith.constant 5 : index
    %c0_79 = arith.constant 0 : index
    %c0_80 = arith.constant 0 : index
    %107 = vector.load %arg3[%c5_78, %c0_79, %c0_80] : memref<9x1x256xf32, #tpu.memory_space<vmem>>, vector<1x1x256xf32>
    %108 = vector.shape_cast %107 : vector<1x1x256xf32> to vector<1x256xf32>
    %109 = vector.broadcast %108 : vector<1x256xf32> to vector<32x256xf32>
    %110 = arith.mulf %106, %109 : vector<32x256xf32>
    %111 = arith.truncf %110 : vector<32x256xf32> to vector<32x256xbf16>
    %c160_81 = arith.constant 160 : index
    %c0_82 = arith.constant 0 : index
    %112 = vector.load %arg14[%c160_81, %c0_82] : memref<288x256xbf16, #tpu.memory_space<vmem>>, vector<32x256xbf16>
    tpu.vector_store %arg14[%c160_81, %c0_82], %111 {strides = array<i32>} : memref<288x256xbf16, #tpu.memory_space<vmem>>, vector<32x256xbf16>,
    %c241_i32_83 = arith.constant 241 : i32
    %113 = tpu.dynamic_rotate %71 by %c241_i32_83 dim 1 : vector<32x256xf32>, i32 -> vector<32x256xf32>
    %c6_84 = arith.constant 6 : index
    %c0_85 = arith.constant 0 : index
    %c0_86 = arith.constant 0 : index
    %114 = vector.load %arg3[%c6_84, %c0_85, %c0_86] : memref<9x1x256xf32, #tpu.memory_space<vmem>>, vector<1x1x256xf32>
    %115 = vector.shape_cast %114 : vector<1x1x256xf32> to vector<1x256xf32>
    %116 = vector.broadcast %115 : vector<1x256xf32> to vector<32x256xf32>
    %117 = arith.mulf %113, %116 : vector<32x256xf32>
    %118 = arith.truncf %117 : vector<32x256xf32> to vector<32x256xbf16>
    %c192_87 = arith.constant 192 : index
    %c0_88 = arith.constant 0 : index
    %119 = vector.load %arg14[%c192_87, %c0_88] : memref<288x256xbf16, #tpu.memory_space<vmem>>, vector<32x256xbf16>
    tpu.vector_store %arg14[%c192_87, %c0_88], %118 {strides = array<i32>} : memref<288x256xbf16, #tpu.memory_space<vmem>>, vector<32x256xbf16>,
    %c240_i32_89 = arith.constant 240 : i32
    %120 = tpu.dynamic_rotate %71 by %c240_i32_89 dim 1 : vector<32x256xf32>, i32 -> vector<32x256xf32>
    %c7_90 = arith.constant 7 : index
    %c0_91 = arith.constant 0 : index
    %c0_92 = arith.constant 0 : index
    %121 = vector.load %arg3[%c7_90, %c0_91, %c0_92] : memref<9x1x256xf32, #tpu.memory_space<vmem>>, vector<1x1x256xf32>
    %122 = vector.shape_cast %121 : vector<1x1x256xf32> to vector<1x256xf32>
    %123 = vector.broadcast %122 : vector<1x256xf32> to vector<32x256xf32>
    %124 = arith.mulf %120, %123 : vector<32x256xf32>
    %125 = arith.truncf %124 : vector<32x256xf32> to vector<32x256xbf16>
    %c224_93 = arith.constant 224 : index
    %c0_94 = arith.constant 0 : index
    %126 = vector.load %arg14[%c224_93, %c0_94] : memref<288x256xbf16, #tpu.memory_space<vmem>>, vector<32x256xbf16>
    tpu.vector_store %arg14[%c224_93, %c0_94], %125 {strides = array<i32>} : memref<288x256xbf16, #tpu.memory_space<vmem>>, vector<32x256xbf16>,
    %c239_i32_95 = arith.constant 239 : i32
    %127 = tpu.dynamic_rotate %71 by %c239_i32_95 dim 1 : vector<32x256xf32>, i32 -> vector<32x256xf32>
    %c8_96 = arith.constant 8 : index
    %c0_97 = arith.constant 0 : index
    %c0_98 = arith.constant 0 : index
    %128 = vector.load %arg3[%c8_96, %c0_97, %c0_98] : memref<9x1x256xf32, #tpu.memory_space<vmem>>, vector<1x1x256xf32>
    %129 = vector.shape_cast %128 : vector<1x1x256xf32> to vector<1x256xf32>
    %130 = vector.broadcast %129 : vector<1x256xf32> to vector<32x256xf32>
    %131 = arith.mulf %127, %130 : vector<32x256xf32>
    %132 = arith.truncf %131 : vector<32x256xf32> to vector<32x256xbf16>
    %c256_99 = arith.constant 256 : index
    %c0_100 = arith.constant 0 : index
    %133 = vector.load %arg14[%c256_99, %c0_100] : memref<288x256xbf16, #tpu.memory_space<vmem>>, vector<32x256xbf16>
    tpu.vector_store %arg14[%c256_99, %c0_100], %132 {strides = array<i32>} : memref<288x256xbf16, #tpu.memory_space<vmem>>, vector<32x256xbf16>,
    %c0_101 = arith.constant 0 : index
    %c0_102 = arith.constant 0 : index
    %134 = vector.load %arg14[%c0_101, %c0_102] : memref<288x256xbf16, #tpu.memory_space<vmem>>, vector<288x256xbf16>
    %cst_103 = arith.constant dense<0.000000e+00> : vector<32x256xf32>
    %135 = tpu.matmul %73, %134, %cst_103 {dimension_numbers = #tpu.dot_dimension_numbers<[1], [0], [0], [1], [0, 0, 1, 1], [], []>} : vector<32x288xbf16>, vector<288x256xbf16>, vector<32x256xf32> -> vector<32x256xf32>
    %136 = vector.broadcast %75 : vector<32x1xf32> to vector<32x256xf32>
    %137 = arith.addf %135, %136 : vector<32x256xf32>
    %138 = arith.addf %1, %137 : vector<32x256xf32>
    %c0_104 = arith.constant 0 : index
    %c2_105 = arith.constant 2 : index
    %c0_106 = arith.constant 0 : index
    %c0_107 = arith.constant 0 : index
    %139 = vector.load %arg4[%c0_104, %c2_105, %c0_106, %c0_107] : memref<2x4x32x288xbf16, #tpu.memory_space<vmem>>, vector<1x1x32x288xbf16>
    %140 = vector.shape_cast %139 : vector<1x1x32x288xbf16> to vector<32x288xbf16>
    %c0_108 = arith.constant 0 : index
    %c2_109 = arith.constant 2 : index
    %c0_110 = arith.constant 0 : index
    %c0_111 = arith.constant 0 : index
    %141 = vector.load %arg5[%c0_108, %c2_109, %c0_110, %c0_111] : memref<2x4x32x1xf32, #tpu.memory_space<vmem>>, vector<1x1x32x1xf32>
    %142 = vector.shape_cast %141 : vector<1x1x32x1xf32> to vector<32x1xf32>
    %c17_i32_112 = arith.constant 17 : i32
    %143 = tpu.dynamic_rotate %138 by %c17_i32_112 dim 1 : vector<32x256xf32>, i32 -> vector<32x256xf32>
    %c0_113 = arith.constant 0 : index
    %c0_114 = arith.constant 0 : index
    %c0_115 = arith.constant 0 : index
    %144 = vector.load %arg3[%c0_113, %c0_114, %c0_115] : memref<9x1x256xf32, #tpu.memory_space<vmem>>, vector<1x1x256xf32>
    %145 = vector.shape_cast %144 : vector<1x1x256xf32> to vector<1x256xf32>
    %146 = vector.broadcast %145 : vector<1x256xf32> to vector<32x256xf32>
    %147 = arith.mulf %143, %146 : vector<32x256xf32>
    %148 = arith.truncf %147 : vector<32x256xf32> to vector<32x256xbf16>
    %c0_116 = arith.constant 0 : index
    %c0_117 = arith.constant 0 : index
    %149 = vector.load %arg14[%c0_116, %c0_117] : memref<288x256xbf16, #tpu.memory_space<vmem>>, vector<32x256xbf16>
    tpu.vector_store %arg14[%c0_116, %c0_117], %148 {strides = array<i32>} : memref<288x256xbf16, #tpu.memory_space<vmem>>, vector<32x256xbf16>,
    %c16_i32_118 = arith.constant 16 : i32
    %150 = tpu.dynamic_rotate %138 by %c16_i32_118 dim 1 : vector<32x256xf32>, i32 -> vector<32x256xf32>
    %c1_119 = arith.constant 1 : index
    %c0_120 = arith.constant 0 : index
    %c0_121 = arith.constant 0 : index
    %151 = vector.load %arg3[%c1_119, %c0_120, %c0_121] : memref<9x1x256xf32, #tpu.memory_space<vmem>>, vector<1x1x256xf32>
    %152 = vector.shape_cast %151 : vector<1x1x256xf32> to vector<1x256xf32>
    %153 = vector.broadcast %152 : vector<1x256xf32> to vector<32x256xf32>
    %154 = arith.mulf %150, %153 : vector<32x256xf32>
    %155 = arith.truncf %154 : vector<32x256xf32> to vector<32x256xbf16>
    %c32_122 = arith.constant 32 : index
    %c0_123 = arith.constant 0 : index
    %156 = vector.load %arg14[%c32_122, %c0_123] : memref<288x256xbf16, #tpu.memory_space<vmem>>, vector<32x256xbf16>
    tpu.vector_store %arg14[%c32_122, %c0_123], %155 {strides = array<i32>} : memref<288x256xbf16, #tpu.memory_space<vmem>>, vector<32x256xbf16>,
    %c15_i32_124 = arith.constant 15 : i32
    %157 = tpu.dynamic_rotate %138 by %c15_i32_124 dim 1 : vector<32x256xf32>, i32 -> vector<32x256xf32>
    %c2_125 = arith.constant 2 : index
    %c0_126 = arith.constant 0 : index
    %c0_127 = arith.constant 0 : index
    %158 = vector.load %arg3[%c2_125, %c0_126, %c0_127] : memref<9x1x256xf32, #tpu.memory_space<vmem>>, vector<1x1x256xf32>
    %159 = vector.shape_cast %158 : vector<1x1x256xf32> to vector<1x256xf32>
    %160 = vector.broadcast %159 : vector<1x256xf32> to vector<32x256xf32>
    %161 = arith.mulf %157, %160 : vector<32x256xf32>
    %162 = arith.truncf %161 : vector<32x256xf32> to vector<32x256xbf16>
    %c64_128 = arith.constant 64 : index
    %c0_129 = arith.constant 0 : index
    %163 = vector.load %arg14[%c64_128, %c0_129] : memref<288x256xbf16, #tpu.memory_space<vmem>>, vector<32x256xbf16>
    tpu.vector_store %arg14[%c64_128, %c0_129], %162 {strides = array<i32>} : memref<288x256xbf16, #tpu.memory_space<vmem>>, vector<32x256xbf16>,
    %c1_i32_130 = arith.constant 1 : i32
    %164 = tpu.dynamic_rotate %138 by %c1_i32_130 dim 1 : vector<32x256xf32>, i32 -> vector<32x256xf32>
    %c3_131 = arith.constant 3 : index
    %c0_132 = arith.constant 0 : index
    %c0_133 = arith.constant 0 : index
    %165 = vector.load %arg3[%c3_131, %c0_132, %c0_133] : memref<9x1x256xf32, #tpu.memory_space<vmem>>, vector<1x1x256xf32>
    %166 = vector.shape_cast %165 : vector<1x1x256xf32> to vector<1x256xf32>
    %167 = vector.broadcast %166 : vector<1x256xf32> to vector<32x256xf32>
    %168 = arith.mulf %164, %167 : vector<32x256xf32>
    %169 = arith.truncf %168 : vector<32x256xf32> to vector<32x256xbf16>
    %c96_134 = arith.constant 96 : index
    %c0_135 = arith.constant 0 : index
    %170 = vector.load %arg14[%c96_134, %c0_135] : memref<288x256xbf16, #tpu.memory_space<vmem>>, vector<32x256xbf16>
    tpu.vector_store %arg14[%c96_134, %c0_135], %169 {strides = array<i32>} : memref<288x256xbf16, #tpu.memory_space<vmem>>, vector<32x256xbf16>,
    %171 = arith.truncf %138 : vector<32x256xf32> to vector<32x256xbf16>
    %c128_136 = arith.constant 128 : index
    %c0_137 = arith.constant 0 : index
    %172 = vector.load %arg14[%c128_136, %c0_137] : memref<288x256xbf16, #tpu.memory_space<vmem>>, vector<32x256xbf16>
    tpu.vector_store %arg14[%c128_136, %c0_137], %171 {strides = array<i32>} : memref<288x256xbf16, #tpu.memory_space<vmem>>, vector<32x256xbf16>,
    %c255_i32_138 = arith.constant 255 : i32
    %173 = tpu.dynamic_rotate %138 by %c255_i32_138 dim 1 : vector<32x256xf32>, i32 -> vector<32x256xf32>
    %c5_139 = arith.constant 5 : index
    %c0_140 = arith.constant 0 : index
    %c0_141 = arith.constant 0 : index
    %174 = vector.load %arg3[%c5_139, %c0_140, %c0_141] : memref<9x1x256xf32, #tpu.memory_space<vmem>>, vector<1x1x256xf32>
    %175 = vector.shape_cast %174 : vector<1x1x256xf32> to vector<1x256xf32>
    %176 = vector.broadcast %175 : vector<1x256xf32> to vector<32x256xf32>
    %177 = arith.mulf %173, %176 : vector<32x256xf32>
    %178 = arith.truncf %177 : vector<32x256xf32> to vector<32x256xbf16>
    %c160_142 = arith.constant 160 : index
    %c0_143 = arith.constant 0 : index
    %179 = vector.load %arg14[%c160_142, %c0_143] : memref<288x256xbf16, #tpu.memory_space<vmem>>, vector<32x256xbf16>
    tpu.vector_store %arg14[%c160_142, %c0_143], %178 {strides = array<i32>} : memref<288x256xbf16, #tpu.memory_space<vmem>>, vector<32x256xbf16>,
    %c241_i32_144 = arith.constant 241 : i32
    %180 = tpu.dynamic_rotate %138 by %c241_i32_144 dim 1 : vector<32x256xf32>, i32 -> vector<32x256xf32>
    %c6_145 = arith.constant 6 : index
    %c0_146 = arith.constant 0 : index
    %c0_147 = arith.constant 0 : index
    %181 = vector.load %arg3[%c6_145, %c0_146, %c0_147] : memref<9x1x256xf32, #tpu.memory_space<vmem>>, vector<1x1x256xf32>
    %182 = vector.shape_cast %181 : vector<1x1x256xf32> to vector<1x256xf32>
    %183 = vector.broadcast %182 : vector<1x256xf32> to vector<32x256xf32>
    %184 = arith.mulf %180, %183 : vector<32x256xf32>
    %185 = arith.truncf %184 : vector<32x256xf32> to vector<32x256xbf16>
    %c192_148 = arith.constant 192 : index
    %c0_149 = arith.constant 0 : index
    %186 = vector.load %arg14[%c192_148, %c0_149] : memref<288x256xbf16, #tpu.memory_space<vmem>>, vector<32x256xbf16>
    tpu.vector_store %arg14[%c192_148, %c0_149], %185 {strides = array<i32>} : memref<288x256xbf16, #tpu.memory_space<vmem>>, vector<32x256xbf16>,
    %c240_i32_150 = arith.constant 240 : i32
    %187 = tpu.dynamic_rotate %138 by %c240_i32_150 dim 1 : vector<32x256xf32>, i32 -> vector<32x256xf32>
    %c7_151 = arith.constant 7 : index
    %c0_152 = arith.constant 0 : index
    %c0_153 = arith.constant 0 : index
    %188 = vector.load %arg3[%c7_151, %c0_152, %c0_153] : memref<9x1x256xf32, #tpu.memory_space<vmem>>, vector<1x1x256xf32>
    %189 = vector.shape_cast %188 : vector<1x1x256xf32> to vector<1x256xf32>
    %190 = vector.broadcast %189 : vector<1x256xf32> to vector<32x256xf32>
    %191 = arith.mulf %187, %190 : vector<32x256xf32>
    %192 = arith.truncf %191 : vector<32x256xf32> to vector<32x256xbf16>
    %c224_154 = arith.constant 224 : index
    %c0_155 = arith.constant 0 : index
    %193 = vector.load %arg14[%c224_154, %c0_155] : memref<288x256xbf16, #tpu.memory_space<vmem>>, vector<32x256xbf16>
    tpu.vector_store %arg14[%c224_154, %c0_155], %192 {strides = array<i32>} : memref<288x256xbf16, #tpu.memory_space<vmem>>, vector<32x256xbf16>,
    %c239_i32_156 = arith.constant 239 : i32
    %194 = tpu.dynamic_rotate %138 by %c239_i32_156 dim 1 : vector<32x256xf32>, i32 -> vector<32x256xf32>
    %c8_157 = arith.constant 8 : index
    %c0_158 = arith.constant 0 : index
    %c0_159 = arith.constant 0 : index
    %195 = vector.load %arg3[%c8_157, %c0_158, %c0_159] : memref<9x1x256xf32, #tpu.memory_space<vmem>>, vector<1x1x256xf32>
    %196 = vector.shape_cast %195 : vector<1x1x256xf32> to vector<1x256xf32>
    %197 = vector.broadcast %196 : vector<1x256xf32> to vector<32x256xf32>
    %198 = arith.mulf %194, %197 : vector<32x256xf32>
    %199 = arith.truncf %198 : vector<32x256xf32> to vector<32x256xbf16>
    %c256_160 = arith.constant 256 : index
    %c0_161 = arith.constant 0 : index
    %200 = vector.load %arg14[%c256_160, %c0_161] : memref<288x256xbf16, #tpu.memory_space<vmem>>, vector<32x256xbf16>
    tpu.vector_store %arg14[%c256_160, %c0_161], %199 {strides = array<i32>} : memref<288x256xbf16, #tpu.memory_space<vmem>>, vector<32x256xbf16>,
    %c0_162 = arith.constant 0 : index
    %c0_163 = arith.constant 0 : index
    %201 = vector.load %arg14[%c0_162, %c0_163] : memref<288x256xbf16, #tpu.memory_space<vmem>>, vector<288x256xbf16>
    %cst_164 = arith.constant dense<0.000000e+00> : vector<32x256xf32>
    %202 = tpu.matmul %140, %201, %cst_164 {dimension_numbers = #tpu.dot_dimension_numbers<[1], [0], [0], [1], [0, 0, 1, 1], [], []>} : vector<32x288xbf16>, vector<288x256xbf16>, vector<32x256xf32> -> vector<32x256xf32>
    %203 = vector.broadcast %142 : vector<32x1xf32> to vector<32x256xf32>
    %204 = arith.addf %202, %203 : vector<32x256xf32>
    %cst_165 = arith.constant 0.000000e+00 : f32
    %205 = vector.broadcast %cst_165 : f32 to vector<32x256xf32>
    %206 = arith.maximumf %204, %205 : vector<32x256xf32>
    %c0_166 = arith.constant 0 : index
    %c3_167 = arith.constant 3 : index
    %c0_168 = arith.constant 0 : index
    %c0_169 = arith.constant 0 : index
    %207 = vector.load %arg4[%c0_166, %c3_167, %c0_168, %c0_169] : memref<2x4x32x288xbf16, #tpu.memory_space<vmem>>, vector<1x1x32x288xbf16>
    %208 = vector.shape_cast %207 : vector<1x1x32x288xbf16> to vector<32x288xbf16>
    %c0_170 = arith.constant 0 : index
    %c3_171 = arith.constant 3 : index
    %c0_172 = arith.constant 0 : index
    %c0_173 = arith.constant 0 : index
    %209 = vector.load %arg5[%c0_170, %c3_171, %c0_172, %c0_173] : memref<2x4x32x1xf32, #tpu.memory_space<vmem>>, vector<1x1x32x1xf32>
    %210 = vector.shape_cast %209 : vector<1x1x32x1xf32> to vector<32x1xf32>
    %c17_i32_174 = arith.constant 17 : i32
    %211 = tpu.dynamic_rotate %206 by %c17_i32_174 dim 1 : vector<32x256xf32>, i32 -> vector<32x256xf32>
    %c0_175 = arith.constant 0 : index
    %c0_176 = arith.constant 0 : index
    %c0_177 = arith.constant 0 : index
    %212 = vector.load %arg3[%c0_175, %c0_176, %c0_177] : memref<9x1x256xf32, #tpu.memory_space<vmem>>, vector<1x1x256xf32>
    %213 = vector.shape_cast %212 : vector<1x1x256xf32> to vector<1x256xf32>
    %214 = vector.broadcast %213 : vector<1x256xf32> to vector<32x256xf32>
    %215 = arith.mulf %211, %214 : vector<32x256xf32>
    %216 = arith.truncf %215 : vector<32x256xf32> to vector<32x256xbf16>
    %c0_178 = arith.constant 0 : index
    %c0_179 = arith.constant 0 : index
    %217 = vector.load %arg14[%c0_178, %c0_179] : memref<288x256xbf16, #tpu.memory_space<vmem>>, vector<32x256xbf16>
    tpu.vector_store %arg14[%c0_178, %c0_179], %216 {strides = array<i32>} : memref<288x256xbf16, #tpu.memory_space<vmem>>, vector<32x256xbf16>,
    %c16_i32_180 = arith.constant 16 : i32
    %218 = tpu.dynamic_rotate %206 by %c16_i32_180 dim 1 : vector<32x256xf32>, i32 -> vector<32x256xf32>
    %c1_181 = arith.constant 1 : index
    %c0_182 = arith.constant 0 : index
    %c0_183 = arith.constant 0 : index
    %219 = vector.load %arg3[%c1_181, %c0_182, %c0_183] : memref<9x1x256xf32, #tpu.memory_space<vmem>>, vector<1x1x256xf32>
    %220 = vector.shape_cast %219 : vector<1x1x256xf32> to vector<1x256xf32>
    %221 = vector.broadcast %220 : vector<1x256xf32> to vector<32x256xf32>
    %222 = arith.mulf %218, %221 : vector<32x256xf32>
    %223 = arith.truncf %222 : vector<32x256xf32> to vector<32x256xbf16>
    %c32_184 = arith.constant 32 : index
    %c0_185 = arith.constant 0 : index
    %224 = vector.load %arg14[%c32_184, %c0_185] : memref<288x256xbf16, #tpu.memory_space<vmem>>, vector<32x256xbf16>
    tpu.vector_store %arg14[%c32_184, %c0_185], %223 {strides = array<i32>} : memref<288x256xbf16, #tpu.memory_space<vmem>>, vector<32x256xbf16>,
    %c15_i32_186 = arith.constant 15 : i32
    %225 = tpu.dynamic_rotate %206 by %c15_i32_186 dim 1 : vector<32x256xf32>, i32 -> vector<32x256xf32>
    %c2_187 = arith.constant 2 : index
    %c0_188 = arith.constant 0 : index
    %c0_189 = arith.constant 0 : index
    %226 = vector.load %arg3[%c2_187, %c0_188, %c0_189] : memref<9x1x256xf32, #tpu.memory_space<vmem>>, vector<1x1x256xf32>
    %227 = vector.shape_cast %226 : vector<1x1x256xf32> to vector<1x256xf32>
    %228 = vector.broadcast %227 : vector<1x256xf32> to vector<32x256xf32>
    %229 = arith.mulf %225, %228 : vector<32x256xf32>
    %230 = arith.truncf %229 : vector<32x256xf32> to vector<32x256xbf16>
    %c64_190 = arith.constant 64 : index
    %c0_191 = arith.constant 0 : index
    %231 = vector.load %arg14[%c64_190, %c0_191] : memref<288x256xbf16, #tpu.memory_space<vmem>>, vector<32x256xbf16>
    tpu.vector_store %arg14[%c64_190, %c0_191], %230 {strides = array<i32>} : memref<288x256xbf16, #tpu.memory_space<vmem>>, vector<32x256xbf16>,
    %c1_i32_192 = arith.constant 1 : i32
    %232 = tpu.dynamic_rotate %206 by %c1_i32_192 dim 1 : vector<32x256xf32>, i32 -> vector<32x256xf32>
    %c3_193 = arith.constant 3 : index
    %c0_194 = arith.constant 0 : index
    %c0_195 = arith.constant 0 : index
    %233 = vector.load %arg3[%c3_193, %c0_194, %c0_195] : memref<9x1x256xf32, #tpu.memory_space<vmem>>, vector<1x1x256xf32>
    %234 = vector.shape_cast %233 : vector<1x1x256xf32> to vector<1x256xf32>
    %235 = vector.broadcast %234 : vector<1x256xf32> to vector<32x256xf32>
    %236 = arith.mulf %232, %235 : vector<32x256xf32>
    %237 = arith.truncf %236 : vector<32x256xf32> to vector<32x256xbf16>
    %c96_196 = arith.constant 96 : index
    %c0_197 = arith.constant 0 : index
    %238 = vector.load %arg14[%c96_196, %c0_197] : memref<288x256xbf16, #tpu.memory_space<vmem>>, vector<32x256xbf16>
    tpu.vector_store %arg14[%c96_196, %c0_197], %237 {strides = array<i32>} : memref<288x256xbf16, #tpu.memory_space<vmem>>, vector<32x256xbf16>,
    %239 = arith.truncf %206 : vector<32x256xf32> to vector<32x256xbf16>
    %c128_198 = arith.constant 128 : index
    %c0_199 = arith.constant 0 : index
    %240 = vector.load %arg14[%c128_198, %c0_199] : memref<288x256xbf16, #tpu.memory_space<vmem>>, vector<32x256xbf16>
    tpu.vector_store %arg14[%c128_198, %c0_199], %239 {strides = array<i32>} : memref<288x256xbf16, #tpu.memory_space<vmem>>, vector<32x256xbf16>,
    %c255_i32_200 = arith.constant 255 : i32
    %241 = tpu.dynamic_rotate %206 by %c255_i32_200 dim 1 : vector<32x256xf32>, i32 -> vector<32x256xf32>
    %c5_201 = arith.constant 5 : index
    %c0_202 = arith.constant 0 : index
    %c0_203 = arith.constant 0 : index
    %242 = vector.load %arg3[%c5_201, %c0_202, %c0_203] : memref<9x1x256xf32, #tpu.memory_space<vmem>>, vector<1x1x256xf32>
    %243 = vector.shape_cast %242 : vector<1x1x256xf32> to vector<1x256xf32>
    %244 = vector.broadcast %243 : vector<1x256xf32> to vector<32x256xf32>
    %245 = arith.mulf %241, %244 : vector<32x256xf32>
    %246 = arith.truncf %245 : vector<32x256xf32> to vector<32x256xbf16>
    %c160_204 = arith.constant 160 : index
    %c0_205 = arith.constant 0 : index
    %247 = vector.load %arg14[%c160_204, %c0_205] : memref<288x256xbf16, #tpu.memory_space<vmem>>, vector<32x256xbf16>
    tpu.vector_store %arg14[%c160_204, %c0_205], %246 {strides = array<i32>} : memref<288x256xbf16, #tpu.memory_space<vmem>>, vector<32x256xbf16>,
    %c241_i32_206 = arith.constant 241 : i32
    %248 = tpu.dynamic_rotate %206 by %c241_i32_206 dim 1 : vector<32x256xf32>, i32 -> vector<32x256xf32>
    %c6_207 = arith.constant 6 : index
    %c0_208 = arith.constant 0 : index
    %c0_209 = arith.constant 0 : index
    %249 = vector.load %arg3[%c6_207, %c0_208, %c0_209] : memref<9x1x256xf32, #tpu.memory_space<vmem>>, vector<1x1x256xf32>
    %250 = vector.shape_cast %249 : vector<1x1x256xf32> to vector<1x256xf32>
    %251 = vector.broadcast %250 : vector<1x256xf32> to vector<32x256xf32>
    %252 = arith.mulf %248, %251 : vector<32x256xf32>
    %253 = arith.truncf %252 : vector<32x256xf32> to vector<32x256xbf16>
    %c192_210 = arith.constant 192 : index
    %c0_211 = arith.constant 0 : index
    %254 = vector.load %arg14[%c192_210, %c0_211] : memref<288x256xbf16, #tpu.memory_space<vmem>>, vector<32x256xbf16>
    tpu.vector_store %arg14[%c192_210, %c0_211], %253 {strides = array<i32>} : memref<288x256xbf16, #tpu.memory_space<vmem>>, vector<32x256xbf16>,
    %c240_i32_212 = arith.constant 240 : i32
    %255 = tpu.dynamic_rotate %206 by %c240_i32_212 dim 1 : vector<32x256xf32>, i32 -> vector<32x256xf32>
    %c7_213 = arith.constant 7 : index
    %c0_214 = arith.constant 0 : index
    %c0_215 = arith.constant 0 : index
    %256 = vector.load %arg3[%c7_213, %c0_214, %c0_215] : memref<9x1x256xf32, #tpu.memory_space<vmem>>, vector<1x1x256xf32>
    %257 = vector.shape_cast %256 : vector<1x1x256xf32> to vector<1x256xf32>
    %258 = vector.broadcast %257 : vector<1x256xf32> to vector<32x256xf32>
    %259 = arith.mulf %255, %258 : vector<32x256xf32>
    %260 = arith.truncf %259 : vector<32x256xf32> to vector<32x256xbf16>
    %c224_216 = arith.constant 224 : index
    %c0_217 = arith.constant 0 : index
    %261 = vector.load %arg14[%c224_216, %c0_217] : memref<288x256xbf16, #tpu.memory_space<vmem>>, vector<32x256xbf16>
    tpu.vector_store %arg14[%c224_216, %c0_217], %260 {strides = array<i32>} : memref<288x256xbf16, #tpu.memory_space<vmem>>, vector<32x256xbf16>,
    %c239_i32_218 = arith.constant 239 : i32
    %262 = tpu.dynamic_rotate %206 by %c239_i32_218 dim 1 : vector<32x256xf32>, i32 -> vector<32x256xf32>
    %c8_219 = arith.constant 8 : index
    %c0_220 = arith.constant 0 : index
    %c0_221 = arith.constant 0 : index
    %263 = vector.load %arg3[%c8_219, %c0_220, %c0_221] : memref<9x1x256xf32, #tpu.memory_space<vmem>>, vector<1x1x256xf32>
    %264 = vector.shape_cast %263 : vector<1x1x256xf32> to vector<1x256xf32>
    %265 = vector.broadcast %264 : vector<1x256xf32> to vector<32x256xf32>
    %266 = arith.mulf %262, %265 : vector<32x256xf32>
    %267 = arith.truncf %266 : vector<32x256xf32> to vector<32x256xbf16>
    %c256_222 = arith.constant 256 : index
    %c0_223 = arith.constant 0 : index
    %268 = vector.load %arg14[%c256_222, %c0_223] : memref<288x256xbf16, #tpu.memory_space<vmem>>, vector<32x256xbf16>
    tpu.vector_store %arg14[%c256_222, %c0_223], %267 {strides = array<i32>} : memref<288x256xbf16, #tpu.memory_space<vmem>>, vector<32x256xbf16>,
    %c0_224 = arith.constant 0 : index
    %c0_225 = arith.constant 0 : index
    %269 = vector.load %arg14[%c0_224, %c0_225] : memref<288x256xbf16, #tpu.memory_space<vmem>>, vector<288x256xbf16>
    %cst_226 = arith.constant dense<0.000000e+00> : vector<32x256xf32>
    %270 = tpu.matmul %208, %269, %cst_226 {dimension_numbers = #tpu.dot_dimension_numbers<[1], [0], [0], [1], [0, 0, 1, 1], [], []>} : vector<32x288xbf16>, vector<288x256xbf16>, vector<32x256xf32> -> vector<32x256xf32>
    %271 = vector.broadcast %210 : vector<32x1xf32> to vector<32x256xf32>
    %272 = arith.addf %270, %271 : vector<32x256xf32>
    %cst_227 = arith.constant dense<0.000000e+00> : vector<32xf32>
    %273 = vector.multi_reduction <add>, %272, %cst_227 [1] : vector<32x256xf32> to vector<32xf32>
    %274 = vector.shape_cast %273 : vector<32xf32> to vector<32x1xf32>
    %cst_228 = arith.constant 2.560000e+02 : f32
    %275 = vector.broadcast %cst_228 : f32 to vector<32x1xf32>
    %276 = arith.divf %274, %275 : vector<32x1xf32>
    %c0_229 = arith.constant 0 : index
    %c0_230 = arith.constant 0 : index
    %c0_231 = arith.constant 0 : index
    %277 = vector.load %arg6[%c0_229, %c0_230, %c0_231] : memref<2x8x32xf32, #tpu.memory_space<vmem>>, vector<1x8x32xf32>
    %278 = vector.shape_cast %277 : vector<1x8x32xf32> to vector<8x32xf32>
    %cst_232 = arith.constant dense<0.000000e+00> : vector<8x1xf32>
    %279 = tpu.matmul %278, %276, %cst_232 {dimension_numbers = #tpu.dot_dimension_numbers<[1], [0], [0], [1], [0, 0, 1, 1], [], []>} : vector<8x32xf32>, vector<32x1xf32>, vector<8x1xf32> -> vector<8x1xf32>
    %c0_233 = arith.constant 0 : index
    %c0_234 = arith.constant 0 : index
    %c0_235 = arith.constant 0 : index
    %280 = vector.load %arg7[%c0_233, %c0_234, %c0_235] : memref<2x8x1xf32, #tpu.memory_space<vmem>>, vector<1x8x1xf32>
    %281 = vector.shape_cast %280 : vector<1x8x1xf32> to vector<8x1xf32>
    %282 = arith.addf %279, %281 : vector<8x1xf32>
    %cst_236 = arith.constant 0.000000e+00 : f32
    %283 = vector.broadcast %cst_236 : f32 to vector<8x1xf32>
    %284 = arith.maximumf %282, %283 : vector<8x1xf32>
    %c0_237 = arith.constant 0 : index
    %c0_238 = arith.constant 0 : index
    %c0_239 = arith.constant 0 : index
    %285 = vector.load %arg8[%c0_237, %c0_238, %c0_239] : memref<2x32x8xf32, #tpu.memory_space<vmem>>, vector<1x32x8xf32>
    %286 = vector.shape_cast %285 : vector<1x32x8xf32> to vector<32x8xf32>
    %cst_240 = arith.constant dense<0.000000e+00> : vector<32x1xf32>
    %287 = tpu.matmul %286, %284, %cst_240 {dimension_numbers = #tpu.dot_dimension_numbers<[1], [0], [0], [1], [0, 0, 1, 1], [], []>} : vector<32x8xf32>, vector<8x1xf32>, vector<32x1xf32> -> vector<32x1xf32>
    %c0_241 = arith.constant 0 : index
    %c0_242 = arith.constant 0 : index
    %c0_243 = arith.constant 0 : index
    %288 = vector.load %arg9[%c0_241, %c0_242, %c0_243] : memref<2x32x1xf32, #tpu.memory_space<vmem>>, vector<1x32x1xf32>
    %289 = vector.shape_cast %288 : vector<1x32x1xf32> to vector<32x1xf32>
    %290 = arith.addf %287, %289 : vector<32x1xf32>
    %291 = arith.negf %290 : vector<32x1xf32>
    %292 = math.exp %291 : vector<32x1xf32>
    %cst_244 = arith.constant 1.000000e+00 : f32
    %293 = vector.broadcast %cst_244 : f32 to vector<32x1xf32>
    %294 = arith.addf %293, %292 : vector<32x1xf32>
    %295 = arith.divf %293, %294 : vector<32x1xf32>
    %296 = vector.broadcast %295 : vector<32x1xf32> to vector<32x256xf32>
    %297 = arith.mulf %272, %296 : vector<32x256xf32>
    %298 = arith.addf %138, %297 : vector<32x256xf32>
    %c1_245 = arith.constant 1 : index
    %c0_246 = arith.constant 0 : index
    %c0_247 = arith.constant 0 : index
    %c0_248 = arith.constant 0 : index
    %299 = vector.load %arg4[%c1_245, %c0_246, %c0_247, %c0_248] : memref<2x4x32x288xbf16, #tpu.memory_space<vmem>>, vector<1x1x32x288xbf16>
    %300 = vector.shape_cast %299 : vector<1x1x32x288xbf16> to vector<32x288xbf16>
    %c1_249 = arith.constant 1 : index
    %c0_250 = arith.constant 0 : index
    %c0_251 = arith.constant 0 : index
    %c0_252 = arith.constant 0 : index
    %301 = vector.load %arg5[%c1_249, %c0_250, %c0_251, %c0_252] : memref<2x4x32x1xf32, #tpu.memory_space<vmem>>, vector<1x1x32x1xf32>
    %302 = vector.shape_cast %301 : vector<1x1x32x1xf32> to vector<32x1xf32>
    %c17_i32_253 = arith.constant 17 : i32
    %303 = tpu.dynamic_rotate %3 by %c17_i32_253 dim 1 : vector<32x256xf32>, i32 -> vector<32x256xf32>
    %c0_254 = arith.constant 0 : index
    %c0_255 = arith.constant 0 : index
    %c0_256 = arith.constant 0 : index
    %304 = vector.load %arg3[%c0_254, %c0_255, %c0_256] : memref<9x1x256xf32, #tpu.memory_space<vmem>>, vector<1x1x256xf32>
    %305 = vector.shape_cast %304 : vector<1x1x256xf32> to vector<1x256xf32>
    %306 = vector.broadcast %305 : vector<1x256xf32> to vector<32x256xf32>
    %307 = arith.mulf %303, %306 : vector<32x256xf32>
    %308 = arith.truncf %307 : vector<32x256xf32> to vector<32x256xbf16>
    %c0_257 = arith.constant 0 : index
    %c0_258 = arith.constant 0 : index
    %309 = vector.load %arg14[%c0_257, %c0_258] : memref<288x256xbf16, #tpu.memory_space<vmem>>, vector<32x256xbf16>
    tpu.vector_store %arg14[%c0_257, %c0_258], %308 {strides = array<i32>} : memref<288x256xbf16, #tpu.memory_space<vmem>>, vector<32x256xbf16>,
    %c16_i32_259 = arith.constant 16 : i32
    %310 = tpu.dynamic_rotate %3 by %c16_i32_259 dim 1 : vector<32x256xf32>, i32 -> vector<32x256xf32>
    %c1_260 = arith.constant 1 : index
    %c0_261 = arith.constant 0 : index
    %c0_262 = arith.constant 0 : index
    %311 = vector.load %arg3[%c1_260, %c0_261, %c0_262] : memref<9x1x256xf32, #tpu.memory_space<vmem>>, vector<1x1x256xf32>
    %312 = vector.shape_cast %311 : vector<1x1x256xf32> to vector<1x256xf32>
    %313 = vector.broadcast %312 : vector<1x256xf32> to vector<32x256xf32>
    %314 = arith.mulf %310, %313 : vector<32x256xf32>
    %315 = arith.truncf %314 : vector<32x256xf32> to vector<32x256xbf16>
    %c32_263 = arith.constant 32 : index
    %c0_264 = arith.constant 0 : index
    %316 = vector.load %arg14[%c32_263, %c0_264] : memref<288x256xbf16, #tpu.memory_space<vmem>>, vector<32x256xbf16>
    tpu.vector_store %arg14[%c32_263, %c0_264], %315 {strides = array<i32>} : memref<288x256xbf16, #tpu.memory_space<vmem>>, vector<32x256xbf16>,
    %c15_i32_265 = arith.constant 15 : i32
    %317 = tpu.dynamic_rotate %3 by %c15_i32_265 dim 1 : vector<32x256xf32>, i32 -> vector<32x256xf32>
    %c2_266 = arith.constant 2 : index
    %c0_267 = arith.constant 0 : index
    %c0_268 = arith.constant 0 : index
    %318 = vector.load %arg3[%c2_266, %c0_267, %c0_268] : memref<9x1x256xf32, #tpu.memory_space<vmem>>, vector<1x1x256xf32>
    %319 = vector.shape_cast %318 : vector<1x1x256xf32> to vector<1x256xf32>
    %320 = vector.broadcast %319 : vector<1x256xf32> to vector<32x256xf32>
    %321 = arith.mulf %317, %320 : vector<32x256xf32>
    %322 = arith.truncf %321 : vector<32x256xf32> to vector<32x256xbf16>
    %c64_269 = arith.constant 64 : index
    %c0_270 = arith.constant 0 : index
    %323 = vector.load %arg14[%c64_269, %c0_270] : memref<288x256xbf16, #tpu.memory_space<vmem>>, vector<32x256xbf16>
    tpu.vector_store %arg14[%c64_269, %c0_270], %322 {strides = array<i32>} : memref<288x256xbf16, #tpu.memory_space<vmem>>, vector<32x256xbf16>,
    %c1_i32_271 = arith.constant 1 : i32
    %324 = tpu.dynamic_rotate %3 by %c1_i32_271 dim 1 : vector<32x256xf32>, i32 -> vector<32x256xf32>
    %c3_272 = arith.constant 3 : index
    %c0_273 = arith.constant 0 : index
    %c0_274 = arith.constant 0 : index
    %325 = vector.load %arg3[%c3_272, %c0_273, %c0_274] : memref<9x1x256xf32, #tpu.memory_space<vmem>>, vector<1x1x256xf32>
    %326 = vector.shape_cast %325 : vector<1x1x256xf32> to vector<1x256xf32>
    %327 = vector.broadcast %326 : vector<1x256xf32> to vector<32x256xf32>
    %328 = arith.mulf %324, %327 : vector<32x256xf32>
    %329 = arith.truncf %328 : vector<32x256xf32> to vector<32x256xbf16>
    %c96_275 = arith.constant 96 : index
    %c0_276 = arith.constant 0 : index
    %330 = vector.load %arg14[%c96_275, %c0_276] : memref<288x256xbf16, #tpu.memory_space<vmem>>, vector<32x256xbf16>
    tpu.vector_store %arg14[%c96_275, %c0_276], %329 {strides = array<i32>} : memref<288x256xbf16, #tpu.memory_space<vmem>>, vector<32x256xbf16>,
    %331 = arith.truncf %3 : vector<32x256xf32> to vector<32x256xbf16>
    %c128_277 = arith.constant 128 : index
    %c0_278 = arith.constant 0 : index
    %332 = vector.load %arg14[%c128_277, %c0_278] : memref<288x256xbf16, #tpu.memory_space<vmem>>, vector<32x256xbf16>
    tpu.vector_store %arg14[%c128_277, %c0_278], %331 {strides = array<i32>} : memref<288x256xbf16, #tpu.memory_space<vmem>>, vector<32x256xbf16>,
    %c255_i32_279 = arith.constant 255 : i32
    %333 = tpu.dynamic_rotate %3 by %c255_i32_279 dim 1 : vector<32x256xf32>, i32 -> vector<32x256xf32>
    %c5_280 = arith.constant 5 : index
    %c0_281 = arith.constant 0 : index
    %c0_282 = arith.constant 0 : index
    %334 = vector.load %arg3[%c5_280, %c0_281, %c0_282] : memref<9x1x256xf32, #tpu.memory_space<vmem>>, vector<1x1x256xf32>
    %335 = vector.shape_cast %334 : vector<1x1x256xf32> to vector<1x256xf32>
    %336 = vector.broadcast %335 : vector<1x256xf32> to vector<32x256xf32>
    %337 = arith.mulf %333, %336 : vector<32x256xf32>
    %338 = arith.truncf %337 : vector<32x256xf32> to vector<32x256xbf16>
    %c160_283 = arith.constant 160 : index
    %c0_284 = arith.constant 0 : index
    %339 = vector.load %arg14[%c160_283, %c0_284] : memref<288x256xbf16, #tpu.memory_space<vmem>>, vector<32x256xbf16>
    tpu.vector_store %arg14[%c160_283, %c0_284], %338 {strides = array<i32>} : memref<288x256xbf16, #tpu.memory_space<vmem>>, vector<32x256xbf16>,
    %c241_i32_285 = arith.constant 241 : i32
    %340 = tpu.dynamic_rotate %3 by %c241_i32_285 dim 1 : vector<32x256xf32>, i32 -> vector<32x256xf32>
    %c6_286 = arith.constant 6 : index
    %c0_287 = arith.constant 0 : index
    %c0_288 = arith.constant 0 : index
    %341 = vector.load %arg3[%c6_286, %c0_287, %c0_288] : memref<9x1x256xf32, #tpu.memory_space<vmem>>, vector<1x1x256xf32>
    %342 = vector.shape_cast %341 : vector<1x1x256xf32> to vector<1x256xf32>
    %343 = vector.broadcast %342 : vector<1x256xf32> to vector<32x256xf32>
    %344 = arith.mulf %340, %343 : vector<32x256xf32>
    %345 = arith.truncf %344 : vector<32x256xf32> to vector<32x256xbf16>
    %c192_289 = arith.constant 192 : index
    %c0_290 = arith.constant 0 : index
    %346 = vector.load %arg14[%c192_289, %c0_290] : memref<288x256xbf16, #tpu.memory_space<vmem>>, vector<32x256xbf16>
    tpu.vector_store %arg14[%c192_289, %c0_290], %345 {strides = array<i32>} : memref<288x256xbf16, #tpu.memory_space<vmem>>, vector<32x256xbf16>,
    %c240_i32_291 = arith.constant 240 : i32
    %347 = tpu.dynamic_rotate %3 by %c240_i32_291 dim 1 : vector<32x256xf32>, i32 -> vector<32x256xf32>
    %c7_292 = arith.constant 7 : index
    %c0_293 = arith.constant 0 : index
    %c0_294 = arith.constant 0 : index
    %348 = vector.load %arg3[%c7_292, %c0_293, %c0_294] : memref<9x1x256xf32, #tpu.memory_space<vmem>>, vector<1x1x256xf32>
    %349 = vector.shape_cast %348 : vector<1x1x256xf32> to vector<1x256xf32>
    %350 = vector.broadcast %349 : vector<1x256xf32> to vector<32x256xf32>
    %351 = arith.mulf %347, %350 : vector<32x256xf32>
    %352 = arith.truncf %351 : vector<32x256xf32> to vector<32x256xbf16>
    %c224_295 = arith.constant 224 : index
    %c0_296 = arith.constant 0 : index
    %353 = vector.load %arg14[%c224_295, %c0_296] : memref<288x256xbf16, #tpu.memory_space<vmem>>, vector<32x256xbf16>
    tpu.vector_store %arg14[%c224_295, %c0_296], %352 {strides = array<i32>} : memref<288x256xbf16, #tpu.memory_space<vmem>>, vector<32x256xbf16>,
    %c239_i32_297 = arith.constant 239 : i32
    %354 = tpu.dynamic_rotate %3 by %c239_i32_297 dim 1 : vector<32x256xf32>, i32 -> vector<32x256xf32>
    %c8_298 = arith.constant 8 : index
    %c0_299 = arith.constant 0 : index
    %c0_300 = arith.constant 0 : index
    %355 = vector.load %arg3[%c8_298, %c0_299, %c0_300] : memref<9x1x256xf32, #tpu.memory_space<vmem>>, vector<1x1x256xf32>
    %356 = vector.shape_cast %355 : vector<1x1x256xf32> to vector<1x256xf32>
    %357 = vector.broadcast %356 : vector<1x256xf32> to vector<32x256xf32>
    %358 = arith.mulf %354, %357 : vector<32x256xf32>
    %359 = arith.truncf %358 : vector<32x256xf32> to vector<32x256xbf16>
    %c256_301 = arith.constant 256 : index
    %c0_302 = arith.constant 0 : index
    %360 = vector.load %arg14[%c256_301, %c0_302] : memref<288x256xbf16, #tpu.memory_space<vmem>>, vector<32x256xbf16>
    tpu.vector_store %arg14[%c256_301, %c0_302], %359 {strides = array<i32>} : memref<288x256xbf16, #tpu.memory_space<vmem>>, vector<32x256xbf16>,
    %c0_303 = arith.constant 0 : index
    %c0_304 = arith.constant 0 : index
    %361 = vector.load %arg14[%c0_303, %c0_304] : memref<288x256xbf16, #tpu.memory_space<vmem>>, vector<288x256xbf16>
    %cst_305 = arith.constant dense<0.000000e+00> : vector<32x256xf32>
    %362 = tpu.matmul %300, %361, %cst_305 {dimension_numbers = #tpu.dot_dimension_numbers<[1], [0], [0], [1], [0, 0, 1, 1], [], []>} : vector<32x288xbf16>, vector<288x256xbf16>, vector<32x256xf32> -> vector<32x256xf32>
    %363 = vector.broadcast %302 : vector<32x1xf32> to vector<32x256xf32>
    %364 = arith.addf %362, %363 : vector<32x256xf32>
    %cst_306 = arith.constant 0.000000e+00 : f32
    %365 = vector.broadcast %cst_306 : f32 to vector<32x256xf32>
    %366 = arith.maximumf %364, %365 : vector<32x256xf32>
    %c1_307 = arith.constant 1 : index
    %c1_308 = arith.constant 1 : index
    %c0_309 = arith.constant 0 : index
    %c0_310 = arith.constant 0 : index
    %367 = vector.load %arg4[%c1_307, %c1_308, %c0_309, %c0_310] : memref<2x4x32x288xbf16, #tpu.memory_space<vmem>>, vector<1x1x32x288xbf16>
    %368 = vector.shape_cast %367 : vector<1x1x32x288xbf16> to vector<32x288xbf16>
    %c1_311 = arith.constant 1 : index
    %c1_312 = arith.constant 1 : index
    %c0_313 = arith.constant 0 : index
    %c0_314 = arith.constant 0 : index
    %369 = vector.load %arg5[%c1_311, %c1_312, %c0_313, %c0_314] : memref<2x4x32x1xf32, #tpu.memory_space<vmem>>, vector<1x1x32x1xf32>
    %370 = vector.shape_cast %369 : vector<1x1x32x1xf32> to vector<32x1xf32>
    %c17_i32_315 = arith.constant 17 : i32
    %371 = tpu.dynamic_rotate %366 by %c17_i32_315 dim 1 : vector<32x256xf32>, i32 -> vector<32x256xf32>
    %c0_316 = arith.constant 0 : index
    %c0_317 = arith.constant 0 : index
    %c0_318 = arith.constant 0 : index
    %372 = vector.load %arg3[%c0_316, %c0_317, %c0_318] : memref<9x1x256xf32, #tpu.memory_space<vmem>>, vector<1x1x256xf32>
    %373 = vector.shape_cast %372 : vector<1x1x256xf32> to vector<1x256xf32>
    %374 = vector.broadcast %373 : vector<1x256xf32> to vector<32x256xf32>
    %375 = arith.mulf %371, %374 : vector<32x256xf32>
    %376 = arith.truncf %375 : vector<32x256xf32> to vector<32x256xbf16>
    %c0_319 = arith.constant 0 : index
    %c0_320 = arith.constant 0 : index
    %377 = vector.load %arg14[%c0_319, %c0_320] : memref<288x256xbf16, #tpu.memory_space<vmem>>, vector<32x256xbf16>
    tpu.vector_store %arg14[%c0_319, %c0_320], %376 {strides = array<i32>} : memref<288x256xbf16, #tpu.memory_space<vmem>>, vector<32x256xbf16>,
    %c16_i32_321 = arith.constant 16 : i32
    %378 = tpu.dynamic_rotate %366 by %c16_i32_321 dim 1 : vector<32x256xf32>, i32 -> vector<32x256xf32>
    %c1_322 = arith.constant 1 : index
    %c0_323 = arith.constant 0 : index
    %c0_324 = arith.constant 0 : index
    %379 = vector.load %arg3[%c1_322, %c0_323, %c0_324] : memref<9x1x256xf32, #tpu.memory_space<vmem>>, vector<1x1x256xf32>
    %380 = vector.shape_cast %379 : vector<1x1x256xf32> to vector<1x256xf32>
    %381 = vector.broadcast %380 : vector<1x256xf32> to vector<32x256xf32>
    %382 = arith.mulf %378, %381 : vector<32x256xf32>
    %383 = arith.truncf %382 : vector<32x256xf32> to vector<32x256xbf16>
    %c32_325 = arith.constant 32 : index
    %c0_326 = arith.constant 0 : index
    %384 = vector.load %arg14[%c32_325, %c0_326] : memref<288x256xbf16, #tpu.memory_space<vmem>>, vector<32x256xbf16>
    tpu.vector_store %arg14[%c32_325, %c0_326], %383 {strides = array<i32>} : memref<288x256xbf16, #tpu.memory_space<vmem>>, vector<32x256xbf16>,
    %c15_i32_327 = arith.constant 15 : i32
    %385 = tpu.dynamic_rotate %366 by %c15_i32_327 dim 1 : vector<32x256xf32>, i32 -> vector<32x256xf32>
    %c2_328 = arith.constant 2 : index
    %c0_329 = arith.constant 0 : index
    %c0_330 = arith.constant 0 : index
    %386 = vector.load %arg3[%c2_328, %c0_329, %c0_330] : memref<9x1x256xf32, #tpu.memory_space<vmem>>, vector<1x1x256xf32>
    %387 = vector.shape_cast %386 : vector<1x1x256xf32> to vector<1x256xf32>
    %388 = vector.broadcast %387 : vector<1x256xf32> to vector<32x256xf32>
    %389 = arith.mulf %385, %388 : vector<32x256xf32>
    %390 = arith.truncf %389 : vector<32x256xf32> to vector<32x256xbf16>
    %c64_331 = arith.constant 64 : index
    %c0_332 = arith.constant 0 : index
    %391 = vector.load %arg14[%c64_331, %c0_332] : memref<288x256xbf16, #tpu.memory_space<vmem>>, vector<32x256xbf16>
    tpu.vector_store %arg14[%c64_331, %c0_332], %390 {strides = array<i32>} : memref<288x256xbf16, #tpu.memory_space<vmem>>, vector<32x256xbf16>,
    %c1_i32_333 = arith.constant 1 : i32
    %392 = tpu.dynamic_rotate %366 by %c1_i32_333 dim 1 : vector<32x256xf32>, i32 -> vector<32x256xf32>
    %c3_334 = arith.constant 3 : index
    %c0_335 = arith.constant 0 : index
    %c0_336 = arith.constant 0 : index
    %393 = vector.load %arg3[%c3_334, %c0_335, %c0_336] : memref<9x1x256xf32, #tpu.memory_space<vmem>>, vector<1x1x256xf32>
    %394 = vector.shape_cast %393 : vector<1x1x256xf32> to vector<1x256xf32>
    %395 = vector.broadcast %394 : vector<1x256xf32> to vector<32x256xf32>
    %396 = arith.mulf %392, %395 : vector<32x256xf32>
    %397 = arith.truncf %396 : vector<32x256xf32> to vector<32x256xbf16>
    %c96_337 = arith.constant 96 : index
    %c0_338 = arith.constant 0 : index
    %398 = vector.load %arg14[%c96_337, %c0_338] : memref<288x256xbf16, #tpu.memory_space<vmem>>, vector<32x256xbf16>
    tpu.vector_store %arg14[%c96_337, %c0_338], %397 {strides = array<i32>} : memref<288x256xbf16, #tpu.memory_space<vmem>>, vector<32x256xbf16>,
    %399 = arith.truncf %366 : vector<32x256xf32> to vector<32x256xbf16>
    %c128_339 = arith.constant 128 : index
    %c0_340 = arith.constant 0 : index
    %400 = vector.load %arg14[%c128_339, %c0_340] : memref<288x256xbf16, #tpu.memory_space<vmem>>, vector<32x256xbf16>
    tpu.vector_store %arg14[%c128_339, %c0_340], %399 {strides = array<i32>} : memref<288x256xbf16, #tpu.memory_space<vmem>>, vector<32x256xbf16>,
    %c255_i32_341 = arith.constant 255 : i32
    %401 = tpu.dynamic_rotate %366 by %c255_i32_341 dim 1 : vector<32x256xf32>, i32 -> vector<32x256xf32>
    %c5_342 = arith.constant 5 : index
    %c0_343 = arith.constant 0 : index
    %c0_344 = arith.constant 0 : index
    %402 = vector.load %arg3[%c5_342, %c0_343, %c0_344] : memref<9x1x256xf32, #tpu.memory_space<vmem>>, vector<1x1x256xf32>
    %403 = vector.shape_cast %402 : vector<1x1x256xf32> to vector<1x256xf32>
    %404 = vector.broadcast %403 : vector<1x256xf32> to vector<32x256xf32>
    %405 = arith.mulf %401, %404 : vector<32x256xf32>
    %406 = arith.truncf %405 : vector<32x256xf32> to vector<32x256xbf16>
    %c160_345 = arith.constant 160 : index
    %c0_346 = arith.constant 0 : index
    %407 = vector.load %arg14[%c160_345, %c0_346] : memref<288x256xbf16, #tpu.memory_space<vmem>>, vector<32x256xbf16>
    tpu.vector_store %arg14[%c160_345, %c0_346], %406 {strides = array<i32>} : memref<288x256xbf16, #tpu.memory_space<vmem>>, vector<32x256xbf16>,
    %c241_i32_347 = arith.constant 241 : i32
    %408 = tpu.dynamic_rotate %366 by %c241_i32_347 dim 1 : vector<32x256xf32>, i32 -> vector<32x256xf32>
    %c6_348 = arith.constant 6 : index
    %c0_349 = arith.constant 0 : index
    %c0_350 = arith.constant 0 : index
    %409 = vector.load %arg3[%c6_348, %c0_349, %c0_350] : memref<9x1x256xf32, #tpu.memory_space<vmem>>, vector<1x1x256xf32>
    %410 = vector.shape_cast %409 : vector<1x1x256xf32> to vector<1x256xf32>
    %411 = vector.broadcast %410 : vector<1x256xf32> to vector<32x256xf32>
    %412 = arith.mulf %408, %411 : vector<32x256xf32>
    %413 = arith.truncf %412 : vector<32x256xf32> to vector<32x256xbf16>
    %c192_351 = arith.constant 192 : index
    %c0_352 = arith.constant 0 : index
    %414 = vector.load %arg14[%c192_351, %c0_352] : memref<288x256xbf16, #tpu.memory_space<vmem>>, vector<32x256xbf16>
    tpu.vector_store %arg14[%c192_351, %c0_352], %413 {strides = array<i32>} : memref<288x256xbf16, #tpu.memory_space<vmem>>, vector<32x256xbf16>,
    %c240_i32_353 = arith.constant 240 : i32
    %415 = tpu.dynamic_rotate %366 by %c240_i32_353 dim 1 : vector<32x256xf32>, i32 -> vector<32x256xf32>
    %c7_354 = arith.constant 7 : index
    %c0_355 = arith.constant 0 : index
    %c0_356 = arith.constant 0 : index
    %416 = vector.load %arg3[%c7_354, %c0_355, %c0_356] : memref<9x1x256xf32, #tpu.memory_space<vmem>>, vector<1x1x256xf32>
    %417 = vector.shape_cast %416 : vector<1x1x256xf32> to vector<1x256xf32>
    %418 = vector.broadcast %417 : vector<1x256xf32> to vector<32x256xf32>
    %419 = arith.mulf %415, %418 : vector<32x256xf32>
    %420 = arith.truncf %419 : vector<32x256xf32> to vector<32x256xbf16>
    %c224_357 = arith.constant 224 : index
    %c0_358 = arith.constant 0 : index
    %421 = vector.load %arg14[%c224_357, %c0_358] : memref<288x256xbf16, #tpu.memory_space<vmem>>, vector<32x256xbf16>
    tpu.vector_store %arg14[%c224_357, %c0_358], %420 {strides = array<i32>} : memref<288x256xbf16, #tpu.memory_space<vmem>>, vector<32x256xbf16>,
    %c239_i32_359 = arith.constant 239 : i32
    %422 = tpu.dynamic_rotate %366 by %c239_i32_359 dim 1 : vector<32x256xf32>, i32 -> vector<32x256xf32>
    %c8_360 = arith.constant 8 : index
    %c0_361 = arith.constant 0 : index
    %c0_362 = arith.constant 0 : index
    %423 = vector.load %arg3[%c8_360, %c0_361, %c0_362] : memref<9x1x256xf32, #tpu.memory_space<vmem>>, vector<1x1x256xf32>
    %424 = vector.shape_cast %423 : vector<1x1x256xf32> to vector<1x256xf32>
    %425 = vector.broadcast %424 : vector<1x256xf32> to vector<32x256xf32>
    %426 = arith.mulf %422, %425 : vector<32x256xf32>
    %427 = arith.truncf %426 : vector<32x256xf32> to vector<32x256xbf16>
    %c256_363 = arith.constant 256 : index
    %c0_364 = arith.constant 0 : index
    %428 = vector.load %arg14[%c256_363, %c0_364] : memref<288x256xbf16, #tpu.memory_space<vmem>>, vector<32x256xbf16>
    tpu.vector_store %arg14[%c256_363, %c0_364], %427 {strides = array<i32>} : memref<288x256xbf16, #tpu.memory_space<vmem>>, vector<32x256xbf16>,
    %c0_365 = arith.constant 0 : index
    %c0_366 = arith.constant 0 : index
    %429 = vector.load %arg14[%c0_365, %c0_366] : memref<288x256xbf16, #tpu.memory_space<vmem>>, vector<288x256xbf16>
    %cst_367 = arith.constant dense<0.000000e+00> : vector<32x256xf32>
    %430 = tpu.matmul %368, %429, %cst_367 {dimension_numbers = #tpu.dot_dimension_numbers<[1], [0], [0], [1], [0, 0, 1, 1], [], []>} : vector<32x288xbf16>, vector<288x256xbf16>, vector<32x256xf32> -> vector<32x256xf32>
    %431 = vector.broadcast %370 : vector<32x1xf32> to vector<32x256xf32>
    %432 = arith.addf %430, %431 : vector<32x256xf32>
    %433 = arith.addf %3, %432 : vector<32x256xf32>
    %c1_368 = arith.constant 1 : index
    %c2_369 = arith.constant 2 : index
    %c0_370 = arith.constant 0 : index
    %c0_371 = arith.constant 0 : index
    %434 = vector.load %arg4[%c1_368, %c2_369, %c0_370, %c0_371] : memref<2x4x32x288xbf16, #tpu.memory_space<vmem>>, vector<1x1x32x288xbf16>
    %435 = vector.shape_cast %434 : vector<1x1x32x288xbf16> to vector<32x288xbf16>
    %c1_372 = arith.constant 1 : index
    %c2_373 = arith.constant 2 : index
    %c0_374 = arith.constant 0 : index
    %c0_375 = arith.constant 0 : index
    %436 = vector.load %arg5[%c1_372, %c2_373, %c0_374, %c0_375] : memref<2x4x32x1xf32, #tpu.memory_space<vmem>>, vector<1x1x32x1xf32>
    %437 = vector.shape_cast %436 : vector<1x1x32x1xf32> to vector<32x1xf32>
    %c17_i32_376 = arith.constant 17 : i32
    %438 = tpu.dynamic_rotate %433 by %c17_i32_376 dim 1 : vector<32x256xf32>, i32 -> vector<32x256xf32>
    %c0_377 = arith.constant 0 : index
    %c0_378 = arith.constant 0 : index
    %c0_379 = arith.constant 0 : index
    %439 = vector.load %arg3[%c0_377, %c0_378, %c0_379] : memref<9x1x256xf32, #tpu.memory_space<vmem>>, vector<1x1x256xf32>
    %440 = vector.shape_cast %439 : vector<1x1x256xf32> to vector<1x256xf32>
    %441 = vector.broadcast %440 : vector<1x256xf32> to vector<32x256xf32>
    %442 = arith.mulf %438, %441 : vector<32x256xf32>
    %443 = arith.truncf %442 : vector<32x256xf32> to vector<32x256xbf16>
    %c0_380 = arith.constant 0 : index
    %c0_381 = arith.constant 0 : index
    %444 = vector.load %arg14[%c0_380, %c0_381] : memref<288x256xbf16, #tpu.memory_space<vmem>>, vector<32x256xbf16>
    tpu.vector_store %arg14[%c0_380, %c0_381], %443 {strides = array<i32>} : memref<288x256xbf16, #tpu.memory_space<vmem>>, vector<32x256xbf16>,
    %c16_i32_382 = arith.constant 16 : i32
    %445 = tpu.dynamic_rotate %433 by %c16_i32_382 dim 1 : vector<32x256xf32>, i32 -> vector<32x256xf32>
    %c1_383 = arith.constant 1 : index
    %c0_384 = arith.constant 0 : index
    %c0_385 = arith.constant 0 : index
    %446 = vector.load %arg3[%c1_383, %c0_384, %c0_385] : memref<9x1x256xf32, #tpu.memory_space<vmem>>, vector<1x1x256xf32>
    %447 = vector.shape_cast %446 : vector<1x1x256xf32> to vector<1x256xf32>
    %448 = vector.broadcast %447 : vector<1x256xf32> to vector<32x256xf32>
    %449 = arith.mulf %445, %448 : vector<32x256xf32>
    %450 = arith.truncf %449 : vector<32x256xf32> to vector<32x256xbf16>
    %c32_386 = arith.constant 32 : index
    %c0_387 = arith.constant 0 : index
    %451 = vector.load %arg14[%c32_386, %c0_387] : memref<288x256xbf16, #tpu.memory_space<vmem>>, vector<32x256xbf16>
    tpu.vector_store %arg14[%c32_386, %c0_387], %450 {strides = array<i32>} : memref<288x256xbf16, #tpu.memory_space<vmem>>, vector<32x256xbf16>,
    %c15_i32_388 = arith.constant 15 : i32
    %452 = tpu.dynamic_rotate %433 by %c15_i32_388 dim 1 : vector<32x256xf32>, i32 -> vector<32x256xf32>
    %c2_389 = arith.constant 2 : index
    %c0_390 = arith.constant 0 : index
    %c0_391 = arith.constant 0 : index
    %453 = vector.load %arg3[%c2_389, %c0_390, %c0_391] : memref<9x1x256xf32, #tpu.memory_space<vmem>>, vector<1x1x256xf32>
    %454 = vector.shape_cast %453 : vector<1x1x256xf32> to vector<1x256xf32>
    %455 = vector.broadcast %454 : vector<1x256xf32> to vector<32x256xf32>
    %456 = arith.mulf %452, %455 : vector<32x256xf32>
    %457 = arith.truncf %456 : vector<32x256xf32> to vector<32x256xbf16>
    %c64_392 = arith.constant 64 : index
    %c0_393 = arith.constant 0 : index
    %458 = vector.load %arg14[%c64_392, %c0_393] : memref<288x256xbf16, #tpu.memory_space<vmem>>, vector<32x256xbf16>
    tpu.vector_store %arg14[%c64_392, %c0_393], %457 {strides = array<i32>} : memref<288x256xbf16, #tpu.memory_space<vmem>>, vector<32x256xbf16>,
    %c1_i32_394 = arith.constant 1 : i32
    %459 = tpu.dynamic_rotate %433 by %c1_i32_394 dim 1 : vector<32x256xf32>, i32 -> vector<32x256xf32>
    %c3_395 = arith.constant 3 : index
    %c0_396 = arith.constant 0 : index
    %c0_397 = arith.constant 0 : index
    %460 = vector.load %arg3[%c3_395, %c0_396, %c0_397] : memref<9x1x256xf32, #tpu.memory_space<vmem>>, vector<1x1x256xf32>
    %461 = vector.shape_cast %460 : vector<1x1x256xf32> to vector<1x256xf32>
    %462 = vector.broadcast %461 : vector<1x256xf32> to vector<32x256xf32>
    %463 = arith.mulf %459, %462 : vector<32x256xf32>
    %464 = arith.truncf %463 : vector<32x256xf32> to vector<32x256xbf16>
    %c96_398 = arith.constant 96 : index
    %c0_399 = arith.constant 0 : index
    %465 = vector.load %arg14[%c96_398, %c0_399] : memref<288x256xbf16, #tpu.memory_space<vmem>>, vector<32x256xbf16>
    tpu.vector_store %arg14[%c96_398, %c0_399], %464 {strides = array<i32>} : memref<288x256xbf16, #tpu.memory_space<vmem>>, vector<32x256xbf16>,
    %466 = arith.truncf %433 : vector<32x256xf32> to vector<32x256xbf16>
    %c128_400 = arith.constant 128 : index
    %c0_401 = arith.constant 0 : index
    %467 = vector.load %arg14[%c128_400, %c0_401] : memref<288x256xbf16, #tpu.memory_space<vmem>>, vector<32x256xbf16>
    tpu.vector_store %arg14[%c128_400, %c0_401], %466 {strides = array<i32>} : memref<288x256xbf16, #tpu.memory_space<vmem>>, vector<32x256xbf16>,
    %c255_i32_402 = arith.constant 255 : i32
    %468 = tpu.dynamic_rotate %433 by %c255_i32_402 dim 1 : vector<32x256xf32>, i32 -> vector<32x256xf32>
    %c5_403 = arith.constant 5 : index
    %c0_404 = arith.constant 0 : index
    %c0_405 = arith.constant 0 : index
    %469 = vector.load %arg3[%c5_403, %c0_404, %c0_405] : memref<9x1x256xf32, #tpu.memory_space<vmem>>, vector<1x1x256xf32>
    %470 = vector.shape_cast %469 : vector<1x1x256xf32> to vector<1x256xf32>
    %471 = vector.broadcast %470 : vector<1x256xf32> to vector<32x256xf32>
    %472 = arith.mulf %468, %471 : vector<32x256xf32>
    %473 = arith.truncf %472 : vector<32x256xf32> to vector<32x256xbf16>
    %c160_406 = arith.constant 160 : index
    %c0_407 = arith.constant 0 : index
    %474 = vector.load %arg14[%c160_406, %c0_407] : memref<288x256xbf16, #tpu.memory_space<vmem>>, vector<32x256xbf16>
    tpu.vector_store %arg14[%c160_406, %c0_407], %473 {strides = array<i32>} : memref<288x256xbf16, #tpu.memory_space<vmem>>, vector<32x256xbf16>,
    %c241_i32_408 = arith.constant 241 : i32
    %475 = tpu.dynamic_rotate %433 by %c241_i32_408 dim 1 : vector<32x256xf32>, i32 -> vector<32x256xf32>
    %c6_409 = arith.constant 6 : index
    %c0_410 = arith.constant 0 : index
    %c0_411 = arith.constant 0 : index
    %476 = vector.load %arg3[%c6_409, %c0_410, %c0_411] : memref<9x1x256xf32, #tpu.memory_space<vmem>>, vector<1x1x256xf32>
    %477 = vector.shape_cast %476 : vector<1x1x256xf32> to vector<1x256xf32>
    %478 = vector.broadcast %477 : vector<1x256xf32> to vector<32x256xf32>
    %479 = arith.mulf %475, %478 : vector<32x256xf32>
    %480 = arith.truncf %479 : vector<32x256xf32> to vector<32x256xbf16>
    %c192_412 = arith.constant 192 : index
    %c0_413 = arith.constant 0 : index
    %481 = vector.load %arg14[%c192_412, %c0_413] : memref<288x256xbf16, #tpu.memory_space<vmem>>, vector<32x256xbf16>
    tpu.vector_store %arg14[%c192_412, %c0_413], %480 {strides = array<i32>} : memref<288x256xbf16, #tpu.memory_space<vmem>>, vector<32x256xbf16>,
    %c240_i32_414 = arith.constant 240 : i32
    %482 = tpu.dynamic_rotate %433 by %c240_i32_414 dim 1 : vector<32x256xf32>, i32 -> vector<32x256xf32>
    %c7_415 = arith.constant 7 : index
    %c0_416 = arith.constant 0 : index
    %c0_417 = arith.constant 0 : index
    %483 = vector.load %arg3[%c7_415, %c0_416, %c0_417] : memref<9x1x256xf32, #tpu.memory_space<vmem>>, vector<1x1x256xf32>
    %484 = vector.shape_cast %483 : vector<1x1x256xf32> to vector<1x256xf32>
    %485 = vector.broadcast %484 : vector<1x256xf32> to vector<32x256xf32>
    %486 = arith.mulf %482, %485 : vector<32x256xf32>
    %487 = arith.truncf %486 : vector<32x256xf32> to vector<32x256xbf16>
    %c224_418 = arith.constant 224 : index
    %c0_419 = arith.constant 0 : index
    %488 = vector.load %arg14[%c224_418, %c0_419] : memref<288x256xbf16, #tpu.memory_space<vmem>>, vector<32x256xbf16>
    tpu.vector_store %arg14[%c224_418, %c0_419], %487 {strides = array<i32>} : memref<288x256xbf16, #tpu.memory_space<vmem>>, vector<32x256xbf16>,
    %c239_i32_420 = arith.constant 239 : i32
    %489 = tpu.dynamic_rotate %433 by %c239_i32_420 dim 1 : vector<32x256xf32>, i32 -> vector<32x256xf32>
    %c8_421 = arith.constant 8 : index
    %c0_422 = arith.constant 0 : index
    %c0_423 = arith.constant 0 : index
    %490 = vector.load %arg3[%c8_421, %c0_422, %c0_423] : memref<9x1x256xf32, #tpu.memory_space<vmem>>, vector<1x1x256xf32>
    %491 = vector.shape_cast %490 : vector<1x1x256xf32> to vector<1x256xf32>
    %492 = vector.broadcast %491 : vector<1x256xf32> to vector<32x256xf32>
    %493 = arith.mulf %489, %492 : vector<32x256xf32>
    %494 = arith.truncf %493 : vector<32x256xf32> to vector<32x256xbf16>
    %c256_424 = arith.constant 256 : index
    %c0_425 = arith.constant 0 : index
    %495 = vector.load %arg14[%c256_424, %c0_425] : memref<288x256xbf16, #tpu.memory_space<vmem>>, vector<32x256xbf16>
    tpu.vector_store %arg14[%c256_424, %c0_425], %494 {strides = array<i32>} : memref<288x256xbf16, #tpu.memory_space<vmem>>, vector<32x256xbf16>,
    %c0_426 = arith.constant 0 : index
    %c0_427 = arith.constant 0 : index
    %496 = vector.load %arg14[%c0_426, %c0_427] : memref<288x256xbf16, #tpu.memory_space<vmem>>, vector<288x256xbf16>
    %cst_428 = arith.constant dense<0.000000e+00> : vector<32x256xf32>
    %497 = tpu.matmul %435, %496, %cst_428 {dimension_numbers = #tpu.dot_dimension_numbers<[1], [0], [0], [1], [0, 0, 1, 1], [], []>} : vector<32x288xbf16>, vector<288x256xbf16>, vector<32x256xf32> -> vector<32x256xf32>
    %498 = vector.broadcast %437 : vector<32x1xf32> to vector<32x256xf32>
    %499 = arith.addf %497, %498 : vector<32x256xf32>
    %cst_429 = arith.constant 0.000000e+00 : f32
    %500 = vector.broadcast %cst_429 : f32 to vector<32x256xf32>
    %501 = arith.maximumf %499, %500 : vector<32x256xf32>
    %c1_430 = arith.constant 1 : index
    %c3_431 = arith.constant 3 : index
    %c0_432 = arith.constant 0 : index
    %c0_433 = arith.constant 0 : index
    %502 = vector.load %arg4[%c1_430, %c3_431, %c0_432, %c0_433] : memref<2x4x32x288xbf16, #tpu.memory_space<vmem>>, vector<1x1x32x288xbf16>
    %503 = vector.shape_cast %502 : vector<1x1x32x288xbf16> to vector<32x288xbf16>
    %c1_434 = arith.constant 1 : index
    %c3_435 = arith.constant 3 : index
    %c0_436 = arith.constant 0 : index
    %c0_437 = arith.constant 0 : index
    %504 = vector.load %arg5[%c1_434, %c3_435, %c0_436, %c0_437] : memref<2x4x32x1xf32, #tpu.memory_space<vmem>>, vector<1x1x32x1xf32>
    %505 = vector.shape_cast %504 : vector<1x1x32x1xf32> to vector<32x1xf32>
    %c17_i32_438 = arith.constant 17 : i32
    %506 = tpu.dynamic_rotate %501 by %c17_i32_438 dim 1 : vector<32x256xf32>, i32 -> vector<32x256xf32>
    %c0_439 = arith.constant 0 : index
    %c0_440 = arith.constant 0 : index
    %c0_441 = arith.constant 0 : index
    %507 = vector.load %arg3[%c0_439, %c0_440, %c0_441] : memref<9x1x256xf32, #tpu.memory_space<vmem>>, vector<1x1x256xf32>
    %508 = vector.shape_cast %507 : vector<1x1x256xf32> to vector<1x256xf32>
    %509 = vector.broadcast %508 : vector<1x256xf32> to vector<32x256xf32>
    %510 = arith.mulf %506, %509 : vector<32x256xf32>
    %511 = arith.truncf %510 : vector<32x256xf32> to vector<32x256xbf16>
    %c0_442 = arith.constant 0 : index
    %c0_443 = arith.constant 0 : index
    %512 = vector.load %arg14[%c0_442, %c0_443] : memref<288x256xbf16, #tpu.memory_space<vmem>>, vector<32x256xbf16>
    tpu.vector_store %arg14[%c0_442, %c0_443], %511 {strides = array<i32>} : memref<288x256xbf16, #tpu.memory_space<vmem>>, vector<32x256xbf16>,
    %c16_i32_444 = arith.constant 16 : i32
    %513 = tpu.dynamic_rotate %501 by %c16_i32_444 dim 1 : vector<32x256xf32>, i32 -> vector<32x256xf32>
    %c1_445 = arith.constant 1 : index
    %c0_446 = arith.constant 0 : index
    %c0_447 = arith.constant 0 : index
    %514 = vector.load %arg3[%c1_445, %c0_446, %c0_447] : memref<9x1x256xf32, #tpu.memory_space<vmem>>, vector<1x1x256xf32>
    %515 = vector.shape_cast %514 : vector<1x1x256xf32> to vector<1x256xf32>
    %516 = vector.broadcast %515 : vector<1x256xf32> to vector<32x256xf32>
    %517 = arith.mulf %513, %516 : vector<32x256xf32>
    %518 = arith.truncf %517 : vector<32x256xf32> to vector<32x256xbf16>
    %c32_448 = arith.constant 32 : index
    %c0_449 = arith.constant 0 : index
    %519 = vector.load %arg14[%c32_448, %c0_449] : memref<288x256xbf16, #tpu.memory_space<vmem>>, vector<32x256xbf16>
    tpu.vector_store %arg14[%c32_448, %c0_449], %518 {strides = array<i32>} : memref<288x256xbf16, #tpu.memory_space<vmem>>, vector<32x256xbf16>,
    %c15_i32_450 = arith.constant 15 : i32
    %520 = tpu.dynamic_rotate %501 by %c15_i32_450 dim 1 : vector<32x256xf32>, i32 -> vector<32x256xf32>
    %c2_451 = arith.constant 2 : index
    %c0_452 = arith.constant 0 : index
    %c0_453 = arith.constant 0 : index
    %521 = vector.load %arg3[%c2_451, %c0_452, %c0_453] : memref<9x1x256xf32, #tpu.memory_space<vmem>>, vector<1x1x256xf32>
    %522 = vector.shape_cast %521 : vector<1x1x256xf32> to vector<1x256xf32>
    %523 = vector.broadcast %522 : vector<1x256xf32> to vector<32x256xf32>
    %524 = arith.mulf %520, %523 : vector<32x256xf32>
    %525 = arith.truncf %524 : vector<32x256xf32> to vector<32x256xbf16>
    %c64_454 = arith.constant 64 : index
    %c0_455 = arith.constant 0 : index
    %526 = vector.load %arg14[%c64_454, %c0_455] : memref<288x256xbf16, #tpu.memory_space<vmem>>, vector<32x256xbf16>
    tpu.vector_store %arg14[%c64_454, %c0_455], %525 {strides = array<i32>} : memref<288x256xbf16, #tpu.memory_space<vmem>>, vector<32x256xbf16>,
    %c1_i32_456 = arith.constant 1 : i32
    %527 = tpu.dynamic_rotate %501 by %c1_i32_456 dim 1 : vector<32x256xf32>, i32 -> vector<32x256xf32>
    %c3_457 = arith.constant 3 : index
    %c0_458 = arith.constant 0 : index
    %c0_459 = arith.constant 0 : index
    %528 = vector.load %arg3[%c3_457, %c0_458, %c0_459] : memref<9x1x256xf32, #tpu.memory_space<vmem>>, vector<1x1x256xf32>
    %529 = vector.shape_cast %528 : vector<1x1x256xf32> to vector<1x256xf32>
    %530 = vector.broadcast %529 : vector<1x256xf32> to vector<32x256xf32>
    %531 = arith.mulf %527, %530 : vector<32x256xf32>
    %532 = arith.truncf %531 : vector<32x256xf32> to vector<32x256xbf16>
    %c96_460 = arith.constant 96 : index
    %c0_461 = arith.constant 0 : index
    %533 = vector.load %arg14[%c96_460, %c0_461] : memref<288x256xbf16, #tpu.memory_space<vmem>>, vector<32x256xbf16>
    tpu.vector_store %arg14[%c96_460, %c0_461], %532 {strides = array<i32>} : memref<288x256xbf16, #tpu.memory_space<vmem>>, vector<32x256xbf16>,
    %534 = arith.truncf %501 : vector<32x256xf32> to vector<32x256xbf16>
    %c128_462 = arith.constant 128 : index
    %c0_463 = arith.constant 0 : index
    %535 = vector.load %arg14[%c128_462, %c0_463] : memref<288x256xbf16, #tpu.memory_space<vmem>>, vector<32x256xbf16>
    tpu.vector_store %arg14[%c128_462, %c0_463], %534 {strides = array<i32>} : memref<288x256xbf16, #tpu.memory_space<vmem>>, vector<32x256xbf16>,
    %c255_i32_464 = arith.constant 255 : i32
    %536 = tpu.dynamic_rotate %501 by %c255_i32_464 dim 1 : vector<32x256xf32>, i32 -> vector<32x256xf32>
    %c5_465 = arith.constant 5 : index
    %c0_466 = arith.constant 0 : index
    %c0_467 = arith.constant 0 : index
    %537 = vector.load %arg3[%c5_465, %c0_466, %c0_467] : memref<9x1x256xf32, #tpu.memory_space<vmem>>, vector<1x1x256xf32>
    %538 = vector.shape_cast %537 : vector<1x1x256xf32> to vector<1x256xf32>
    %539 = vector.broadcast %538 : vector<1x256xf32> to vector<32x256xf32>
    %540 = arith.mulf %536, %539 : vector<32x256xf32>
    %541 = arith.truncf %540 : vector<32x256xf32> to vector<32x256xbf16>
    %c160_468 = arith.constant 160 : index
    %c0_469 = arith.constant 0 : index
    %542 = vector.load %arg14[%c160_468, %c0_469] : memref<288x256xbf16, #tpu.memory_space<vmem>>, vector<32x256xbf16>
    tpu.vector_store %arg14[%c160_468, %c0_469], %541 {strides = array<i32>} : memref<288x256xbf16, #tpu.memory_space<vmem>>, vector<32x256xbf16>,
    %c241_i32_470 = arith.constant 241 : i32
    %543 = tpu.dynamic_rotate %501 by %c241_i32_470 dim 1 : vector<32x256xf32>, i32 -> vector<32x256xf32>
    %c6_471 = arith.constant 6 : index
    %c0_472 = arith.constant 0 : index
    %c0_473 = arith.constant 0 : index
    %544 = vector.load %arg3[%c6_471, %c0_472, %c0_473] : memref<9x1x256xf32, #tpu.memory_space<vmem>>, vector<1x1x256xf32>
    %545 = vector.shape_cast %544 : vector<1x1x256xf32> to vector<1x256xf32>
    %546 = vector.broadcast %545 : vector<1x256xf32> to vector<32x256xf32>
    %547 = arith.mulf %543, %546 : vector<32x256xf32>
    %548 = arith.truncf %547 : vector<32x256xf32> to vector<32x256xbf16>
    %c192_474 = arith.constant 192 : index
    %c0_475 = arith.constant 0 : index
    %549 = vector.load %arg14[%c192_474, %c0_475] : memref<288x256xbf16, #tpu.memory_space<vmem>>, vector<32x256xbf16>
    tpu.vector_store %arg14[%c192_474, %c0_475], %548 {strides = array<i32>} : memref<288x256xbf16, #tpu.memory_space<vmem>>, vector<32x256xbf16>,
    %c240_i32_476 = arith.constant 240 : i32
    %550 = tpu.dynamic_rotate %501 by %c240_i32_476 dim 1 : vector<32x256xf32>, i32 -> vector<32x256xf32>
    %c7_477 = arith.constant 7 : index
    %c0_478 = arith.constant 0 : index
    %c0_479 = arith.constant 0 : index
    %551 = vector.load %arg3[%c7_477, %c0_478, %c0_479] : memref<9x1x256xf32, #tpu.memory_space<vmem>>, vector<1x1x256xf32>
    %552 = vector.shape_cast %551 : vector<1x1x256xf32> to vector<1x256xf32>
    %553 = vector.broadcast %552 : vector<1x256xf32> to vector<32x256xf32>
    %554 = arith.mulf %550, %553 : vector<32x256xf32>
    %555 = arith.truncf %554 : vector<32x256xf32> to vector<32x256xbf16>
    %c224_480 = arith.constant 224 : index
    %c0_481 = arith.constant 0 : index
    %556 = vector.load %arg14[%c224_480, %c0_481] : memref<288x256xbf16, #tpu.memory_space<vmem>>, vector<32x256xbf16>
    tpu.vector_store %arg14[%c224_480, %c0_481], %555 {strides = array<i32>} : memref<288x256xbf16, #tpu.memory_space<vmem>>, vector<32x256xbf16>,
    %c239_i32_482 = arith.constant 239 : i32
    %557 = tpu.dynamic_rotate %501 by %c239_i32_482 dim 1 : vector<32x256xf32>, i32 -> vector<32x256xf32>
    %c8_483 = arith.constant 8 : index
    %c0_484 = arith.constant 0 : index
    %c0_485 = arith.constant 0 : index
    %558 = vector.load %arg3[%c8_483, %c0_484, %c0_485] : memref<9x1x256xf32, #tpu.memory_space<vmem>>, vector<1x1x256xf32>
    %559 = vector.shape_cast %558 : vector<1x1x256xf32> to vector<1x256xf32>
    %560 = vector.broadcast %559 : vector<1x256xf32> to vector<32x256xf32>
    %561 = arith.mulf %557, %560 : vector<32x256xf32>
    %562 = arith.truncf %561 : vector<32x256xf32> to vector<32x256xbf16>
    %c256_486 = arith.constant 256 : index
    %c0_487 = arith.constant 0 : index
    %563 = vector.load %arg14[%c256_486, %c0_487] : memref<288x256xbf16, #tpu.memory_space<vmem>>, vector<32x256xbf16>
    tpu.vector_store %arg14[%c256_486, %c0_487], %562 {strides = array<i32>} : memref<288x256xbf16, #tpu.memory_space<vmem>>, vector<32x256xbf16>,
    %c0_488 = arith.constant 0 : index
    %c0_489 = arith.constant 0 : index
    %564 = vector.load %arg14[%c0_488, %c0_489] : memref<288x256xbf16, #tpu.memory_space<vmem>>, vector<288x256xbf16>
    %cst_490 = arith.constant dense<0.000000e+00> : vector<32x256xf32>
    %565 = tpu.matmul %503, %564, %cst_490 {dimension_numbers = #tpu.dot_dimension_numbers<[1], [0], [0], [1], [0, 0, 1, 1], [], []>} : vector<32x288xbf16>, vector<288x256xbf16>, vector<32x256xf32> -> vector<32x256xf32>
    %566 = vector.broadcast %505 : vector<32x1xf32> to vector<32x256xf32>
    %567 = arith.addf %565, %566 : vector<32x256xf32>
    %cst_491 = arith.constant dense<0.000000e+00> : vector<32xf32>
    %568 = vector.multi_reduction <add>, %567, %cst_491 [1] : vector<32x256xf32> to vector<32xf32>
    %569 = vector.shape_cast %568 : vector<32xf32> to vector<32x1xf32>
    %cst_492 = arith.constant 2.560000e+02 : f32
    %570 = vector.broadcast %cst_492 : f32 to vector<32x1xf32>
    %571 = arith.divf %569, %570 : vector<32x1xf32>
    %c1_493 = arith.constant 1 : index
    %c0_494 = arith.constant 0 : index
    %c0_495 = arith.constant 0 : index
    %572 = vector.load %arg6[%c1_493, %c0_494, %c0_495] : memref<2x8x32xf32, #tpu.memory_space<vmem>>, vector<1x8x32xf32>
    %573 = vector.shape_cast %572 : vector<1x8x32xf32> to vector<8x32xf32>
    %cst_496 = arith.constant dense<0.000000e+00> : vector<8x1xf32>
    %574 = tpu.matmul %573, %571, %cst_496 {dimension_numbers = #tpu.dot_dimension_numbers<[1], [0], [0], [1], [0, 0, 1, 1], [], []>} : vector<8x32xf32>, vector<32x1xf32>, vector<8x1xf32> -> vector<8x1xf32>
    %c1_497 = arith.constant 1 : index
    %c0_498 = arith.constant 0 : index
    %c0_499 = arith.constant 0 : index
    %575 = vector.load %arg7[%c1_497, %c0_498, %c0_499] : memref<2x8x1xf32, #tpu.memory_space<vmem>>, vector<1x8x1xf32>
    %576 = vector.shape_cast %575 : vector<1x8x1xf32> to vector<8x1xf32>
    %577 = arith.addf %574, %576 : vector<8x1xf32>
    %cst_500 = arith.constant 0.000000e+00 : f32
    %578 = vector.broadcast %cst_500 : f32 to vector<8x1xf32>
    %579 = arith.maximumf %577, %578 : vector<8x1xf32>
    %c1_501 = arith.constant 1 : index
    %c0_502 = arith.constant 0 : index
    %c0_503 = arith.constant 0 : index
    %580 = vector.load %arg8[%c1_501, %c0_502, %c0_503] : memref<2x32x8xf32, #tpu.memory_space<vmem>>, vector<1x32x8xf32>
    %581 = vector.shape_cast %580 : vector<1x32x8xf32> to vector<32x8xf32>
    %cst_504 = arith.constant dense<0.000000e+00> : vector<32x1xf32>
    %582 = tpu.matmul %581, %579, %cst_504 {dimension_numbers = #tpu.dot_dimension_numbers<[1], [0], [0], [1], [0, 0, 1, 1], [], []>} : vector<32x8xf32>, vector<8x1xf32>, vector<32x1xf32> -> vector<32x1xf32>
    %c1_505 = arith.constant 1 : index
    %c0_506 = arith.constant 0 : index
    %c0_507 = arith.constant 0 : index
    %583 = vector.load %arg9[%c1_505, %c0_506, %c0_507] : memref<2x32x1xf32, #tpu.memory_space<vmem>>, vector<1x32x1xf32>
    %584 = vector.shape_cast %583 : vector<1x32x1xf32> to vector<32x1xf32>
    %585 = arith.addf %582, %584 : vector<32x1xf32>
    %586 = arith.negf %585 : vector<32x1xf32>
    %587 = math.exp %586 : vector<32x1xf32>
    %cst_508 = arith.constant 1.000000e+00 : f32
    %588 = vector.broadcast %cst_508 : f32 to vector<32x1xf32>
    %589 = arith.addf %588, %587 : vector<32x1xf32>
    %590 = arith.divf %588, %589 : vector<32x1xf32>
    %591 = vector.broadcast %590 : vector<32x1xf32> to vector<32x256xf32>
    %592 = arith.mulf %567, %591 : vector<32x256xf32>
    %593 = arith.addf %433, %592 : vector<32x256xf32>
    %c0_509 = arith.constant 0 : index
    %c0_510 = arith.constant 0 : index
    %c0_511 = arith.constant 0 : index
    %594 = vector.load %arg13[%c0_509, %c0_510, %c0_511] : memref<1x32x256xf32, #tpu.memory_space<vmem>>, vector<1x32x256xf32>
    %595 = vector.shape_cast %594 : vector<1x32x256xf32> to vector<32x256xf32>
    %596 = vector.shape_cast %593 : vector<32x256xf32> to vector<1x32x256xf32>
    tpu.vector_store %arg13[%c0_509, %c0_510, %c0_511], %596 {strides = array<i32>} : memref<1x32x256xf32, #tpu.memory_space<vmem>>, vector<1x32x256xf32>,
    %597 = arith.truncf %298 : vector<32x256xf32> to vector<32x256xbf16>
    %598 = arith.truncf %593 : vector<32x256xf32> to vector<32x256xbf16>
    %599 = tpu.concatenate %597, %598 in 0 : vector<32x256xbf16>, vector<32x256xbf16> -> vector<64x256xbf16>
    %c0_512 = arith.constant 0 : index
    %c0_513 = arith.constant 0 : index
    %600 = vector.load %arg10[%c0_512, %c0_513] : memref<96x64xbf16, #tpu.memory_space<vmem>>, vector<96x64xbf16>
    %cst_514 = arith.constant dense<0.000000e+00> : vector<96x256xf32>
    %601 = tpu.matmul %600, %599, %cst_514 {dimension_numbers = #tpu.dot_dimension_numbers<[1], [0], [0], [1], [0, 0, 1, 1], [], []>} : vector<96x64xbf16>, vector<64x256xbf16>, vector<96x256xf32> -> vector<96x256xf32>
    %602 = vector.extract_strided_slice %601 {offsets = [0, 0], sizes = [32, 256], strides = [1, 1]} : vector<96x256xf32> to vector<32x256xf32>
    %603 = arith.truncf %602 : vector<32x256xf32> to vector<32x256xbf16>
    %c0_515 = arith.constant 0 : index
    %c0_516 = arith.constant 0 : index
    %604 = vector.load %arg15[%c0_515, %c0_516] : memref<32x256xbf16, #tpu.memory_space<vmem>>, vector<32x256xbf16>
    tpu.vector_store %arg15[%c0_515, %c0_516], %603 {strides = array<i32>} : memref<32x256xbf16, #tpu.memory_space<vmem>>, vector<32x256xbf16>,
    %605 = vector.extract_strided_slice %601 {offsets = [32, 0], sizes = [32, 256], strides = [1, 1]} : vector<96x256xf32> to vector<32x256xf32>
    %606 = arith.truncf %605 : vector<32x256xf32> to vector<32x256xbf16>
    %c0_517 = arith.constant 0 : index
    %c0_518 = arith.constant 0 : index
    %607 = vector.load %arg16[%c0_517, %c0_518] : memref<32x256xbf16, #tpu.memory_space<vmem>>, vector<32x256xbf16>
    tpu.vector_store %arg16[%c0_517, %c0_518], %606 {strides = array<i32>} : memref<32x256xbf16, #tpu.memory_space<vmem>>, vector<32x256xbf16>,
    %608 = vector.extract_strided_slice %601 {offsets = [64, 0], sizes = [32, 256], strides = [1, 1]} : vector<96x256xf32> to vector<32x256xf32>
    %609 = arith.truncf %608 : vector<32x256xf32> to vector<32x256xbf16>
    %c0_519 = arith.constant 0 : index
    %c0_520 = arith.constant 0 : index
    %610 = vector.load %arg17[%c0_519, %c0_520] : memref<32x256xbf16, #tpu.memory_space<vmem>>, vector<32x256xbf16>
    tpu.vector_store %arg17[%c0_519, %c0_520], %609 {strides = array<i32>} : memref<32x256xbf16, #tpu.memory_space<vmem>>, vector<32x256xbf16>,
    %c0_i32 = arith.constant 0 : i32
    %c2_i32 = arith.constant 2 : i32
    %611 = arith.addi %c0_i32, %c2_i32 : i32
    %c1_i32_521 = arith.constant 1 : i32
    scf.for %arg19 = %c0_i32 to %611 step %c1_i32_521  : i32 {
      %c128_i32 = arith.constant 128 : i32
      %619 = arith.muli %arg19, %c128_i32 : i32
      %620 = tpu.assume_multiple %619, 128 : i32
      %c0_531 = arith.constant 0 : index
      %621 = arith.index_cast %620 : i32 to index
      %622 = vector.load %arg15[%c0_531, %621] : memref<32x256xbf16, #tpu.memory_space<vmem>>, vector<32x128xbf16>
      %c0_532 = arith.constant 0 : index
      %c0_533 = arith.constant 0 : index
      %623 = vector.load %arg16[%c0_532, %c0_533] : memref<32x256xbf16, #tpu.memory_space<vmem>>, vector<32x256xbf16>
      %cst_534 = arith.constant dense<0.000000e+00> : vector<128x256xf32>
      %624 = tpu.matmul %622, %623, %cst_534 {dimension_numbers = #tpu.dot_dimension_numbers<[0], [0], [1], [1], [0, 1, 1, 1], [], []>} : vector<32x128xbf16>, vector<32x256xbf16>, vector<128x256xf32> -> vector<128x256xf32>
      %cst_535 = arith.constant dense<0xFF800000> : vector<128xf32>
      %625 = vector.multi_reduction <maximumf>, %624, %cst_535 [1] : vector<128x256xf32> to vector<128xf32>
      %626 = vector.shape_cast %625 : vector<128xf32> to vector<128x1xf32>
      %627 = vector.broadcast %626 : vector<128x1xf32> to vector<128x256xf32>
      %628 = arith.subf %624, %627 : vector<128x256xf32>
      %629 = math.exp %628 : vector<128x256xf32>
      %cst_536 = arith.constant dense<0.000000e+00> : vector<128xf32>
      %630 = vector.multi_reduction <add>, %629, %cst_536 [1] : vector<128x256xf32> to vector<128xf32>
      %631 = vector.shape_cast %630 : vector<128xf32> to vector<128x1xf32>
      %632 = tpu.reciprocal %631 {approx = true} : vector<128x1xf32> -> vector<128x1xf32>
      %633 = vector.broadcast %632 : vector<128x1xf32> to vector<128x256xf32>
      %634 = arith.mulf %629, %633 : vector<128x256xf32>
      %c0_537 = arith.constant 0 : index
      %c0_538 = arith.constant 0 : index
      %635 = vector.load %arg17[%c0_537, %c0_538] : memref<32x256xbf16, #tpu.memory_space<vmem>>, vector<32x256xbf16>
      %636 = arith.truncf %634 : vector<128x256xf32> to vector<128x256xbf16>
      %cst_539 = arith.constant dense<0.000000e+00> : vector<32x128xf32>
      %637 = tpu.matmul %635, %636, %cst_539 {dimension_numbers = #tpu.dot_dimension_numbers<[1], [1], [0], [0], [0, 0, 1, 0], [], []>} : vector<32x256xbf16>, vector<128x256xbf16>, vector<32x128xf32> -> vector<32x128xf32>
      %638 = arith.truncf %637 : vector<32x128xf32> to vector<32x128xbf16>
      %c0_540 = arith.constant 0 : index
      %639 = arith.index_cast %620 : i32 to index
      %640 = vector.load %arg18[%c0_540, %639] : memref<32x256xbf16, #tpu.memory_space<vmem>>, vector<32x128xbf16>
      tpu.vector_store %arg18[%c0_540, %639], %638 {strides = array<i32>} : memref<32x256xbf16, #tpu.memory_space<vmem>>, vector<32x128xbf16>,
    }
    %c2_i32_522 = arith.constant 2 : i32
    %c0_523 = arith.constant 0 : index
    %c0_524 = arith.constant 0 : index
    %612 = vector.load %arg11[%c0_523, %c0_524] : memref<32x32xbf16, #tpu.memory_space<vmem>>, vector<32x32xbf16>
    %c0_525 = arith.constant 0 : index
    %c0_526 = arith.constant 0 : index
    %613 = vector.load %arg18[%c0_525, %c0_526] : memref<32x256xbf16, #tpu.memory_space<vmem>>, vector<32x256xbf16>
    %cst_527 = arith.constant dense<0.000000e+00> : vector<32x256xf32>
    %614 = tpu.matmul %612, %613, %cst_527 {dimension_numbers = #tpu.dot_dimension_numbers<[1], [0], [0], [1], [0, 0, 1, 1], [], []>} : vector<32x32xbf16>, vector<32x256xbf16>, vector<32x256xf32> -> vector<32x256xf32>
    %615 = arith.addf %298, %614 : vector<32x256xf32>
    %c0_528 = arith.constant 0 : index
    %c0_529 = arith.constant 0 : index
    %c0_530 = arith.constant 0 : index
    %616 = vector.load %arg12[%c0_528, %c0_529, %c0_530] : memref<1x32x256xf32, #tpu.memory_space<vmem>>, vector<1x32x256xf32>
    %617 = vector.shape_cast %616 : vector<1x32x256xf32> to vector<32x256xf32>
    %618 = vector.shape_cast %615 : vector<32x256xf32> to vector<1x32x256xf32>
    tpu.vector_store %arg12[%c0_528, %c0_529, %c0_530], %618 {strides = array<i32>} : memref<1x32x256xf32, #tpu.memory_space<vmem>>, vector<1x32x256xf32>,
    return
  }
  func.func @transform_0(%arg0: i32) -> (i32, i32, i32) {
    %c0_i32 = arith.constant 0 : i32
    %c0_i32_0 = arith.constant 0 : i32
    %c0_i32_1 = arith.constant 0 : i32
    return %arg0, %c0_i32, %c0_i32_0 : i32, i32, i32
  }
  func.func @transform_1(%arg0: i32) -> (i32, i32, i32) {
    %c0_i32 = arith.constant 0 : i32
    %c0_i32_0 = arith.constant 0 : i32
    %c0_i32_1 = arith.constant 0 : i32
    return %arg0, %c0_i32, %c0_i32_0 : i32, i32, i32
  }
  func.func @transform_2(%arg0: i32) -> (i32, i32, i32) {
    %c0_i32 = arith.constant 0 : i32
    %c0_i32_0 = arith.constant 0 : i32
    %c0_i32_1 = arith.constant 0 : i32
    %c0_i32_2 = arith.constant 0 : i32
    return %c0_i32, %c0_i32_0, %c0_i32_1 : i32, i32, i32
  }
  func.func @transform_3(%arg0: i32) -> (i32, i32, i32, i32) {
    %c0_i32 = arith.constant 0 : i32
    %c0_i32_0 = arith.constant 0 : i32
    %c0_i32_1 = arith.constant 0 : i32
    %c0_i32_2 = arith.constant 0 : i32
    %c0_i32_3 = arith.constant 0 : i32
    return %c0_i32, %c0_i32_0, %c0_i32_1, %c0_i32_2 : i32, i32, i32, i32
  }
  func.func @transform_4(%arg0: i32) -> (i32, i32, i32, i32) {
    %c0_i32 = arith.constant 0 : i32
    %c0_i32_0 = arith.constant 0 : i32
    %c0_i32_1 = arith.constant 0 : i32
    %c0_i32_2 = arith.constant 0 : i32
    %c0_i32_3 = arith.constant 0 : i32
    return %c0_i32, %c0_i32_0, %c0_i32_1, %c0_i32_2 : i32, i32, i32, i32
  }
  func.func @transform_5(%arg0: i32) -> (i32, i32, i32) {
    %c0_i32 = arith.constant 0 : i32
    %c0_i32_0 = arith.constant 0 : i32
    %c0_i32_1 = arith.constant 0 : i32
    %c0_i32_2 = arith.constant 0 : i32
    return %c0_i32, %c0_i32_0, %c0_i32_1 : i32, i32, i32
  }
  func.func @transform_6(%arg0: i32) -> (i32, i32, i32) {
    %c0_i32 = arith.constant 0 : i32
    %c0_i32_0 = arith.constant 0 : i32
    %c0_i32_1 = arith.constant 0 : i32
    %c0_i32_2 = arith.constant 0 : i32
    return %c0_i32, %c0_i32_0, %c0_i32_1 : i32, i32, i32
  }
  func.func @transform_7(%arg0: i32) -> (i32, i32, i32) {
    %c0_i32 = arith.constant 0 : i32
    %c0_i32_0 = arith.constant 0 : i32
    %c0_i32_1 = arith.constant 0 : i32
    %c0_i32_2 = arith.constant 0 : i32
    return %c0_i32, %c0_i32_0, %c0_i32_1 : i32, i32, i32
  }
  func.func @transform_8(%arg0: i32) -> (i32, i32, i32) {
    %c0_i32 = arith.constant 0 : i32
    %c0_i32_0 = arith.constant 0 : i32
    %c0_i32_1 = arith.constant 0 : i32
    %c0_i32_2 = arith.constant 0 : i32
    return %c0_i32, %c0_i32_0, %c0_i32_1 : i32, i32, i32
  }
  func.func @transform_9(%arg0: i32) -> (i32, i32) {
    %c0_i32 = arith.constant 0 : i32
    %c0_i32_0 = arith.constant 0 : i32
    %c0_i32_1 = arith.constant 0 : i32
    return %c0_i32, %c0_i32_0 : i32, i32
  }
  func.func @transform_10(%arg0: i32) -> (i32, i32) {
    %c0_i32 = arith.constant 0 : i32
    %c0_i32_0 = arith.constant 0 : i32
    %c0_i32_1 = arith.constant 0 : i32
    return %c0_i32, %c0_i32_0 : i32, i32
  }
  func.func @transform_11(%arg0: i32) -> (i32, i32, i32) {
    %c0_i32 = arith.constant 0 : i32
    %c0_i32_0 = arith.constant 0 : i32
    %c0_i32_1 = arith.constant 0 : i32
    return %arg0, %c0_i32, %c0_i32_0 : i32, i32, i32
  }
  func.func @transform_12(%arg0: i32) -> (i32, i32, i32) {
    %c0_i32 = arith.constant 0 : i32
    %c0_i32_0 = arith.constant 0 : i32
    %c0_i32_1 = arith.constant 0 : i32
    return %arg0, %c0_i32, %c0_i32_0 : i32, i32, i32
  }
}

</mosaic_0001>

<llo_original>
// kernel: sf_gpg_forward.1
$region0: #{sf_gpg_forward.1}
  #allocation0 [shape = 'u32[]', space=smem, size = 0x4, offset = 0x4, fixed_abs, tag = 'smem constant byte address 0x4 - core index']
  #allocation1 [shape = 'u32[144,128]{1,0:T(1,128)}', space=vmem, size = 0x12000, scoped, tag = 'internal scratch']
  #allocation2 [shape = 'bf16[288,256]{1,0:T(16,128)(2,1)}', space=vmem, size = 0x24000, scoped, tag = 'scratch operand']
  #allocation3 [shape = 'bf16[32,256]{1,0:T(16,128)(2,1)}', space=vmem, size = 0x4000, scoped, tag = 'scratch operand']
  #allocation4 [shape = 'bf16[32,256]{1,0:T(16,128)(2,1)}', space=vmem, size = 0x4000, scoped, tag = 'scratch operand']
  #allocation5 [shape = 'bf16[32,256]{1,0:T(16,128)(2,1)}', space=vmem, size = 0x4000, scoped, tag = 'scratch operand']
  #allocation6 [shape = 'bf16[32,256]{1,0:T(16,128)(2,1)}', space=vmem, size = 0x4000, scoped, tag = 'scratch operand']
  %s0 = inlined_call_operand.vmem [shape: f32[2,32,256], index: 0, kind: input, shape index: {}]
  %s1 = inlined_call_operand.vmem [shape: f32[2,32,256], index: 1, kind: input, shape index: {}]
  %s2 = inlined_call_operand.vmem [shape: f32[9,1,256], index: 2, kind: input, shape index: {}]
  %s3 = inlined_call_operand.vmem [shape: bf16[2,4,32,288], index: 3, kind: input, shape index: {}]
  %s4 = inlined_call_operand.vmem [shape: f32[2,4,32,1], index: 4, kind: input, shape index: {}]
  %s5 = inlined_call_operand.vmem [shape: f32[2,8,32], index: 5, kind: input, shape index: {}]
  %s6 = inlined_call_operand.vmem [shape: f32[2,8,1], index: 6, kind: input, shape index: {}]
  %s7 = inlined_call_operand.vmem [shape: f32[2,32,8], index: 7, kind: input, shape index: {}]
  %s8 = inlined_call_operand.vmem [shape: f32[2,32,1], index: 8, kind: input, shape index: {}]
  %s9 = inlined_call_operand.vmem [shape: bf16[96,64], index: 9, kind: input, shape index: {}]
  %s10 = inlined_call_operand.vmem [shape: bf16[32,32], index: 10, kind: input, shape index: {}]
  %s11 = inlined_call_operand.vmem [shape: f32[2,32,256], index: 11, kind: output, shape index: {0}]
  %s12 = inlined_call_operand.vmem [shape: f32[2,32,256], index: 12, kind: output, shape index: {1}]
  %13 = xla_tuple %s11, %s12
  %s14 = sld [smem:[#allocation0]]
  $region92: #{sf_gpg_forward.1} parent=0
    _
  %s16 = ssub.s32 1, %s14
  %s17 = scalar_select 0, %s16, %s14
  loop: start=0, step=1, limit=4
  $region2: #{sf_gpg_forward.1} parent=0 // loop_pre_header
    _
  $region3: #{sf_gpg_forward.1} parent=0 // loop_header
    %s19 = sphi 0, %s23
    %p20 = scmp.ge.s32.totalorder %s19, 4
    %s29 = sphi 0, %s31
    %s32 = sphi 0, %s29
    %s33 = sphi 0, %s32
    %s49 = sphi 0, %s33
    %s55 = sphi 0, %s57
    %s58 = sphi 0, %s55
    %s59 = sphi 0, %s58
    %s75 = sphi 0, %s59
    %s79 = sphi 0, %s79
    %s81 = sphi 0, %s79
    %s82 = sphi 0, %s81
    %s96 = sphi 0, %s82
    %s100 = sphi 0, %s100
    %s102 = sphi 0, %s100
    %s103 = sphi 0, %s102
    %s117 = sphi 0, %s103
    %s121 = sphi 0, %s121
    %s123 = sphi 0, %s121
    %s124 = sphi 0, %s123
    %s138 = sphi 0, %s124
    %s142 = sphi 0, %s142
    %s144 = sphi 0, %s142
    %s145 = sphi 0, %s144
    %s159 = sphi 0, %s145
    %s163 = sphi 0, %s163
    %s165 = sphi 0, %s163
    %s166 = sphi 0, %s165
    %s180 = sphi 0, %s166
    %s184 = sphi 0, %s184
    %s186 = sphi 0, %s184
    %s187 = sphi 0, %s186
    %s201 = sphi 0, %s187
    %s205 = sphi 0, %s205
    %s207 = sphi 0, %s205
    %s208 = sphi 0, %s207
    %s222 = sphi 0, %s208
    %s226 = sphi 0, %s226
    %s228 = sphi 0, %s226
    %s229 = sphi 0, %s228
    %s243 = sphi 0, %s229
    %s247 = sphi 0, %s247
    %s249 = sphi 0, %s247
    %s250 = sphi 0, %s249
    %s264 = sphi 0, %s250
    %s270 = sphi 0, %s272
    %s273 = sphi 0, %s270
    %s274 = sphi 0, %s273
    %s290 = sphi 0, %s274
    %s296 = sphi 0, %s298
    %s299 = sphi 0, %s296
    %s300 = sphi 0, %s299
    %s316 = sphi 0, %s300
  $region4: #{sf_gpg_forward.1} parent=0 // loop_header_branch
    %22 = sbr.rel (%p20) target = $region8
  $region5: #{sf_gpg_forward.1} parent=0 // loop_body
    %s24 = ssub.s32 %s19, 1
    %s25 = ssub.s32 %s19, 2
    %s26 = sadd.s32 %s19, 1
    %s27 = ssub.s32 %s19, %s26
    %p28 = scmp.eq.s32.totalorder %s27, 0
    %s30 = sadd.s32 %s29, 1
    %s31 = scalar_select %p28, %s29, %s30
    %p34 = pneg %p28
    %p35 = scmp.eq.s32.totalorder %s19, 1
    %p36 = por %p34, %p35
    %p37 = scmp.ne.s32.totalorder %s29, %s32
    %p38 = scmp.eq.s32.totalorder %s19, 0
    %p39 = por %p37, %p38
    %p40 = scmp.ne.s32.totalorder %s29, %s32
    %p41 = scmp.eq.s32.totalorder %s24, 1
    %p42 = por %p40, %p41
    %p43 = scmp.ne.s32.totalorder %s32, %s33
    %p44 = scmp.eq.s32.totalorder %s24, 0
    %p45 = por %p43, %p44
    %p46 = scmp.ne.s32.totalorder %s32, %s33
    %p47 = scmp.eq.s32.totalorder %s25, 1
    %p48 = por %p46, %p47
    %p50 = scmp.ne.s32.totalorder %s33, %s49
    %p51 = scmp.eq.s32.totalorder %s25, 0
    %p52 = por %p50, %p51
    %s53 = ssub.s32 %s19, %s26
    %p54 = scmp.eq.s32.totalorder %s53, 0
    %s56 = sadd.s32 %s55, 1
    %s57 = scalar_select %p54, %s55, %s56
    %p60 = pneg %p54
    %p61 = scmp.eq.s32.totalorder %s19, 1
    %p62 = por %p60, %p61
    %p63 = scmp.ne.s32.totalorder %s55, %s58
    %p64 = scmp.eq.s32.totalorder %s19, 0
    %p65 = por %p63, %p64
    %p66 = scmp.ne.s32.totalorder %s55, %s58
    %p67 = scmp.eq.s32.totalorder %s24, 1
    %p68 = por %p66, %p67
    %p69 = scmp.ne.s32.totalorder %s58, %s59
    %p70 = scmp.eq.s32.totalorder %s24, 0
    %p71 = por %p69, %p70
    %p72 = scmp.ne.s32.totalorder %s58, %s59
    %p73 = scmp.eq.s32.totalorder %s25, 1
    %p74 = por %p72, %p73
    %p76 = scmp.ne.s32.totalorder %s59, %s75
    %p77 = scmp.eq.s32.totalorder %s25, 0
    %p78 = por %p76, %p77
    %s80 = sadd.s32 %s79, 1
    %p83 = scmp.eq.s32.totalorder %s19, 1
    %p84 = scmp.ne.s32.totalorder %s79, %s81
    %p85 = scmp.eq.s32.totalorder %s19, 0
    %p86 = por %p84, %p85
    %p87 = scmp.ne.s32.totalorder %s79, %s81
    %p88 = scmp.eq.s32.totalorder %s24, 1
    %p89 = por %p87, %p88
    %p90 = scmp.ne.s32.totalorder %s81, %s82
    %p91 = scmp.eq.s32.totalorder %s24, 0
    %p92 = por %p90, %p91
    %p93 = scmp.ne.s32.totalorder %s81, %s82
    %p94 = scmp.eq.s32.totalorder %s25, 1
    %p95 = por %p93, %p94
    %p97 = scmp.ne.s32.totalorder %s82, %s96
    %p98 = scmp.eq.s32.totalorder %s25, 0
    %p99 = por %p97, %p98
    %s101 = sadd.s32 %s100, 1
    %p104 = scmp.eq.s32.totalorder %s19, 1
    %p105 = scmp.ne.s32.totalorder %s100, %s102
    %p106 = scmp.eq.s32.totalorder %s19, 0
    %p107 = por %p105, %p106
    %p108 = scmp.ne.s32.totalorder %s100, %s102
    %p109 = scmp.eq.s32.totalorder %s24, 1
    %p110 = por %p108, %p109
    %p111 = scmp.ne.s32.totalorder %s102, %s103
    %p112 = scmp.eq.s32.totalorder %s24, 0
    %p113 = por %p111, %p112
    %p114 = scmp.ne.s32.totalorder %s102, %s103
    %p115 = scmp.eq.s32.totalorder %s25, 1
    %p116 = por %p114, %p115
    %p118 = scmp.ne.s32.totalorder %s103, %s117
    %p119 = scmp.eq.s32.totalorder %s25, 0
    %p120 = por %p118, %p119
    %s122 = sadd.s32 %s121, 1
    %p125 = scmp.eq.s32.totalorder %s19, 1
    %p126 = scmp.ne.s32.totalorder %s121, %s123
    %p127 = scmp.eq.s32.totalorder %s19, 0
    %p128 = por %p126, %p127
    %p129 = scmp.ne.s32.totalorder %s121, %s123
    %p130 = scmp.eq.s32.totalorder %s24, 1
    %p131 = por %p129, %p130
    %p132 = scmp.ne.s32.totalorder %s123, %s124
    %p133 = scmp.eq.s32.totalorder %s24, 0
    %p134 = por %p132, %p133
    %p135 = scmp.ne.s32.totalorder %s123, %s124
    %p136 = scmp.eq.s32.totalorder %s25, 1
    %p137 = por %p135, %p136
    %p139 = scmp.ne.s32.totalorder %s124, %s138
    %p140 = scmp.eq.s32.totalorder %s25, 0
    %p141 = por %p139, %p140
    %s143 = sadd.s32 %s142, 1
    %p146 = scmp.eq.s32.totalorder %s19, 1
    %p147 = scmp.ne.s32.totalorder %s142, %s144
    %p148 = scmp.eq.s32.totalorder %s19, 0
    %p149 = por %p147, %p148
    %p150 = scmp.ne.s32.totalorder %s142, %s144
    %p151 = scmp.eq.s32.totalorder %s24, 1
    %p152 = por %p150, %p151
    %p153 = scmp.ne.s32.totalorder %s144, %s145
    %p154 = scmp.eq.s32.totalorder %s24, 0
    %p155 = por %p153, %p154
    %p156 = scmp.ne.s32.totalorder %s144, %s145
    %p157 = scmp.eq.s32.totalorder %s25, 1
    %p158 = por %p156, %p157
    %p160 = scmp.ne.s32.totalorder %s145, %s159
    %p161 = scmp.eq.s32.totalorder %s25, 0
    %p162 = por %p160, %p161
    %s164 = sadd.s32 %s163, 1
    %p167 = scmp.eq.s32.totalorder %s19, 1
    %p168 = scmp.ne.s32.totalorder %s163, %s165
    %p169 = scmp.eq.s32.totalorder %s19, 0
    %p170 = por %p168, %p169
    %p171 = scmp.ne.s32.totalorder %s163, %s165
    %p172 = scmp.eq.s32.totalorder %s24, 1
    %p173 = por %p171, %p172
    %p174 = scmp.ne.s32.totalorder %s165, %s166
    %p175 = scmp.eq.s32.totalorder %s24, 0
    %p176 = por %p174, %p175
    %p177 = scmp.ne.s32.totalorder %s165, %s166
    %p178 = scmp.eq.s32.totalorder %s25, 1
    %p179 = por %p177, %p178
    %p181 = scmp.ne.s32.totalorder %s166, %s180
    %p182 = scmp.eq.s32.totalorder %s25, 0
    %p183 = por %p181, %p182
    %s185 = sadd.s32 %s184, 1
    %p188 = scmp.eq.s32.totalorder %s19, 1
    %p189 = scmp.ne.s32.totalorder %s184, %s186
    %p190 = scmp.eq.s32.totalorder %s19, 0
    %p191 = por %p189, %p190
    %p192 = scmp.ne.s32.totalorder %s184, %s186
    %p193 = scmp.eq.s32.totalorder %s24, 1
    %p194 = por %p192, %p193
    %p195 = scmp.ne.s32.totalorder %s186, %s187
    %p196 = scmp.eq.s32.totalorder %s24, 0
    %p197 = por %p195, %p196
    %p198 = scmp.ne.s32.totalorder %s186, %s187
    %p199 = scmp.eq.s32.totalorder %s25, 1
    %p200 = por %p198, %p199
    %p202 = scmp.ne.s32.totalorder %s187, %s201
    %p203 = scmp.eq.s32.totalorder %s25, 0
    %p204 = por %p202, %p203
    %s206 = sadd.s32 %s205, 1
    %p209 = scmp.eq.s32.totalorder %s19, 1
    %p210 = scmp.ne.s32.totalorder %s205, %s207
    %p211 = scmp.eq.s32.totalorder %s19, 0
    %p212 = por %p210, %p211
    %p213 = scmp.ne.s32.totalorder %s205, %s207
    %p214 = scmp.eq.s32.totalorder %s24, 1
    %p215 = por %p213, %p214
    %p216 = scmp.ne.s32.totalorder %s207, %s208
    %p217 = scmp.eq.s32.totalorder %s24, 0
    %p218 = por %p216, %p217
    %p219 = scmp.ne.s32.totalorder %s207, %s208
    %p220 = scmp.eq.s32.totalorder %s25, 1
    %p221 = por %p219, %p220
    %p223 = scmp.ne.s32.totalorder %s208, %s222
    %p224 = scmp.eq.s32.totalorder %s25, 0
    %p225 = por %p223, %p224
    %s227 = sadd.s32 %s226, 1
    %p230 = scmp.eq.s32.totalorder %s19, 1
    %p231 = scmp.ne.s32.totalorder %s226, %s228
    %p232 = scmp.eq.s32.totalorder %s19, 0
    %p233 = por %p231, %p232
    %p234 = scmp.ne.s32.totalorder %s226, %s228
    %p235 = scmp.eq.s32.totalorder %s24, 1
    %p236 = por %p234, %p235
    %p237 = scmp.ne.s32.totalorder %s228, %s229
    %p238 = scmp.eq.s32.totalorder %s24, 0
    %p239 = por %p237, %p238
    %p240 = scmp.ne.s32.totalorder %s228, %s229
    %p241 = scmp.eq.s32.totalorder %s25, 1
    %p242 = por %p240, %p241
    %p244 = scmp.ne.s32.totalorder %s229, %s243
    %p245 = scmp.eq.s32.totalorder %s25, 0
    %p246 = por %p244, %p245
    %s248 = sadd.s32 %s247, 1
    %p251 = scmp.eq.s32.totalorder %s19, 1
    %p252 = scmp.ne.s32.totalorder %s247, %s249
    %p253 = scmp.eq.s32.totalorder %s19, 0
    %p254 = por %p252, %p253
    %p255 = scmp.ne.s32.totalorder %s247, %s249
    %p256 = scmp.eq.s32.totalorder %s24, 1
    %p257 = por %p255, %p256
    %p258 = scmp.ne.s32.totalorder %s249, %s250
    %p259 = scmp.eq.s32.totalorder %s24, 0
    %p260 = por %p258, %p259
    %p261 = scmp.ne.s32.totalorder %s249, %s250
    %p262 = scmp.eq.s32.totalorder %s25, 1
    %p263 = por %p261, %p262
    %p265 = scmp.ne.s32.totalorder %s250, %s264
    %p266 = scmp.eq.s32.totalorder %s25, 0
    %p267 = por %p265, %p266
    %s268 = ssub.s32 %s19, %s26
    %p269 = scmp.eq.s32.totalorder %s268, 0
    %s271 = sadd.s32 %s270, 1
    %s272 = scalar_select %p269, %s270, %s271
    %p275 = pneg %p269
    %p276 = scmp.eq.s32.totalorder %s19, 1
    %p277 = por %p275, %p276
    %p278 = scmp.ne.s32.totalorder %s270, %s273
    %p279 = scmp.eq.s32.totalorder %s19, 0
    %p280 = por %p278, %p279
    %p281 = scmp.ne.s32.totalorder %s270, %s273
    %p282 = scmp.eq.s32.totalorder %s24, 1
    %p283 = por %p281, %p282
    %p284 = scmp.ne.s32.totalorder %s273, %s274
    %p285 = scmp.eq.s32.totalorder %s24, 0
    %p286 = por %p284, %p285
    %p287 = scmp.ne.s32.totalorder %s273, %s274
    %p288 = scmp.eq.s32.totalorder %s25, 1
    %p289 = por %p287, %p288
    %p291 = scmp.ne.s32.totalorder %s274, %s290
    %p292 = scmp.eq.s32.totalorder %s25, 0
    %p293 = por %p291, %p292
    %s294 = ssub.s32 %s19, %s26
    %p295 = scmp.eq.s32.totalorder %s294, 0
    %s297 = sadd.s32 %s296, 1
    %s298 = scalar_select %p295, %s296, %s297
    %p301 = pneg %p295
    %p302 = scmp.eq.s32.totalorder %s19, 1
    %p303 = por %p301, %p302
    %p304 = scmp.ne.s32.totalorder %s296, %s299
    %p305 = scmp.eq.s32.totalorder %s19, 0
    %p306 = por %p304, %p305
    %p307 = scmp.ne.s32.totalorder %s296, %s299
    %p308 = scmp.eq.s32.totalorder %s24, 1
    %p309 = por %p307, %p308
    %p310 = scmp.ne.s32.totalorder %s299, %s300
    %p311 = scmp.eq.s32.totalorder %s24, 0
    %p312 = por %p310, %p311
    %p313 = scmp.ne.s32.totalorder %s299, %s300
    %p314 = scmp.eq.s32.totalorder %s25, 1
    %p315 = por %p313, %p314
    %p317 = scmp.ne.s32.totalorder %s300, %s316
    %p318 = scmp.eq.s32.totalorder %s25, 0
    %p319 = por %p317, %p318
    %p320 = scmp.le.s32.totalorder 1, %s19
    %p321 = scmp.lt.s32.totalorder %s19, 3
    %p322 = pnand %p320, %p321
    %p323 = pneg %p322
    // Predicated region
    $region9: #{sf_gpg_forward.1} parent=5 // pred_check
      _
    $region10: #{sf_gpg_forward.1} parent=5 // pred_check_branch
      %325 = sbr.rel (%p322) target = $region12
    $region11: #{sf_gpg_forward.1} parent=5 // pred_region
      %s326 = ssub.s32 %s19, 1
      // Predicated region
      $region13: #{sf_gpg_forward.1} parent=11 // pred_check
        %p327 = pneg %p92
      $region14: #{sf_gpg_forward.1} parent=11 // pred_check_branch
        %329 = sbr.rel (%p327) target = $region16
      $region15: #{sf_gpg_forward.1} parent=11 // pred_region
        _
      $region16: #{sf_gpg_forward.1} parent=11 // pred_fallthru
        _
      // Predicated region
      $region17: #{sf_gpg_forward.1} parent=11 // pred_check
        %p330 = pneg %p113
      $region18: #{sf_gpg_forward.1} parent=11 // pred_check_branch
        %332 = sbr.rel (%p330) target = $region20
      $region19: #{sf_gpg_forward.1} parent=11 // pred_region
        _
      $region20: #{sf_gpg_forward.1} parent=11 // pred_fallthru
        _
      // Predicated region
      $region21: #{sf_gpg_forward.1} parent=11 // pred_check
        %p333 = pneg %p134
      $region22: #{sf_gpg_forward.1} parent=11 // pred_check_branch
        %335 = sbr.rel (%p333) target = $region24
      $region23: #{sf_gpg_forward.1} parent=11 // pred_region
        _
      $region24: #{sf_gpg_forward.1} parent=11 // pred_fallthru
        _
      // Predicated region
      $region25: #{sf_gpg_forward.1} parent=11 // pred_check
        %p336 = pneg %p155
      $region26: #{sf_gpg_forward.1} parent=11 // pred_check_branch
        %338 = sbr.rel (%p336) target = $region28
      $region27: #{sf_gpg_forward.1} parent=11 // pred_region
        _
      $region28: #{sf_gpg_forward.1} parent=11 // pred_fallthru
        _
      // Predicated region
      $region29: #{sf_gpg_forward.1} parent=11 // pred_check
        %p339 = pneg %p176
      $region30: #{sf_gpg_forward.1} parent=11 // pred_check_branch
        %341 = sbr.rel (%p339) target = $region32
      $region31: #{sf_gpg_forward.1} parent=11 // pred_region
        _
      $region32: #{sf_gpg_forward.1} parent=11 // pred_fallthru
        _
      // Predicated region
      $region33: #{sf_gpg_forward.1} parent=11 // pred_check
        %p342 = pneg %p197
      $region34: #{sf_gpg_forward.1} parent=11 // pred_check_branch
        %344 = sbr.rel (%p342) target = $region36
      $region35: #{sf_gpg_forward.1} parent=11 // pred_region
        _
      $region36: #{sf_gpg_forward.1} parent=11 // pred_fallthru
        _
      // Predicated region
      $region37: #{sf_gpg_forward.1} parent=11 // pred_check
        %p345 = pneg %p218
      $region38: #{sf_gpg_forward.1} parent=11 // pred_check_branch
        %347 = sbr.rel (%p345) target = $region40
      $region39: #{sf_gpg_forward.1} parent=11 // pred_region
        _
      $region40: #{sf_gpg_forward.1} parent=11 // pred_fallthru
        _
      // Predicated region
      $region41: #{sf_gpg_forward.1} parent=11 // pred_check
        %p348 = pneg %p239
      $region42: #{sf_gpg_forward.1} parent=11 // pred_check_branch
        %350 = sbr.rel (%p348) target = $region44
      $region43: #{sf_gpg_forward.1} parent=11 // pred_region
        _
      $region44: #{sf_gpg_forward.1} parent=11 // pred_fallthru
        _
      // Predicated region
      $region45: #{sf_gpg_forward.1} parent=11 // pred_check
        %p351 = pneg %p260
      $region46: #{sf_gpg_forward.1} parent=11 // pred_check_branch
        %353 = sbr.rel (%p351) target = $region48
      $region47: #{sf_gpg_forward.1} parent=11 // pred_region
        _
      $region48: #{sf_gpg_forward.1} parent=11 // pred_fallthru
        _
    $region12: #{sf_gpg_forward.1} parent=5 // pred_fallthru
      _
    %p354 = scmp.lt.s32.totalorder %s19, 2
    // Predicated region
    $region49: #{sf_gpg_forward.1} parent=5 // pred_check
      %p355 = pneg %p354
    $region50: #{sf_gpg_forward.1} parent=5 // pred_check_branch
      %357 = sbr.rel (%p355) target = $region52
    $region51: #{sf_gpg_forward.1} parent=5 // pred_region
      // Predicated region
      $region53: #{sf_gpg_forward.1} parent=51 // pred_check
        %p358 = pneg %p39
      $region54: #{sf_gpg_forward.1} parent=51 // pred_check_branch
        %360 = sbr.rel (%p358) target = $region56
      $region55: #{sf_gpg_forward.1} parent=51 // pred_region
        %p361 = scmp.lt.s32.totalorder %s19, 1
        %s362 = scalar_select %p361, %s19, 1
        %s363 = smul.addr %s362, 8
        %s364 = smul.addr %s363, 8
        %s365 = scalar_lea.vmem %s0, %s364
      $region56: #{sf_gpg_forward.1} parent=51 // pred_fallthru
        _
      // Predicated region
      $region57: #{sf_gpg_forward.1} parent=51 // pred_check
        %p366 = pneg %p65
      $region58: #{sf_gpg_forward.1} parent=51 // pred_check_branch
        %368 = sbr.rel (%p366) target = $region60
      $region59: #{sf_gpg_forward.1} parent=51 // pred_region
        %p369 = scmp.lt.s32.totalorder %s19, 1
        %s370 = scalar_select %p369, %s19, 1
        %s371 = smul.addr %s370, 8
        %s372 = smul.addr %s371, 8
        %s373 = scalar_lea.vmem %s1, %s372
      $region60: #{sf_gpg_forward.1} parent=51 // pred_fallthru
        _
    $region52: #{sf_gpg_forward.1} parent=5 // pred_fallthru
      _
    %p374 = scmp.le.s32.totalorder 1, %s19
    %p375 = scmp.lt.s32.totalorder %s19, 3
    %p376 = pnand %p374, %p375
    %p377 = pneg %p376
    // Predicated region
    $region61: #{sf_gpg_forward.1} parent=5 // pred_check
      _
    $region62: #{sf_gpg_forward.1} parent=5 // pred_check_branch
      %379 = sbr.rel (%p376) target = $region64
    $region63: #{sf_gpg_forward.1} parent=5 // pred_region
      %s380 = ssub.s32 %s19, 1
      %p381 = scmp.lt.s32.totalorder %s24, 1
      %s382 = scalar_select %p381, %s24, 1
      %s383 = smul.addr %s382, 8
      %s384 = smul.addr %s383, 8
      %s385 = scalar_lea.vmem %s0, %s384
      %p386 = pneg %p45
      %p387 = pneg %p42
      %p388 = scmp.lt.s32.totalorder %s24, 1
      %s389 = scalar_select %p388, %s24, 1
      %s390 = smul.addr %s389, 8
      %s391 = smul.addr %s390, 8
      %s392 = scalar_lea.vmem %s1, %s391
      %p393 = pneg %p71
      %p394 = pneg %p68
      %p395 = pneg %p92
      %p396 = pneg %p89
      %p397 = pneg %p113
      %p398 = pneg %p110
      %p399 = pneg %p134
      %p400 = pneg %p131
      %p401 = pneg %p155
      %p402 = pneg %p152
      %p403 = pneg %p176
      %p404 = pneg %p173
      %p405 = pneg %p197
      %p406 = pneg %p194
      %p407 = pneg %p218
      %p408 = pneg %p215
      %p409 = pneg %p239
      %p410 = pneg %p236
      %p411 = pneg %p260
      %p412 = pneg %p257
      %p413 = pneg %p286
      %p414 = pneg %p283
      %p415 = scmp.lt.s32.totalorder %s24, 1
      %s416 = scalar_select %p415, %s24, 1
      %s417 = smul.addr %s416, 8
      %s418 = smul.addr %s417, 8
      %s419 = scalar_lea.vmem %s11, %s418
      %p420 = pneg %p312
      %p421 = pneg %p309
      %p422 = scmp.lt.s32.totalorder %s24, 1
      %s423 = scalar_select %p422, %s24, 1
      %s424 = smul.addr %s423, 8
      %s425 = smul.addr %s424, 8
      %s426 = scalar_lea.vmem %s12, %s425
      %p427 = scmp.lt.s32.totalorder %s24, 1
      %s428 = scalar_select %p427, %s24, 1
      %s429 = smul.addr %s428, 8
      %s430 = smul.addr %s429, 8
      %s431 = scalar_lea.vmem %s0, %s430
      %p432 = scmp.lt.s32.totalorder %s24, 1
      %s433 = scalar_select %p432, %s24, 1
      %s434 = smul.addr %s433, 8
      %s435 = smul.addr %s434, 8
      %s436 = scalar_lea.vmem %s1, %s435
      %p437 = scmp.lt.s32.totalorder %s24, 1
      %s438 = scalar_select %p437, %s24, 1
      %s439 = smul.addr %s438, 8
      %s440 = smul.addr %s439, 8
      %s441 = scalar_lea.vmem %s11, %s440
      %p442 = scmp.lt.s32.totalorder %s24, 1
      %s443 = scalar_select %p442, %s24, 1
      %s444 = smul.addr %s443, 8
      %s445 = smul.addr %s444, 8
      %s446 = scalar_lea.vmem %s12, %s445
      %v448 = vld [vmem:[%s431] sm:$0xff]
      %v449 = vld [vmem:[%s431 + $0x8] sm:$0xff]
      %v450 = vld [vmem:[%s431 + $0x10] sm:$0xff]
      %v451 = vld [vmem:[%s431 + $0x18] sm:$0xff]
      %v452 = vld [vmem:[%s431 + $0x20] sm:$0xff]
      %v453 = vld [vmem:[%s431 + $0x28] sm:$0xff]
      %v454 = vld [vmem:[%s431 + $0x30] sm:$0xff]
      %v455 = vld [vmem:[%s431 + $0x38] sm:$0xff]
      %v456 = vld [vmem:[%s436] sm:$0xff]
      %v457 = vld [vmem:[%s436 + $0x8] sm:$0xff]
      %v458 = vld [vmem:[%s436 + $0x10] sm:$0xff]
      %v459 = vld [vmem:[%s436 + $0x18] sm:$0xff]
      %v460 = vld [vmem:[%s436 + $0x20] sm:$0xff]
      %v461 = vld [vmem:[%s436 + $0x28] sm:$0xff]
      %v462 = vld [vmem:[%s436 + $0x30] sm:$0xff]
      %v463 = vld [vmem:[%s436 + $0x38] sm:$0xff]
      %v464 = vld [vmem:[%s3] sm:$0xff]
      %v465 = vld [vmem:[%s3 + $0x8] sm:$0xf]
      %v466 = vld [vmem:[%s3 + $0xc] sm:$0xff]
      %v467 = vld [vmem:[%s3 + $0x14] sm:$0xf]
      %v468 = vld [vmem:[%s3 + $0x18] sm:$0xff]
      %v469 = vld [vmem:[%s3 + $0x20] sm:$0xf]
      %v470 = vld [vmem:[%s3 + $0x24] sm:$0xff]
      %v471 = vld [vmem:[%s3 + $0x2c] sm:$0xf]
      %v472 = vld [vmem:[%s4] sm:$0xff]
      %v473 = vld [vmem:[%s4 + $0x8] sm:$0xff]
      %v474 = vld [vmem:[%s4 + $0x10] sm:$0xff]
      %v475 = vld [vmem:[%s4 + $0x18] sm:$0xff]
      %476 = vrot.lane.b32.xlu0 %v448, 17
      %v477 = vpop.permute.xlu0 %476
      %478 = vrot.lane.b32.xlu0 %v450, 17
      %v479 = vpop.permute.xlu0 %478
      %480 = vrot.lane.b32.xlu0 %v452, 17
      %v481 = vpop.permute.xlu0 %480
      %482 = vrot.lane.b32.xlu0 %v454, 17
      %v483 = vpop.permute.xlu0 %482
      %484 = vrot.lane.b32.xlu0 %v449, 17
      %v485 = vpop.permute.xlu0 %484
      %486 = vrot.lane.b32.xlu0 %v451, 17
      %v487 = vpop.permute.xlu0 %486
      %488 = vrot.lane.b32.xlu0 %v453, 17
      %v489 = vpop.permute.xlu0 %488
      %490 = vrot.lane.b32.xlu0 %v455, 17
      %v491 = vpop.permute.xlu0 %490
      %v492 = vlaneseq
      %v493 = vand.u32 %v492, 127
      %vm494 = vcmp.lt.s32.totalorder %v493, 17
      %v495 = vsel %vm494, %v477, %v485
      %v496 = vsel %vm494, %v479, %v487
      %v497 = vsel %vm494, %v481, %v489
      %v498 = vsel %vm494, %v483, %v491
      %v499 = vsel %vm494, %v485, %v477
      %v500 = vsel %vm494, %v487, %v479
      %v501 = vsel %vm494, %v489, %v481
      %v502 = vsel %vm494, %v491, %v483
      %v503 = vld [vmem:[%s2] sm:$0x3]
      %v505 = vlaneseq
      %v506 = vshrl.u32 %v505, 7
      %v507 = vsub.s32 0, %v506
      %v508 = vrot.slane %v503, %v507
      %v509 = vlaneseq
      %v510 = vshrl.u32 %v509, 7
      %v511 = vsub.s32 1, %v510
      %v512 = vrot.slane %v503, %v511
      %v515 = vmul.f32 %v499, %v508
      %v516 = vmul.f32 %v495, %v512
      %v517 = vmul.f32 %v500, %v508
      %v518 = vmul.f32 %v496, %v512
      %v519 = vmul.f32 %v501, %v508
      %v520 = vmul.f32 %v497, %v512
      %v521 = vmul.f32 %v502, %v508
      %v522 = vmul.f32 %v498, %v512
      %v523 = vpack.c.bf16 %v517, %v515
      %v524 = vpack.c.bf16 %v518, %v516
      %v525 = vpack.c.bf16 %v521, %v519
      %v526 = vpack.c.bf16 %v522, %v520
      %527 = vst [vmem:[#allocation2] sm:$0xff] %v523
      %528 = vst [vmem:[#allocation2 + $0x8] sm:$0xff] %v524
      %529 = vst [vmem:[#allocation2 + $0x10] sm:$0xff] %v525
      %530 = vst [vmem:[#allocation2 + $0x18] sm:$0xff] %v526
      %531 = vrot.lane.b32.xlu0 %v448, 16
      %v532 = vpop.permute.xlu0 %531
      %533 = vrot.lane.b32.xlu0 %v450, 16
      %v534 = vpop.permute.xlu0 %533
      %535 = vrot.lane.b32.xlu0 %v452, 16
      %v536 = vpop.permute.xlu0 %535
      %537 = vrot.lane.b32.xlu0 %v454, 16
      %v538 = vpop.permute.xlu0 %537
      %539 = vrot.lane.b32.xlu0 %v449, 16
      %v540 = vpop.permute.xlu0 %539
      %541 = vrot.lane.b32.xlu0 %v451, 16
      %v542 = vpop.permute.xlu0 %541
      %543 = vrot.lane.b32.xlu0 %v453, 16
      %v544 = vpop.permute.xlu0 %543
      %545 = vrot.lane.b32.xlu0 %v455, 16
      %v546 = vpop.permute.xlu0 %545
      %vm547 = vcmp.lt.s32.totalorder %v493, 16
      %v548 = vsel %vm547, %v532, %v540
      %v549 = vsel %vm547, %v534, %v542
      %v550 = vsel %vm547, %v536, %v544
      %v551 = vsel %vm547, %v538, %v546
      %v552 = vsel %vm547, %v540, %v532
      %v553 = vsel %vm547, %v542, %v534
      %v554 = vsel %vm547, %v544, %v536
      %v555 = vsel %vm547, %v546, %v538
      %s556 = scalar_lea.vmem %s2, 2
      %v557 = vld [vmem:[%s556] sm:$0x3]
      %v559 = vlaneseq
      %v560 = vshrl.u32 %v559, 7
      %v561 = vsub.s32 0, %v560
      %v562 = vrot.slane %v557, %v561
      %v563 = vlaneseq
      %v564 = vshrl.u32 %v563, 7
      %v565 = vsub.s32 1, %v564
      %v566 = vrot.slane %v557, %v565
      %v569 = vmul.f32 %v552, %v562
      %v570 = vmul.f32 %v548, %v566
      %v571 = vmul.f32 %v553, %v562
      %v572 = vmul.f32 %v549, %v566
      %v573 = vmul.f32 %v554, %v562
      %v574 = vmul.f32 %v550, %v566
      %v575 = vmul.f32 %v555, %v562
      %v576 = vmul.f32 %v551, %v566
      %v577 = vpack.c.bf16 %v571, %v569
      %v578 = vpack.c.bf16 %v572, %v570
      %v579 = vpack.c.bf16 %v575, %v573
      %v580 = vpack.c.bf16 %v576, %v574
      %581 = vst [vmem:[#allocation2 + $0x20] sm:$0xff] %v577
      %582 = vst [vmem:[#allocation2 + $0x28] sm:$0xff] %v578
      %583 = vst [vmem:[#allocation2 + $0x30] sm:$0xff] %v579
      %584 = vst [vmem:[#allocation2 + $0x38] sm:$0xff] %v580
      %585 = vrot.lane.b32.xlu0 %v448, 15
      %v586 = vpop.permute.xlu0 %585
      %587 = vrot.lane.b32.xlu0 %v450, 15
      %v588 = vpop.permute.xlu0 %587
      %589 = vrot.lane.b32.xlu0 %v452, 15
      %v590 = vpop.permute.xlu0 %589
      %591 = vrot.lane.b32.xlu0 %v454, 15
      %v592 = vpop.permute.xlu0 %591
      %593 = vrot.lane.b32.xlu0 %v449, 15
      %v594 = vpop.permute.xlu0 %593
      %595 = vrot.lane.b32.xlu0 %v451, 15
      %v596 = vpop.permute.xlu0 %595
      %597 = vrot.lane.b32.xlu0 %v453, 15
      %v598 = vpop.permute.xlu0 %597
      %599 = vrot.lane.b32.xlu0 %v455, 15
      %v600 = vpop.permute.xlu0 %599
      %vm601 = vcmp.lt.s32.totalorder %v493, 15
      %v602 = vsel %vm601, %v586, %v594
      %v603 = vsel %vm601, %v588, %v596
      %v604 = vsel %vm601, %v590, %v598
      %v605 = vsel %vm601, %v592, %v600
      %v606 = vsel %vm601, %v594, %v586
      %v607 = vsel %vm601, %v596, %v588
      %v608 = vsel %vm601, %v598, %v590
      %v609 = vsel %vm601, %v600, %v592
      %s610 = scalar_lea.vmem %s2, 4
      %v611 = vld [vmem:[%s610] sm:$0x3]
      %v613 = vlaneseq
      %v614 = vshrl.u32 %v613, 7
      %v615 = vsub.s32 0, %v614
      %v616 = vrot.slane %v611, %v615
      %v617 = vlaneseq
      %v618 = vshrl.u32 %v617, 7
      %v619 = vsub.s32 1, %v618
      %v620 = vrot.slane %v611, %v619
      %v623 = vmul.f32 %v606, %v616
      %v624 = vmul.f32 %v602, %v620
      %v625 = vmul.f32 %v607, %v616
      %v626 = vmul.f32 %v603, %v620
      %v627 = vmul.f32 %v608, %v616
      %v628 = vmul.f32 %v604, %v620
      %v629 = vmul.f32 %v609, %v616
      %v630 = vmul.f32 %v605, %v620
      %v631 = vpack.c.bf16 %v625, %v623
      %v632 = vpack.c.bf16 %v626, %v624
      %v633 = vpack.c.bf16 %v629, %v627
      %v634 = vpack.c.bf16 %v630, %v628
      %635 = vst [vmem:[#allocation2 + $0x40] sm:$0xff] %v631
      %636 = vst [vmem:[#allocation2 + $0x48] sm:$0xff] %v632
      %637 = vst [vmem:[#allocation2 + $0x50] sm:$0xff] %v633
      %638 = vst [vmem:[#allocation2 + $0x58] sm:$0xff] %v634
      %639 = vrot.lane.b32.xlu0 %v448, 1
      %v640 = vpop.permute.xlu0 %639
      %641 = vrot.lane.b32.xlu0 %v450, 1
      %v642 = vpop.permute.xlu0 %641
      %643 = vrot.lane.b32.xlu0 %v452, 1
      %v644 = vpop.permute.xlu0 %643
      %645 = vrot.lane.b32.xlu0 %v454, 1
      %v646 = vpop.permute.xlu0 %645
      %647 = vrot.lane.b32.xlu0 %v449, 1
      %v648 = vpop.permute.xlu0 %647
      %649 = vrot.lane.b32.xlu0 %v451, 1
      %v650 = vpop.permute.xlu0 %649
      %651 = vrot.lane.b32.xlu0 %v453, 1
      %v652 = vpop.permute.xlu0 %651
      %653 = vrot.lane.b32.xlu0 %v455, 1
      %v654 = vpop.permute.xlu0 %653
      %vm655 = vcmp.lt.s32.totalorder %v493, 1
      %v656 = vsel %vm655, %v640, %v648
      %v657 = vsel %vm655, %v642, %v650
      %v658 = vsel %vm655, %v644, %v652
      %v659 = vsel %vm655, %v646, %v654
      %v660 = vsel %vm655, %v648, %v640
      %v661 = vsel %vm655, %v650, %v642
      %v662 = vsel %vm655, %v652, %v644
      %v663 = vsel %vm655, %v654, %v646
      %s664 = scalar_lea.vmem %s2, 6
      %v665 = vld [vmem:[%s664] sm:$0x3]
      %v667 = vlaneseq
      %v668 = vshrl.u32 %v667, 7
      %v669 = vsub.s32 0, %v668
      %v670 = vrot.slane %v665, %v669
      %v671 = vlaneseq
      %v672 = vshrl.u32 %v671, 7
      %v673 = vsub.s32 1, %v672
      %v674 = vrot.slane %v665, %v673
      %v677 = vmul.f32 %v660, %v670
      %v678 = vmul.f32 %v656, %v674
      %v679 = vmul.f32 %v661, %v670
      %v680 = vmul.f32 %v657, %v674
      %v681 = vmul.f32 %v662, %v670
      %v682 = vmul.f32 %v658, %v674
      %v683 = vmul.f32 %v663, %v670
      %v684 = vmul.f32 %v659, %v674
      %v685 = vpack.c.bf16 %v679, %v677
      %v686 = vpack.c.bf16 %v680, %v678
      %v687 = vpack.c.bf16 %v683, %v681
      %v688 = vpack.c.bf16 %v684, %v682
      %689 = vst [vmem:[#allocation2 + $0x60] sm:$0xff] %v685
      %690 = vst [vmem:[#allocation2 + $0x68] sm:$0xff] %v686
      %691 = vst [vmem:[#allocation2 + $0x70] sm:$0xff] %v687
      %692 = vst [vmem:[#allocation2 + $0x78] sm:$0xff] %v688
      %v693 = vpack.c.bf16 %v450, %v448
      %v694 = vpack.c.bf16 %v451, %v449
      %v695 = vpack.c.bf16 %v454, %v452
      %v696 = vpack.c.bf16 %v455, %v453
      %697 = vst [vmem:[#allocation2 + $0x80] sm:$0xff] %v693
      %698 = vst [vmem:[#allocation2 + $0x88] sm:$0xff] %v694
      %699 = vst [vmem:[#allocation2 + $0x90] sm:$0xff] %v695
      %700 = vst [vmem:[#allocation2 + $0x98] sm:$0xff] %v696
      %701 = vrot.lane.b32.xlu0 %v448, 127
      %v702 = vpop.permute.xlu0 %701
      %703 = vrot.lane.b32.xlu0 %v450, 127
      %v704 = vpop.permute.xlu0 %703
      %705 = vrot.lane.b32.xlu0 %v452, 127
      %v706 = vpop.permute.xlu0 %705
      %707 = vrot.lane.b32.xlu0 %v454, 127
      %v708 = vpop.permute.xlu0 %707
      %709 = vrot.lane.b32.xlu0 %v449, 127
      %v710 = vpop.permute.xlu0 %709
      %711 = vrot.lane.b32.xlu0 %v451, 127
      %v712 = vpop.permute.xlu0 %711
      %713 = vrot.lane.b32.xlu0 %v453, 127
      %v714 = vpop.permute.xlu0 %713
      %715 = vrot.lane.b32.xlu0 %v455, 127
      %v716 = vpop.permute.xlu0 %715
      %vm717 = vcmp.lt.s32.totalorder %v493, 127
      %v718 = vsel %vm717, %v702, %v710
      %v719 = vsel %vm717, %v704, %v712
      %v720 = vsel %vm717, %v706, %v714
      %v721 = vsel %vm717, %v708, %v716
      %v722 = vsel %vm717, %v710, %v702
      %v723 = vsel %vm717, %v712, %v704
      %v724 = vsel %vm717, %v714, %v706
      %v725 = vsel %vm717, %v716, %v708
      %s726 = scalar_lea.vmem %s2, 10
      %v727 = vld [vmem:[%s726] sm:$0x3]
      %v729 = vlaneseq
      %v730 = vshrl.u32 %v729, 7
      %v731 = vsub.s32 0, %v730
      %v732 = vrot.slane %v727, %v731
      %v733 = vlaneseq
      %v734 = vshrl.u32 %v733, 7
      %v735 = vsub.s32 1, %v734
      %v736 = vrot.slane %v727, %v735
      %v739 = vmul.f32 %v718, %v732
      %v740 = vmul.f32 %v722, %v736
      %v741 = vmul.f32 %v719, %v732
      %v742 = vmul.f32 %v723, %v736
      %v743 = vmul.f32 %v720, %v732
      %v744 = vmul.f32 %v724, %v736
      %v745 = vmul.f32 %v721, %v732
      %v746 = vmul.f32 %v725, %v736
      %v747 = vpack.c.bf16 %v741, %v739
      %v748 = vpack.c.bf16 %v742, %v740
      %v749 = vpack.c.bf16 %v745, %v743
      %v750 = vpack.c.bf16 %v746, %v744
      %751 = vst [vmem:[#allocation2 + $0xa0] sm:$0xff] %v747
      %752 = vst [vmem:[#allocation2 + $0xa8] sm:$0xff] %v748
      %753 = vst [vmem:[#allocation2 + $0xb0] sm:$0xff] %v749
      %754 = vst [vmem:[#allocation2 + $0xb8] sm:$0xff] %v750
      %755 = vrot.lane.b32.xlu0 %v448, 113
      %v756 = vpop.permute.xlu0 %755
      %757 = vrot.lane.b32.xlu0 %v450, 113
      %v758 = vpop.permute.xlu0 %757
      %759 = vrot.lane.b32.xlu0 %v452, 113
      %v760 = vpop.permute.xlu0 %759
      %761 = vrot.lane.b32.xlu0 %v454, 113
      %v762 = vpop.permute.xlu0 %761
      %763 = vrot.lane.b32.xlu0 %v449, 113
      %v764 = vpop.permute.xlu0 %763
      %765 = vrot.lane.b32.xlu0 %v451, 113
      %v766 = vpop.permute.xlu0 %765
      %767 = vrot.lane.b32.xlu0 %v453, 113
      %v768 = vpop.permute.xlu0 %767
      %769 = vrot.lane.b32.xlu0 %v455, 113
      %v770 = vpop.permute.xlu0 %769
      %vm771 = vcmp.lt.s32.totalorder %v493, 113
      %v772 = vsel %vm771, %v756, %v764
      %v773 = vsel %vm771, %v758, %v766
      %v774 = vsel %vm771, %v760, %v768
      %v775 = vsel %vm771, %v762, %v770
      %v776 = vsel %vm771, %v764, %v756
      %v777 = vsel %vm771, %v766, %v758
      %v778 = vsel %vm771, %v768, %v760
      %v779 = vsel %vm771, %v770, %v762
      %s780 = scalar_lea.vmem %s2, 12
      %v781 = vld [vmem:[%s780] sm:$0x3]
      %v783 = vlaneseq
      %v784 = vshrl.u32 %v783, 7
      %v785 = vsub.s32 0, %v784
      %v786 = vrot.slane %v781, %v785
      %v787 = vlaneseq
      %v788 = vshrl.u32 %v787, 7
      %v789 = vsub.s32 1, %v788
      %v790 = vrot.slane %v781, %v789
      %v793 = vmul.f32 %v772, %v786
      %v794 = vmul.f32 %v776, %v790
      %v795 = vmul.f32 %v773, %v786
      %v796 = vmul.f32 %v777, %v790
      %v797 = vmul.f32 %v774, %v786
      %v798 = vmul.f32 %v778, %v790
      %v799 = vmul.f32 %v775, %v786
      %v800 = vmul.f32 %v779, %v790
      %v801 = vpack.c.bf16 %v795, %v793
      %v802 = vpack.c.bf16 %v796, %v794
      %v803 = vpack.c.bf16 %v799, %v797
      %v804 = vpack.c.bf16 %v800, %v798
      %805 = vst [vmem:[#allocation2 + $0xc0] sm:$0xff] %v801
      %806 = vst [vmem:[#allocation2 + $0xc8] sm:$0xff] %v802
      %807 = vst [vmem:[#allocation2 + $0xd0] sm:$0xff] %v803
      %808 = vst [vmem:[#allocation2 + $0xd8] sm:$0xff] %v804
      %809 = vrot.lane.b32.xlu0 %v448, 112
      %v810 = vpop.permute.xlu0 %809
      %811 = vrot.lane.b32.xlu0 %v450, 112
      %v812 = vpop.permute.xlu0 %811
      %813 = vrot.lane.b32.xlu0 %v452, 112
      %v814 = vpop.permute.xlu0 %813
      %815 = vrot.lane.b32.xlu0 %v454, 112
      %v816 = vpop.permute.xlu0 %815
      %817 = vrot.lane.b32.xlu0 %v449, 112
      %v818 = vpop.permute.xlu0 %817
      %819 = vrot.lane.b32.xlu0 %v451, 112
      %v820 = vpop.permute.xlu0 %819
      %821 = vrot.lane.b32.xlu0 %v453, 112
      %v822 = vpop.permute.xlu0 %821
      %823 = vrot.lane.b32.xlu0 %v455, 112
      %v824 = vpop.permute.xlu0 %823
      %vm825 = vcmp.lt.s32.totalorder %v493, 112
      %v826 = vsel %vm825, %v810, %v818
      %v827 = vsel %vm825, %v812, %v820
      %v828 = vsel %vm825, %v814, %v822
      %v829 = vsel %vm825, %v816, %v824
      %v830 = vsel %vm825, %v818, %v810
      %v831 = vsel %vm825, %v820, %v812
      %v832 = vsel %vm825, %v822, %v814
      %v833 = vsel %vm825, %v824, %v816
      %s834 = scalar_lea.vmem %s2, 14
      %v835 = vld [vmem:[%s834] sm:$0x3]
      %v837 = vlaneseq
      %v838 = vshrl.u32 %v837, 7
      %v839 = vsub.s32 0, %v838
      %v840 = vrot.slane %v835, %v839
      %v841 = vlaneseq
      %v842 = vshrl.u32 %v841, 7
      %v843 = vsub.s32 1, %v842
      %v844 = vrot.slane %v835, %v843
      %v847 = vmul.f32 %v826, %v840
      %v848 = vmul.f32 %v830, %v844
      %v849 = vmul.f32 %v827, %v840
      %v850 = vmul.f32 %v831, %v844
      %v851 = vmul.f32 %v828, %v840
      %v852 = vmul.f32 %v832, %v844
      %v853 = vmul.f32 %v829, %v840
      %v854 = vmul.f32 %v833, %v844
      %v855 = vpack.c.bf16 %v849, %v847
      %v856 = vpack.c.bf16 %v850, %v848
      %v857 = vpack.c.bf16 %v853, %v851
      %v858 = vpack.c.bf16 %v854, %v852
      %859 = vst [vmem:[#allocation2 + $0xe0] sm:$0xff] %v855
      %860 = vst [vmem:[#allocation2 + $0xe8] sm:$0xff] %v856
      %861 = vst [vmem:[#allocation2 + $0xf0] sm:$0xff] %v857
      %862 = vst [vmem:[#allocation2 + $0xf8] sm:$0xff] %v858
      %863 = vrot.lane.b32.xlu0 %v448, 111
      %v864 = vpop.permute.xlu0 %863
      %865 = vrot.lane.b32.xlu0 %v450, 111
      %v866 = vpop.permute.xlu0 %865
      %867 = vrot.lane.b32.xlu0 %v452, 111
      %v868 = vpop.permute.xlu0 %867
      %869 = vrot.lane.b32.xlu0 %v454, 111
      %v870 = vpop.permute.xlu0 %869
      %871 = vrot.lane.b32.xlu0 %v449, 111
      %v872 = vpop.permute.xlu0 %871
      %873 = vrot.lane.b32.xlu0 %v451, 111
      %v874 = vpop.permute.xlu0 %873
      %875 = vrot.lane.b32.xlu0 %v453, 111
      %v876 = vpop.permute.xlu0 %875
      %877 = vrot.lane.b32.xlu0 %v455, 111
      %v878 = vpop.permute.xlu0 %877
      %vm879 = vcmp.lt.s32.totalorder %v493, 111
      %v880 = vsel %vm879, %v864, %v872
      %v881 = vsel %vm879, %v866, %v874
      %v882 = vsel %vm879, %v868, %v876
      %v883 = vsel %vm879, %v870, %v878
      %v884 = vsel %vm879, %v872, %v864
      %v885 = vsel %vm879, %v874, %v866
      %v886 = vsel %vm879, %v876, %v868
      %v887 = vsel %vm879, %v878, %v870
      %s888 = scalar_lea.vmem %s2, 16
      %v889 = vld [vmem:[%s888] sm:$0x3]
      %v891 = vlaneseq
      %v892 = vshrl.u32 %v891, 7
      %v893 = vsub.s32 0, %v892
      %v894 = vrot.slane %v889, %v893
      %v895 = vlaneseq
      %v896 = vshrl.u32 %v895, 7
      %v897 = vsub.s32 1, %v896
      %v898 = vrot.slane %v889, %v897
      %v901 = vmul.f32 %v880, %v894
      %v902 = vmul.f32 %v884, %v898
      %v903 = vmul.f32 %v881, %v894
      %v904 = vmul.f32 %v885, %v898
      %v905 = vmul.f32 %v882, %v894
      %v906 = vmul.f32 %v886, %v898
      %v907 = vmul.f32 %v883, %v894
      %v908 = vmul.f32 %v887, %v898
      %v909 = vpack.c.bf16 %v903, %v901
      %v910 = vpack.c.bf16 %v904, %v902
      %v911 = vpack.c.bf16 %v907, %v905
      %v912 = vpack.c.bf16 %v908, %v906
      %913 = vst [vmem:[#allocation2 + $0x100] sm:$0xff] %v909
      %914 = vst [vmem:[#allocation2 + $0x108] sm:$0xff] %v910
      %915 = vst [vmem:[#allocation2 + $0x110] sm:$0xff] %v911
      %916 = vst [vmem:[#allocation2 + $0x118] sm:$0xff] %v912
      %v917 = vld [vmem:[#allocation2] sm:$0xff]
      %v918 = vld [vmem:[#allocation2 + $0x8] sm:$0xff]
      %v919 = vld [vmem:[#allocation2 + $0x10] sm:$0xff]
      %v920 = vld [vmem:[#allocation2 + $0x18] sm:$0xff]
      %v921 = vld [vmem:[#allocation2 + $0x20] sm:$0xff]
      %v922 = vld [vmem:[#allocation2 + $0x28] sm:$0xff]
      %v923 = vld [vmem:[#allocation2 + $0x30] sm:$0xff]
      %v924 = vld [vmem:[#allocation2 + $0x38] sm:$0xff]
      %v925 = vld [vmem:[#allocation2 + $0x40] sm:$0xff]
      %v926 = vld [vmem:[#allocation2 + $0x48] sm:$0xff]
      %v927 = vld [vmem:[#allocation2 + $0x50] sm:$0xff]
      %v928 = vld [vmem:[#allocation2 + $0x58] sm:$0xff]
      %v929 = vld [vmem:[#allocation2 + $0x60] sm:$0xff]
      %v930 = vld [vmem:[#allocation2 + $0x68] sm:$0xff]
      %v931 = vld [vmem:[#allocation2 + $0x70] sm:$0xff]
      %v932 = vld [vmem:[#allocation2 + $0x78] sm:$0xff]
      %v933 = vld [vmem:[#allocation2 + $0x80] sm:$0xff]
      %v934 = vld [vmem:[#allocation2 + $0x88] sm:$0xff]
      %v935 = vld [vmem:[#allocation2 + $0x90] sm:$0xff]
      %v936 = vld [vmem:[#allocation2 + $0x98] sm:$0xff]
      %v937 = vld [vmem:[#allocation2 + $0xa0] sm:$0xff]
      %v938 = vld [vmem:[#allocation2 + $0xa8] sm:$0xff]
      %v939 = vld [vmem:[#allocation2 + $0xb0] sm:$0xff]
      %v940 = vld [vmem:[#allocation2 + $0xb8] sm:$0xff]
      %v941 = vld [vmem:[#allocation2 + $0xc0] sm:$0xff]
      %v942 = vld [vmem:[#allocation2 + $0xc8] sm:$0xff]
      %v943 = vld [vmem:[#allocation2 + $0xd0] sm:$0xff]
      %v944 = vld [vmem:[#allocation2 + $0xd8] sm:$0xff]
      %v945 = vld [vmem:[#allocation2 + $0xe0] sm:$0xff]
      %v946 = vld [vmem:[#allocation2 + $0xe8] sm:$0xff]
      %v947 = vld [vmem:[#allocation2 + $0xf0] sm:$0xff]
      %v948 = vld [vmem:[#allocation2 + $0xf8] sm:$0xff]
      %v949 = vld [vmem:[#allocation2 + $0x100] sm:$0xff]
      %v950 = vld [vmem:[#allocation2 + $0x108] sm:$0xff]
      %v951 = vld [vmem:[#allocation2 + $0x110] sm:$0xff]
      %v952 = vld [vmem:[#allocation2 + $0x118] sm:$0xff]
      %954 = vset.pattern.permute.xlu0 0
      %955 = vperm.xlu0 %954, %v472
      %v956 = vpop.permute.xlu0 %955
      %959 = vset.pattern.permute.xlu0 0
      %960 = vperm.xlu0 %959, %v473
      %v961 = vpop.permute.xlu0 %960
      %964 = vset.pattern.permute.xlu0 0
      %965 = vperm.xlu0 %964, %v474
      %v966 = vpop.permute.xlu0 %965
      %969 = vset.pattern.permute.xlu0 0
      %970 = vperm.xlu0 %969, %v475
      %v971 = vpop.permute.xlu0 %970
      %v981 = vunpack.c.l.b16 %v464
      %v982 = vunpack.c.h.b16 %v464
      %v983 = vunpack.c.l.b16 %v465
      %v984 = vunpack.c.l.b16 %v466
      %v985 = vunpack.c.h.b16 %v466
      %v986 = vunpack.c.l.b16 %v467
      %v987 = vunpack.c.l.b16 %v468
      %v988 = vunpack.c.h.b16 %v468
      %v989 = vunpack.c.l.b16 %v469
      %v990 = vunpack.c.l.b16 %v470
      %v991 = vunpack.c.h.b16 %v470
      %v992 = vunpack.c.l.b16 %v471
      %v993 = vpack.c.b16 %v984, %v981
      %v994 = vpack.c.b16 %v985, %v982
      %v995 = vpack.c.b16 %v986, %v983
      %v996 = vpack.c.b16 %v990, %v987
      %v997 = vpack.c.b16 %v991, %v988
      %v998 = vpack.c.b16 %v992, %v989
      %vm1003 = vcmask 261120
      %v1005 = vsel %vm1003, %v995, 0
      %v1008 = vsel %vm1003, %v998, 0
      %1010 = vmatprep.subr.bf16.mxu0 %v918
      %1011 = vmatpush1.bf16.msra.mxu0 %v917
      %1012 = vmatprep.subr.bf16.mxu0 %v920
      %1013 = vmatpush1.bf16.msra.mxu0 %v919
      %1014 = vmatprep.subr.bf16.mxu0 %v922
      %1015 = vmatpush1.bf16.msra.mxu0 %v921
      %1016 = vmatprep.subr.bf16.mxu0 %v924
      %1017 = vmatpush1.bf16.msra.mxu0 %v923
      %1018 = vmatprep.subr.bf16.mxu0 %v926
      %1019 = vmatpush1.bf16.msra.mxu0 %v925
      %1020 = vmatprep.subr.bf16.mxu0 %v928
      %1021 = vmatpush1.bf16.msra.mxu0 %v927
      %1022 = vmatprep.subr.bf16.mxu0 %v930
      %1023 = vmatpush1.bf16.msra.mxu0 %v929
      %1024 = vmatprep.subr.bf16.mxu0 %v932
      %1025 = vmatpush1.bf16.msra.mxu0 %v931
      %1026 = vmatprep.subr.bf16.mxu0 %v934
      %1027 = vmatpush1.bf16.msra.mxu0 %v933
      %1028 = vmatprep.subr.bf16.mxu0 %v936
      %1029 = vmatpush1.bf16.msra.mxu0 %v935
      %1030 = vmatprep.subr.bf16.mxu0 %v938
      %1031 = vmatpush1.bf16.msra.mxu0 %v937
      %1032 = vmatprep.subr.bf16.mxu0 %v940
      %1033 = vmatpush1.bf16.msra.mxu0 %v939
      %1034 = vmatprep.subr.bf16.mxu0 %v942
      %1035 = vmatpush1.bf16.msra.mxu0 %v941
      %1036 = vmatprep.subr.bf16.mxu0 %v944
      %1037 = vmatpush1.bf16.msra.mxu0 %v943
      %1038 = vmatprep.subr.bf16.mxu0 %v946
      %1039 = vmatpush1.bf16.msra.mxu0 %v945
      %1040 = vmatprep.subr.bf16.mxu0 %v948
      %1041 = vmatpush1.bf16.msra.mxu0 %v947
      %1042 = vmatprep.mubr.bf16.mxu0 %v994
      %1043 = vmatmul.mubr.bf16.gmra.mrb[0].mxu0 %v993
      %v1044 = vpop.f32.mrb[0].mxu0
      %v1045 = vadd.f32 %v956, %v1044
      %v1046 = vpop.f32.mrb[0].mxu0
      %v1047 = vadd.f32 %v956, %v1046
      %v1048 = vpop.f32.mrb[0].mxu0
      %v1049 = vadd.f32 %v961, %v1048
      %v1050 = vpop.f32.mrb[0].mxu0
      %v1051 = vadd.f32 %v961, %v1050
      %1052 = vmatprep.mubr.bf16.mxu0 %v997
      %1053 = vmatmul.mubr.bf16.gmra.mrb[0].mxu0 %v996
      %v1054 = vpop.f32.mrb[0].mxu0
      %v1055 = vadd.f32 %v966, %v1054
      %v1056 = vpop.f32.mrb[0].mxu0
      %v1057 = vadd.f32 %v966, %v1056
      %v1058 = vpop.f32.mrb[0].mxu0
      %v1059 = vadd.f32 %v971, %v1058
      %v1060 = vpop.f32.mrb[0].mxu0
      %v1061 = vadd.f32 %v971, %v1060
      %1062 = vdwg.mxu0
      %1063 = vmatprep.subr.bf16.mxu0 %v950
      %1064 = vmatpush1.bf16.msra.mxu0 %v949
      %1065 = vmatprep.subr.bf16.mxu0 %v952
      %1066 = vmatpush1.bf16.msra.mxu0 %v951
      %1067 = vmatprep.subr.bf16.mxu0 0
      %1068 = vmatpush1.bf16.msra.mxu0 0
      %1069 = vmatprep.subr.bf16.mxu0 0
      %1070 = vmatpush1.bf16.msra.mxu0 0
      %1071 = vmatprep.subr.bf16.mxu0 0
      %1072 = vmatpush1.bf16.msra.mxu0 0
      %1073 = vmatprep.subr.bf16.mxu0 0
      %1074 = vmatpush1.bf16.msra.mxu0 0
      %1075 = vmatprep.subr.bf16.mxu0 0
      %1076 = vmatpush1.bf16.msra.mxu0 0
      %1077 = vmatprep.subr.bf16.mxu0 0
      %1078 = vmatpush1.bf16.msra.mxu0 0
      %1079 = vmatprep.subr.bf16.mxu0 0
      %1080 = vmatpush1.bf16.msra.mxu0 0
      %1081 = vmatprep.subr.bf16.mxu0 0
      %1082 = vmatpush1.bf16.msra.mxu0 0
      %1083 = vmatprep.subr.bf16.mxu0 0
      %1084 = vmatpush1.bf16.msra.mxu0 0
      %1085 = vmatprep.subr.bf16.mxu0 0
      %1086 = vmatpush1.bf16.msra.mxu0 0
      %1087 = vmatprep.subr.bf16.mxu0 0
      %1088 = vmatpush1.bf16.msra.mxu0 0
      %1089 = vmatprep.subr.bf16.mxu0 0
      %1090 = vmatpush1.bf16.msra.mxu0 0
      %1091 = vmatprep.subr.bf16.mxu0 0
      %1092 = vmatpush1.bf16.msra.mxu0 0
      %1093 = vmatprep.subr.bf16.mxu0 0
      %1094 = vmatpush1.bf16.msra.mxu0 0
      %1095 = vmatprep.mubr.bf16.mxu0 0
      %1096 = vmatmul.mubr.bf16.gmra.mrb[0].mxu0 %v1005
      %v1097 = vpop.f32.mrb[0].mxu0
      %v1098 = vadd.f32 %v1045, %v1097
      %v1099 = vpop.f32.mrb[0].mxu0
      %v1100 = vadd.f32 %v1047, %v1099
      %v1101 = vpop.f32.mrb[0].mxu0
      %v1102 = vadd.f32 %v1049, %v1101
      %v1103 = vpop.f32.mrb[0].mxu0
      %v1104 = vadd.f32 %v1051, %v1103
      %1105 = vmatprep.mubr.bf16.mxu0 0
      %1106 = vmatmul.mubr.bf16.gmra.mrb[0].mxu0 %v1008
      %v1107 = vpop.f32.mrb[0].mxu0
      %v1108 = vadd.f32 %v1055, %v1107
      %v1109 = vpop.f32.mrb[0].mxu0
      %v1110 = vadd.f32 %v1057, %v1109
      %v1111 = vpop.f32.mrb[0].mxu0
      %v1112 = vadd.f32 %v1059, %v1111
      %v1113 = vpop.f32.mrb[0].mxu0
      %v1114 = vadd.f32 %v1061, %v1113
      %1115 = vdwg.mxu0
      %v1116 = vmax.f32 %v1098, 0.0
      %v1117 = vmax.f32 %v1100, 0.0
      %v1118 = vmax.f32 %v1102, 0.0
      %v1119 = vmax.f32 %v1104, 0.0
      %v1120 = vmax.f32 %v1108, 0.0
      %v1121 = vmax.f32 %v1110, 0.0
      %v1122 = vmax.f32 %v1112, 0.0
      %v1123 = vmax.f32 %v1114, 0.0
      %s1124 = scalar_lea.vmem %s3, 48
      %v1125 = vld [vmem:[%s1124] sm:$0xff]
      %v1126 = vld [vmem:[%s1124 + $0x8] sm:$0xf]
      %v1127 = vld [vmem:[%s1124 + $0xc] sm:$0xff]
      %v1128 = vld [vmem:[%s1124 + $0x14] sm:$0xf]
      %v1129 = vld [vmem:[%s1124 + $0x18] sm:$0xff]
      %v1130 = vld [vmem:[%s1124 + $0x20] sm:$0xf]
      %v1131 = vld [vmem:[%s1124 + $0x24] sm:$0xff]
      %v1132 = vld [vmem:[%s1124 + $0x2c] sm:$0xf]
      %s1133 = scalar_lea.vmem %s4, 32
      %v1134 = vld [vmem:[%s1133] sm:$0xff]
      %v1135 = vld [vmem:[%s1133 + $0x8] sm:$0xff]
      %v1136 = vld [vmem:[%s1133 + $0x10] sm:$0xff]
      %v1137 = vld [vmem:[%s1133 + $0x18] sm:$0xff]
      %1138 = vrot.lane.b32.xlu0 %v1116, 17
      %v1139 = vpop.permute.xlu0 %1138
      %1140 = vrot.lane.b32.xlu0 %v1118, 17
      %v1141 = vpop.permute.xlu0 %1140
      %1142 = vrot.lane.b32.xlu0 %v1120, 17
      %v1143 = vpop.permute.xlu0 %1142
      %1144 = vrot.lane.b32.xlu0 %v1122, 17
      %v1145 = vpop.permute.xlu0 %1144
      %1146 = vrot.lane.b32.xlu0 %v1117, 17
      %v1147 = vpop.permute.xlu0 %1146
      %1148 = vrot.lane.b32.xlu0 %v1119, 17
      %v1149 = vpop.permute.xlu0 %1148
      %1150 = vrot.lane.b32.xlu0 %v1121, 17
      %v1151 = vpop.permute.xlu0 %1150
      %1152 = vrot.lane.b32.xlu0 %v1123, 17
      %v1153 = vpop.permute.xlu0 %1152
      %v1154 = vsel %vm494, %v1139, %v1147
      %v1155 = vsel %vm494, %v1141, %v1149
      %v1156 = vsel %vm494, %v1143, %v1151
      %v1157 = vsel %vm494, %v1145, %v1153
      %v1158 = vsel %vm494, %v1147, %v1139
      %v1159 = vsel %vm494, %v1149, %v1141
      %v1160 = vsel %vm494, %v1151, %v1143
      %v1161 = vsel %vm494, %v1153, %v1145
      %v1162 = vld [vmem:[%s2] sm:$0x3]
      %v1164 = vlaneseq
      %v1165 = vshrl.u32 %v1164, 7
      %v1166 = vsub.s32 0, %v1165
      %v1167 = vrot.slane %v1162, %v1166
      %v1168 = vlaneseq
      %v1169 = vshrl.u32 %v1168, 7
      %v1170 = vsub.s32 1, %v1169
      %v1171 = vrot.slane %v1162, %v1170
      %v1174 = vmul.f32 %v1158, %v1167
      %v1175 = vmul.f32 %v1154, %v1171
      %v1176 = vmul.f32 %v1159, %v1167
      %v1177 = vmul.f32 %v1155, %v1171
      %v1178 = vmul.f32 %v1160, %v1167
      %v1179 = vmul.f32 %v1156, %v1171
      %v1180 = vmul.f32 %v1161, %v1167
      %v1181 = vmul.f32 %v1157, %v1171
      %v1182 = vpack.c.bf16 %v1176, %v1174
      %v1183 = vpack.c.bf16 %v1177, %v1175
      %v1184 = vpack.c.bf16 %v1180, %v1178
      %v1185 = vpack.c.bf16 %v1181, %v1179
      %1186 = vst [vmem:[#allocation2] sm:$0xff] %v1182
      %1187 = vst [vmem:[#allocation2 + $0x8] sm:$0xff] %v1183
      %1188 = vst [vmem:[#allocation2 + $0x10] sm:$0xff] %v1184
      %1189 = vst [vmem:[#allocation2 + $0x18] sm:$0xff] %v1185
      %1190 = vrot.lane.b32.xlu0 %v1116, 16
      %v1191 = vpop.permute.xlu0 %1190
      %1192 = vrot.lane.b32.xlu0 %v1118, 16
      %v1193 = vpop.permute.xlu0 %1192
      %1194 = vrot.lane.b32.xlu0 %v1120, 16
      %v1195 = vpop.permute.xlu0 %1194
      %1196 = vrot.lane.b32.xlu0 %v1122, 16
      %v1197 = vpop.permute.xlu0 %1196
      %1198 = vrot.lane.b32.xlu0 %v1117, 16
      %v1199 = vpop.permute.xlu0 %1198
      %1200 = vrot.lane.b32.xlu0 %v1119, 16
      %v1201 = vpop.permute.xlu0 %1200
      %1202 = vrot.lane.b32.xlu0 %v1121, 16
      %v1203 = vpop.permute.xlu0 %1202
      %1204 = vrot.lane.b32.xlu0 %v1123, 16
      %v1205 = vpop.permute.xlu0 %1204
      %v1206 = vsel %vm547, %v1191, %v1199
      %v1207 = vsel %vm547, %v1193, %v1201
      %v1208 = vsel %vm547, %v1195, %v1203
      %v1209 = vsel %vm547, %v1197, %v1205
      %v1210 = vsel %vm547, %v1199, %v1191
      %v1211 = vsel %vm547, %v1201, %v1193
      %v1212 = vsel %vm547, %v1203, %v1195
      %v1213 = vsel %vm547, %v1205, %v1197
      %v1214 = vld [vmem:[%s556] sm:$0x3]
      %v1216 = vlaneseq
      %v1217 = vshrl.u32 %v1216, 7
      %v1218 = vsub.s32 0, %v1217
      %v1219 = vrot.slane %v1214, %v1218
      %v1220 = vlaneseq
      %v1221 = vshrl.u32 %v1220, 7
      %v1222 = vsub.s32 1, %v1221
      %v1223 = vrot.slane %v1214, %v1222
      %v1226 = vmul.f32 %v1210, %v1219
      %v1227 = vmul.f32 %v1206, %v1223
      %v1228 = vmul.f32 %v1211, %v1219
      %v1229 = vmul.f32 %v1207, %v1223
      %v1230 = vmul.f32 %v1212, %v1219
      %v1231 = vmul.f32 %v1208, %v1223
      %v1232 = vmul.f32 %v1213, %v1219
      %v1233 = vmul.f32 %v1209, %v1223
      %v1234 = vpack.c.bf16 %v1228, %v1226
      %v1235 = vpack.c.bf16 %v1229, %v1227
      %v1236 = vpack.c.bf16 %v1232, %v1230
      %v1237 = vpack.c.bf16 %v1233, %v1231
      %1238 = vst [vmem:[#allocation2 + $0x20] sm:$0xff] %v1234
      %1239 = vst [vmem:[#allocation2 + $0x28] sm:$0xff] %v1235
      %1240 = vst [vmem:[#allocation2 + $0x30] sm:$0xff] %v1236
      %1241 = vst [vmem:[#allocation2 + $0x38] sm:$0xff] %v1237
      %1242 = vrot.lane.b32.xlu0 %v1116, 15
      %v1243 = vpop.permute.xlu0 %1242
      %1244 = vrot.lane.b32.xlu0 %v1118, 15
      %v1245 = vpop.permute.xlu0 %1244
      %1246 = vrot.lane.b32.xlu0 %v1120, 15
      %v1247 = vpop.permute.xlu0 %1246
      %1248 = vrot.lane.b32.xlu0 %v1122, 15
      %v1249 = vpop.permute.xlu0 %1248
      %1250 = vrot.lane.b32.xlu0 %v1117, 15
      %v1251 = vpop.permute.xlu0 %1250
      %1252 = vrot.lane.b32.xlu0 %v1119, 15
      %v1253 = vpop.permute.xlu0 %1252
      %1254 = vrot.lane.b32.xlu0 %v1121, 15
      %v1255 = vpop.permute.xlu0 %1254
      %1256 = vrot.lane.b32.xlu0 %v1123, 15
      %v1257 = vpop.permute.xlu0 %1256
      %v1258 = vsel %vm601, %v1243, %v1251
      %v1259 = vsel %vm601, %v1245, %v1253
      %v1260 = vsel %vm601, %v1247, %v1255
      %v1261 = vsel %vm601, %v1249, %v1257
      %v1262 = vsel %vm601, %v1251, %v1243
      %v1263 = vsel %vm601, %v1253, %v1245
      %v1264 = vsel %vm601, %v1255, %v1247
      %v1265 = vsel %vm601, %v1257, %v1249
      %v1266 = vld [vmem:[%s610] sm:$0x3]
      %v1268 = vlaneseq
      %v1269 = vshrl.u32 %v1268, 7
      %v1270 = vsub.s32 0, %v1269
      %v1271 = vrot.slane %v1266, %v1270
      %v1272 = vlaneseq
      %v1273 = vshrl.u32 %v1272, 7
      %v1274 = vsub.s32 1, %v1273
      %v1275 = vrot.slane %v1266, %v1274
      %v1278 = vmul.f32 %v1262, %v1271
      %v1279 = vmul.f32 %v1258, %v1275
      %v1280 = vmul.f32 %v1263, %v1271
      %v1281 = vmul.f32 %v1259, %v1275
      %v1282 = vmul.f32 %v1264, %v1271
      %v1283 = vmul.f32 %v1260, %v1275
      %v1284 = vmul.f32 %v1265, %v1271
      %v1285 = vmul.f32 %v1261, %v1275
      %v1286 = vpack.c.bf16 %v1280, %v1278
      %v1287 = vpack.c.bf16 %v1281, %v1279
      %v1288 = vpack.c.bf16 %v1284, %v1282
      %v1289 = vpack.c.bf16 %v1285, %v1283
      %1290 = vst [vmem:[#allocation2 + $0x40] sm:$0xff] %v1286
      %1291 = vst [vmem:[#allocation2 + $0x48] sm:$0xff] %v1287
      %1292 = vst [vmem:[#allocation2 + $0x50] sm:$0xff] %v1288
      %1293 = vst [vmem:[#allocation2 + $0x58] sm:$0xff] %v1289
      %1294 = vrot.lane.b32.xlu0 %v1116, 1
      %v1295 = vpop.permute.xlu0 %1294
      %1296 = vrot.lane.b32.xlu0 %v1118, 1
      %v1297 = vpop.permute.xlu0 %1296
      %1298 = vrot.lane.b32.xlu0 %v1120, 1
      %v1299 = vpop.permute.xlu0 %1298
      %1300 = vrot.lane.b32.xlu0 %v1122, 1
      %v1301 = vpop.permute.xlu0 %1300
      %1302 = vrot.lane.b32.xlu0 %v1117, 1
      %v1303 = vpop.permute.xlu0 %1302
      %1304 = vrot.lane.b32.xlu0 %v1119, 1
      %v1305 = vpop.permute.xlu0 %1304
      %1306 = vrot.lane.b32.xlu0 %v1121, 1
      %v1307 = vpop.permute.xlu0 %1306
      %1308 = vrot.lane.b32.xlu0 %v1123, 1
      %v1309 = vpop.permute.xlu0 %1308
      %v1310 = vsel %vm655, %v1295, %v1303
      %v1311 = vsel %vm655, %v1297, %v1305
      %v1312 = vsel %vm655, %v1299, %v1307
      %v1313 = vsel %vm655, %v1301, %v1309
      %v1314 = vsel %vm655, %v1303, %v1295
      %v1315 = vsel %vm655, %v1305, %v1297
      %v1316 = vsel %vm655, %v1307, %v1299
      %v1317 = vsel %vm655, %v1309, %v1301
      %v1318 = vld [vmem:[%s664] sm:$0x3]
      %v1320 = vlaneseq
      %v1321 = vshrl.u32 %v1320, 7
      %v1322 = vsub.s32 0, %v1321
      %v1323 = vrot.slane %v1318, %v1322
      %v1324 = vlaneseq
      %v1325 = vshrl.u32 %v1324, 7
      %v1326 = vsub.s32 1, %v1325
      %v1327 = vrot.slane %v1318, %v1326
      %v1330 = vmul.f32 %v1314, %v1323
      %v1331 = vmul.f32 %v1310, %v1327
      %v1332 = vmul.f32 %v1315, %v1323
      %v1333 = vmul.f32 %v1311, %v1327
      %v1334 = vmul.f32 %v1316, %v1323
      %v1335 = vmul.f32 %v1312, %v1327
      %v1336 = vmul.f32 %v1317, %v1323
      %v1337 = vmul.f32 %v1313, %v1327
      %v1338 = vpack.c.bf16 %v1332, %v1330
      %v1339 = vpack.c.bf16 %v1333, %v1331
      %v1340 = vpack.c.bf16 %v1336, %v1334
      %v1341 = vpack.c.bf16 %v1337, %v1335
      %1342 = vst [vmem:[#allocation2 + $0x60] sm:$0xff] %v1338
      %1343 = vst [vmem:[#allocation2 + $0x68] sm:$0xff] %v1339
      %1344 = vst [vmem:[#allocation2 + $0x70] sm:$0xff] %v1340
      %1345 = vst [vmem:[#allocation2 + $0x78] sm:$0xff] %v1341
      %v1346 = vpack.c.bf16 %v1118, %v1116
      %v1347 = vpack.c.bf16 %v1119, %v1117
      %v1348 = vpack.c.bf16 %v1122, %v1120
      %v1349 = vpack.c.bf16 %v1123, %v1121
      %1350 = vst [vmem:[#allocation2 + $0x80] sm:$0xff] %v1346
      %1351 = vst [vmem:[#allocation2 + $0x88] sm:$0xff] %v1347
      %1352 = vst [vmem:[#allocation2 + $0x90] sm:$0xff] %v1348
      %1353 = vst [vmem:[#allocation2 + $0x98] sm:$0xff] %v1349
      %1354 = vrot.lane.b32.xlu0 %v1116, 127
      %v1355 = vpop.permute.xlu0 %1354
      %1356 = vrot.lane.b32.xlu0 %v1118, 127
      %v1357 = vpop.permute.xlu0 %1356
      %1358 = vrot.lane.b32.xlu0 %v1120, 127
      %v1359 = vpop.permute.xlu0 %1358
      %1360 = vrot.lane.b32.xlu0 %v1122, 127
      %v1361 = vpop.permute.xlu0 %1360
      %1362 = vrot.lane.b32.xlu0 %v1117, 127
      %v1363 = vpop.permute.xlu0 %1362
      %1364 = vrot.lane.b32.xlu0 %v1119, 127
      %v1365 = vpop.permute.xlu0 %1364
      %1366 = vrot.lane.b32.xlu0 %v1121, 127
      %v1367 = vpop.permute.xlu0 %1366
      %1368 = vrot.lane.b32.xlu0 %v1123, 127
      %v1369 = vpop.permute.xlu0 %1368
      %v1370 = vsel %vm717, %v1355, %v1363
      %v1371 = vsel %vm717, %v1357, %v1365
      %v1372 = vsel %vm717, %v1359, %v1367
      %v1373 = vsel %vm717, %v1361, %v1369
      %v1374 = vsel %vm717, %v1363, %v1355
      %v1375 = vsel %vm717, %v1365, %v1357
      %v1376 = vsel %vm717, %v1367, %v1359
      %v1377 = vsel %vm717, %v1369, %v1361
      %v1378 = vld [vmem:[%s726] sm:$0x3]
      %v1380 = vlaneseq
      %v1381 = vshrl.u32 %v1380, 7
      %v1382 = vsub.s32 0, %v1381
      %v1383 = vrot.slane %v1378, %v1382
      %v1384 = vlaneseq
      %v1385 = vshrl.u32 %v1384, 7
      %v1386 = vsub.s32 1, %v1385
      %v1387 = vrot.slane %v1378, %v1386
      %v1390 = vmul.f32 %v1370, %v1383
      %v1391 = vmul.f32 %v1374, %v1387
      %v1392 = vmul.f32 %v1371, %v1383
      %v1393 = vmul.f32 %v1375, %v1387
      %v1394 = vmul.f32 %v1372, %v1383
      %v1395 = vmul.f32 %v1376, %v1387
      %v1396 = vmul.f32 %v1373, %v1383
      %v1397 = vmul.f32 %v1377, %v1387
      %v1398 = vpack.c.bf16 %v1392, %v1390
      %v1399 = vpack.c.bf16 %v1393, %v1391
      %v1400 = vpack.c.bf16 %v1396, %v1394
      %v1401 = vpack.c.bf16 %v1397, %v1395
      %1402 = vst [vmem:[#allocation2 + $0xa0] sm:$0xff] %v1398
      %1403 = vst [vmem:[#allocation2 + $0xa8] sm:$0xff] %v1399
      %1404 = vst [vmem:[#allocation2 + $0xb0] sm:$0xff] %v1400
      %1405 = vst [vmem:[#allocation2 + $0xb8] sm:$0xff] %v1401
      %1406 = vrot.lane.b32.xlu0 %v1116, 113
      %v1407 = vpop.permute.xlu0 %1406
      %1408 = vrot.lane.b32.xlu0 %v1118, 113
      %v1409 = vpop.permute.xlu0 %1408
      %1410 = vrot.lane.b32.xlu0 %v1120, 113
      %v1411 = vpop.permute.xlu0 %1410
      %1412 = vrot.lane.b32.xlu0 %v1122, 113
      %v1413 = vpop.permute.xlu0 %1412
      %1414 = vrot.lane.b32.xlu0 %v1117, 113
      %v1415 = vpop.permute.xlu0 %1414
      %1416 = vrot.lane.b32.xlu0 %v1119, 113
      %v1417 = vpop.permute.xlu0 %1416
      %1418 = vrot.lane.b32.xlu0 %v1121, 113
      %v1419 = vpop.permute.xlu0 %1418
      %1420 = vrot.lane.b32.xlu0 %v1123, 113
      %v1421 = vpop.permute.xlu0 %1420
      %v1422 = vsel %vm771, %v1407, %v1415
      %v1423 = vsel %vm771, %v1409, %v1417
      %v1424 = vsel %vm771, %v1411, %v1419
      %v1425 = vsel %vm771, %v1413, %v1421
      %v1426 = vsel %vm771, %v1415, %v1407
      %v1427 = vsel %vm771, %v1417, %v1409
      %v1428 = vsel %vm771, %v1419, %v1411
      %v1429 = vsel %vm771, %v1421, %v1413
      %v1430 = vld [vmem:[%s780] sm:$0x3]
      %v1432 = vlaneseq
      %v1433 = vshrl.u32 %v1432, 7
      %v1434 = vsub.s32 0, %v1433
      %v1435 = vrot.slane %v1430, %v1434
      %v1436 = vlaneseq
      %v1437 = vshrl.u32 %v1436, 7
      %v1438 = vsub.s32 1, %v1437
      %v1439 = vrot.slane %v1430, %v1438
      %v1442 = vmul.f32 %v1422, %v1435
      %v1443 = vmul.f32 %v1426, %v1439
      %v1444 = vmul.f32 %v1423, %v1435
      %v1445 = vmul.f32 %v1427, %v1439
      %v1446 = vmul.f32 %v1424, %v1435
      %v1447 = vmul.f32 %v1428, %v1439
      %v1448 = vmul.f32 %v1425, %v1435
      %v1449 = vmul.f32 %v1429, %v1439
      %v1450 = vpack.c.bf16 %v1444, %v1442
      %v1451 = vpack.c.bf16 %v1445, %v1443
      %v1452 = vpack.c.bf16 %v1448, %v1446
      %v1453 = vpack.c.bf16 %v1449, %v1447
      %1454 = vst [vmem:[#allocation2 + $0xc0] sm:$0xff] %v1450
      %1455 = vst [vmem:[#allocation2 + $0xc8] sm:$0xff] %v1451
      %1456 = vst [vmem:[#allocation2 + $0xd0] sm:$0xff] %v1452
      %1457 = vst [vmem:[#allocation2 + $0xd8] sm:$0xff] %v1453
      %1458 = vrot.lane.b32.xlu0 %v1116, 112
      %v1459 = vpop.permute.xlu0 %1458
      %1460 = vrot.lane.b32.xlu0 %v1118, 112
      %v1461 = vpop.permute.xlu0 %1460
      %1462 = vrot.lane.b32.xlu0 %v1120, 112
      %v1463 = vpop.permute.xlu0 %1462
      %1464 = vrot.lane.b32.xlu0 %v1122, 112
      %v1465 = vpop.permute.xlu0 %1464
      %1466 = vrot.lane.b32.xlu0 %v1117, 112
      %v1467 = vpop.permute.xlu0 %1466
      %1468 = vrot.lane.b32.xlu0 %v1119, 112
      %v1469 = vpop.permute.xlu0 %1468
      %1470 = vrot.lane.b32.xlu0 %v1121, 112
      %v1471 = vpop.permute.xlu0 %1470
      %1472 = vrot.lane.b32.xlu0 %v1123, 112
      %v1473 = vpop.permute.xlu0 %1472
      %v1474 = vsel %vm825, %v1459, %v1467
      %v1475 = vsel %vm825, %v1461, %v1469
      %v1476 = vsel %vm825, %v1463, %v1471
      %v1477 = vsel %vm825, %v1465, %v1473
      %v1478 = vsel %vm825, %v1467, %v1459
      %v1479 = vsel %vm825, %v1469, %v1461
      %v1480 = vsel %vm825, %v1471, %v1463
      %v1481 = vsel %vm825, %v1473, %v1465
      %v1482 = vld [vmem:[%s834] sm:$0x3]
      %v1484 = vlaneseq
      %v1485 = vshrl.u32 %v1484, 7
      %v1486 = vsub.s32 0, %v1485
      %v1487 = vrot.slane %v1482, %v1486
      %v1488 = vlaneseq
      %v1489 = vshrl.u32 %v1488, 7
      %v1490 = vsub.s32 1, %v1489
      %v1491 = vrot.slane %v1482, %v1490
      %v1494 = vmul.f32 %v1474, %v1487
      %v1495 = vmul.f32 %v1478, %v1491
      %v1496 = vmul.f32 %v1475, %v1487
      %v1497 = vmul.f32 %v1479, %v1491
      %v1498 = vmul.f32 %v1476, %v1487
      %v1499 = vmul.f32 %v1480, %v1491
      %v1500 = vmul.f32 %v1477, %v1487
      %v1501 = vmul.f32 %v1481, %v1491
      %v1502 = vpack.c.bf16 %v1496, %v1494
      %v1503 = vpack.c.bf16 %v1497, %v1495
      %v1504 = vpack.c.bf16 %v1500, %v1498
      %v1505 = vpack.c.bf16 %v1501, %v1499
      %1506 = vst [vmem:[#allocation2 + $0xe0] sm:$0xff] %v1502
      %1507 = vst [vmem:[#allocation2 + $0xe8] sm:$0xff] %v1503
      %1508 = vst [vmem:[#allocation2 + $0xf0] sm:$0xff] %v1504
      %1509 = vst [vmem:[#allocation2 + $0xf8] sm:$0xff] %v1505
      %1510 = vrot.lane.b32.xlu0 %v1116, 111
      %v1511 = vpop.permute.xlu0 %1510
      %1512 = vrot.lane.b32.xlu0 %v1118, 111
      %v1513 = vpop.permute.xlu0 %1512
      %1514 = vrot.lane.b32.xlu0 %v1120, 111
      %v1515 = vpop.permute.xlu0 %1514
      %1516 = vrot.lane.b32.xlu0 %v1122, 111
      %v1517 = vpop.permute.xlu0 %1516
      %1518 = vrot.lane.b32.xlu0 %v1117, 111
      %v1519 = vpop.permute.xlu0 %1518
      %1520 = vrot.lane.b32.xlu0 %v1119, 111
      %v1521 = vpop.permute.xlu0 %1520
      %1522 = vrot.lane.b32.xlu0 %v1121, 111
      %v1523 = vpop.permute.xlu0 %1522
      %1524 = vrot.lane.b32.xlu0 %v1123, 111
      %v1525 = vpop.permute.xlu0 %1524
      %v1526 = vsel %vm879, %v1511, %v1519
      %v1527 = vsel %vm879, %v1513, %v1521
      %v1528 = vsel %vm879, %v1515, %v1523
      %v1529 = vsel %vm879, %v1517, %v1525
      %v1530 = vsel %vm879, %v1519, %v1511
      %v1531 = vsel %vm879, %v1521, %v1513
      %v1532 = vsel %vm879, %v1523, %v1515
      %v1533 = vsel %vm879, %v1525, %v1517
      %v1534 = vld [vmem:[%s888] sm:$0x3]
      %v1536 = vlaneseq
      %v1537 = vshrl.u32 %v1536, 7
      %v1538 = vsub.s32 0, %v1537
      %v1539 = vrot.slane %v1534, %v1538
      %v1540 = vlaneseq
      %v1541 = vshrl.u32 %v1540, 7
      %v1542 = vsub.s32 1, %v1541
      %v1543 = vrot.slane %v1534, %v1542
      %v1546 = vmul.f32 %v1526, %v1539
      %v1547 = vmul.f32 %v1530, %v1543
      %v1548 = vmul.f32 %v1527, %v1539
      %v1549 = vmul.f32 %v1531, %v1543
      %v1550 = vmul.f32 %v1528, %v1539
      %v1551 = vmul.f32 %v1532, %v1543
      %v1552 = vmul.f32 %v1529, %v1539
      %v1553 = vmul.f32 %v1533, %v1543
      %v1554 = vpack.c.bf16 %v1548, %v1546
      %v1555 = vpack.c.bf16 %v1549, %v1547
      %v1556 = vpack.c.bf16 %v1552, %v1550
      %v1557 = vpack.c.bf16 %v1553, %v1551
      %1558 = vst [vmem:[#allocation2 + $0x100] sm:$0xff] %v1554
      %1559 = vst [vmem:[#allocation2 + $0x108] sm:$0xff] %v1555
      %1560 = vst [vmem:[#allocation2 + $0x110] sm:$0xff] %v1556
      %1561 = vst [vmem:[#allocation2 + $0x118] sm:$0xff] %v1557
      %v1562 = vld [vmem:[#allocation2] sm:$0xff]
      %v1563 = vld [vmem:[#allocation2 + $0x8] sm:$0xff]
      %v1564 = vld [vmem:[#allocation2 + $0x10] sm:$0xff]
      %v1565 = vld [vmem:[#allocation2 + $0x18] sm:$0xff]
      %v1566 = vld [vmem:[#allocation2 + $0x20] sm:$0xff]
      %v1567 = vld [vmem:[#allocation2 + $0x28] sm:$0xff]
      %v1568 = vld [vmem:[#allocation2 + $0x30] sm:$0xff]
      %v1569 = vld [vmem:[#allocation2 + $0x38] sm:$0xff]
      %v1570 = vld [vmem:[#allocation2 + $0x40] sm:$0xff]
      %v1571 = vld [vmem:[#allocation2 + $0x48] sm:$0xff]
      %v1572 = vld [vmem:[#allocation2 + $0x50] sm:$0xff]
      %v1573 = vld [vmem:[#allocation2 + $0x58] sm:$0xff]
      %v1574 = vld [vmem:[#allocation2 + $0x60] sm:$0xff]
      %v1575 = vld [vmem:[#allocation2 + $0x68] sm:$0xff]
      %v1576 = vld [vmem:[#allocation2 + $0x70] sm:$0xff]
      %v1577 = vld [vmem:[#allocation2 + $0x78] sm:$0xff]
      %v1578 = vld [vmem:[#allocation2 + $0x80] sm:$0xff]
      %v1579 = vld [vmem:[#allocation2 + $0x88] sm:$0xff]
      %v1580 = vld [vmem:[#allocation2 + $0x90] sm:$0xff]
      %v1581 = vld [vmem:[#allocation2 + $0x98] sm:$0xff]
      %v1582 = vld [vmem:[#allocation2 + $0xa0] sm:$0xff]
      %v1583 = vld [vmem:[#allocation2 + $0xa8] sm:$0xff]
      %v1584 = vld [vmem:[#allocation2 + $0xb0] sm:$0xff]
      %v1585 = vld [vmem:[#allocation2 + $0xb8] sm:$0xff]
      %v1586 = vld [vmem:[#allocation2 + $0xc0] sm:$0xff]
      %v1587 = vld [vmem:[#allocation2 + $0xc8] sm:$0xff]
      %v1588 = vld [vmem:[#allocation2 + $0xd0] sm:$0xff]
      %v1589 = vld [vmem:[#allocation2 + $0xd8] sm:$0xff]
      %v1590 = vld [vmem:[#allocation2 + $0xe0] sm:$0xff]
      %v1591 = vld [vmem:[#allocation2 + $0xe8] sm:$0xff]
      %v1592 = vld [vmem:[#allocation2 + $0xf0] sm:$0xff]
      %v1593 = vld [vmem:[#allocation2 + $0xf8] sm:$0xff]
      %v1594 = vld [vmem:[#allocation2 + $0x100] sm:$0xff]
      %v1595 = vld [vmem:[#allocation2 + $0x108] sm:$0xff]
      %v1596 = vld [vmem:[#allocation2 + $0x110] sm:$0xff]
      %v1597 = vld [vmem:[#allocation2 + $0x118] sm:$0xff]
      %1599 = vset.pattern.permute.xlu0 0
      %1600 = vperm.xlu0 %1599, %v1134
      %v1601 = vpop.permute.xlu0 %1600
      %1604 = vset.pattern.permute.xlu0 0
      %1605 = vperm.xlu0 %1604, %v1135
      %v1606 = vpop.permute.xlu0 %1605
      %1609 = vset.pattern.permute.xlu0 0
      %1610 = vperm.xlu0 %1609, %v1136
      %v1611 = vpop.permute.xlu0 %1610
      %1614 = vset.pattern.permute.xlu0 0
      %1615 = vperm.xlu0 %1614, %v1137
      %v1616 = vpop.permute.xlu0 %1615
      %v1626 = vunpack.c.l.b16 %v1125
      %v1627 = vunpack.c.h.b16 %v1125
      %v1628 = vunpack.c.l.b16 %v1126
      %v1629 = vunpack.c.l.b16 %v1127
      %v1630 = vunpack.c.h.b16 %v1127
      %v1631 = vunpack.c.l.b16 %v1128
      %v1632 = vunpack.c.l.b16 %v1129
      %v1633 = vunpack.c.h.b16 %v1129
      %v1634 = vunpack.c.l.b16 %v1130
      %v1635 = vunpack.c.l.b16 %v1131
      %v1636 = vunpack.c.h.b16 %v1131
      %v1637 = vunpack.c.l.b16 %v1132
      %v1638 = vpack.c.b16 %v1629, %v1626
      %v1639 = vpack.c.b16 %v1630, %v1627
      %v1640 = vpack.c.b16 %v1631, %v1628
      %v1641 = vpack.c.b16 %v1635, %v1632
      %v1642 = vpack.c.b16 %v1636, %v1633
      %v1643 = vpack.c.b16 %v1637, %v1634
      %v1649 = vsel %vm1003, %v1640, 0
      %v1652 = vsel %vm1003, %v1643, 0
      %1654 = vmatprep.subr.bf16.mxu0 %v1563
      %1655 = vmatpush1.bf16.msra.mxu0 %v1562
      %1656 = vmatprep.subr.bf16.mxu0 %v1565
      %1657 = vmatpush1.bf16.msra.mxu0 %v1564
      %1658 = vmatprep.subr.bf16.mxu0 %v1567
      %1659 = vmatpush1.bf16.msra.mxu0 %v1566
      %1660 = vmatprep.subr.bf16.mxu0 %v1569
      %1661 = vmatpush1.bf16.msra.mxu0 %v1568
      %1662 = vmatprep.subr.bf16.mxu0 %v1571
      %1663 = vmatpush1.bf16.msra.mxu0 %v1570
      %1664 = vmatprep.subr.bf16.mxu0 %v1573
      %1665 = vmatpush1.bf16.msra.mxu0 %v1572
      %1666 = vmatprep.subr.bf16.mxu0 %v1575
      %1667 = vmatpush1.bf16.msra.mxu0 %v1574
      %1668 = vmatprep.subr.bf16.mxu0 %v1577
      %1669 = vmatpush1.bf16.msra.mxu0 %v1576
      %1670 = vmatprep.subr.bf16.mxu0 %v1579
      %1671 = vmatpush1.bf16.msra.mxu0 %v1578
      %1672 = vmatprep.subr.bf16.mxu0 %v1581
      %1673 = vmatpush1.bf16.msra.mxu0 %v1580
      %1674 = vmatprep.subr.bf16.mxu0 %v1583
      %1675 = vmatpush1.bf16.msra.mxu0 %v1582
      %1676 = vmatprep.subr.bf16.mxu0 %v1585
      %1677 = vmatpush1.bf16.msra.mxu0 %v1584
      %1678 = vmatprep.subr.bf16.mxu0 %v1587
      %1679 = vmatpush1.bf16.msra.mxu0 %v1586
      %1680 = vmatprep.subr.bf16.mxu0 %v1589
      %1681 = vmatpush1.bf16.msra.mxu0 %v1588
      %1682 = vmatprep.subr.bf16.mxu0 %v1591
      %1683 = vmatpush1.bf16.msra.mxu0 %v1590
      %1684 = vmatprep.subr.bf16.mxu0 %v1593
      %1685 = vmatpush1.bf16.msra.mxu0 %v1592
      %1686 = vmatprep.mubr.bf16.mxu0 %v1639
      %1687 = vmatmul.mubr.bf16.gmra.mrb[0].mxu0 %v1638
      %v1688 = vpop.f32.mrb[0].mxu0
      %v1689 = vadd.f32 %v1601, %v1688
      %v1690 = vpop.f32.mrb[0].mxu0
      %v1691 = vadd.f32 %v1601, %v1690
      %v1692 = vpop.f32.mrb[0].mxu0
      %v1693 = vadd.f32 %v1606, %v1692
      %v1694 = vpop.f32.mrb[0].mxu0
      %v1695 = vadd.f32 %v1606, %v1694
      %1696 = vmatprep.mubr.bf16.mxu0 %v1642
      %1697 = vmatmul.mubr.bf16.gmra.mrb[0].mxu0 %v1641
      %v1698 = vpop.f32.mrb[0].mxu0
      %v1699 = vadd.f32 %v1611, %v1698
      %v1700 = vpop.f32.mrb[0].mxu0
      %v1701 = vadd.f32 %v1611, %v1700
      %v1702 = vpop.f32.mrb[0].mxu0
      %v1703 = vadd.f32 %v1616, %v1702
      %v1704 = vpop.f32.mrb[0].mxu0
      %v1705 = vadd.f32 %v1616, %v1704
      %1706 = vdwg.mxu0
      %1707 = vmatprep.subr.bf16.mxu0 %v1595
      %1708 = vmatpush1.bf16.msra.mxu0 %v1594
      %1709 = vmatprep.subr.bf16.mxu0 %v1597
      %1710 = vmatpush1.bf16.msra.mxu0 %v1596
      %1711 = vmatprep.subr.bf16.mxu0 0
      %1712 = vmatpush1.bf16.msra.mxu0 0
      %1713 = vmatprep.subr.bf16.mxu0 0
      %1714 = vmatpush1.bf16.msra.mxu0 0
      %1715 = vmatprep.subr.bf16.mxu0 0
      %1716 = vmatpush1.bf16.msra.mxu0 0
      %1717 = vmatprep.subr.bf16.mxu0 0
      %1718 = vmatpush1.bf16.msra.mxu0 0
      %1719 = vmatprep.subr.bf16.mxu0 0
      %1720 = vmatpush1.bf16.msra.mxu0 0
      %1721 = vmatprep.subr.bf16.mxu0 0
      %1722 = vmatpush1.bf16.msra.mxu0 0
      %1723 = vmatprep.subr.bf16.mxu0 0
      %1724 = vmatpush1.bf16.msra.mxu0 0
      %1725 = vmatprep.subr.bf16.mxu0 0
      %1726 = vmatpush1.bf16.msra.mxu0 0
      %1727 = vmatprep.subr.bf16.mxu0 0
      %1728 = vmatpush1.bf16.msra.mxu0 0
      %1729 = vmatprep.subr.bf16.mxu0 0
      %1730 = vmatpush1.bf16.msra.mxu0 0
      %1731 = vmatprep.subr.bf16.mxu0 0
      %1732 = vmatpush1.bf16.msra.mxu0 0
      %1733 = vmatprep.subr.bf16.mxu0 0
      %1734 = vmatpush1.bf16.msra.mxu0 0
      %1735 = vmatprep.subr.bf16.mxu0 0
      %1736 = vmatpush1.bf16.msra.mxu0 0
      %1737 = vmatprep.subr.bf16.mxu0 0
      %1738 = vmatpush1.bf16.msra.mxu0 0
      %1739 = vmatprep.mubr.bf16.mxu0 0
      %1740 = vmatmul.mubr.bf16.gmra.mrb[0].mxu0 %v1649
      %v1741 = vpop.f32.mrb[0].mxu0
      %v1742 = vadd.f32 %v1689, %v1741
      %v1743 = vpop.f32.mrb[0].mxu0
      %v1744 = vadd.f32 %v1691, %v1743
      %v1745 = vpop.f32.mrb[0].mxu0
      %v1746 = vadd.f32 %v1693, %v1745
      %v1747 = vpop.f32.mrb[0].mxu0
      %v1748 = vadd.f32 %v1695, %v1747
      %1749 = vmatprep.mubr.bf16.mxu0 0
      %1750 = vmatmul.mubr.bf16.gmra.mrb[0].mxu0 %v1652
      %v1751 = vpop.f32.mrb[0].mxu0
      %v1752 = vadd.f32 %v1699, %v1751
      %v1753 = vpop.f32.mrb[0].mxu0
      %v1754 = vadd.f32 %v1701, %v1753
      %v1755 = vpop.f32.mrb[0].mxu0
      %v1756 = vadd.f32 %v1703, %v1755
      %v1757 = vpop.f32.mrb[0].mxu0
      %v1758 = vadd.f32 %v1705, %v1757
      %1759 = vdwg.mxu0
      %v1760 = vadd.f32 %v448, %v1742
      %v1761 = vadd.f32 %v449, %v1744
      %v1762 = vadd.f32 %v450, %v1746
      %v1763 = vadd.f32 %v451, %v1748
      %v1764 = vadd.f32 %v452, %v1752
      %v1765 = vadd.f32 %v453, %v1754
      %v1766 = vadd.f32 %v454, %v1756
      %v1767 = vadd.f32 %v455, %v1758
      %s1768 = scalar_lea.vmem %s3, 96
      %v1769 = vld [vmem:[%s1768] sm:$0xff]
      %v1770 = vld [vmem:[%s1768 + $0x8] sm:$0xf]
      %v1771 = vld [vmem:[%s1768 + $0xc] sm:$0xff]
      %v1772 = vld [vmem:[%s1768 + $0x14] sm:$0xf]
      %v1773 = vld [vmem:[%s1768 + $0x18] sm:$0xff]
      %v1774 = vld [vmem:[%s1768 + $0x20] sm:$0xf]
      %v1775 = vld [vmem:[%s1768 + $0x24] sm:$0xff]
      %v1776 = vld [vmem:[%s1768 + $0x2c] sm:$0xf]
      %s1777 = scalar_lea.vmem %s4, 64
      %v1778 = vld [vmem:[%s1777] sm:$0xff]
      %v1779 = vld [vmem:[%s1777 + $0x8] sm:$0xff]
      %v1780 = vld [vmem:[%s1777 + $0x10] sm:$0xff]
      %v1781 = vld [vmem:[%s1777 + $0x18] sm:$0xff]
      %1782 = vrot.lane.b32.xlu0 %v1760, 17
      %v1783 = vpop.permute.xlu0 %1782
      %1784 = vrot.lane.b32.xlu0 %v1762, 17
      %v1785 = vpop.permute.xlu0 %1784
      %1786 = vrot.lane.b32.xlu0 %v1764, 17
      %v1787 = vpop.permute.xlu0 %1786
      %1788 = vrot.lane.b32.xlu0 %v1766, 17
      %v1789 = vpop.permute.xlu0 %1788
      %1790 = vrot.lane.b32.xlu0 %v1761, 17
      %v1791 = vpop.permute.xlu0 %1790
      %1792 = vrot.lane.b32.xlu0 %v1763, 17
      %v1793 = vpop.permute.xlu0 %1792
      %1794 = vrot.lane.b32.xlu0 %v1765, 17
      %v1795 = vpop.permute.xlu0 %1794
      %1796 = vrot.lane.b32.xlu0 %v1767, 17
      %v1797 = vpop.permute.xlu0 %1796
      %v1798 = vsel %vm494, %v1783, %v1791
      %v1799 = vsel %vm494, %v1785, %v1793
      %v1800 = vsel %vm494, %v1787, %v1795
      %v1801 = vsel %vm494, %v1789, %v1797
      %v1802 = vsel %vm494, %v1791, %v1783
      %v1803 = vsel %vm494, %v1793, %v1785
      %v1804 = vsel %vm494, %v1795, %v1787
      %v1805 = vsel %vm494, %v1797, %v1789
      %v1806 = vld [vmem:[%s2] sm:$0x3]
      %v1808 = vlaneseq
      %v1809 = vshrl.u32 %v1808, 7
      %v1810 = vsub.s32 0, %v1809
      %v1811 = vrot.slane %v1806, %v1810
      %v1812 = vlaneseq
      %v1813 = vshrl.u32 %v1812, 7
      %v1814 = vsub.s32 1, %v1813
      %v1815 = vrot.slane %v1806, %v1814
      %v1818 = vmul.f32 %v1802, %v1811
      %v1819 = vmul.f32 %v1798, %v1815
      %v1820 = vmul.f32 %v1803, %v1811
      %v1821 = vmul.f32 %v1799, %v1815
      %v1822 = vmul.f32 %v1804, %v1811
      %v1823 = vmul.f32 %v1800, %v1815
      %v1824 = vmul.f32 %v1805, %v1811
      %v1825 = vmul.f32 %v1801, %v1815
      %v1826 = vpack.c.bf16 %v1820, %v1818
      %v1827 = vpack.c.bf16 %v1821, %v1819
      %v1828 = vpack.c.bf16 %v1824, %v1822
      %v1829 = vpack.c.bf16 %v1825, %v1823
      %1830 = vst [vmem:[#allocation2] sm:$0xff] %v1826
      %1831 = vst [vmem:[#allocation2 + $0x8] sm:$0xff] %v1827
      %1832 = vst [vmem:[#allocation2 + $0x10] sm:$0xff] %v1828
      %1833 = vst [vmem:[#allocation2 + $0x18] sm:$0xff] %v1829
      %1834 = vrot.lane.b32.xlu0 %v1760, 16
      %v1835 = vpop.permute.xlu0 %1834
      %1836 = vrot.lane.b32.xlu0 %v1762, 16
      %v1837 = vpop.permute.xlu0 %1836
      %1838 = vrot.lane.b32.xlu0 %v1764, 16
      %v1839 = vpop.permute.xlu0 %1838
      %1840 = vrot.lane.b32.xlu0 %v1766, 16
      %v1841 = vpop.permute.xlu0 %1840
      %1842 = vrot.lane.b32.xlu0 %v1761, 16
      %v1843 = vpop.permute.xlu0 %1842
      %1844 = vrot.lane.b32.xlu0 %v1763, 16
      %v1845 = vpop.permute.xlu0 %1844
      %1846 = vrot.lane.b32.xlu0 %v1765, 16
      %v1847 = vpop.permute.xlu0 %1846
      %1848 = vrot.lane.b32.xlu0 %v1767, 16
      %v1849 = vpop.permute.xlu0 %1848
      %v1850 = vsel %vm547, %v1835, %v1843
      %v1851 = vsel %vm547, %v1837, %v1845
      %v1852 = vsel %vm547, %v1839, %v1847
      %v1853 = vsel %vm547, %v1841, %v1849
      %v1854 = vsel %vm547, %v1843, %v1835
      %v1855 = vsel %vm547, %v1845, %v1837
      %v1856 = vsel %vm547, %v1847, %v1839
      %v1857 = vsel %vm547, %v1849, %v1841
      %v1858 = vld [vmem:[%s556] sm:$0x3]
      %v1860 = vlaneseq
      %v1861 = vshrl.u32 %v1860, 7
      %v1862 = vsub.s32 0, %v1861
      %v1863 = vrot.slane %v1858, %v1862
      %v1864 = vlaneseq
      %v1865 = vshrl.u32 %v1864, 7
      %v1866 = vsub.s32 1, %v1865
      %v1867 = vrot.slane %v1858, %v1866
      %v1870 = vmul.f32 %v1854, %v1863
      %v1871 = vmul.f32 %v1850, %v1867
      %v1872 = vmul.f32 %v1855, %v1863
      %v1873 = vmul.f32 %v1851, %v1867
      %v1874 = vmul.f32 %v1856, %v1863
      %v1875 = vmul.f32 %v1852, %v1867
      %v1876 = vmul.f32 %v1857, %v1863
      %v1877 = vmul.f32 %v1853, %v1867
      %v1878 = vpack.c.bf16 %v1872, %v1870
      %v1879 = vpack.c.bf16 %v1873, %v1871
      %v1880 = vpack.c.bf16 %v1876, %v1874
      %v1881 = vpack.c.bf16 %v1877, %v1875
      %1882 = vst [vmem:[#allocation2 + $0x20] sm:$0xff] %v1878
      %1883 = vst [vmem:[#allocation2 + $0x28] sm:$0xff] %v1879
      %1884 = vst [vmem:[#allocation2 + $0x30] sm:$0xff] %v1880
      %1885 = vst [vmem:[#allocation2 + $0x38] sm:$0xff] %v1881
      %1886 = vrot.lane.b32.xlu0 %v1760, 15
      %v1887 = vpop.permute.xlu0 %1886
      %1888 = vrot.lane.b32.xlu0 %v1762, 15
      %v1889 = vpop.permute.xlu0 %1888
      %1890 = vrot.lane.b32.xlu0 %v1764, 15
      %v1891 = vpop.permute.xlu0 %1890
      %1892 = vrot.lane.b32.xlu0 %v1766, 15
      %v1893 = vpop.permute.xlu0 %1892
      %1894 = vrot.lane.b32.xlu0 %v1761, 15
      %v1895 = vpop.permute.xlu0 %1894
      %1896 = vrot.lane.b32.xlu0 %v1763, 15
      %v1897 = vpop.permute.xlu0 %1896
      %1898 = vrot.lane.b32.xlu0 %v1765, 15
      %v1899 = vpop.permute.xlu0 %1898
      %1900 = vrot.lane.b32.xlu0 %v1767, 15
      %v1901 = vpop.permute.xlu0 %1900
      %v1902 = vsel %vm601, %v1887, %v1895
      %v1903 = vsel %vm601, %v1889, %v1897
      %v1904 = vsel %vm601, %v1891, %v1899
      %v1905 = vsel %vm601, %v1893, %v1901
      %v1906 = vsel %vm601, %v1895, %v1887
      %v1907 = vsel %vm601, %v1897, %v1889
      %v1908 = vsel %vm601, %v1899, %v1891
      %v1909 = vsel %vm601, %v1901, %v1893
      %v1910 = vld [vmem:[%s610] sm:$0x3]
      %v1912 = vlaneseq
      %v1913 = vshrl.u32 %v1912, 7
      %v1914 = vsub.s32 0, %v1913
      %v1915 = vrot.slane %v1910, %v1914
      %v1916 = vlaneseq
      %v1917 = vshrl.u32 %v1916, 7
      %v1918 = vsub.s32 1, %v1917
      %v1919 = vrot.slane %v1910, %v1918
      %v1922 = vmul.f32 %v1906, %v1915
      %v1923 = vmul.f32 %v1902, %v1919
      %v1924 = vmul.f32 %v1907, %v1915
      %v1925 = vmul.f32 %v1903, %v1919
      %v1926 = vmul.f32 %v1908, %v1915
      %v1927 = vmul.f32 %v1904, %v1919
      %v1928 = vmul.f32 %v1909, %v1915
      %v1929 = vmul.f32 %v1905, %v1919
      %v1930 = vpack.c.bf16 %v1924, %v1922
      %v1931 = vpack.c.bf16 %v1925, %v1923
      %v1932 = vpack.c.bf16 %v1928, %v1926
      %v1933 = vpack.c.bf16 %v1929, %v1927
      %1934 = vst [vmem:[#allocation2 + $0x40] sm:$0xff] %v1930
      %1935 = vst [vmem:[#allocation2 + $0x48] sm:$0xff] %v1931
      %1936 = vst [vmem:[#allocation2 + $0x50] sm:$0xff] %v1932
      %1937 = vst [vmem:[#allocation2 + $0x58] sm:$0xff] %v1933
      %1938 = vrot.lane.b32.xlu0 %v1760, 1
      %v1939 = vpop.permute.xlu0 %1938
      %1940 = vrot.lane.b32.xlu0 %v1762, 1
      %v1941 = vpop.permute.xlu0 %1940
      %1942 = vrot.lane.b32.xlu0 %v1764, 1
      %v1943 = vpop.permute.xlu0 %1942
      %1944 = vrot.lane.b32.xlu0 %v1766, 1
      %v1945 = vpop.permute.xlu0 %1944
      %1946 = vrot.lane.b32.xlu0 %v1761, 1
      %v1947 = vpop.permute.xlu0 %1946
      %1948 = vrot.lane.b32.xlu0 %v1763, 1
      %v1949 = vpop.permute.xlu0 %1948
      %1950 = vrot.lane.b32.xlu0 %v1765, 1
      %v1951 = vpop.permute.xlu0 %1950
      %1952 = vrot.lane.b32.xlu0 %v1767, 1
      %v1953 = vpop.permute.xlu0 %1952
      %v1954 = vsel %vm655, %v1939, %v1947
      %v1955 = vsel %vm655, %v1941, %v1949
      %v1956 = vsel %vm655, %v1943, %v1951
      %v1957 = vsel %vm655, %v1945, %v1953
      %v1958 = vsel %vm655, %v1947, %v1939
      %v1959 = vsel %vm655, %v1949, %v1941
      %v1960 = vsel %vm655, %v1951, %v1943
      %v1961 = vsel %vm655, %v1953, %v1945
      %v1962 = vld [vmem:[%s664] sm:$0x3]
      %v1964 = vlaneseq
      %v1965 = vshrl.u32 %v1964, 7
      %v1966 = vsub.s32 0, %v1965
      %v1967 = vrot.slane %v1962, %v1966
      %v1968 = vlaneseq
      %v1969 = vshrl.u32 %v1968, 7
      %v1970 = vsub.s32 1, %v1969
      %v1971 = vrot.slane %v1962, %v1970
      %v1974 = vmul.f32 %v1958, %v1967
      %v1975 = vmul.f32 %v1954, %v1971
      %v1976 = vmul.f32 %v1959, %v1967
      %v1977 = vmul.f32 %v1955, %v1971
      %v1978 = vmul.f32 %v1960, %v1967
      %v1979 = vmul.f32 %v1956, %v1971
      %v1980 = vmul.f32 %v1961, %v1967
      %v1981 = vmul.f32 %v1957, %v1971
      %v1982 = vpack.c.bf16 %v1976, %v1974
      %v1983 = vpack.c.bf16 %v1977, %v1975
      %v1984 = vpack.c.bf16 %v1980, %v1978
      %v1985 = vpack.c.bf16 %v1981, %v1979
      %1986 = vst [vmem:[#allocation2 + $0x60] sm:$0xff] %v1982
      %1987 = vst [vmem:[#allocation2 + $0x68] sm:$0xff] %v1983
      %1988 = vst [vmem:[#allocation2 + $0x70] sm:$0xff] %v1984
      %1989 = vst [vmem:[#allocation2 + $0x78] sm:$0xff] %v1985
      %v1990 = vpack.c.bf16 %v1762, %v1760
      %v1991 = vpack.c.bf16 %v1763, %v1761
      %v1992 = vpack.c.bf16 %v1766, %v1764
      %v1993 = vpack.c.bf16 %v1767, %v1765
      %1994 = vst [vmem:[#allocation2 + $0x80] sm:$0xff] %v1990
      %1995 = vst [vmem:[#allocation2 + $0x88] sm:$0xff] %v1991
      %1996 = vst [vmem:[#allocation2 + $0x90] sm:$0xff] %v1992
      %1997 = vst [vmem:[#allocation2 + $0x98] sm:$0xff] %v1993
      %1998 = vrot.lane.b32.xlu0 %v1760, 127
      %v1999 = vpop.permute.xlu0 %1998
      %2000 = vrot.lane.b32.xlu0 %v1762, 127
      %v2001 = vpop.permute.xlu0 %2000
      %2002 = vrot.lane.b32.xlu0 %v1764, 127
      %v2003 = vpop.permute.xlu0 %2002
      %2004 = vrot.lane.b32.xlu0 %v1766, 127
      %v2005 = vpop.permute.xlu0 %2004
      %2006 = vrot.lane.b32.xlu0 %v1761, 127
      %v2007 = vpop.permute.xlu0 %2006
      %2008 = vrot.lane.b32.xlu0 %v1763, 127
      %v2009 = vpop.permute.xlu0 %2008
      %2010 = vrot.lane.b32.xlu0 %v1765, 127
      %v2011 = vpop.permute.xlu0 %2010
      %2012 = vrot.lane.b32.xlu0 %v1767, 127
      %v2013 = vpop.permute.xlu0 %2012
      %v2014 = vsel %vm717, %v1999, %v2007
      %v2015 = vsel %vm717, %v2001, %v2009
      %v2016 = vsel %vm717, %v2003, %v2011
      %v2017 = vsel %vm717, %v2005, %v2013
      %v2018 = vsel %vm717, %v2007, %v1999
      %v2019 = vsel %vm717, %v2009, %v2001
      %v2020 = vsel %vm717, %v2011, %v2003
      %v2021 = vsel %vm717, %v2013, %v2005
      %v2022 = vld [vmem:[%s726] sm:$0x3]
      %v2024 = vlaneseq
      %v2025 = vshrl.u32 %v2024, 7
      %v2026 = vsub.s32 0, %v2025
      %v2027 = vrot.slane %v2022, %v2026
      %v2028 = vlaneseq
      %v2029 = vshrl.u32 %v2028, 7
      %v2030 = vsub.s32 1, %v2029
      %v2031 = vrot.slane %v2022, %v2030
      %v2034 = vmul.f32 %v2014, %v2027
      %v2035 = vmul.f32 %v2018, %v2031
      %v2036 = vmul.f32 %v2015, %v2027
      %v2037 = vmul.f32 %v2019, %v2031
      %v2038 = vmul.f32 %v2016, %v2027
      %v2039 = vmul.f32 %v2020, %v2031
      %v2040 = vmul.f32 %v2017, %v2027
      %v2041 = vmul.f32 %v2021, %v2031
      %v2042 = vpack.c.bf16 %v2036, %v2034
      %v2043 = vpack.c.bf16 %v2037, %v2035
      %v2044 = vpack.c.bf16 %v2040, %v2038
      %v2045 = vpack.c.bf16 %v2041, %v2039
      %2046 = vst [vmem:[#allocation2 + $0xa0] sm:$0xff] %v2042
      %2047 = vst [vmem:[#allocation2 + $0xa8] sm:$0xff] %v2043
      %2048 = vst [vmem:[#allocation2 + $0xb0] sm:$0xff] %v2044
      %2049 = vst [vmem:[#allocation2 + $0xb8] sm:$0xff] %v2045
      %2050 = vrot.lane.b32.xlu0 %v1760, 113
      %v2051 = vpop.permute.xlu0 %2050
      %2052 = vrot.lane.b32.xlu0 %v1762, 113
      %v2053 = vpop.permute.xlu0 %2052
      %2054 = vrot.lane.b32.xlu0 %v1764, 113
      %v2055 = vpop.permute.xlu0 %2054
      %2056 = vrot.lane.b32.xlu0 %v1766, 113
      %v2057 = vpop.permute.xlu0 %2056
      %2058 = vrot.lane.b32.xlu0 %v1761, 113
      %v2059 = vpop.permute.xlu0 %2058
      %2060 = vrot.lane.b32.xlu0 %v1763, 113
      %v2061 = vpop.permute.xlu0 %2060
      %2062 = vrot.lane.b32.xlu0 %v1765, 113
      %v2063 = vpop.permute.xlu0 %2062
      %2064 = vrot.lane.b32.xlu0 %v1767, 113
      %v2065 = vpop.permute.xlu0 %2064
      %v2066 = vsel %vm771, %v2051, %v2059
      %v2067 = vsel %vm771, %v2053, %v2061
      %v2068 = vsel %vm771, %v2055, %v2063
      %v2069 = vsel %vm771, %v2057, %v2065
      %v2070 = vsel %vm771, %v2059, %v2051
      %v2071 = vsel %vm771, %v2061, %v2053
      %v2072 = vsel %vm771, %v2063, %v2055
      %v2073 = vsel %vm771, %v2065, %v2057
      %v2074 = vld [vmem:[%s780] sm:$0x3]
      %v2076 = vlaneseq
      %v2077 = vshrl.u32 %v2076, 7
      %v2078 = vsub.s32 0, %v2077
      %v2079 = vrot.slane %v2074, %v2078
      %v2080 = vlaneseq
      %v2081 = vshrl.u32 %v2080, 7
      %v2082 = vsub.s32 1, %v2081
      %v2083 = vrot.slane %v2074, %v2082
      %v2086 = vmul.f32 %v2066, %v2079
      %v2087 = vmul.f32 %v2070, %v2083
      %v2088 = vmul.f32 %v2067, %v2079
      %v2089 = vmul.f32 %v2071, %v2083
      %v2090 = vmul.f32 %v2068, %v2079
      %v2091 = vmul.f32 %v2072, %v2083
      %v2092 = vmul.f32 %v2069, %v2079
      %v2093 = vmul.f32 %v2073, %v2083
      %v2094 = vpack.c.bf16 %v2088, %v2086
      %v2095 = vpack.c.bf16 %v2089, %v2087
      %v2096 = vpack.c.bf16 %v2092, %v2090
      %v2097 = vpack.c.bf16 %v2093, %v2091
      %2098 = vst [vmem:[#allocation2 + $0xc0] sm:$0xff] %v2094
      %2099 = vst [vmem:[#allocation2 + $0xc8] sm:$0xff] %v2095
      %2100 = vst [vmem:[#allocation2 + $0xd0] sm:$0xff] %v2096
      %2101 = vst [vmem:[#allocation2 + $0xd8] sm:$0xff] %v2097
      %2102 = vrot.lane.b32.xlu0 %v1760, 112
      %v2103 = vpop.permute.xlu0 %2102
      %2104 = vrot.lane.b32.xlu0 %v1762, 112
      %v2105 = vpop.permute.xlu0 %2104
      %2106 = vrot.lane.b32.xlu0 %v1764, 112
      %v2107 = vpop.permute.xlu0 %2106
      %2108 = vrot.lane.b32.xlu0 %v1766, 112
      %v2109 = vpop.permute.xlu0 %2108
      %2110 = vrot.lane.b32.xlu0 %v1761, 112
      %v2111 = vpop.permute.xlu0 %2110
      %2112 = vrot.lane.b32.xlu0 %v1763, 112
      %v2113 = vpop.permute.xlu0 %2112
      %2114 = vrot.lane.b32.xlu0 %v1765, 112
      %v2115 = vpop.permute.xlu0 %2114
      %2116 = vrot.lane.b32.xlu0 %v1767, 112
      %v2117 = vpop.permute.xlu0 %2116
      %v2118 = vsel %vm825, %v2103, %v2111
      %v2119 = vsel %vm825, %v2105, %v2113
      %v2120 = vsel %vm825, %v2107, %v2115
      %v2121 = vsel %vm825, %v2109, %v2117
      %v2122 = vsel %vm825, %v2111, %v2103
      %v2123 = vsel %vm825, %v2113, %v2105
      %v2124 = vsel %vm825, %v2115, %v2107
      %v2125 = vsel %vm825, %v2117, %v2109
      %v2126 = vld [vmem:[%s834] sm:$0x3]
      %v2128 = vlaneseq
      %v2129 = vshrl.u32 %v2128, 7
      %v2130 = vsub.s32 0, %v2129
      %v2131 = vrot.slane %v2126, %v2130
      %v2132 = vlaneseq
      %v2133 = vshrl.u32 %v2132, 7
      %v2134 = vsub.s32 1, %v2133
      %v2135 = vrot.slane %v2126, %v2134
      %v2138 = vmul.f32 %v2118, %v2131
      %v2139 = vmul.f32 %v2122, %v2135
      %v2140 = vmul.f32 %v2119, %v2131
      %v2141 = vmul.f32 %v2123, %v2135
      %v2142 = vmul.f32 %v2120, %v2131
      %v2143 = vmul.f32 %v2124, %v2135
      %v2144 = vmul.f32 %v2121, %v2131
      %v2145 = vmul.f32 %v2125, %v2135
      %v2146 = vpack.c.bf16 %v2140, %v2138
      %v2147 = vpack.c.bf16 %v2141, %v2139
      %v2148 = vpack.c.bf16 %v2144, %v2142
      %v2149 = vpack.c.bf16 %v2145, %v2143
      %2150 = vst [vmem:[#allocation2 + $0xe0] sm:$0xff] %v2146
      %2151 = vst [vmem:[#allocation2 + $0xe8] sm:$0xff] %v2147
      %2152 = vst [vmem:[#allocation2 + $0xf0] sm:$0xff] %v2148
      %2153 = vst [vmem:[#allocation2 + $0xf8] sm:$0xff] %v2149
      %2154 = vrot.lane.b32.xlu0 %v1760, 111
      %v2155 = vpop.permute.xlu0 %2154
      %2156 = vrot.lane.b32.xlu0 %v1762, 111
      %v2157 = vpop.permute.xlu0 %2156
      %2158 = vrot.lane.b32.xlu0 %v1764, 111
      %v2159 = vpop.permute.xlu0 %2158
      %2160 = vrot.lane.b32.xlu0 %v1766, 111
      %v2161 = vpop.permute.xlu0 %2160
      %2162 = vrot.lane.b32.xlu0 %v1761, 111
      %v2163 = vpop.permute.xlu0 %2162
      %2164 = vrot.lane.b32.xlu0 %v1763, 111
      %v2165 = vpop.permute.xlu0 %2164
      %2166 = vrot.lane.b32.xlu0 %v1765, 111
      %v2167 = vpop.permute.xlu0 %2166
      %2168 = vrot.lane.b32.xlu0 %v1767, 111
      %v2169 = vpop.permute.xlu0 %2168
      %v2170 = vsel %vm879, %v2155, %v2163
      %v2171 = vsel %vm879, %v2157, %v2165
      %v2172 = vsel %vm879, %v2159, %v2167
      %v2173 = vsel %vm879, %v2161, %v2169
      %v2174 = vsel %vm879, %v2163, %v2155
      %v2175 = vsel %vm879, %v2165, %v2157
      %v2176 = vsel %vm879, %v2167, %v2159
      %v2177 = vsel %vm879, %v2169, %v2161
      %v2178 = vld [vmem:[%s888] sm:$0x3]
      %v2180 = vlaneseq
      %v2181 = vshrl.u32 %v2180, 7
      %v2182 = vsub.s32 0, %v2181
      %v2183 = vrot.slane %v2178, %v2182
      %v2184 = vlaneseq
      %v2185 = vshrl.u32 %v2184, 7
      %v2186 = vsub.s32 1, %v2185
      %v2187 = vrot.slane %v2178, %v2186
      %v2190 = vmul.f32 %v2170, %v2183
      %v2191 = vmul.f32 %v2174, %v2187
      %v2192 = vmul.f32 %v2171, %v2183
      %v2193 = vmul.f32 %v2175, %v2187
      %v2194 = vmul.f32 %v2172, %v2183
      %v2195 = vmul.f32 %v2176, %v2187
      %v2196 = vmul.f32 %v2173, %v2183
      %v2197 = vmul.f32 %v2177, %v2187
      %v2198 = vpack.c.bf16 %v2192, %v2190
      %v2199 = vpack.c.bf16 %v2193, %v2191
      %v2200 = vpack.c.bf16 %v2196, %v2194
      %v2201 = vpack.c.bf16 %v2197, %v2195
      %2202 = vst [vmem:[#allocation2 + $0x100] sm:$0xff] %v2198
      %2203 = vst [vmem:[#allocation2 + $0x108] sm:$0xff] %v2199
      %2204 = vst [vmem:[#allocation2 + $0x110] sm:$0xff] %v2200
      %2205 = vst [vmem:[#allocation2 + $0x118] sm:$0xff] %v2201
      %v2206 = vld [vmem:[#allocation2] sm:$0xff]
      %v2207 = vld [vmem:[#allocation2 + $0x8] sm:$0xff]
      %v2208 = vld [vmem:[#allocation2 + $0x10] sm:$0xff]
      %v2209 = vld [vmem:[#allocation2 + $0x18] sm:$0xff]
      %v2210 = vld [vmem:[#allocation2 + $0x20] sm:$0xff]
      %v2211 = vld [vmem:[#allocation2 + $0x28] sm:$0xff]
      %v2212 = vld [vmem:[#allocation2 + $0x30] sm:$0xff]
      %v2213 = vld [vmem:[#allocation2 + $0x38] sm:$0xff]
      %v2214 = vld [vmem:[#allocation2 + $0x40] sm:$0xff]
      %v2215 = vld [vmem:[#allocation2 + $0x48] sm:$0xff]
      %v2216 = vld [vmem:[#allocation2 + $0x50] sm:$0xff]
      %v2217 = vld [vmem:[#allocation2 + $0x58] sm:$0xff]
      %v2218 = vld [vmem:[#allocation2 + $0x60] sm:$0xff]
      %v2219 = vld [vmem:[#allocation2 + $0x68] sm:$0xff]
      %v2220 = vld [vmem:[#allocation2 + $0x70] sm:$0xff]
      %v2221 = vld [vmem:[#allocation2 + $0x78] sm:$0xff]
      %v2222 = vld [vmem:[#allocation2 + $0x80] sm:$0xff]
      %v2223 = vld [vmem:[#allocation2 + $0x88] sm:$0xff]
      %v2224 = vld [vmem:[#allocation2 + $0x90] sm:$0xff]
      %v2225 = vld [vmem:[#allocation2 + $0x98] sm:$0xff]
      %v2226 = vld [vmem:[#allocation2 + $0xa0] sm:$0xff]
      %v2227 = vld [vmem:[#allocation2 + $0xa8] sm:$0xff]
      %v2228 = vld [vmem:[#allocation2 + $0xb0] sm:$0xff]
      %v2229 = vld [vmem:[#allocation2 + $0xb8] sm:$0xff]
      %v2230 = vld [vmem:[#allocation2 + $0xc0] sm:$0xff]
      %v2231 = vld [vmem:[#allocation2 + $0xc8] sm:$0xff]
      %v2232 = vld [vmem:[#allocation2 + $0xd0] sm:$0xff]
      %v2233 = vld [vmem:[#allocation2 + $0xd8] sm:$0xff]
      %v2234 = vld [vmem:[#allocation2 + $0xe0] sm:$0xff]
      %v2235 = vld [vmem:[#allocation2 + $0xe8] sm:$0xff]
      %v2236 = vld [vmem:[#allocation2 + $0xf0] sm:$0xff]
      %v2237 = vld [vmem:[#allocation2 + $0xf8] sm:$0xff]
      %v2238 = vld [vmem:[#allocation2 + $0x100] sm:$0xff]
      %v2239 = vld [vmem:[#allocation2 + $0x108] sm:$0xff]
      %v2240 = vld [vmem:[#allocation2 + $0x110] sm:$0xff]
      %v2241 = vld [vmem:[#allocation2 + $0x118] sm:$0xff]
      %2243 = vset.pattern.permute.xlu0 0
      %2244 = vperm.xlu0 %2243, %v1778
      %v2245 = vpop.permute.xlu0 %2244
      %2248 = vset.pattern.permute.xlu0 0
      %2249 = vperm.xlu0 %2248, %v1779
      %v2250 = vpop.permute.xlu0 %2249
      %2253 = vset.pattern.permute.xlu0 0
      %2254 = vperm.xlu0 %2253, %v1780
      %v2255 = vpop.permute.xlu0 %2254
      %2258 = vset.pattern.permute.xlu0 0
      %2259 = vperm.xlu0 %2258, %v1781
      %v2260 = vpop.permute.xlu0 %2259
      %v2270 = vunpack.c.l.b16 %v1769
      %v2271 = vunpack.c.h.b16 %v1769
      %v2272 = vunpack.c.l.b16 %v1770
      %v2273 = vunpack.c.l.b16 %v1771
      %v2274 = vunpack.c.h.b16 %v1771
      %v2275 = vunpack.c.l.b16 %v1772
      %v2276 = vunpack.c.l.b16 %v1773
      %v2277 = vunpack.c.h.b16 %v1773
      %v2278 = vunpack.c.l.b16 %v1774
      %v2279 = vunpack.c.l.b16 %v1775
      %v2280 = vunpack.c.h.b16 %v1775
      %v2281 = vunpack.c.l.b16 %v1776
      %v2282 = vpack.c.b16 %v2273, %v2270
      %v2283 = vpack.c.b16 %v2274, %v2271
      %v2284 = vpack.c.b16 %v2275, %v2272
      %v2285 = vpack.c.b16 %v2279, %v2276
      %v2286 = vpack.c.b16 %v2280, %v2277
      %v2287 = vpack.c.b16 %v2281, %v2278
      %v2293 = vsel %vm1003, %v2284, 0
      %v2296 = vsel %vm1003, %v2287, 0
      %2298 = vmatprep.subr.bf16.mxu0 %v2207
      %2299 = vmatpush1.bf16.msra.mxu0 %v2206
      %2300 = vmatprep.subr.bf16.mxu0 %v2209
      %2301 = vmatpush1.bf16.msra.mxu0 %v2208
      %2302 = vmatprep.subr.bf16.mxu0 %v2211
      %2303 = vmatpush1.bf16.msra.mxu0 %v2210
      %2304 = vmatprep.subr.bf16.mxu0 %v2213
      %2305 = vmatpush1.bf16.msra.mxu0 %v2212
      %2306 = vmatprep.subr.bf16.mxu0 %v2215
      %2307 = vmatpush1.bf16.msra.mxu0 %v2214
      %2308 = vmatprep.subr.bf16.mxu0 %v2217
      %2309 = vmatpush1.bf16.msra.mxu0 %v2216
      %2310 = vmatprep.subr.bf16.mxu0 %v2219
      %2311 = vmatpush1.bf16.msra.mxu0 %v2218
      %2312 = vmatprep.subr.bf16.mxu0 %v2221
      %2313 = vmatpush1.bf16.msra.mxu0 %v2220
      %2314 = vmatprep.subr.bf16.mxu0 %v2223
      %2315 = vmatpush1.bf16.msra.mxu0 %v2222
      %2316 = vmatprep.subr.bf16.mxu0 %v2225
      %2317 = vmatpush1.bf16.msra.mxu0 %v2224
      %2318 = vmatprep.subr.bf16.mxu0 %v2227
      %2319 = vmatpush1.bf16.msra.mxu0 %v2226
      %2320 = vmatprep.subr.bf16.mxu0 %v2229
      %2321 = vmatpush1.bf16.msra.mxu0 %v2228
      %2322 = vmatprep.subr.bf16.mxu0 %v2231
      %2323 = vmatpush1.bf16.msra.mxu0 %v2230
      %2324 = vmatprep.subr.bf16.mxu0 %v2233
      %2325 = vmatpush1.bf16.msra.mxu0 %v2232
      %2326 = vmatprep.subr.bf16.mxu0 %v2235
      %2327 = vmatpush1.bf16.msra.mxu0 %v2234
      %2328 = vmatprep.subr.bf16.mxu0 %v2237
      %2329 = vmatpush1.bf16.msra.mxu0 %v2236
      %2330 = vmatprep.mubr.bf16.mxu0 %v2283
      %2331 = vmatmul.mubr.bf16.gmra.mrb[0].mxu0 %v2282
      %v2332 = vpop.f32.mrb[0].mxu0
      %v2333 = vadd.f32 %v2245, %v2332
      %v2334 = vpop.f32.mrb[0].mxu0
      %v2335 = vadd.f32 %v2245, %v2334
      %v2336 = vpop.f32.mrb[0].mxu0
      %v2337 = vadd.f32 %v2250, %v2336
      %v2338 = vpop.f32.mrb[0].mxu0
      %v2339 = vadd.f32 %v2250, %v2338
      %2340 = vmatprep.mubr.bf16.mxu0 %v2286
      %2341 = vmatmul.mubr.bf16.gmra.mrb[0].mxu0 %v2285
      %v2342 = vpop.f32.mrb[0].mxu0
      %v2343 = vadd.f32 %v2255, %v2342
      %v2344 = vpop.f32.mrb[0].mxu0
      %v2345 = vadd.f32 %v2255, %v2344
      %v2346 = vpop.f32.mrb[0].mxu0
      %v2347 = vadd.f32 %v2260, %v2346
      %v2348 = vpop.f32.mrb[0].mxu0
      %v2349 = vadd.f32 %v2260, %v2348
      %2350 = vdwg.mxu0
      %2351 = vmatprep.subr.bf16.mxu0 %v2239
      %2352 = vmatpush1.bf16.msra.mxu0 %v2238
      %2353 = vmatprep.subr.bf16.mxu0 %v2241
      %2354 = vmatpush1.bf16.msra.mxu0 %v2240
      %2355 = vmatprep.subr.bf16.mxu0 0
      %2356 = vmatpush1.bf16.msra.mxu0 0
      %2357 = vmatprep.subr.bf16.mxu0 0
      %2358 = vmatpush1.bf16.msra.mxu0 0
      %2359 = vmatprep.subr.bf16.mxu0 0
      %2360 = vmatpush1.bf16.msra.mxu0 0
      %2361 = vmatprep.subr.bf16.mxu0 0
      %2362 = vmatpush1.bf16.msra.mxu0 0
      %2363 = vmatprep.subr.bf16.mxu0 0
      %2364 = vmatpush1.bf16.msra.mxu0 0
      %2365 = vmatprep.subr.bf16.mxu0 0
      %2366 = vmatpush1.bf16.msra.mxu0 0
      %2367 = vmatprep.subr.bf16.mxu0 0
      %2368 = vmatpush1.bf16.msra.mxu0 0
      %2369 = vmatprep.subr.bf16.mxu0 0
      %2370 = vmatpush1.bf16.msra.mxu0 0
      %2371 = vmatprep.subr.bf16.mxu0 0
      %2372 = vmatpush1.bf16.msra.mxu0 0
      %2373 = vmatprep.subr.bf16.mxu0 0
      %2374 = vmatpush1.bf16.msra.mxu0 0
      %2375 = vmatprep.subr.bf16.mxu0 0
      %2376 = vmatpush1.bf16.msra.mxu0 0
      %2377 = vmatprep.subr.bf16.mxu0 0
      %2378 = vmatpush1.bf16.msra.mxu0 0
      %2379 = vmatprep.subr.bf16.mxu0 0
      %2380 = vmatpush1.bf16.msra.mxu0 0
      %2381 = vmatprep.subr.bf16.mxu0 0
      %2382 = vmatpush1.bf16.msra.mxu0 0
      %2383 = vmatprep.mubr.bf16.mxu0 0
      %2384 = vmatmul.mubr.bf16.gmra.mrb[0].mxu0 %v2293
      %v2385 = vpop.f32.mrb[0].mxu0
      %v2386 = vadd.f32 %v2333, %v2385
      %v2387 = vpop.f32.mrb[0].mxu0
      %v2388 = vadd.f32 %v2335, %v2387
      %v2389 = vpop.f32.mrb[0].mxu0
      %v2390 = vadd.f32 %v2337, %v2389
      %v2391 = vpop.f32.mrb[0].mxu0
      %v2392 = vadd.f32 %v2339, %v2391
      %2393 = vmatprep.mubr.bf16.mxu0 0
      %2394 = vmatmul.mubr.bf16.gmra.mrb[0].mxu0 %v2296
      %v2395 = vpop.f32.mrb[0].mxu0
      %v2396 = vadd.f32 %v2343, %v2395
      %v2397 = vpop.f32.mrb[0].mxu0
      %v2398 = vadd.f32 %v2345, %v2397
      %v2399 = vpop.f32.mrb[0].mxu0
      %v2400 = vadd.f32 %v2347, %v2399
      %v2401 = vpop.f32.mrb[0].mxu0
      %v2402 = vadd.f32 %v2349, %v2401
      %2403 = vdwg.mxu0
      %v2404 = vmax.f32 %v2386, 0.0
      %v2405 = vmax.f32 %v2388, 0.0
      %v2406 = vmax.f32 %v2390, 0.0
      %v2407 = vmax.f32 %v2392, 0.0
      %v2408 = vmax.f32 %v2396, 0.0
      %v2409 = vmax.f32 %v2398, 0.0
      %v2410 = vmax.f32 %v2400, 0.0
      %v2411 = vmax.f32 %v2402, 0.0
      %s2412 = scalar_lea.vmem %s3, 144
      %v2413 = vld [vmem:[%s2412] sm:$0xff]
      %v2414 = vld [vmem:[%s2412 + $0x8] sm:$0xf]
      %v2415 = vld [vmem:[%s2412 + $0xc] sm:$0xff]
      %v2416 = vld [vmem:[%s2412 + $0x14] sm:$0xf]
      %v2417 = vld [vmem:[%s2412 + $0x18] sm:$0xff]
      %v2418 = vld [vmem:[%s2412 + $0x20] sm:$0xf]
      %v2419 = vld [vmem:[%s2412 + $0x24] sm:$0xff]
      %v2420 = vld [vmem:[%s2412 + $0x2c] sm:$0xf]
      %s2421 = scalar_lea.vmem %s4, 96
      %v2422 = vld [vmem:[%s2421] sm:$0xff]
      %v2423 = vld [vmem:[%s2421 + $0x8] sm:$0xff]
      %v2424 = vld [vmem:[%s2421 + $0x10] sm:$0xff]
      %v2425 = vld [vmem:[%s2421 + $0x18] sm:$0xff]
      %2426 = vrot.lane.b32.xlu0 %v2404, 17
      %v2427 = vpop.permute.xlu0 %2426
      %2428 = vrot.lane.b32.xlu0 %v2406, 17
      %v2429 = vpop.permute.xlu0 %2428
      %2430 = vrot.lane.b32.xlu0 %v2408, 17
      %v2431 = vpop.permute.xlu0 %2430
      %2432 = vrot.lane.b32.xlu0 %v2410, 17
      %v2433 = vpop.permute.xlu0 %2432
      %2434 = vrot.lane.b32.xlu0 %v2405, 17
      %v2435 = vpop.permute.xlu0 %2434
      %2436 = vrot.lane.b32.xlu0 %v2407, 17
      %v2437 = vpop.permute.xlu0 %2436
      %2438 = vrot.lane.b32.xlu0 %v2409, 17
      %v2439 = vpop.permute.xlu0 %2438
      %2440 = vrot.lane.b32.xlu0 %v2411, 17
      %v2441 = vpop.permute.xlu0 %2440
      %v2442 = vsel %vm494, %v2427, %v2435
      %v2443 = vsel %vm494, %v2429, %v2437
      %v2444 = vsel %vm494, %v2431, %v2439
      %v2445 = vsel %vm494, %v2433, %v2441
      %v2446 = vsel %vm494, %v2435, %v2427
      %v2447 = vsel %vm494, %v2437, %v2429
      %v2448 = vsel %vm494, %v2439, %v2431
      %v2449 = vsel %vm494, %v2441, %v2433
      %v2450 = vld [vmem:[%s2] sm:$0x3]
      %v2452 = vlaneseq
      %v2453 = vshrl.u32 %v2452, 7
      %v2454 = vsub.s32 0, %v2453
      %v2455 = vrot.slane %v2450, %v2454
      %v2456 = vlaneseq
      %v2457 = vshrl.u32 %v2456, 7
      %v2458 = vsub.s32 1, %v2457
      %v2459 = vrot.slane %v2450, %v2458
      %v2462 = vmul.f32 %v2446, %v2455
      %v2463 = vmul.f32 %v2442, %v2459
      %v2464 = vmul.f32 %v2447, %v2455
      %v2465 = vmul.f32 %v2443, %v2459
      %v2466 = vmul.f32 %v2448, %v2455
      %v2467 = vmul.f32 %v2444, %v2459
      %v2468 = vmul.f32 %v2449, %v2455
      %v2469 = vmul.f32 %v2445, %v2459
      %v2470 = vpack.c.bf16 %v2464, %v2462
      %v2471 = vpack.c.bf16 %v2465, %v2463
      %v2472 = vpack.c.bf16 %v2468, %v2466
      %v2473 = vpack.c.bf16 %v2469, %v2467
      %2474 = vst [vmem:[#allocation2] sm:$0xff] %v2470
      %2475 = vst [vmem:[#allocation2 + $0x8] sm:$0xff] %v2471
      %2476 = vst [vmem:[#allocation2 + $0x10] sm:$0xff] %v2472
      %2477 = vst [vmem:[#allocation2 + $0x18] sm:$0xff] %v2473
      %2478 = vrot.lane.b32.xlu0 %v2404, 16
      %v2479 = vpop.permute.xlu0 %2478
      %2480 = vrot.lane.b32.xlu0 %v2406, 16
      %v2481 = vpop.permute.xlu0 %2480
      %2482 = vrot.lane.b32.xlu0 %v2408, 16
      %v2483 = vpop.permute.xlu0 %2482
      %2484 = vrot.lane.b32.xlu0 %v2410, 16
      %v2485 = vpop.permute.xlu0 %2484
      %2486 = vrot.lane.b32.xlu0 %v2405, 16
      %v2487 = vpop.permute.xlu0 %2486
      %2488 = vrot.lane.b32.xlu0 %v2407, 16
      %v2489 = vpop.permute.xlu0 %2488
      %2490 = vrot.lane.b32.xlu0 %v2409, 16
      %v2491 = vpop.permute.xlu0 %2490
      %2492 = vrot.lane.b32.xlu0 %v2411, 16
      %v2493 = vpop.permute.xlu0 %2492
      %v2494 = vsel %vm547, %v2479, %v2487
      %v2495 = vsel %vm547, %v2481, %v2489
      %v2496 = vsel %vm547, %v2483, %v2491
      %v2497 = vsel %vm547, %v2485, %v2493
      %v2498 = vsel %vm547, %v2487, %v2479
      %v2499 = vsel %vm547, %v2489, %v2481
      %v2500 = vsel %vm547, %v2491, %v2483
      %v2501 = vsel %vm547, %v2493, %v2485
      %v2502 = vld [vmem:[%s556] sm:$0x3]
      %v2504 = vlaneseq
      %v2505 = vshrl.u32 %v2504, 7
      %v2506 = vsub.s32 0, %v2505
      %v2507 = vrot.slane %v2502, %v2506
      %v2508 = vlaneseq
      %v2509 = vshrl.u32 %v2508, 7
      %v2510 = vsub.s32 1, %v2509
      %v2511 = vrot.slane %v2502, %v2510
      %v2514 = vmul.f32 %v2498, %v2507
      %v2515 = vmul.f32 %v2494, %v2511
      %v2516 = vmul.f32 %v2499, %v2507
      %v2517 = vmul.f32 %v2495, %v2511
      %v2518 = vmul.f32 %v2500, %v2507
      %v2519 = vmul.f32 %v2496, %v2511
      %v2520 = vmul.f32 %v2501, %v2507
      %v2521 = vmul.f32 %v2497, %v2511
      %v2522 = vpack.c.bf16 %v2516, %v2514
      %v2523 = vpack.c.bf16 %v2517, %v2515
      %v2524 = vpack.c.bf16 %v2520, %v2518
      %v2525 = vpack.c.bf16 %v2521, %v2519
      %2526 = vst [vmem:[#allocation2 + $0x20] sm:$0xff] %v2522
      %2527 = vst [vmem:[#allocation2 + $0x28] sm:$0xff] %v2523
      %2528 = vst [vmem:[#allocation2 + $0x30] sm:$0xff] %v2524
      %2529 = vst [vmem:[#allocation2 + $0x38] sm:$0xff] %v2525
      %2530 = vrot.lane.b32.xlu0 %v2404, 15
      %v2531 = vpop.permute.xlu0 %2530
      %2532 = vrot.lane.b32.xlu0 %v2406, 15
      %v2533 = vpop.permute.xlu0 %2532
      %2534 = vrot.lane.b32.xlu0 %v2408, 15
      %v2535 = vpop.permute.xlu0 %2534
      %2536 = vrot.lane.b32.xlu0 %v2410, 15
      %v2537 = vpop.permute.xlu0 %2536
      %2538 = vrot.lane.b32.xlu0 %v2405, 15
      %v2539 = vpop.permute.xlu0 %2538
      %2540 = vrot.lane.b32.xlu0 %v2407, 15
      %v2541 = vpop.permute.xlu0 %2540
      %2542 = vrot.lane.b32.xlu0 %v2409, 15
      %v2543 = vpop.permute.xlu0 %2542
      %2544 = vrot.lane.b32.xlu0 %v2411, 15
      %v2545 = vpop.permute.xlu0 %2544
      %v2546 = vsel %vm601, %v2531, %v2539
      %v2547 = vsel %vm601, %v2533, %v2541
      %v2548 = vsel %vm601, %v2535, %v2543
      %v2549 = vsel %vm601, %v2537, %v2545
      %v2550 = vsel %vm601, %v2539, %v2531
      %v2551 = vsel %vm601, %v2541, %v2533
      %v2552 = vsel %vm601, %v2543, %v2535
      %v2553 = vsel %vm601, %v2545, %v2537
      %v2554 = vld [vmem:[%s610] sm:$0x3]
      %v2556 = vlaneseq
      %v2557 = vshrl.u32 %v2556, 7
      %v2558 = vsub.s32 0, %v2557
      %v2559 = vrot.slane %v2554, %v2558
      %v2560 = vlaneseq
      %v2561 = vshrl.u32 %v2560, 7
      %v2562 = vsub.s32 1, %v2561
      %v2563 = vrot.slane %v2554, %v2562
      %v2566 = vmul.f32 %v2550, %v2559
      %v2567 = vmul.f32 %v2546, %v2563
      %v2568 = vmul.f32 %v2551, %v2559
      %v2569 = vmul.f32 %v2547, %v2563
      %v2570 = vmul.f32 %v2552, %v2559
      %v2571 = vmul.f32 %v2548, %v2563
      %v2572 = vmul.f32 %v2553, %v2559
      %v2573 = vmul.f32 %v2549, %v2563
      %v2574 = vpack.c.bf16 %v2568, %v2566
      %v2575 = vpack.c.bf16 %v2569, %v2567
      %v2576 = vpack.c.bf16 %v2572, %v2570
      %v2577 = vpack.c.bf16 %v2573, %v2571
      %2578 = vst [vmem:[#allocation2 + $0x40] sm:$0xff] %v2574
      %2579 = vst [vmem:[#allocation2 + $0x48] sm:$0xff] %v2575
      %2580 = vst [vmem:[#allocation2 + $0x50] sm:$0xff] %v2576
      %2581 = vst [vmem:[#allocation2 + $0x58] sm:$0xff] %v2577
      %2582 = vrot.lane.b32.xlu0 %v2404, 1
      %v2583 = vpop.permute.xlu0 %2582
      %2584 = vrot.lane.b32.xlu0 %v2406, 1
      %v2585 = vpop.permute.xlu0 %2584
      %2586 = vrot.lane.b32.xlu0 %v2408, 1
      %v2587 = vpop.permute.xlu0 %2586
      %2588 = vrot.lane.b32.xlu0 %v2410, 1
      %v2589 = vpop.permute.xlu0 %2588
      %2590 = vrot.lane.b32.xlu0 %v2405, 1
      %v2591 = vpop.permute.xlu0 %2590
      %2592 = vrot.lane.b32.xlu0 %v2407, 1
      %v2593 = vpop.permute.xlu0 %2592
      %2594 = vrot.lane.b32.xlu0 %v2409, 1
      %v2595 = vpop.permute.xlu0 %2594
      %2596 = vrot.lane.b32.xlu0 %v2411, 1
      %v2597 = vpop.permute.xlu0 %2596
      %v2598 = vsel %vm655, %v2583, %v2591
      %v2599 = vsel %vm655, %v2585, %v2593
      %v2600 = vsel %vm655, %v2587, %v2595
      %v2601 = vsel %vm655, %v2589, %v2597
      %v2602 = vsel %vm655, %v2591, %v2583
      %v2603 = vsel %vm655, %v2593, %v2585
      %v2604 = vsel %vm655, %v2595, %v2587
      %v2605 = vsel %vm655, %v2597, %v2589
      %v2606 = vld [vmem:[%s664] sm:$0x3]
      %v2608 = vlaneseq
      %v2609 = vshrl.u32 %v2608, 7
      %v2610 = vsub.s32 0, %v2609
      %v2611 = vrot.slane %v2606, %v2610
      %v2612 = vlaneseq
      %v2613 = vshrl.u32 %v2612, 7
      %v2614 = vsub.s32 1, %v2613
      %v2615 = vrot.slane %v2606, %v2614
      %v2618 = vmul.f32 %v2602, %v2611
      %v2619 = vmul.f32 %v2598, %v2615
      %v2620 = vmul.f32 %v2603, %v2611
      %v2621 = vmul.f32 %v2599, %v2615
      %v2622 = vmul.f32 %v2604, %v2611
      %v2623 = vmul.f32 %v2600, %v2615
      %v2624 = vmul.f32 %v2605, %v2611
      %v2625 = vmul.f32 %v2601, %v2615
      %v2626 = vpack.c.bf16 %v2620, %v2618
      %v2627 = vpack.c.bf16 %v2621, %v2619
      %v2628 = vpack.c.bf16 %v2624, %v2622
      %v2629 = vpack.c.bf16 %v2625, %v2623
      %2630 = vst [vmem:[#allocation2 + $0x60] sm:$0xff] %v2626
      %2631 = vst [vmem:[#allocation2 + $0x68] sm:$0xff] %v2627
      %2632 = vst [vmem:[#allocation2 + $0x70] sm:$0xff] %v2628
      %2633 = vst [vmem:[#allocation2 + $0x78] sm:$0xff] %v2629
      %v2634 = vpack.c.bf16 %v2406, %v2404
      %v2635 = vpack.c.bf16 %v2407, %v2405
      %v2636 = vpack.c.bf16 %v2410, %v2408
      %v2637 = vpack.c.bf16 %v2411, %v2409
      %2638 = vst [vmem:[#allocation2 + $0x80] sm:$0xff] %v2634
      %2639 = vst [vmem:[#allocation2 + $0x88] sm:$0xff] %v2635
      %2640 = vst [vmem:[#allocation2 + $0x90] sm:$0xff] %v2636
      %2641 = vst [vmem:[#allocation2 + $0x98] sm:$0xff] %v2637
      %2642 = vrot.lane.b32.xlu0 %v2404, 127
      %v2643 = vpop.permute.xlu0 %2642
      %2644 = vrot.lane.b32.xlu0 %v2406, 127
      %v2645 = vpop.permute.xlu0 %2644
      %2646 = vrot.lane.b32.xlu0 %v2408, 127
      %v2647 = vpop.permute.xlu0 %2646
      %2648 = vrot.lane.b32.xlu0 %v2410, 127
      %v2649 = vpop.permute.xlu0 %2648
      %2650 = vrot.lane.b32.xlu0 %v2405, 127
      %v2651 = vpop.permute.xlu0 %2650
      %2652 = vrot.lane.b32.xlu0 %v2407, 127
      %v2653 = vpop.permute.xlu0 %2652
      %2654 = vrot.lane.b32.xlu0 %v2409, 127
      %v2655 = vpop.permute.xlu0 %2654
      %2656 = vrot.lane.b32.xlu0 %v2411, 127
      %v2657 = vpop.permute.xlu0 %2656
      %v2658 = vsel %vm717, %v2643, %v2651
      %v2659 = vsel %vm717, %v2645, %v2653
      %v2660 = vsel %vm717, %v2647, %v2655
      %v2661 = vsel %vm717, %v2649, %v2657
      %v2662 = vsel %vm717, %v2651, %v2643
      %v2663 = vsel %vm717, %v2653, %v2645
      %v2664 = vsel %vm717, %v2655, %v2647
      %v2665 = vsel %vm717, %v2657, %v2649
      %v2666 = vld [vmem:[%s726] sm:$0x3]
      %v2668 = vlaneseq
      %v2669 = vshrl.u32 %v2668, 7
      %v2670 = vsub.s32 0, %v2669
      %v2671 = vrot.slane %v2666, %v2670
      %v2672 = vlaneseq
      %v2673 = vshrl.u32 %v2672, 7
      %v2674 = vsub.s32 1, %v2673
      %v2675 = vrot.slane %v2666, %v2674
      %v2678 = vmul.f32 %v2658, %v2671
      %v2679 = vmul.f32 %v2662, %v2675
      %v2680 = vmul.f32 %v2659, %v2671
      %v2681 = vmul.f32 %v2663, %v2675
      %v2682 = vmul.f32 %v2660, %v2671
      %v2683 = vmul.f32 %v2664, %v2675
      %v2684 = vmul.f32 %v2661, %v2671
      %v2685 = vmul.f32 %v2665, %v2675
      %v2686 = vpack.c.bf16 %v2680, %v2678
      %v2687 = vpack.c.bf16 %v2681, %v2679
      %v2688 = vpack.c.bf16 %v2684, %v2682
      %v2689 = vpack.c.bf16 %v2685, %v2683
      %2690 = vst [vmem:[#allocation2 + $0xa0] sm:$0xff] %v2686
      %2691 = vst [vmem:[#allocation2 + $0xa8] sm:$0xff] %v2687
      %2692 = vst [vmem:[#allocation2 + $0xb0] sm:$0xff] %v2688
      %2693 = vst [vmem:[#allocation2 + $0xb8] sm:$0xff] %v2689
      %2694 = vrot.lane.b32.xlu0 %v2404, 113
      %v2695 = vpop.permute.xlu0 %2694
      %2696 = vrot.lane.b32.xlu0 %v2406, 113
      %v2697 = vpop.permute.xlu0 %2696
      %2698 = vrot.lane.b32.xlu0 %v2408, 113
      %v2699 = vpop.permute.xlu0 %2698
      %2700 = vrot.lane.b32.xlu0 %v2410, 113
      %v2701 = vpop.permute.xlu0 %2700
      %2702 = vrot.lane.b32.xlu0 %v2405, 113
      %v2703 = vpop.permute.xlu0 %2702
      %2704 = vrot.lane.b32.xlu0 %v2407, 113
      %v2705 = vpop.permute.xlu0 %2704
      %2706 = vrot.lane.b32.xlu0 %v2409, 113
      %v2707 = vpop.permute.xlu0 %2706
      %2708 = vrot.lane.b32.xlu0 %v2411, 113
      %v2709 = vpop.permute.xlu0 %2708
      %v2710 = vsel %vm771, %v2695, %v2703
      %v2711 = vsel %vm771, %v2697, %v2705
      %v2712 = vsel %vm771, %v2699, %v2707
      %v2713 = vsel %vm771, %v2701, %v2709
      %v2714 = vsel %vm771, %v2703, %v2695
      %v2715 = vsel %vm771, %v2705, %v2697
      %v2716 = vsel %vm771, %v2707, %v2699
      %v2717 = vsel %vm771, %v2709, %v2701
      %v2718 = vld [vmem:[%s780] sm:$0x3]
      %v2720 = vlaneseq
      %v2721 = vshrl.u32 %v2720, 7
      %v2722 = vsub.s32 0, %v2721
      %v2723 = vrot.slane %v2718, %v2722
      %v2724 = vlaneseq
      %v2725 = vshrl.u32 %v2724, 7
      %v2726 = vsub.s32 1, %v2725
      %v2727 = vrot.slane %v2718, %v2726
      %v2730 = vmul.f32 %v2710, %v2723
      %v2731 = vmul.f32 %v2714, %v2727
      %v2732 = vmul.f32 %v2711, %v2723
      %v2733 = vmul.f32 %v2715, %v2727
      %v2734 = vmul.f32 %v2712, %v2723
      %v2735 = vmul.f32 %v2716, %v2727
      %v2736 = vmul.f32 %v2713, %v2723
      %v2737 = vmul.f32 %v2717, %v2727
      %v2738 = vpack.c.bf16 %v2732, %v2730
      %v2739 = vpack.c.bf16 %v2733, %v2731
      %v2740 = vpack.c.bf16 %v2736, %v2734
      %v2741 = vpack.c.bf16 %v2737, %v2735
      %2742 = vst [vmem:[#allocation2 + $0xc0] sm:$0xff] %v2738
      %2743 = vst [vmem:[#allocation2 + $0xc8] sm:$0xff] %v2739
      %2744 = vst [vmem:[#allocation2 + $0xd0] sm:$0xff] %v2740
      %2745 = vst [vmem:[#allocation2 + $0xd8] sm:$0xff] %v2741
      %2746 = vrot.lane.b32.xlu0 %v2404, 112
      %v2747 = vpop.permute.xlu0 %2746
      %2748 = vrot.lane.b32.xlu0 %v2406, 112
      %v2749 = vpop.permute.xlu0 %2748
      %2750 = vrot.lane.b32.xlu0 %v2408, 112
      %v2751 = vpop.permute.xlu0 %2750
      %2752 = vrot.lane.b32.xlu0 %v2410, 112
      %v2753 = vpop.permute.xlu0 %2752
      %2754 = vrot.lane.b32.xlu0 %v2405, 112
      %v2755 = vpop.permute.xlu0 %2754
      %2756 = vrot.lane.b32.xlu0 %v2407, 112
      %v2757 = vpop.permute.xlu0 %2756
      %2758 = vrot.lane.b32.xlu0 %v2409, 112
      %v2759 = vpop.permute.xlu0 %2758
      %2760 = vrot.lane.b32.xlu0 %v2411, 112
      %v2761 = vpop.permute.xlu0 %2760
      %v2762 = vsel %vm825, %v2747, %v2755
      %v2763 = vsel %vm825, %v2749, %v2757
      %v2764 = vsel %vm825, %v2751, %v2759
      %v2765 = vsel %vm825, %v2753, %v2761
      %v2766 = vsel %vm825, %v2755, %v2747
      %v2767 = vsel %vm825, %v2757, %v2749
      %v2768 = vsel %vm825, %v2759, %v2751
      %v2769 = vsel %vm825, %v2761, %v2753
      %v2770 = vld [vmem:[%s834] sm:$0x3]
      %v2772 = vlaneseq
      %v2773 = vshrl.u32 %v2772, 7
      %v2774 = vsub.s32 0, %v2773
      %v2775 = vrot.slane %v2770, %v2774
      %v2776 = vlaneseq
      %v2777 = vshrl.u32 %v2776, 7
      %v2778 = vsub.s32 1, %v2777
      %v2779 = vrot.slane %v2770, %v2778
      %v2782 = vmul.f32 %v2762, %v2775
      %v2783 = vmul.f32 %v2766, %v2779
      %v2784 = vmul.f32 %v2763, %v2775
      %v2785 = vmul.f32 %v2767, %v2779
      %v2786 = vmul.f32 %v2764, %v2775
      %v2787 = vmul.f32 %v2768, %v2779
      %v2788 = vmul.f32 %v2765, %v2775
      %v2789 = vmul.f32 %v2769, %v2779
      %v2790 = vpack.c.bf16 %v2784, %v2782
      %v2791 = vpack.c.bf16 %v2785, %v2783
      %v2792 = vpack.c.bf16 %v2788, %v2786
      %v2793 = vpack.c.bf16 %v2789, %v2787
      %2794 = vst [vmem:[#allocation2 + $0xe0] sm:$0xff] %v2790
      %2795 = vst [vmem:[#allocation2 + $0xe8] sm:$0xff] %v2791
      %2796 = vst [vmem:[#allocation2 + $0xf0] sm:$0xff] %v2792
      %2797 = vst [vmem:[#allocation2 + $0xf8] sm:$0xff] %v2793
      %2798 = vrot.lane.b32.xlu0 %v2404, 111
      %v2799 = vpop.permute.xlu0 %2798
      %2800 = vrot.lane.b32.xlu0 %v2406, 111
      %v2801 = vpop.permute.xlu0 %2800
      %2802 = vrot.lane.b32.xlu0 %v2408, 111
      %v2803 = vpop.permute.xlu0 %2802
      %2804 = vrot.lane.b32.xlu0 %v2410, 111
      %v2805 = vpop.permute.xlu0 %2804
      %2806 = vrot.lane.b32.xlu0 %v2405, 111
      %v2807 = vpop.permute.xlu0 %2806
      %2808 = vrot.lane.b32.xlu0 %v2407, 111
      %v2809 = vpop.permute.xlu0 %2808
      %2810 = vrot.lane.b32.xlu0 %v2409, 111
      %v2811 = vpop.permute.xlu0 %2810
      %2812 = vrot.lane.b32.xlu0 %v2411, 111
      %v2813 = vpop.permute.xlu0 %2812
      %v2814 = vsel %vm879, %v2799, %v2807
      %v2815 = vsel %vm879, %v2801, %v2809
      %v2816 = vsel %vm879, %v2803, %v2811
      %v2817 = vsel %vm879, %v2805, %v2813
      %v2818 = vsel %vm879, %v2807, %v2799
      %v2819 = vsel %vm879, %v2809, %v2801
      %v2820 = vsel %vm879, %v2811, %v2803
      %v2821 = vsel %vm879, %v2813, %v2805
      %v2822 = vld [vmem:[%s888] sm:$0x3]
      %v2824 = vlaneseq
      %v2825 = vshrl.u32 %v2824, 7
      %v2826 = vsub.s32 0, %v2825
      %v2827 = vrot.slane %v2822, %v2826
      %v2828 = vlaneseq
      %v2829 = vshrl.u32 %v2828, 7
      %v2830 = vsub.s32 1, %v2829
      %v2831 = vrot.slane %v2822, %v2830
      %v2834 = vmul.f32 %v2814, %v2827
      %v2835 = vmul.f32 %v2818, %v2831
      %v2836 = vmul.f32 %v2815, %v2827
      %v2837 = vmul.f32 %v2819, %v2831
      %v2838 = vmul.f32 %v2816, %v2827
      %v2839 = vmul.f32 %v2820, %v2831
      %v2840 = vmul.f32 %v2817, %v2827
      %v2841 = vmul.f32 %v2821, %v2831
      %v2842 = vpack.c.bf16 %v2836, %v2834
      %v2843 = vpack.c.bf16 %v2837, %v2835
      %v2844 = vpack.c.bf16 %v2840, %v2838
      %v2845 = vpack.c.bf16 %v2841, %v2839
      %2846 = vst [vmem:[#allocation2 + $0x100] sm:$0xff] %v2842
      %2847 = vst [vmem:[#allocation2 + $0x108] sm:$0xff] %v2843
      %2848 = vst [vmem:[#allocation2 + $0x110] sm:$0xff] %v2844
      %2849 = vst [vmem:[#allocation2 + $0x118] sm:$0xff] %v2845
      %v2850 = vld [vmem:[#allocation2] sm:$0xff]
      %v2851 = vld [vmem:[#allocation2 + $0x8] sm:$0xff]
      %v2852 = vld [vmem:[#allocation2 + $0x10] sm:$0xff]
      %v2853 = vld [vmem:[#allocation2 + $0x18] sm:$0xff]
      %v2854 = vld [vmem:[#allocation2 + $0x20] sm:$0xff]
      %v2855 = vld [vmem:[#allocation2 + $0x28] sm:$0xff]
      %v2856 = vld [vmem:[#allocation2 + $0x30] sm:$0xff]
      %v2857 = vld [vmem:[#allocation2 + $0x38] sm:$0xff]
      %v2858 = vld [vmem:[#allocation2 + $0x40] sm:$0xff]
      %v2859 = vld [vmem:[#allocation2 + $0x48] sm:$0xff]
      %v2860 = vld [vmem:[#allocation2 + $0x50] sm:$0xff]
      %v2861 = vld [vmem:[#allocation2 + $0x58] sm:$0xff]
      %v2862 = vld [vmem:[#allocation2 + $0x60] sm:$0xff]
      %v2863 = vld [vmem:[#allocation2 + $0x68] sm:$0xff]
      %v2864 = vld [vmem:[#allocation2 + $0x70] sm:$0xff]
      %v2865 = vld [vmem:[#allocation2 + $0x78] sm:$0xff]
      %v2866 = vld [vmem:[#allocation2 + $0x80] sm:$0xff]
      %v2867 = vld [vmem:[#allocation2 + $0x88] sm:$0xff]
      %v2868 = vld [vmem:[#allocation2 + $0x90] sm:$0xff]
      %v2869 = vld [vmem:[#allocation2 + $0x98] sm:$0xff]
      %v2870 = vld [vmem:[#allocation2 + $0xa0] sm:$0xff]
      %v2871 = vld [vmem:[#allocation2 + $0xa8] sm:$0xff]
      %v2872 = vld [vmem:[#allocation2 + $0xb0] sm:$0xff]
      %v2873 = vld [vmem:[#allocation2 + $0xb8] sm:$0xff]
      %v2874 = vld [vmem:[#allocation2 + $0xc0] sm:$0xff]
      %v2875 = vld [vmem:[#allocation2 + $0xc8] sm:$0xff]
      %v2876 = vld [vmem:[#allocation2 + $0xd0] sm:$0xff]
      %v2877 = vld [vmem:[#allocation2 + $0xd8] sm:$0xff]
      %v2878 = vld [vmem:[#allocation2 + $0xe0] sm:$0xff]
      %v2879 = vld [vmem:[#allocation2 + $0xe8] sm:$0xff]
      %v2880 = vld [vmem:[#allocation2 + $0xf0] sm:$0xff]
      %v2881 = vld [vmem:[#allocation2 + $0xf8] sm:$0xff]
      %v2882 = vld [vmem:[#allocation2 + $0x100] sm:$0xff]
      %v2883 = vld [vmem:[#allocation2 + $0x108] sm:$0xff]
      %v2884 = vld [vmem:[#allocation2 + $0x110] sm:$0xff]
      %v2885 = vld [vmem:[#allocation2 + $0x118] sm:$0xff]
      %2887 = vset.pattern.permute.xlu0 0
      %2888 = vperm.xlu0 %2887, %v2422
      %v2889 = vpop.permute.xlu0 %2888
      %2892 = vset.pattern.permute.xlu0 0
      %2893 = vperm.xlu0 %2892, %v2423
      %v2894 = vpop.permute.xlu0 %2893
      %2897 = vset.pattern.permute.xlu0 0
      %2898 = vperm.xlu0 %2897, %v2424
      %v2899 = vpop.permute.xlu0 %2898
      %2902 = vset.pattern.permute.xlu0 0
      %2903 = vperm.xlu0 %2902, %v2425
      %v2904 = vpop.permute.xlu0 %2903
      %v2914 = vunpack.c.l.b16 %v2413
      %v2915 = vunpack.c.h.b16 %v2413
      %v2916 = vunpack.c.l.b16 %v2414
      %v2917 = vunpack.c.l.b16 %v2415
      %v2918 = vunpack.c.h.b16 %v2415
      %v2919 = vunpack.c.l.b16 %v2416
      %v2920 = vunpack.c.l.b16 %v2417
      %v2921 = vunpack.c.h.b16 %v2417
      %v2922 = vunpack.c.l.b16 %v2418
      %v2923 = vunpack.c.l.b16 %v2419
      %v2924 = vunpack.c.h.b16 %v2419
      %v2925 = vunpack.c.l.b16 %v2420
      %v2926 = vpack.c.b16 %v2917, %v2914
      %v2927 = vpack.c.b16 %v2918, %v2915
      %v2928 = vpack.c.b16 %v2919, %v2916
      %v2929 = vpack.c.b16 %v2923, %v2920
      %v2930 = vpack.c.b16 %v2924, %v2921
      %v2931 = vpack.c.b16 %v2925, %v2922
      %v2937 = vsel %vm1003, %v2928, 0
      %v2940 = vsel %vm1003, %v2931, 0
      %2942 = vmatprep.subr.bf16.mxu0 %v2851
      %2943 = vmatpush1.bf16.msra.mxu0 %v2850
      %2944 = vmatprep.subr.bf16.mxu0 %v2853
      %2945 = vmatpush1.bf16.msra.mxu0 %v2852
      %2946 = vmatprep.subr.bf16.mxu0 %v2855
      %2947 = vmatpush1.bf16.msra.mxu0 %v2854
      %2948 = vmatprep.subr.bf16.mxu0 %v2857
      %2949 = vmatpush1.bf16.msra.mxu0 %v2856
      %2950 = vmatprep.subr.bf16.mxu0 %v2859
      %2951 = vmatpush1.bf16.msra.mxu0 %v2858
      %2952 = vmatprep.subr.bf16.mxu0 %v2861
      %2953 = vmatpush1.bf16.msra.mxu0 %v2860
      %2954 = vmatprep.subr.bf16.mxu0 %v2863
      %2955 = vmatpush1.bf16.msra.mxu0 %v2862
      %2956 = vmatprep.subr.bf16.mxu0 %v2865
      %2957 = vmatpush1.bf16.msra.mxu0 %v2864
      %2958 = vmatprep.subr.bf16.mxu0 %v2867
      %2959 = vmatpush1.bf16.msra.mxu0 %v2866
      %2960 = vmatprep.subr.bf16.mxu0 %v2869
      %2961 = vmatpush1.bf16.msra.mxu0 %v2868
      %2962 = vmatprep.subr.bf16.mxu0 %v2871
      %2963 = vmatpush1.bf16.msra.mxu0 %v2870
      %2964 = vmatprep.subr.bf16.mxu0 %v2873
      %2965 = vmatpush1.bf16.msra.mxu0 %v2872
      %2966 = vmatprep.subr.bf16.mxu0 %v2875
      %2967 = vmatpush1.bf16.msra.mxu0 %v2874
      %2968 = vmatprep.subr.bf16.mxu0 %v2877
      %2969 = vmatpush1.bf16.msra.mxu0 %v2876
      %2970 = vmatprep.subr.bf16.mxu0 %v2879
      %2971 = vmatpush1.bf16.msra.mxu0 %v2878
      %2972 = vmatprep.subr.bf16.mxu0 %v2881
      %2973 = vmatpush1.bf16.msra.mxu0 %v2880
      %2974 = vmatprep.mubr.bf16.mxu0 %v2927
      %2975 = vmatmul.mubr.bf16.gmra.mrb[0].mxu0 %v2926
      %v2976 = vpop.f32.mrb[0].mxu0
      %v2977 = vadd.f32 %v2889, %v2976
      %v2978 = vpop.f32.mrb[0].mxu0
      %v2979 = vadd.f32 %v2889, %v2978
      %v2980 = vpop.f32.mrb[0].mxu0
      %v2981 = vadd.f32 %v2894, %v2980
      %v2982 = vpop.f32.mrb[0].mxu0
      %v2983 = vadd.f32 %v2894, %v2982
      %2984 = vmatprep.mubr.bf16.mxu0 %v2930
      %2985 = vmatmul.mubr.bf16.gmra.mrb[0].mxu0 %v2929
      %v2986 = vpop.f32.mrb[0].mxu0
      %v2987 = vadd.f32 %v2899, %v2986
      %v2988 = vpop.f32.mrb[0].mxu0
      %v2989 = vadd.f32 %v2899, %v2988
      %v2990 = vpop.f32.mrb[0].mxu0
      %v2991 = vadd.f32 %v2904, %v2990
      %v2992 = vpop.f32.mrb[0].mxu0
      %v2993 = vadd.f32 %v2904, %v2992
      %2994 = vdwg.mxu0
      %2995 = vmatprep.subr.bf16.mxu0 %v2883
      %2996 = vmatpush1.bf16.msra.mxu0 %v2882
      %2997 = vmatprep.subr.bf16.mxu0 %v2885
      %2998 = vmatpush1.bf16.msra.mxu0 %v2884
      %2999 = vmatprep.subr.bf16.mxu0 0
      %3000 = vmatpush1.bf16.msra.mxu0 0
      %3001 = vmatprep.subr.bf16.mxu0 0
      %3002 = vmatpush1.bf16.msra.mxu0 0
      %3003 = vmatprep.subr.bf16.mxu0 0
      %3004 = vmatpush1.bf16.msra.mxu0 0
      %3005 = vmatprep.subr.bf16.mxu0 0
      %3006 = vmatpush1.bf16.msra.mxu0 0
      %3007 = vmatprep.subr.bf16.mxu0 0
      %3008 = vmatpush1.bf16.msra.mxu0 0
      %3009 = vmatprep.subr.bf16.mxu0 0
      %3010 = vmatpush1.bf16.msra.mxu0 0
      %3011 = vmatprep.subr.bf16.mxu0 0
      %3012 = vmatpush1.bf16.msra.mxu0 0
      %3013 = vmatprep.subr.bf16.mxu0 0
      %3014 = vmatpush1.bf16.msra.mxu0 0
      %3015 = vmatprep.subr.bf16.mxu0 0
      %3016 = vmatpush1.bf16.msra.mxu0 0
      %3017 = vmatprep.subr.bf16.mxu0 0
      %3018 = vmatpush1.bf16.msra.mxu0 0
      %3019 = vmatprep.subr.bf16.mxu0 0
      %3020 = vmatpush1.bf16.msra.mxu0 0
      %3021 = vmatprep.subr.bf16.mxu0 0
      %3022 = vmatpush1.bf16.msra.mxu0 0
      %3023 = vmatprep.subr.bf16.mxu0 0
      %3024 = vmatpush1.bf16.msra.mxu0 0
      %3025 = vmatprep.subr.bf16.mxu0 0
      %3026 = vmatpush1.bf16.msra.mxu0 0
      %3027 = vmatprep.mubr.bf16.mxu0 0
      %3028 = vmatmul.mubr.bf16.gmra.mrb[0].mxu0 %v2937
      %v3029 = vpop.f32.mrb[0].mxu0
      %v3030 = vadd.f32 %v2977, %v3029
      %v3031 = vpop.f32.mrb[0].mxu0
      %v3032 = vadd.f32 %v2979, %v3031
      %v3033 = vpop.f32.mrb[0].mxu0
      %v3034 = vadd.f32 %v2981, %v3033
      %v3035 = vpop.f32.mrb[0].mxu0
      %v3036 = vadd.f32 %v2983, %v3035
      %3037 = vmatprep.mubr.bf16.mxu0 0
      %3038 = vmatmul.mubr.bf16.gmra.mrb[0].mxu0 %v2940
      %v3039 = vpop.f32.mrb[0].mxu0
      %v3040 = vadd.f32 %v2987, %v3039
      %v3041 = vpop.f32.mrb[0].mxu0
      %v3042 = vadd.f32 %v2989, %v3041
      %v3043 = vpop.f32.mrb[0].mxu0
      %v3044 = vadd.f32 %v2991, %v3043
      %v3045 = vpop.f32.mrb[0].mxu0
      %v3046 = vadd.f32 %v2993, %v3045
      %3047 = vdwg.mxu0
      %v3048 = vadd.f32 %v3030, %v3032
      %3049 = vadd.xlane.f32.xlu0 %v3048
      %v3050 = vpop.xlane.xlu0 %3049
      %v3051 = vadd.f32 %v3034, %v3036
      %3052 = vadd.xlane.f32.xlu0 %v3051
      %v3053 = vpop.xlane.xlu0 %3052
      %v3054 = vadd.f32 %v3040, %v3042
      %3055 = vadd.xlane.f32.xlu0 %v3054
      %v3056 = vpop.xlane.xlu0 %3055
      %v3057 = vadd.f32 %v3044, %v3046
      %3058 = vadd.xlane.f32.xlu0 %v3057
      %v3059 = vpop.xlane.xlu0 %3058
      %v3060 = vrcp.pop 256.0
      %v3061 = vmul.f32 %v3050, %v3060
      %v3062 = vmul.f32 %v3053, %v3060
      %v3063 = vmul.f32 %v3056, %v3060
      %v3064 = vmul.f32 %v3059, %v3060
      %v3065 = vld [vmem:[%s5] sm:$0xff]
      %v3066 = vld [vmem:[%s6] sm:$0xff]
      %v3068 = vsel %vm1003, %v3065, 0
      %3070 = vmatprep.subr.mxu0 0.0
      %3071 = vmatpush1.msra.mxu0 %v3061
      %3072 = vmatprep.subr.mxu0 0.0
      %3073 = vmatpush1.msra.mxu0 %v3062
      %3074 = vmatprep.subr.mxu0 0.0
      %3075 = vmatpush1.msra.mxu0 %v3063
      %3076 = vmatprep.subr.mxu0 0.0
      %3077 = vmatpush1.msra.mxu0 %v3064
      %3078 = vmatprep.subr.mxu0 0.0
      %3079 = vmatpush1.msra.mxu0 0.0
      %3080 = vmatprep.subr.mxu0 0.0
      %3081 = vmatpush1.msra.mxu0 0.0
      %3082 = vmatprep.subr.mxu0 0.0
      %3083 = vmatpush1.msra.mxu0 0.0
      %3084 = vmatprep.subr.mxu0 0.0
      %3085 = vmatpush1.msra.mxu0 0.0
      %3086 = vmatprep.subr.mxu0 0.0
      %3087 = vmatpush1.msra.mxu0 0.0
      %3088 = vmatprep.subr.mxu0 0.0
      %3089 = vmatpush1.msra.mxu0 0.0
      %3090 = vmatprep.subr.mxu0 0.0
      %3091 = vmatpush1.msra.mxu0 0.0
      %3092 = vmatprep.subr.mxu0 0.0
      %3093 = vmatpush1.msra.mxu0 0.0
      %3094 = vmatprep.subr.mxu0 0.0
      %3095 = vmatpush1.msra.mxu0 0.0
      %3096 = vmatprep.subr.mxu0 0.0
      %3097 = vmatpush1.msra.mxu0 0.0
      %3098 = vmatprep.subr.mxu0 0.0
      %3099 = vmatpush1.msra.mxu0 0.0
      %3100 = vmatprep.subr.mxu0 0.0
      %3101 = vmatpush1.msra.mxu0 0.0
      %3102 = vmatprep.subr.mxu0 0.0
      %3103 = vmatpush1.msra.mxu0 0.0
      %3104 = vmatprep.subr.mxu0 0.0
      %3105 = vmatpush1.msra.mxu0 0.0
      %3106 = vmatprep.subr.mxu0 0.0
      %3107 = vmatpush1.msra.mxu0 0.0
      %3108 = vmatprep.subr.mxu0 0.0
      %3109 = vmatpush1.msra.mxu0 0.0
      %3110 = vmatprep.subr.mxu0 0.0
      %3111 = vmatpush1.msra.mxu0 0.0
      %3112 = vmatprep.subr.mxu0 0.0
      %3113 = vmatpush1.msra.mxu0 0.0
      %3114 = vmatprep.subr.mxu0 0.0
      %3115 = vmatpush1.msra.mxu0 0.0
      %3116 = vmatprep.subr.mxu0 0.0
      %3117 = vmatpush1.msra.mxu0 0.0
      %3118 = vmatprep.subr.mxu0 0.0
      %3119 = vmatpush1.msra.mxu0 0.0
      %3120 = vmatprep.subr.mxu0 0.0
      %3121 = vmatpush1.msra.mxu0 0.0
      %3122 = vmatprep.subr.mxu0 0.0
      %3123 = vmatpush1.msra.mxu0 0.0
      %3124 = vmatprep.subr.mxu0 0.0
      %3125 = vmatpush1.msra.mxu0 0.0
      %3126 = vmatprep.subr.mxu0 0.0
      %3127 = vmatpush1.msra.mxu0 0.0
      %3128 = vmatprep.subr.mxu0 0.0
      %3129 = vmatpush1.msra.mxu0 0.0
      %3130 = vmatprep.subr.mxu0 0.0
      %3131 = vmatpush1.msra.mxu0 0.0
      %3132 = vmatprep.subr.mxu0 0.0
      %3133 = vmatpush1.msra.mxu0 0.0
      %3134 = vmatprep.mubr.f32.mxu0 0.0
      %3135 = vmatmul.mubr.f32.gmra.mrb[0].mxu0 %v3068
      %v3136 = vpop.f32.mrb[0].mxu0
      %v3137 = vadd.f32 %v3066, %v3136
      %v3138 = vpop.f32.mrb[0].mxu0
      %3139 = vdwg.mxu0
      %v3140 = vmax.f32 %v3137, 0.0
      %v3141 = vld [vmem:[%s7] sm:$0xff]
      %v3142 = vld [vmem:[%s7 + $0x8] sm:$0xff]
      %v3143 = vld [vmem:[%s7 + $0x10] sm:$0xff]
      %v3144 = vld [vmem:[%s7 + $0x18] sm:$0xff]
      %v3145 = vld [vmem:[%s8] sm:$0xff]
      %v3146 = vld [vmem:[%s8 + $0x8] sm:$0xff]
      %v3147 = vld [vmem:[%s8 + $0x10] sm:$0xff]
      %v3148 = vld [vmem:[%s8 + $0x18] sm:$0xff]
      %vm3149 = vcmask 64512
      %v3151 = vsel %vm3149, %v3141, 0
      %v3154 = vsel %vm3149, %v3142, 0
      %v3157 = vsel %vm3149, %v3143, 0
      %v3160 = vsel %vm3149, %v3144, 0
      %3162 = vmatprep.subr.mxu0 0.0
      %3163 = vmatpush1.msra.mxu0 %v3140
      %3164 = vmatprep.subr.mxu0 0.0
      %3165 = vmatpush1.msra.mxu0 0.0
      %3166 = vmatprep.subr.mxu0 0.0
      %3167 = vmatpush1.msra.mxu0 0.0
      %3168 = vmatprep.subr.mxu0 0.0
      %3169 = vmatpush1.msra.mxu0 0.0
      %3170 = vmatprep.subr.mxu0 0.0
      %3171 = vmatpush1.msra.mxu0 0.0
      %3172 = vmatprep.subr.mxu0 0.0
      %3173 = vmatpush1.msra.mxu0 0.0
      %3174 = vmatprep.subr.mxu0 0.0
      %3175 = vmatpush1.msra.mxu0 0.0
      %3176 = vmatprep.subr.mxu0 0.0
      %3177 = vmatpush1.msra.mxu0 0.0
      %3178 = vmatprep.subr.mxu0 0.0
      %3179 = vmatpush1.msra.mxu0 0.0
      %3180 = vmatprep.subr.mxu0 0.0
      %3181 = vmatpush1.msra.mxu0 0.0
      %3182 = vmatprep.subr.mxu0 0.0
      %3183 = vmatpush1.msra.mxu0 0.0
      %3184 = vmatprep.subr.mxu0 0.0
      %3185 = vmatpush1.msra.mxu0 0.0
      %3186 = vmatprep.subr.mxu0 0.0
      %3187 = vmatpush1.msra.mxu0 0.0
      %3188 = vmatprep.subr.mxu0 0.0
      %3189 = vmatpush1.msra.mxu0 0.0
      %3190 = vmatprep.subr.mxu0 0.0
      %3191 = vmatpush1.msra.mxu0 0.0
      %3192 = vmatprep.subr.mxu0 0.0
      %3193 = vmatpush1.msra.mxu0 0.0
      %3194 = vmatprep.subr.mxu0 0.0
      %3195 = vmatpush1.msra.mxu0 0.0
      %3196 = vmatprep.subr.mxu0 0.0
      %3197 = vmatpush1.msra.mxu0 0.0
      %3198 = vmatprep.subr.mxu0 0.0
      %3199 = vmatpush1.msra.mxu0 0.0
      %3200 = vmatprep.subr.mxu0 0.0
      %3201 = vmatpush1.msra.mxu0 0.0
      %3202 = vmatprep.subr.mxu0 0.0
      %3203 = vmatpush1.msra.mxu0 0.0
      %3204 = vmatprep.subr.mxu0 0.0
      %3205 = vmatpush1.msra.mxu0 0.0
      %3206 = vmatprep.subr.mxu0 0.0
      %3207 = vmatpush1.msra.mxu0 0.0
      %3208 = vmatprep.subr.mxu0 0.0
      %3209 = vmatpush1.msra.mxu0 0.0
      %3210 = vmatprep.subr.mxu0 0.0
      %3211 = vmatpush1.msra.mxu0 0.0
      %3212 = vmatprep.subr.mxu0 0.0
      %3213 = vmatpush1.msra.mxu0 0.0
      %3214 = vmatprep.subr.mxu0 0.0
      %3215 = vmatpush1.msra.mxu0 0.0
      %3216 = vmatprep.subr.mxu0 0.0
      %3217 = vmatpush1.msra.mxu0 0.0
      %3218 = vmatprep.subr.mxu0 0.0
      %3219 = vmatpush1.msra.mxu0 0.0
      %3220 = vmatprep.subr.mxu0 0.0
      %3221 = vmatpush1.msra.mxu0 0.0
      %3222 = vmatprep.subr.mxu0 0.0
      %3223 = vmatpush1.msra.mxu0 0.0
      %3224 = vmatprep.subr.mxu0 0.0
      %3225 = vmatpush1.msra.mxu0 0.0
      %3226 = vmatprep.mubr.f32.mxu0 0.0
      %3227 = vmatmul.mubr.f32.gmra.mrb[0].mxu0 %v3151
      %v3228 = vpop.f32.mrb[0].mxu0
      %v3229 = vadd.f32 %v3145, %v3228
      %v3230 = vpop.f32.mrb[0].mxu0
      %3231 = vmatprep.mubr.f32.mxu0 0.0
      %3232 = vmatmul.mubr.f32.gmra.mrb[0].mxu0 %v3154
      %v3233 = vpop.f32.mrb[0].mxu0
      %v3234 = vadd.f32 %v3146, %v3233
      %v3235 = vpop.f32.mrb[0].mxu0
      %3236 = vmatprep.mubr.f32.mxu0 0.0
      %3237 = vmatmul.mubr.f32.gmra.mrb[0].mxu0 %v3157
      %v3238 = vpop.f32.mrb[0].mxu0
      %v3239 = vadd.f32 %v3147, %v3238
      %v3240 = vpop.f32.mrb[0].mxu0
      %3241 = vmatprep.mubr.f32.mxu0 0.0
      %3242 = vmatmul.mubr.f32.gmra.mrb[0].mxu0 %v3160
      %v3243 = vpop.f32.mrb[0].mxu0
      %v3244 = vadd.f32 %v3148, %v3243
      %v3245 = vpop.f32.mrb[0].mxu0
      %3246 = vdwg.mxu0
      %v3247 = vxor.u32 %v3229, 2147483648
      %v3248 = vxor.u32 %v3234, 2147483648
      %v3249 = vxor.u32 %v3239, 2147483648
      %v3250 = vxor.u32 %v3244, 2147483648
      %v3251 = vmul.f32 %v3247, 1.442695
      %v3252 = vpow.pop %v3251
      %v3253 = vmul.f32 %v3248, 1.442695
      %v3254 = vpow.pop %v3253
      %v3255 = vmul.f32 %v3249, 1.442695
      %v3256 = vpow.pop %v3255
      %v3257 = vmul.f32 %v3250, 1.442695
      %v3258 = vpow.pop %v3257
      %v3259 = vadd.f32 %v3252, 1.0
      %v3260 = vadd.f32 %v3254, 1.0
      %v3261 = vadd.f32 %v3256, 1.0
      %v3262 = vadd.f32 %v3258, 1.0
      %v3263 = vrcp.pop %v3259
      %v3264 = vmul.f32 1.0, %v3263
      %v3265 = vrcp.pop %v3260
      %v3266 = vmul.f32 1.0, %v3265
      %v3267 = vrcp.pop %v3261
      %v3268 = vmul.f32 1.0, %v3267
      %v3269 = vrcp.pop %v3262
      %v3270 = vmul.f32 1.0, %v3269
      %3272 = vset.pattern.permute.xlu0 0
      %3273 = vperm.xlu0 %3272, %v3264
      %v3274 = vpop.permute.xlu0 %3273
      %3277 = vset.pattern.permute.xlu0 0
      %3278 = vperm.xlu0 %3277, %v3266
      %v3279 = vpop.permute.xlu0 %3278
      %3282 = vset.pattern.permute.xlu0 0
      %3283 = vperm.xlu0 %3282, %v3268
      %v3284 = vpop.permute.xlu0 %3283
      %3287 = vset.pattern.permute.xlu0 0
      %3288 = vperm.xlu0 %3287, %v3270
      %v3289 = vpop.permute.xlu0 %3288
      %v3291 = vmul.f32 %v3030, %v3274
      %v3292 = vmul.f32 %v3032, %v3274
      %v3293 = vmul.f32 %v3034, %v3279
      %v3294 = vmul.f32 %v3036, %v3279
      %v3295 = vmul.f32 %v3040, %v3284
      %v3296 = vmul.f32 %v3042, %v3284
      %v3297 = vmul.f32 %v3044, %v3289
      %v3298 = vmul.f32 %v3046, %v3289
      %v3299 = vadd.f32 %v1760, %v3291
      %v3300 = vadd.f32 %v1761, %v3292
      %v3301 = vadd.f32 %v1762, %v3293
      %v3302 = vadd.f32 %v1763, %v3294
      %v3303 = vadd.f32 %v1764, %v3295
      %v3304 = vadd.f32 %v1765, %v3296
      %v3305 = vadd.f32 %v1766, %v3297
      %v3306 = vadd.f32 %v1767, %v3298
      %s3307 = scalar_lea.vmem %s3, 192
      %v3308 = vld [vmem:[%s3307] sm:$0xff]
      %v3309 = vld [vmem:[%s3307 + $0x8] sm:$0xf]
      %v3310 = vld [vmem:[%s3307 + $0xc] sm:$0xff]
      %v3311 = vld [vmem:[%s3307 + $0x14] sm:$0xf]
      %v3312 = vld [vmem:[%s3307 + $0x18] sm:$0xff]
      %v3313 = vld [vmem:[%s3307 + $0x20] sm:$0xf]
      %v3314 = vld [vmem:[%s3307 + $0x24] sm:$0xff]
      %v3315 = vld [vmem:[%s3307 + $0x2c] sm:$0xf]
      %s3316 = scalar_lea.vmem %s4, 128
      %v3317 = vld [vmem:[%s3316] sm:$0xff]
      %v3318 = vld [vmem:[%s3316 + $0x8] sm:$0xff]
      %v3319 = vld [vmem:[%s3316 + $0x10] sm:$0xff]
      %v3320 = vld [vmem:[%s3316 + $0x18] sm:$0xff]
      %3321 = vrot.lane.b32.xlu0 %v456, 17
      %v3322 = vpop.permute.xlu0 %3321
      %3323 = vrot.lane.b32.xlu0 %v458, 17
      %v3324 = vpop.permute.xlu0 %3323
      %3325 = vrot.lane.b32.xlu0 %v460, 17
      %v3326 = vpop.permute.xlu0 %3325
      %3327 = vrot.lane.b32.xlu0 %v462, 17
      %v3328 = vpop.permute.xlu0 %3327
      %3329 = vrot.lane.b32.xlu0 %v457, 17
      %v3330 = vpop.permute.xlu0 %3329
      %3331 = vrot.lane.b32.xlu0 %v459, 17
      %v3332 = vpop.permute.xlu0 %3331
      %3333 = vrot.lane.b32.xlu0 %v461, 17
      %v3334 = vpop.permute.xlu0 %3333
      %3335 = vrot.lane.b32.xlu0 %v463, 17
      %v3336 = vpop.permute.xlu0 %3335
      %v3337 = vsel %vm494, %v3322, %v3330
      %v3338 = vsel %vm494, %v3324, %v3332
      %v3339 = vsel %vm494, %v3326, %v3334
      %v3340 = vsel %vm494, %v3328, %v3336
      %v3341 = vsel %vm494, %v3330, %v3322
      %v3342 = vsel %vm494, %v3332, %v3324
      %v3343 = vsel %vm494, %v3334, %v3326
      %v3344 = vsel %vm494, %v3336, %v3328
      %v3345 = vld [vmem:[%s2] sm:$0x3]
      %v3347 = vlaneseq
      %v3348 = vshrl.u32 %v3347, 7
      %v3349 = vsub.s32 0, %v3348
      %v3350 = vrot.slane %v3345, %v3349
      %v3351 = vlaneseq
      %v3352 = vshrl.u32 %v3351, 7
      %v3353 = vsub.s32 1, %v3352
      %v3354 = vrot.slane %v3345, %v3353
      %v3357 = vmul.f32 %v3341, %v3350
      %v3358 = vmul.f32 %v3337, %v3354
      %v3359 = vmul.f32 %v3342, %v3350
      %v3360 = vmul.f32 %v3338, %v3354
      %v3361 = vmul.f32 %v3343, %v3350
      %v3362 = vmul.f32 %v3339, %v3354
      %v3363 = vmul.f32 %v3344, %v3350
      %v3364 = vmul.f32 %v3340, %v3354
      %v3365 = vpack.c.bf16 %v3359, %v3357
      %v3366 = vpack.c.bf16 %v3360, %v3358
      %v3367 = vpack.c.bf16 %v3363, %v3361
      %v3368 = vpack.c.bf16 %v3364, %v3362
      %3369 = vst [vmem:[#allocation2] sm:$0xff] %v3365
      %3370 = vst [vmem:[#allocation2 + $0x8] sm:$0xff] %v3366
      %3371 = vst [vmem:[#allocation2 + $0x10] sm:$0xff] %v3367
      %3372 = vst [vmem:[#allocation2 + $0x18] sm:$0xff] %v3368
      %3373 = vrot.lane.b32.xlu0 %v456, 16
      %v3374 = vpop.permute.xlu0 %3373
      %3375 = vrot.lane.b32.xlu0 %v458, 16
      %v3376 = vpop.permute.xlu0 %3375
      %3377 = vrot.lane.b32.xlu0 %v460, 16
      %v3378 = vpop.permute.xlu0 %3377
      %3379 = vrot.lane.b32.xlu0 %v462, 16
      %v3380 = vpop.permute.xlu0 %3379
      %3381 = vrot.lane.b32.xlu0 %v457, 16
      %v3382 = vpop.permute.xlu0 %3381
      %3383 = vrot.lane.b32.xlu0 %v459, 16
      %v3384 = vpop.permute.xlu0 %3383
      %3385 = vrot.lane.b32.xlu0 %v461, 16
      %v3386 = vpop.permute.xlu0 %3385
      %3387 = vrot.lane.b32.xlu0 %v463, 16
      %v3388 = vpop.permute.xlu0 %3387
      %v3389 = vsel %vm547, %v3374, %v3382
      %v3390 = vsel %vm547, %v3376, %v3384
      %v3391 = vsel %vm547, %v3378, %v3386
      %v3392 = vsel %vm547, %v3380, %v3388
      %v3393 = vsel %vm547, %v3382, %v3374
      %v3394 = vsel %vm547, %v3384, %v3376
      %v3395 = vsel %vm547, %v3386, %v3378
      %v3396 = vsel %vm547, %v3388, %v3380
      %v3397 = vld [vmem:[%s556] sm:$0x3]
      %v3399 = vlaneseq
      %v3400 = vshrl.u32 %v3399, 7
      %v3401 = vsub.s32 0, %v3400
      %v3402 = vrot.slane %v3397, %v3401
      %v3403 = vlaneseq
      %v3404 = vshrl.u32 %v3403, 7
      %v3405 = vsub.s32 1, %v3404
      %v3406 = vrot.slane %v3397, %v3405
      %v3409 = vmul.f32 %v3393, %v3402
      %v3410 = vmul.f32 %v3389, %v3406
      %v3411 = vmul.f32 %v3394, %v3402
      %v3412 = vmul.f32 %v3390, %v3406
      %v3413 = vmul.f32 %v3395, %v3402
      %v3414 = vmul.f32 %v3391, %v3406
      %v3415 = vmul.f32 %v3396, %v3402
      %v3416 = vmul.f32 %v3392, %v3406
      %v3417 = vpack.c.bf16 %v3411, %v3409
      %v3418 = vpack.c.bf16 %v3412, %v3410
      %v3419 = vpack.c.bf16 %v3415, %v3413
      %v3420 = vpack.c.bf16 %v3416, %v3414
      %3421 = vst [vmem:[#allocation2 + $0x20] sm:$0xff] %v3417
      %3422 = vst [vmem:[#allocation2 + $0x28] sm:$0xff] %v3418
      %3423 = vst [vmem:[#allocation2 + $0x30] sm:$0xff] %v3419
      %3424 = vst [vmem:[#allocation2 + $0x38] sm:$0xff] %v3420
      %3425 = vrot.lane.b32.xlu0 %v456, 15
      %v3426 = vpop.permute.xlu0 %3425
      %3427 = vrot.lane.b32.xlu0 %v458, 15
      %v3428 = vpop.permute.xlu0 %3427
      %3429 = vrot.lane.b32.xlu0 %v460, 15
      %v3430 = vpop.permute.xlu0 %3429
      %3431 = vrot.lane.b32.xlu0 %v462, 15
      %v3432 = vpop.permute.xlu0 %3431
      %3433 = vrot.lane.b32.xlu0 %v457, 15
      %v3434 = vpop.permute.xlu0 %3433
      %3435 = vrot.lane.b32.xlu0 %v459, 15
      %v3436 = vpop.permute.xlu0 %3435
      %3437 = vrot.lane.b32.xlu0 %v461, 15
      %v3438 = vpop.permute.xlu0 %3437
      %3439 = vrot.lane.b32.xlu0 %v463, 15
      %v3440 = vpop.permute.xlu0 %3439
      %v3441 = vsel %vm601, %v3426, %v3434
      %v3442 = vsel %vm601, %v3428, %v3436
      %v3443 = vsel %vm601, %v3430, %v3438
      %v3444 = vsel %vm601, %v3432, %v3440
      %v3445 = vsel %vm601, %v3434, %v3426
      %v3446 = vsel %vm601, %v3436, %v3428
      %v3447 = vsel %vm601, %v3438, %v3430
      %v3448 = vsel %vm601, %v3440, %v3432
      %v3449 = vld [vmem:[%s610] sm:$0x3]
      %v3451 = vlaneseq
      %v3452 = vshrl.u32 %v3451, 7
      %v3453 = vsub.s32 0, %v3452
      %v3454 = vrot.slane %v3449, %v3453
      %v3455 = vlaneseq
      %v3456 = vshrl.u32 %v3455, 7
      %v3457 = vsub.s32 1, %v3456
      %v3458 = vrot.slane %v3449, %v3457
      %v3461 = vmul.f32 %v3445, %v3454
      %v3462 = vmul.f32 %v3441, %v3458
      %v3463 = vmul.f32 %v3446, %v3454
      %v3464 = vmul.f32 %v3442, %v3458
      %v3465 = vmul.f32 %v3447, %v3454
      %v3466 = vmul.f32 %v3443, %v3458
      %v3467 = vmul.f32 %v3448, %v3454
      %v3468 = vmul.f32 %v3444, %v3458
      %v3469 = vpack.c.bf16 %v3463, %v3461
      %v3470 = vpack.c.bf16 %v3464, %v3462
      %v3471 = vpack.c.bf16 %v3467, %v3465
      %v3472 = vpack.c.bf16 %v3468, %v3466
      %3473 = vst [vmem:[#allocation2 + $0x40] sm:$0xff] %v3469
      %3474 = vst [vmem:[#allocation2 + $0x48] sm:$0xff] %v3470
      %3475 = vst [vmem:[#allocation2 + $0x50] sm:$0xff] %v3471
      %3476 = vst [vmem:[#allocation2 + $0x58] sm:$0xff] %v3472
      %3477 = vrot.lane.b32.xlu0 %v456, 1
      %v3478 = vpop.permute.xlu0 %3477
      %3479 = vrot.lane.b32.xlu0 %v458, 1
      %v3480 = vpop.permute.xlu0 %3479
      %3481 = vrot.lane.b32.xlu0 %v460, 1
      %v3482 = vpop.permute.xlu0 %3481
      %3483 = vrot.lane.b32.xlu0 %v462, 1
      %v3484 = vpop.permute.xlu0 %3483
      %3485 = vrot.lane.b32.xlu0 %v457, 1
      %v3486 = vpop.permute.xlu0 %3485
      %3487 = vrot.lane.b32.xlu0 %v459, 1
      %v3488 = vpop.permute.xlu0 %3487
      %3489 = vrot.lane.b32.xlu0 %v461, 1
      %v3490 = vpop.permute.xlu0 %3489
      %3491 = vrot.lane.b32.xlu0 %v463, 1
      %v3492 = vpop.permute.xlu0 %3491
      %v3493 = vsel %vm655, %v3478, %v3486
      %v3494 = vsel %vm655, %v3480, %v3488
      %v3495 = vsel %vm655, %v3482, %v3490
      %v3496 = vsel %vm655, %v3484, %v3492
      %v3497 = vsel %vm655, %v3486, %v3478
      %v3498 = vsel %vm655, %v3488, %v3480
      %v3499 = vsel %vm655, %v3490, %v3482
      %v3500 = vsel %vm655, %v3492, %v3484
      %v3501 = vld [vmem:[%s664] sm:$0x3]
      %v3503 = vlaneseq
      %v3504 = vshrl.u32 %v3503, 7
      %v3505 = vsub.s32 0, %v3504
      %v3506 = vrot.slane %v3501, %v3505
      %v3507 = vlaneseq
      %v3508 = vshrl.u32 %v3507, 7
      %v3509 = vsub.s32 1, %v3508
      %v3510 = vrot.slane %v3501, %v3509
      %v3513 = vmul.f32 %v3497, %v3506
      %v3514 = vmul.f32 %v3493, %v3510
      %v3515 = vmul.f32 %v3498, %v3506
      %v3516 = vmul.f32 %v3494, %v3510
      %v3517 = vmul.f32 %v3499, %v3506
      %v3518 = vmul.f32 %v3495, %v3510
      %v3519 = vmul.f32 %v3500, %v3506
      %v3520 = vmul.f32 %v3496, %v3510
      %v3521 = vpack.c.bf16 %v3515, %v3513
      %v3522 = vpack.c.bf16 %v3516, %v3514
      %v3523 = vpack.c.bf16 %v3519, %v3517
      %v3524 = vpack.c.bf16 %v3520, %v3518
      %3525 = vst [vmem:[#allocation2 + $0x60] sm:$0xff] %v3521
      %3526 = vst [vmem:[#allocation2 + $0x68] sm:$0xff] %v3522
      %3527 = vst [vmem:[#allocation2 + $0x70] sm:$0xff] %v3523
      %3528 = vst [vmem:[#allocation2 + $0x78] sm:$0xff] %v3524
      %v3529 = vpack.c.bf16 %v458, %v456
      %v3530 = vpack.c.bf16 %v459, %v457
      %v3531 = vpack.c.bf16 %v462, %v460
      %v3532 = vpack.c.bf16 %v463, %v461
      %3533 = vst [vmem:[#allocation2 + $0x80] sm:$0xff] %v3529
      %3534 = vst [vmem:[#allocation2 + $0x88] sm:$0xff] %v3530
      %3535 = vst [vmem:[#allocation2 + $0x90] sm:$0xff] %v3531
      %3536 = vst [vmem:[#allocation2 + $0x98] sm:$0xff] %v3532
      %3537 = vrot.lane.b32.xlu0 %v456, 127
      %v3538 = vpop.permute.xlu0 %3537
      %3539 = vrot.lane.b32.xlu0 %v458, 127
      %v3540 = vpop.permute.xlu0 %3539
      %3541 = vrot.lane.b32.xlu0 %v460, 127
      %v3542 = vpop.permute.xlu0 %3541
      %3543 = vrot.lane.b32.xlu0 %v462, 127
      %v3544 = vpop.permute.xlu0 %3543
      %3545 = vrot.lane.b32.xlu0 %v457, 127
      %v3546 = vpop.permute.xlu0 %3545
      %3547 = vrot.lane.b32.xlu0 %v459, 127
      %v3548 = vpop.permute.xlu0 %3547
      %3549 = vrot.lane.b32.xlu0 %v461, 127
      %v3550 = vpop.permute.xlu0 %3549
      %3551 = vrot.lane.b32.xlu0 %v463, 127
      %v3552 = vpop.permute.xlu0 %3551
      %v3553 = vsel %vm717, %v3538, %v3546
      %v3554 = vsel %vm717, %v3540, %v3548
      %v3555 = vsel %vm717, %v3542, %v3550
      %v3556 = vsel %vm717, %v3544, %v3552
      %v3557 = vsel %vm717, %v3546, %v3538
      %v3558 = vsel %vm717, %v3548, %v3540
      %v3559 = vsel %vm717, %v3550, %v3542
      %v3560 = vsel %vm717, %v3552, %v3544
      %v3561 = vld [vmem:[%s726] sm:$0x3]
      %v3563 = vlaneseq
      %v3564 = vshrl.u32 %v3563, 7
      %v3565 = vsub.s32 0, %v3564
      %v3566 = vrot.slane %v3561, %v3565
      %v3567 = vlaneseq
      %v3568 = vshrl.u32 %v3567, 7
      %v3569 = vsub.s32 1, %v3568
      %v3570 = vrot.slane %v3561, %v3569
      %v3573 = vmul.f32 %v3553, %v3566
      %v3574 = vmul.f32 %v3557, %v3570
      %v3575 = vmul.f32 %v3554, %v3566
      %v3576 = vmul.f32 %v3558, %v3570
      %v3577 = vmul.f32 %v3555, %v3566
      %v3578 = vmul.f32 %v3559, %v3570
      %v3579 = vmul.f32 %v3556, %v3566
      %v3580 = vmul.f32 %v3560, %v3570
      %v3581 = vpack.c.bf16 %v3575, %v3573
      %v3582 = vpack.c.bf16 %v3576, %v3574
      %v3583 = vpack.c.bf16 %v3579, %v3577
      %v3584 = vpack.c.bf16 %v3580, %v3578
      %3585 = vst [vmem:[#allocation2 + $0xa0] sm:$0xff] %v3581
      %3586 = vst [vmem:[#allocation2 + $0xa8] sm:$0xff] %v3582
      %3587 = vst [vmem:[#allocation2 + $0xb0] sm:$0xff] %v3583
      %3588 = vst [vmem:[#allocation2 + $0xb8] sm:$0xff] %v3584
      %3589 = vrot.lane.b32.xlu0 %v456, 113
      %v3590 = vpop.permute.xlu0 %3589
      %3591 = vrot.lane.b32.xlu0 %v458, 113
      %v3592 = vpop.permute.xlu0 %3591
      %3593 = vrot.lane.b32.xlu0 %v460, 113
      %v3594 = vpop.permute.xlu0 %3593
      %3595 = vrot.lane.b32.xlu0 %v462, 113
      %v3596 = vpop.permute.xlu0 %3595
      %3597 = vrot.lane.b32.xlu0 %v457, 113
      %v3598 = vpop.permute.xlu0 %3597
      %3599 = vrot.lane.b32.xlu0 %v459, 113
      %v3600 = vpop.permute.xlu0 %3599
      %3601 = vrot.lane.b32.xlu0 %v461, 113
      %v3602 = vpop.permute.xlu0 %3601
      %3603 = vrot.lane.b32.xlu0 %v463, 113
      %v3604 = vpop.permute.xlu0 %3603
      %v3605 = vsel %vm771, %v3590, %v3598
      %v3606 = vsel %vm771, %v3592, %v3600
      %v3607 = vsel %vm771, %v3594, %v3602
      %v3608 = vsel %vm771, %v3596, %v3604
      %v3609 = vsel %vm771, %v3598, %v3590
      %v3610 = vsel %vm771, %v3600, %v3592
      %v3611 = vsel %vm771, %v3602, %v3594
      %v3612 = vsel %vm771, %v3604, %v3596
      %v3613 = vld [vmem:[%s780] sm:$0x3]
      %v3615 = vlaneseq
      %v3616 = vshrl.u32 %v3615, 7
      %v3617 = vsub.s32 0, %v3616
      %v3618 = vrot.slane %v3613, %v3617
      %v3619 = vlaneseq
      %v3620 = vshrl.u32 %v3619, 7
      %v3621 = vsub.s32 1, %v3620
      %v3622 = vrot.slane %v3613, %v3621
      %v3625 = vmul.f32 %v3605, %v3618
      %v3626 = vmul.f32 %v3609, %v3622
      %v3627 = vmul.f32 %v3606, %v3618
      %v3628 = vmul.f32 %v3610, %v3622
      %v3629 = vmul.f32 %v3607, %v3618
      %v3630 = vmul.f32 %v3611, %v3622
      %v3631 = vmul.f32 %v3608, %v3618
      %v3632 = vmul.f32 %v3612, %v3622
      %v3633 = vpack.c.bf16 %v3627, %v3625
      %v3634 = vpack.c.bf16 %v3628, %v3626
      %v3635 = vpack.c.bf16 %v3631, %v3629
      %v3636 = vpack.c.bf16 %v3632, %v3630
      %3637 = vst [vmem:[#allocation2 + $0xc0] sm:$0xff] %v3633
      %3638 = vst [vmem:[#allocation2 + $0xc8] sm:$0xff] %v3634
      %3639 = vst [vmem:[#allocation2 + $0xd0] sm:$0xff] %v3635
      %3640 = vst [vmem:[#allocation2 + $0xd8] sm:$0xff] %v3636
      %3641 = vrot.lane.b32.xlu0 %v456, 112
      %v3642 = vpop.permute.xlu0 %3641
      %3643 = vrot.lane.b32.xlu0 %v458, 112
      %v3644 = vpop.permute.xlu0 %3643
      %3645 = vrot.lane.b32.xlu0 %v460, 112
      %v3646 = vpop.permute.xlu0 %3645
      %3647 = vrot.lane.b32.xlu0 %v462, 112
      %v3648 = vpop.permute.xlu0 %3647
      %3649 = vrot.lane.b32.xlu0 %v457, 112
      %v3650 = vpop.permute.xlu0 %3649
      %3651 = vrot.lane.b32.xlu0 %v459, 112
      %v3652 = vpop.permute.xlu0 %3651
      %3653 = vrot.lane.b32.xlu0 %v461, 112
      %v3654 = vpop.permute.xlu0 %3653
      %3655 = vrot.lane.b32.xlu0 %v463, 112
      %v3656 = vpop.permute.xlu0 %3655
      %v3657 = vsel %vm825, %v3642, %v3650
      %v3658 = vsel %vm825, %v3644, %v3652
      %v3659 = vsel %vm825, %v3646, %v3654
      %v3660 = vsel %vm825, %v3648, %v3656
      %v3661 = vsel %vm825, %v3650, %v3642
      %v3662 = vsel %vm825, %v3652, %v3644
      %v3663 = vsel %vm825, %v3654, %v3646
      %v3664 = vsel %vm825, %v3656, %v3648
      %v3665 = vld [vmem:[%s834] sm:$0x3]
      %v3667 = vlaneseq
      %v3668 = vshrl.u32 %v3667, 7
      %v3669 = vsub.s32 0, %v3668
      %v3670 = vrot.slane %v3665, %v3669
      %v3671 = vlaneseq
      %v3672 = vshrl.u32 %v3671, 7
      %v3673 = vsub.s32 1, %v3672
      %v3674 = vrot.slane %v3665, %v3673
      %v3677 = vmul.f32 %v3657, %v3670
      %v3678 = vmul.f32 %v3661, %v3674
      %v3679 = vmul.f32 %v3658, %v3670
      %v3680 = vmul.f32 %v3662, %v3674
      %v3681 = vmul.f32 %v3659, %v3670
      %v3682 = vmul.f32 %v3663, %v3674
      %v3683 = vmul.f32 %v3660, %v3670
      %v3684 = vmul.f32 %v3664, %v3674
      %v3685 = vpack.c.bf16 %v3679, %v3677
      %v3686 = vpack.c.bf16 %v3680, %v3678
      %v3687 = vpack.c.bf16 %v3683, %v3681
      %v3688 = vpack.c.bf16 %v3684, %v3682
      %3689 = vst [vmem:[#allocation2 + $0xe0] sm:$0xff] %v3685
      %3690 = vst [vmem:[#allocation2 + $0xe8] sm:$0xff] %v3686
      %3691 = vst [vmem:[#allocation2 + $0xf0] sm:$0xff] %v3687
      %3692 = vst [vmem:[#allocation2 + $0xf8] sm:$0xff] %v3688
      %3693 = vrot.lane.b32.xlu0 %v456, 111
      %v3694 = vpop.permute.xlu0 %3693
      %3695 = vrot.lane.b32.xlu0 %v458, 111
      %v3696 = vpop.permute.xlu0 %3695
      %3697 = vrot.lane.b32.xlu0 %v460, 111
      %v3698 = vpop.permute.xlu0 %3697
      %3699 = vrot.lane.b32.xlu0 %v462, 111
      %v3700 = vpop.permute.xlu0 %3699
      %3701 = vrot.lane.b32.xlu0 %v457, 111
      %v3702 = vpop.permute.xlu0 %3701
      %3703 = vrot.lane.b32.xlu0 %v459, 111
      %v3704 = vpop.permute.xlu0 %3703
      %3705 = vrot.lane.b32.xlu0 %v461, 111
      %v3706 = vpop.permute.xlu0 %3705
      %3707 = vrot.lane.b32.xlu0 %v463, 111
      %v3708 = vpop.permute.xlu0 %3707
      %v3709 = vsel %vm879, %v3694, %v3702
      %v3710 = vsel %vm879, %v3696, %v3704
      %v3711 = vsel %vm879, %v3698, %v3706
      %v3712 = vsel %vm879, %v3700, %v3708
      %v3713 = vsel %vm879, %v3702, %v3694
      %v3714 = vsel %vm879, %v3704, %v3696
      %v3715 = vsel %vm879, %v3706, %v3698
      %v3716 = vsel %vm879, %v3708, %v3700
      %v3717 = vld [vmem:[%s888] sm:$0x3]
      %v3719 = vlaneseq
      %v3720 = vshrl.u32 %v3719, 7
      %v3721 = vsub.s32 0, %v3720
      %v3722 = vrot.slane %v3717, %v3721
      %v3723 = vlaneseq
      %v3724 = vshrl.u32 %v3723, 7
      %v3725 = vsub.s32 1, %v3724
      %v3726 = vrot.slane %v3717, %v3725
      %v3729 = vmul.f32 %v3709, %v3722
      %v3730 = vmul.f32 %v3713, %v3726
      %v3731 = vmul.f32 %v3710, %v3722
      %v3732 = vmul.f32 %v3714, %v3726
      %v3733 = vmul.f32 %v3711, %v3722
      %v3734 = vmul.f32 %v3715, %v3726
      %v3735 = vmul.f32 %v3712, %v3722
      %v3736 = vmul.f32 %v3716, %v3726
      %v3737 = vpack.c.bf16 %v3731, %v3729
      %v3738 = vpack.c.bf16 %v3732, %v3730
      %v3739 = vpack.c.bf16 %v3735, %v3733
      %v3740 = vpack.c.bf16 %v3736, %v3734
      %3741 = vst [vmem:[#allocation2 + $0x100] sm:$0xff] %v3737
      %3742 = vst [vmem:[#allocation2 + $0x108] sm:$0xff] %v3738
      %3743 = vst [vmem:[#allocation2 + $0x110] sm:$0xff] %v3739
      %3744 = vst [vmem:[#allocation2 + $0x118] sm:$0xff] %v3740
      %v3745 = vld [vmem:[#allocation2] sm:$0xff]
      %v3746 = vld [vmem:[#allocation2 + $0x8] sm:$0xff]
      %v3747 = vld [vmem:[#allocation2 + $0x10] sm:$0xff]
      %v3748 = vld [vmem:[#allocation2 + $0x18] sm:$0xff]
      %v3749 = vld [vmem:[#allocation2 + $0x20] sm:$0xff]
      %v3750 = vld [vmem:[#allocation2 + $0x28] sm:$0xff]
      %v3751 = vld [vmem:[#allocation2 + $0x30] sm:$0xff]
      %v3752 = vld [vmem:[#allocation2 + $0x38] sm:$0xff]
      %v3753 = vld [vmem:[#allocation2 + $0x40] sm:$0xff]
      %v3754 = vld [vmem:[#allocation2 + $0x48] sm:$0xff]
      %v3755 = vld [vmem:[#allocation2 + $0x50] sm:$0xff]
      %v3756 = vld [vmem:[#allocation2 + $0x58] sm:$0xff]
      %v3757 = vld [vmem:[#allocation2 + $0x60] sm:$0xff]
      %v3758 = vld [vmem:[#allocation2 + $0x68] sm:$0xff]
      %v3759 = vld [vmem:[#allocation2 + $0x70] sm:$0xff]
      %v3760 = vld [vmem:[#allocation2 + $0x78] sm:$0xff]
      %v3761 = vld [vmem:[#allocation2 + $0x80] sm:$0xff]
      %v3762 = vld [vmem:[#allocation2 + $0x88] sm:$0xff]
      %v3763 = vld [vmem:[#allocation2 + $0x90] sm:$0xff]
      %v3764 = vld [vmem:[#allocation2 + $0x98] sm:$0xff]
      %v3765 = vld [vmem:[#allocation2 + $0xa0] sm:$0xff]
      %v3766 = vld [vmem:[#allocation2 + $0xa8] sm:$0xff]
      %v3767 = vld [vmem:[#allocation2 + $0xb0] sm:$0xff]
      %v3768 = vld [vmem:[#allocation2 + $0xb8] sm:$0xff]
      %v3769 = vld [vmem:[#allocation2 + $0xc0] sm:$0xff]
      %v3770 = vld [vmem:[#allocation2 + $0xc8] sm:$0xff]
      %v3771 = vld [vmem:[#allocation2 + $0xd0] sm:$0xff]
      %v3772 = vld [vmem:[#allocation2 + $0xd8] sm:$0xff]
      %v3773 = vld [vmem:[#allocation2 + $0xe0] sm:$0xff]
      %v3774 = vld [vmem:[#allocation2 + $0xe8] sm:$0xff]
      %v3775 = vld [vmem:[#allocation2 + $0xf0] sm:$0xff]
      %v3776 = vld [vmem:[#allocation2 + $0xf8] sm:$0xff]
      %v3777 = vld [vmem:[#allocation2 + $0x100] sm:$0xff]
      %v3778 = vld [vmem:[#allocation2 + $0x108] sm:$0xff]
      %v3779 = vld [vmem:[#allocation2 + $0x110] sm:$0xff]
      %v3780 = vld [vmem:[#allocation2 + $0x118] sm:$0xff]
      %3782 = vset.pattern.permute.xlu0 0
      %3783 = vperm.xlu0 %3782, %v3317
      %v3784 = vpop.permute.xlu0 %3783
      %3787 = vset.pattern.permute.xlu0 0
      %3788 = vperm.xlu0 %3787, %v3318
      %v3789 = vpop.permute.xlu0 %3788
      %3792 = vset.pattern.permute.xlu0 0
      %3793 = vperm.xlu0 %3792, %v3319
      %v3794 = vpop.permute.xlu0 %3793
      %3797 = vset.pattern.permute.xlu0 0
      %3798 = vperm.xlu0 %3797, %v3320
      %v3799 = vpop.permute.xlu0 %3798
      %v3809 = vunpack.c.l.b16 %v3308
      %v3810 = vunpack.c.h.b16 %v3308
      %v3811 = vunpack.c.l.b16 %v3309
      %v3812 = vunpack.c.l.b16 %v3310
      %v3813 = vunpack.c.h.b16 %v3310
      %v3814 = vunpack.c.l.b16 %v3311
      %v3815 = vunpack.c.l.b16 %v3312
      %v3816 = vunpack.c.h.b16 %v3312
      %v3817 = vunpack.c.l.b16 %v3313
      %v3818 = vunpack.c.l.b16 %v3314
      %v3819 = vunpack.c.h.b16 %v3314
      %v3820 = vunpack.c.l.b16 %v3315
      %v3821 = vpack.c.b16 %v3812, %v3809
      %v3822 = vpack.c.b16 %v3813, %v3810
      %v3823 = vpack.c.b16 %v3814, %v3811
      %v3824 = vpack.c.b16 %v3818, %v3815
      %v3825 = vpack.c.b16 %v3819, %v3816
      %v3826 = vpack.c.b16 %v3820, %v3817
      %v3832 = vsel %vm1003, %v3823, 0
      %v3835 = vsel %vm1003, %v3826, 0
      %3837 = vmatprep.subr.bf16.mxu0 %v3746
      %3838 = vmatpush1.bf16.msra.mxu0 %v3745
      %3839 = vmatprep.subr.bf16.mxu0 %v3748
      %3840 = vmatpush1.bf16.msra.mxu0 %v3747
      %3841 = vmatprep.subr.bf16.mxu0 %v3750
      %3842 = vmatpush1.bf16.msra.mxu0 %v3749
      %3843 = vmatprep.subr.bf16.mxu0 %v3752
      %3844 = vmatpush1.bf16.msra.mxu0 %v3751
      %3845 = vmatprep.subr.bf16.mxu0 %v3754
      %3846 = vmatpush1.bf16.msra.mxu0 %v3753
      %3847 = vmatprep.subr.bf16.mxu0 %v3756
      %3848 = vmatpush1.bf16.msra.mxu0 %v3755
      %3849 = vmatprep.subr.bf16.mxu0 %v3758
      %3850 = vmatpush1.bf16.msra.mxu0 %v3757
      %3851 = vmatprep.subr.bf16.mxu0 %v3760
      %3852 = vmatpush1.bf16.msra.mxu0 %v3759
      %3853 = vmatprep.subr.bf16.mxu0 %v3762
      %3854 = vmatpush1.bf16.msra.mxu0 %v3761
      %3855 = vmatprep.subr.bf16.mxu0 %v3764
      %3856 = vmatpush1.bf16.msra.mxu0 %v3763
      %3857 = vmatprep.subr.bf16.mxu0 %v3766
      %3858 = vmatpush1.bf16.msra.mxu0 %v3765
      %3859 = vmatprep.subr.bf16.mxu0 %v3768
      %3860 = vmatpush1.bf16.msra.mxu0 %v3767
      %3861 = vmatprep.subr.bf16.mxu0 %v3770
      %3862 = vmatpush1.bf16.msra.mxu0 %v3769
      %3863 = vmatprep.subr.bf16.mxu0 %v3772
      %3864 = vmatpush1.bf16.msra.mxu0 %v3771
      %3865 = vmatprep.subr.bf16.mxu0 %v3774
      %3866 = vmatpush1.bf16.msra.mxu0 %v3773
      %3867 = vmatprep.subr.bf16.mxu0 %v3776
      %3868 = vmatpush1.bf16.msra.mxu0 %v3775
      %3869 = vmatprep.mubr.bf16.mxu0 %v3822
      %3870 = vmatmul.mubr.bf16.gmra.mrb[0].mxu0 %v3821
      %v3871 = vpop.f32.mrb[0].mxu0
      %v3872 = vadd.f32 %v3784, %v3871
      %v3873 = vpop.f32.mrb[0].mxu0
      %v3874 = vadd.f32 %v3784, %v3873
      %v3875 = vpop.f32.mrb[0].mxu0
      %v3876 = vadd.f32 %v3789, %v3875
      %v3877 = vpop.f32.mrb[0].mxu0
      %v3878 = vadd.f32 %v3789, %v3877
      %3879 = vmatprep.mubr.bf16.mxu0 %v3825
      %3880 = vmatmul.mubr.bf16.gmra.mrb[0].mxu0 %v3824
      %v3881 = vpop.f32.mrb[0].mxu0
      %v3882 = vadd.f32 %v3794, %v3881
      %v3883 = vpop.f32.mrb[0].mxu0
      %v3884 = vadd.f32 %v3794, %v3883
      %v3885 = vpop.f32.mrb[0].mxu0
      %v3886 = vadd.f32 %v3799, %v3885
      %v3887 = vpop.f32.mrb[0].mxu0
      %v3888 = vadd.f32 %v3799, %v3887
      %3889 = vdwg.mxu0
      %3890 = vmatprep.subr.bf16.mxu0 %v3778
      %3891 = vmatpush1.bf16.msra.mxu0 %v3777
      %3892 = vmatprep.subr.bf16.mxu0 %v3780
      %3893 = vmatpush1.bf16.msra.mxu0 %v3779
      %3894 = vmatprep.subr.bf16.mxu0 0
      %3895 = vmatpush1.bf16.msra.mxu0 0
      %3896 = vmatprep.subr.bf16.mxu0 0
      %3897 = vmatpush1.bf16.msra.mxu0 0
      %3898 = vmatprep.subr.bf16.mxu0 0
      %3899 = vmatpush1.bf16.msra.mxu0 0
      %3900 = vmatprep.subr.bf16.mxu0 0
      %3901 = vmatpush1.bf16.msra.mxu0 0
      %3902 = vmatprep.subr.bf16.mxu0 0
      %3903 = vmatpush1.bf16.msra.mxu0 0
      %3904 = vmatprep.subr.bf16.mxu0 0
      %3905 = vmatpush1.bf16.msra.mxu0 0
      %3906 = vmatprep.subr.bf16.mxu0 0
      %3907 = vmatpush1.bf16.msra.mxu0 0
      %3908 = vmatprep.subr.bf16.mxu0 0
      %3909 = vmatpush1.bf16.msra.mxu0 0
      %3910 = vmatprep.subr.bf16.mxu0 0
      %3911 = vmatpush1.bf16.msra.mxu0 0
      %3912 = vmatprep.subr.bf16.mxu0 0
      %3913 = vmatpush1.bf16.msra.mxu0 0
      %3914 = vmatprep.subr.bf16.mxu0 0
      %3915 = vmatpush1.bf16.msra.mxu0 0
      %3916 = vmatprep.subr.bf16.mxu0 0
      %3917 = vmatpush1.bf16.msra.mxu0 0
      %3918 = vmatprep.subr.bf16.mxu0 0
      %3919 = vmatpush1.bf16.msra.mxu0 0
      %3920 = vmatprep.subr.bf16.mxu0 0
      %3921 = vmatpush1.bf16.msra.mxu0 0
      %3922 = vmatprep.mubr.bf16.mxu0 0
      %3923 = vmatmul.mubr.bf16.gmra.mrb[0].mxu0 %v3832
      %v3924 = vpop.f32.mrb[0].mxu0
      %v3925 = vadd.f32 %v3872, %v3924
      %v3926 = vpop.f32.mrb[0].mxu0
      %v3927 = vadd.f32 %v3874, %v3926
      %v3928 = vpop.f32.mrb[0].mxu0
      %v3929 = vadd.f32 %v3876, %v3928
      %v3930 = vpop.f32.mrb[0].mxu0
      %v3931 = vadd.f32 %v3878, %v3930
      %3932 = vmatprep.mubr.bf16.mxu0 0
      %3933 = vmatmul.mubr.bf16.gmra.mrb[0].mxu0 %v3835
      %v3934 = vpop.f32.mrb[0].mxu0
      %v3935 = vadd.f32 %v3882, %v3934
      %v3936 = vpop.f32.mrb[0].mxu0
      %v3937 = vadd.f32 %v3884, %v3936
      %v3938 = vpop.f32.mrb[0].mxu0
      %v3939 = vadd.f32 %v3886, %v3938
      %v3940 = vpop.f32.mrb[0].mxu0
      %v3941 = vadd.f32 %v3888, %v3940
      %3942 = vdwg.mxu0
      %v3943 = vmax.f32 %v3925, 0.0
      %v3944 = vmax.f32 %v3927, 0.0
      %v3945 = vmax.f32 %v3929, 0.0
      %v3946 = vmax.f32 %v3931, 0.0
      %v3947 = vmax.f32 %v3935, 0.0
      %v3948 = vmax.f32 %v3937, 0.0
      %v3949 = vmax.f32 %v3939, 0.0
      %v3950 = vmax.f32 %v3941, 0.0
      %s3951 = scalar_lea.vmem %s3, 240
      %v3952 = vld [vmem:[%s3951] sm:$0xff]
      %v3953 = vld [vmem:[%s3951 + $0x8] sm:$0xf]
      %v3954 = vld [vmem:[%s3951 + $0xc] sm:$0xff]
      %v3955 = vld [vmem:[%s3951 + $0x14] sm:$0xf]
      %v3956 = vld [vmem:[%s3951 + $0x18] sm:$0xff]
      %v3957 = vld [vmem:[%s3951 + $0x20] sm:$0xf]
      %v3958 = vld [vmem:[%s3951 + $0x24] sm:$0xff]
      %v3959 = vld [vmem:[%s3951 + $0x2c] sm:$0xf]
      %s3960 = scalar_lea.vmem %s4, 160
      %v3961 = vld [vmem:[%s3960] sm:$0xff]
      %v3962 = vld [vmem:[%s3960 + $0x8] sm:$0xff]
      %v3963 = vld [vmem:[%s3960 + $0x10] sm:$0xff]
      %v3964 = vld [vmem:[%s3960 + $0x18] sm:$0xff]
      %3965 = vrot.lane.b32.xlu0 %v3943, 17
      %v3966 = vpop.permute.xlu0 %3965
      %3967 = vrot.lane.b32.xlu0 %v3945, 17
      %v3968 = vpop.permute.xlu0 %3967
      %3969 = vrot.lane.b32.xlu0 %v3947, 17
      %v3970 = vpop.permute.xlu0 %3969
      %3971 = vrot.lane.b32.xlu0 %v3949, 17
      %v3972 = vpop.permute.xlu0 %3971
      %3973 = vrot.lane.b32.xlu0 %v3944, 17
      %v3974 = vpop.permute.xlu0 %3973
      %3975 = vrot.lane.b32.xlu0 %v3946, 17
      %v3976 = vpop.permute.xlu0 %3975
      %3977 = vrot.lane.b32.xlu0 %v3948, 17
      %v3978 = vpop.permute.xlu0 %3977
      %3979 = vrot.lane.b32.xlu0 %v3950, 17
      %v3980 = vpop.permute.xlu0 %3979
      %v3981 = vsel %vm494, %v3966, %v3974
      %v3982 = vsel %vm494, %v3968, %v3976
      %v3983 = vsel %vm494, %v3970, %v3978
      %v3984 = vsel %vm494, %v3972, %v3980
      %v3985 = vsel %vm494, %v3974, %v3966
      %v3986 = vsel %vm494, %v3976, %v3968
      %v3987 = vsel %vm494, %v3978, %v3970
      %v3988 = vsel %vm494, %v3980, %v3972
      %v3989 = vld [vmem:[%s2] sm:$0x3]
      %v3991 = vlaneseq
      %v3992 = vshrl.u32 %v3991, 7
      %v3993 = vsub.s32 0, %v3992
      %v3994 = vrot.slane %v3989, %v3993
      %v3995 = vlaneseq
      %v3996 = vshrl.u32 %v3995, 7
      %v3997 = vsub.s32 1, %v3996
      %v3998 = vrot.slane %v3989, %v3997
      %v4001 = vmul.f32 %v3985, %v3994
      %v4002 = vmul.f32 %v3981, %v3998
      %v4003 = vmul.f32 %v3986, %v3994
      %v4004 = vmul.f32 %v3982, %v3998
      %v4005 = vmul.f32 %v3987, %v3994
      %v4006 = vmul.f32 %v3983, %v3998
      %v4007 = vmul.f32 %v3988, %v3994
      %v4008 = vmul.f32 %v3984, %v3998
      %v4009 = vpack.c.bf16 %v4003, %v4001
      %v4010 = vpack.c.bf16 %v4004, %v4002
      %v4011 = vpack.c.bf16 %v4007, %v4005
      %v4012 = vpack.c.bf16 %v4008, %v4006
      %4013 = vst [vmem:[#allocation2] sm:$0xff] %v4009
      %4014 = vst [vmem:[#allocation2 + $0x8] sm:$0xff] %v4010
      %4015 = vst [vmem:[#allocation2 + $0x10] sm:$0xff] %v4011
      %4016 = vst [vmem:[#allocation2 + $0x18] sm:$0xff] %v4012
      %4017 = vrot.lane.b32.xlu0 %v3943, 16
      %v4018 = vpop.permute.xlu0 %4017
      %4019 = vrot.lane.b32.xlu0 %v3945, 16
      %v4020 = vpop.permute.xlu0 %4019
      %4021 = vrot.lane.b32.xlu0 %v3947, 16
      %v4022 = vpop.permute.xlu0 %4021
      %4023 = vrot.lane.b32.xlu0 %v3949, 16
      %v4024 = vpop.permute.xlu0 %4023
      %4025 = vrot.lane.b32.xlu0 %v3944, 16
      %v4026 = vpop.permute.xlu0 %4025
      %4027 = vrot.lane.b32.xlu0 %v3946, 16
      %v4028 = vpop.permute.xlu0 %4027
      %4029 = vrot.lane.b32.xlu0 %v3948, 16
      %v4030 = vpop.permute.xlu0 %4029
      %4031 = vrot.lane.b32.xlu0 %v3950, 16
      %v4032 = vpop.permute.xlu0 %4031
      %v4033 = vsel %vm547, %v4018, %v4026
      %v4034 = vsel %vm547, %v4020, %v4028
      %v4035 = vsel %vm547, %v4022, %v4030
      %v4036 = vsel %vm547, %v4024, %v4032
      %v4037 = vsel %vm547, %v4026, %v4018
      %v4038 = vsel %vm547, %v4028, %v4020
      %v4039 = vsel %vm547, %v4030, %v4022
      %v4040 = vsel %vm547, %v4032, %v4024
      %v4041 = vld [vmem:[%s556] sm:$0x3]
      %v4043 = vlaneseq
      %v4044 = vshrl.u32 %v4043, 7
      %v4045 = vsub.s32 0, %v4044
      %v4046 = vrot.slane %v4041, %v4045
      %v4047 = vlaneseq
      %v4048 = vshrl.u32 %v4047, 7
      %v4049 = vsub.s32 1, %v4048
      %v4050 = vrot.slane %v4041, %v4049
      %v4053 = vmul.f32 %v4037, %v4046
      %v4054 = vmul.f32 %v4033, %v4050
      %v4055 = vmul.f32 %v4038, %v4046
      %v4056 = vmul.f32 %v4034, %v4050
      %v4057 = vmul.f32 %v4039, %v4046
      %v4058 = vmul.f32 %v4035, %v4050
      %v4059 = vmul.f32 %v4040, %v4046
      %v4060 = vmul.f32 %v4036, %v4050
      %v4061 = vpack.c.bf16 %v4055, %v4053
      %v4062 = vpack.c.bf16 %v4056, %v4054
      %v4063 = vpack.c.bf16 %v4059, %v4057
      %v4064 = vpack.c.bf16 %v4060, %v4058
      %4065 = vst [vmem:[#allocation2 + $0x20] sm:$0xff] %v4061
      %4066 = vst [vmem:[#allocation2 + $0x28] sm:$0xff] %v4062
      %4067 = vst [vmem:[#allocation2 + $0x30] sm:$0xff] %v4063
      %4068 = vst [vmem:[#allocation2 + $0x38] sm:$0xff] %v4064
      %4069 = vrot.lane.b32.xlu0 %v3943, 15
      %v4070 = vpop.permute.xlu0 %4069
      %4071 = vrot.lane.b32.xlu0 %v3945, 15
      %v4072 = vpop.permute.xlu0 %4071
      %4073 = vrot.lane.b32.xlu0 %v3947, 15
      %v4074 = vpop.permute.xlu0 %4073
      %4075 = vrot.lane.b32.xlu0 %v3949, 15
      %v4076 = vpop.permute.xlu0 %4075
      %4077 = vrot.lane.b32.xlu0 %v3944, 15
      %v4078 = vpop.permute.xlu0 %4077
      %4079 = vrot.lane.b32.xlu0 %v3946, 15
      %v4080 = vpop.permute.xlu0 %4079
      %4081 = vrot.lane.b32.xlu0 %v3948, 15
      %v4082 = vpop.permute.xlu0 %4081
      %4083 = vrot.lane.b32.xlu0 %v3950, 15
      %v4084 = vpop.permute.xlu0 %4083
      %v4085 = vsel %vm601, %v4070, %v4078
      %v4086 = vsel %vm601, %v4072, %v4080
      %v4087 = vsel %vm601, %v4074, %v4082
      %v4088 = vsel %vm601, %v4076, %v4084
      %v4089 = vsel %vm601, %v4078, %v4070
      %v4090 = vsel %vm601, %v4080, %v4072
      %v4091 = vsel %vm601, %v4082, %v4074
      %v4092 = vsel %vm601, %v4084, %v4076
      %v4093 = vld [vmem:[%s610] sm:$0x3]
      %v4095 = vlaneseq
      %v4096 = vshrl.u32 %v4095, 7
      %v4097 = vsub.s32 0, %v4096
      %v4098 = vrot.slane %v4093, %v4097
      %v4099 = vlaneseq
      %v4100 = vshrl.u32 %v4099, 7
      %v4101 = vsub.s32 1, %v4100
      %v4102 = vrot.slane %v4093, %v4101
      %v4105 = vmul.f32 %v4089, %v4098
      %v4106 = vmul.f32 %v4085, %v4102
      %v4107 = vmul.f32 %v4090, %v4098
      %v4108 = vmul.f32 %v4086, %v4102
      %v4109 = vmul.f32 %v4091, %v4098
      %v4110 = vmul.f32 %v4087, %v4102
      %v4111 = vmul.f32 %v4092, %v4098
      %v4112 = vmul.f32 %v4088, %v4102
      %v4113 = vpack.c.bf16 %v4107, %v4105
      %v4114 = vpack.c.bf16 %v4108, %v4106
      %v4115 = vpack.c.bf16 %v4111, %v4109
      %v4116 = vpack.c.bf16 %v4112, %v4110
      %4117 = vst [vmem:[#allocation2 + $0x40] sm:$0xff] %v4113
      %4118 = vst [vmem:[#allocation2 + $0x48] sm:$0xff] %v4114
      %4119 = vst [vmem:[#allocation2 + $0x50] sm:$0xff] %v4115
      %4120 = vst [vmem:[#allocation2 + $0x58] sm:$0xff] %v4116
      %4121 = vrot.lane.b32.xlu0 %v3943, 1
      %v4122 = vpop.permute.xlu0 %4121
      %4123 = vrot.lane.b32.xlu0 %v3945, 1
      %v4124 = vpop.permute.xlu0 %4123
      %4125 = vrot.lane.b32.xlu0 %v3947, 1
      %v4126 = vpop.permute.xlu0 %4125
      %4127 = vrot.lane.b32.xlu0 %v3949, 1
      %v4128 = vpop.permute.xlu0 %4127
      %4129 = vrot.lane.b32.xlu0 %v3944, 1
      %v4130 = vpop.permute.xlu0 %4129
      %4131 = vrot.lane.b32.xlu0 %v3946, 1
      %v4132 = vpop.permute.xlu0 %4131
      %4133 = vrot.lane.b32.xlu0 %v3948, 1
      %v4134 = vpop.permute.xlu0 %4133
      %4135 = vrot.lane.b32.xlu0 %v3950, 1
      %v4136 = vpop.permute.xlu0 %4135
      %v4137 = vsel %vm655, %v4122, %v4130
      %v4138 = vsel %vm655, %v4124, %v4132
      %v4139 = vsel %vm655, %v4126, %v4134
      %v4140 = vsel %vm655, %v4128, %v4136
      %v4141 = vsel %vm655, %v4130, %v4122
      %v4142 = vsel %vm655, %v4132, %v4124
      %v4143 = vsel %vm655, %v4134, %v4126
      %v4144 = vsel %vm655, %v4136, %v4128
      %v4145 = vld [vmem:[%s664] sm:$0x3]
      %v4147 = vlaneseq
      %v4148 = vshrl.u32 %v4147, 7
      %v4149 = vsub.s32 0, %v4148
      %v4150 = vrot.slane %v4145, %v4149
      %v4151 = vlaneseq
      %v4152 = vshrl.u32 %v4151, 7
      %v4153 = vsub.s32 1, %v4152
      %v4154 = vrot.slane %v4145, %v4153
      %v4157 = vmul.f32 %v4141, %v4150
      %v4158 = vmul.f32 %v4137, %v4154
      %v4159 = vmul.f32 %v4142, %v4150
      %v4160 = vmul.f32 %v4138, %v4154
      %v4161 = vmul.f32 %v4143, %v4150
      %v4162 = vmul.f32 %v4139, %v4154
      %v4163 = vmul.f32 %v4144, %v4150
      %v4164 = vmul.f32 %v4140, %v4154
      %v4165 = vpack.c.bf16 %v4159, %v4157
      %v4166 = vpack.c.bf16 %v4160, %v4158
      %v4167 = vpack.c.bf16 %v4163, %v4161
      %v4168 = vpack.c.bf16 %v4164, %v4162
      %4169 = vst [vmem:[#allocation2 + $0x60] sm:$0xff] %v4165
      %4170 = vst [vmem:[#allocation2 + $0x68] sm:$0xff] %v4166
      %4171 = vst [vmem:[#allocation2 + $0x70] sm:$0xff] %v4167
      %4172 = vst [vmem:[#allocation2 + $0x78] sm:$0xff] %v4168
      %v4173 = vpack.c.bf16 %v3945, %v3943
      %v4174 = vpack.c.bf16 %v3946, %v3944
      %v4175 = vpack.c.bf16 %v3949, %v3947
      %v4176 = vpack.c.bf16 %v3950, %v3948
      %4177 = vst [vmem:[#allocation2 + $0x80] sm:$0xff] %v4173
      %4178 = vst [vmem:[#allocation2 + $0x88] sm:$0xff] %v4174
      %4179 = vst [vmem:[#allocation2 + $0x90] sm:$0xff] %v4175
      %4180 = vst [vmem:[#allocation2 + $0x98] sm:$0xff] %v4176
      %4181 = vrot.lane.b32.xlu0 %v3943, 127
      %v4182 = vpop.permute.xlu0 %4181
      %4183 = vrot.lane.b32.xlu0 %v3945, 127
      %v4184 = vpop.permute.xlu0 %4183
      %4185 = vrot.lane.b32.xlu0 %v3947, 127
      %v4186 = vpop.permute.xlu0 %4185
      %4187 = vrot.lane.b32.xlu0 %v3949, 127
      %v4188 = vpop.permute.xlu0 %4187
      %4189 = vrot.lane.b32.xlu0 %v3944, 127
      %v4190 = vpop.permute.xlu0 %4189
      %4191 = vrot.lane.b32.xlu0 %v3946, 127
      %v4192 = vpop.permute.xlu0 %4191
      %4193 = vrot.lane.b32.xlu0 %v3948, 127
      %v4194 = vpop.permute.xlu0 %4193
      %4195 = vrot.lane.b32.xlu0 %v3950, 127
      %v4196 = vpop.permute.xlu0 %4195
      %v4197 = vsel %vm717, %v4182, %v4190
      %v4198 = vsel %vm717, %v4184, %v4192
      %v4199 = vsel %vm717, %v4186, %v4194
      %v4200 = vsel %vm717, %v4188, %v4196
      %v4201 = vsel %vm717, %v4190, %v4182
      %v4202 = vsel %vm717, %v4192, %v4184
      %v4203 = vsel %vm717, %v4194, %v4186
      %v4204 = vsel %vm717, %v4196, %v4188
      %v4205 = vld [vmem:[%s726] sm:$0x3]
      %v4207 = vlaneseq
      %v4208 = vshrl.u32 %v4207, 7
      %v4209 = vsub.s32 0, %v4208
      %v4210 = vrot.slane %v4205, %v4209
      %v4211 = vlaneseq
      %v4212 = vshrl.u32 %v4211, 7
      %v4213 = vsub.s32 1, %v4212
      %v4214 = vrot.slane %v4205, %v4213
      %v4217 = vmul.f32 %v4197, %v4210
      %v4218 = vmul.f32 %v4201, %v4214
      %v4219 = vmul.f32 %v4198, %v4210
      %v4220 = vmul.f32 %v4202, %v4214
      %v4221 = vmul.f32 %v4199, %v4210
      %v4222 = vmul.f32 %v4203, %v4214
      %v4223 = vmul.f32 %v4200, %v4210
      %v4224 = vmul.f32 %v4204, %v4214
      %v4225 = vpack.c.bf16 %v4219, %v4217
      %v4226 = vpack.c.bf16 %v4220, %v4218
      %v4227 = vpack.c.bf16 %v4223, %v4221
      %v4228 = vpack.c.bf16 %v4224, %v4222
      %4229 = vst [vmem:[#allocation2 + $0xa0] sm:$0xff] %v4225
      %4230 = vst [vmem:[#allocation2 + $0xa8] sm:$0xff] %v4226
      %4231 = vst [vmem:[#allocation2 + $0xb0] sm:$0xff] %v4227
      %4232 = vst [vmem:[#allocation2 + $0xb8] sm:$0xff] %v4228
      %4233 = vrot.lane.b32.xlu0 %v3943, 113
      %v4234 = vpop.permute.xlu0 %4233
      %4235 = vrot.lane.b32.xlu0 %v3945, 113
      %v4236 = vpop.permute.xlu0 %4235
      %4237 = vrot.lane.b32.xlu0 %v3947, 113
      %v4238 = vpop.permute.xlu0 %4237
      %4239 = vrot.lane.b32.xlu0 %v3949, 113
      %v4240 = vpop.permute.xlu0 %4239
      %4241 = vrot.lane.b32.xlu0 %v3944, 113
      %v4242 = vpop.permute.xlu0 %4241
      %4243 = vrot.lane.b32.xlu0 %v3946, 113
      %v4244 = vpop.permute.xlu0 %4243
      %4245 = vrot.lane.b32.xlu0 %v3948, 113
      %v4246 = vpop.permute.xlu0 %4245
      %4247 = vrot.lane.b32.xlu0 %v3950, 113
      %v4248 = vpop.permute.xlu0 %4247
      %v4249 = vsel %vm771, %v4234, %v4242
      %v4250 = vsel %vm771, %v4236, %v4244
      %v4251 = vsel %vm771, %v4238, %v4246
      %v4252 = vsel %vm771, %v4240, %v4248
      %v4253 = vsel %vm771, %v4242, %v4234
      %v4254 = vsel %vm771, %v4244, %v4236
      %v4255 = vsel %vm771, %v4246, %v4238
      %v4256 = vsel %vm771, %v4248, %v4240
      %v4257 = vld [vmem:[%s780] sm:$0x3]
      %v4259 = vlaneseq
      %v4260 = vshrl.u32 %v4259, 7
      %v4261 = vsub.s32 0, %v4260
      %v4262 = vrot.slane %v4257, %v4261
      %v4263 = vlaneseq
      %v4264 = vshrl.u32 %v4263, 7
      %v4265 = vsub.s32 1, %v4264
      %v4266 = vrot.slane %v4257, %v4265
      %v4269 = vmul.f32 %v4249, %v4262
      %v4270 = vmul.f32 %v4253, %v4266
      %v4271 = vmul.f32 %v4250, %v4262
      %v4272 = vmul.f32 %v4254, %v4266
      %v4273 = vmul.f32 %v4251, %v4262
      %v4274 = vmul.f32 %v4255, %v4266
      %v4275 = vmul.f32 %v4252, %v4262
      %v4276 = vmul.f32 %v4256, %v4266
      %v4277 = vpack.c.bf16 %v4271, %v4269
      %v4278 = vpack.c.bf16 %v4272, %v4270
      %v4279 = vpack.c.bf16 %v4275, %v4273
      %v4280 = vpack.c.bf16 %v4276, %v4274
      %4281 = vst [vmem:[#allocation2 + $0xc0] sm:$0xff] %v4277
      %4282 = vst [vmem:[#allocation2 + $0xc8] sm:$0xff] %v4278
      %4283 = vst [vmem:[#allocation2 + $0xd0] sm:$0xff] %v4279
      %4284 = vst [vmem:[#allocation2 + $0xd8] sm:$0xff] %v4280
      %4285 = vrot.lane.b32.xlu0 %v3943, 112
      %v4286 = vpop.permute.xlu0 %4285
      %4287 = vrot.lane.b32.xlu0 %v3945, 112
      %v4288 = vpop.permute.xlu0 %4287
      %4289 = vrot.lane.b32.xlu0 %v3947, 112
      %v4290 = vpop.permute.xlu0 %4289
      %4291 = vrot.lane.b32.xlu0 %v3949, 112
      %v4292 = vpop.permute.xlu0 %4291
      %4293 = vrot.lane.b32.xlu0 %v3944, 112
      %v4294 = vpop.permute.xlu0 %4293
      %4295 = vrot.lane.b32.xlu0 %v3946, 112
      %v4296 = vpop.permute.xlu0 %4295
      %4297 = vrot.lane.b32.xlu0 %v3948, 112
      %v4298 = vpop.permute.xlu0 %4297
      %4299 = vrot.lane.b32.xlu0 %v3950, 112
      %v4300 = vpop.permute.xlu0 %4299
      %v4301 = vsel %vm825, %v4286, %v4294
      %v4302 = vsel %vm825, %v4288, %v4296
      %v4303 = vsel %vm825, %v4290, %v4298
      %v4304 = vsel %vm825, %v4292, %v4300
      %v4305 = vsel %vm825, %v4294, %v4286
      %v4306 = vsel %vm825, %v4296, %v4288
      %v4307 = vsel %vm825, %v4298, %v4290
      %v4308 = vsel %vm825, %v4300, %v4292
      %v4309 = vld [vmem:[%s834] sm:$0x3]
      %v4311 = vlaneseq
      %v4312 = vshrl.u32 %v4311, 7
      %v4313 = vsub.s32 0, %v4312
      %v4314 = vrot.slane %v4309, %v4313
      %v4315 = vlaneseq
      %v4316 = vshrl.u32 %v4315, 7
      %v4317 = vsub.s32 1, %v4316
      %v4318 = vrot.slane %v4309, %v4317
      %v4321 = vmul.f32 %v4301, %v4314
      %v4322 = vmul.f32 %v4305, %v4318
      %v4323 = vmul.f32 %v4302, %v4314
      %v4324 = vmul.f32 %v4306, %v4318
      %v4325 = vmul.f32 %v4303, %v4314
      %v4326 = vmul.f32 %v4307, %v4318
      %v4327 = vmul.f32 %v4304, %v4314
      %v4328 = vmul.f32 %v4308, %v4318
      %v4329 = vpack.c.bf16 %v4323, %v4321
      %v4330 = vpack.c.bf16 %v4324, %v4322
      %v4331 = vpack.c.bf16 %v4327, %v4325
      %v4332 = vpack.c.bf16 %v4328, %v4326
      %4333 = vst [vmem:[#allocation2 + $0xe0] sm:$0xff] %v4329
      %4334 = vst [vmem:[#allocation2 + $0xe8] sm:$0xff] %v4330
      %4335 = vst [vmem:[#allocation2 + $0xf0] sm:$0xff] %v4331
      %4336 = vst [vmem:[#allocation2 + $0xf8] sm:$0xff] %v4332
      %4337 = vrot.lane.b32.xlu0 %v3943, 111
      %v4338 = vpop.permute.xlu0 %4337
      %4339 = vrot.lane.b32.xlu0 %v3945, 111
      %v4340 = vpop.permute.xlu0 %4339
      %4341 = vrot.lane.b32.xlu0 %v3947, 111
      %v4342 = vpop.permute.xlu0 %4341
      %4343 = vrot.lane.b32.xlu0 %v3949, 111
      %v4344 = vpop.permute.xlu0 %4343
      %4345 = vrot.lane.b32.xlu0 %v3944, 111
      %v4346 = vpop.permute.xlu0 %4345
      %4347 = vrot.lane.b32.xlu0 %v3946, 111
      %v4348 = vpop.permute.xlu0 %4347
      %4349 = vrot.lane.b32.xlu0 %v3948, 111
      %v4350 = vpop.permute.xlu0 %4349
      %4351 = vrot.lane.b32.xlu0 %v3950, 111
      %v4352 = vpop.permute.xlu0 %4351
      %v4353 = vsel %vm879, %v4338, %v4346
      %v4354 = vsel %vm879, %v4340, %v4348
      %v4355 = vsel %vm879, %v4342, %v4350
      %v4356 = vsel %vm879, %v4344, %v4352
      %v4357 = vsel %vm879, %v4346, %v4338
      %v4358 = vsel %vm879, %v4348, %v4340
      %v4359 = vsel %vm879, %v4350, %v4342
      %v4360 = vsel %vm879, %v4352, %v4344
      %v4361 = vld [vmem:[%s888] sm:$0x3]
      %v4363 = vlaneseq
      %v4364 = vshrl.u32 %v4363, 7
      %v4365 = vsub.s32 0, %v4364
      %v4366 = vrot.slane %v4361, %v4365
      %v4367 = vlaneseq
      %v4368 = vshrl.u32 %v4367, 7
      %v4369 = vsub.s32 1, %v4368
      %v4370 = vrot.slane %v4361, %v4369
      %v4373 = vmul.f32 %v4353, %v4366
      %v4374 = vmul.f32 %v4357, %v4370
      %v4375 = vmul.f32 %v4354, %v4366
      %v4376 = vmul.f32 %v4358, %v4370
      %v4377 = vmul.f32 %v4355, %v4366
      %v4378 = vmul.f32 %v4359, %v4370
      %v4379 = vmul.f32 %v4356, %v4366
      %v4380 = vmul.f32 %v4360, %v4370
      %v4381 = vpack.c.bf16 %v4375, %v4373
      %v4382 = vpack.c.bf16 %v4376, %v4374
      %v4383 = vpack.c.bf16 %v4379, %v4377
      %v4384 = vpack.c.bf16 %v4380, %v4378
      %4385 = vst [vmem:[#allocation2 + $0x100] sm:$0xff] %v4381
      %4386 = vst [vmem:[#allocation2 + $0x108] sm:$0xff] %v4382
      %4387 = vst [vmem:[#allocation2 + $0x110] sm:$0xff] %v4383
      %4388 = vst [vmem:[#allocation2 + $0x118] sm:$0xff] %v4384
      %v4389 = vld [vmem:[#allocation2] sm:$0xff]
      %v4390 = vld [vmem:[#allocation2 + $0x8] sm:$0xff]
      %v4391 = vld [vmem:[#allocation2 + $0x10] sm:$0xff]
      %v4392 = vld [vmem:[#allocation2 + $0x18] sm:$0xff]
      %v4393 = vld [vmem:[#allocation2 + $0x20] sm:$0xff]
      %v4394 = vld [vmem:[#allocation2 + $0x28] sm:$0xff]
      %v4395 = vld [vmem:[#allocation2 + $0x30] sm:$0xff]
      %v4396 = vld [vmem:[#allocation2 + $0x38] sm:$0xff]
      %v4397 = vld [vmem:[#allocation2 + $0x40] sm:$0xff]
      %v4398 = vld [vmem:[#allocation2 + $0x48] sm:$0xff]
      %v4399 = vld [vmem:[#allocation2 + $0x50] sm:$0xff]
      %v4400 = vld [vmem:[#allocation2 + $0x58] sm:$0xff]
      %v4401 = vld [vmem:[#allocation2 + $0x60] sm:$0xff]
      %v4402 = vld [vmem:[#allocation2 + $0x68] sm:$0xff]
      %v4403 = vld [vmem:[#allocation2 + $0x70] sm:$0xff]
      %v4404 = vld [vmem:[#allocation2 + $0x78] sm:$0xff]
      %v4405 = vld [vmem:[#allocation2 + $0x80] sm:$0xff]
      %v4406 = vld [vmem:[#allocation2 + $0x88] sm:$0xff]
      %v4407 = vld [vmem:[#allocation2 + $0x90] sm:$0xff]
      %v4408 = vld [vmem:[#allocation2 + $0x98] sm:$0xff]
      %v4409 = vld [vmem:[#allocation2 + $0xa0] sm:$0xff]
      %v4410 = vld [vmem:[#allocation2 + $0xa8] sm:$0xff]
      %v4411 = vld [vmem:[#allocation2 + $0xb0] sm:$0xff]
      %v4412 = vld [vmem:[#allocation2 + $0xb8] sm:$0xff]
      %v4413 = vld [vmem:[#allocation2 + $0xc0] sm:$0xff]
      %v4414 = vld [vmem:[#allocation2 + $0xc8] sm:$0xff]
      %v4415 = vld [vmem:[#allocation2 + $0xd0] sm:$0xff]
      %v4416 = vld [vmem:[#allocation2 + $0xd8] sm:$0xff]
      %v4417 = vld [vmem:[#allocation2 + $0xe0] sm:$0xff]
      %v4418 = vld [vmem:[#allocation2 + $0xe8] sm:$0xff]
      %v4419 = vld [vmem:[#allocation2 + $0xf0] sm:$0xff]
      %v4420 = vld [vmem:[#allocation2 + $0xf8] sm:$0xff]
      %v4421 = vld [vmem:[#allocation2 + $0x100] sm:$0xff]
      %v4422 = vld [vmem:[#allocation2 + $0x108] sm:$0xff]
      %v4423 = vld [vmem:[#allocation2 + $0x110] sm:$0xff]
      %v4424 = vld [vmem:[#allocation2 + $0x118] sm:$0xff]
      %4426 = vset.pattern.permute.xlu0 0
      %4427 = vperm.xlu0 %4426, %v3961
      %v4428 = vpop.permute.xlu0 %4427
      %4431 = vset.pattern.permute.xlu0 0
      %4432 = vperm.xlu0 %4431, %v3962
      %v4433 = vpop.permute.xlu0 %4432
      %4436 = vset.pattern.permute.xlu0 0
      %4437 = vperm.xlu0 %4436, %v3963
      %v4438 = vpop.permute.xlu0 %4437
      %4441 = vset.pattern.permute.xlu0 0
      %4442 = vperm.xlu0 %4441, %v3964
      %v4443 = vpop.permute.xlu0 %4442
      %v4453 = vunpack.c.l.b16 %v3952
      %v4454 = vunpack.c.h.b16 %v3952
      %v4455 = vunpack.c.l.b16 %v3953
      %v4456 = vunpack.c.l.b16 %v3954
      %v4457 = vunpack.c.h.b16 %v3954
      %v4458 = vunpack.c.l.b16 %v3955
      %v4459 = vunpack.c.l.b16 %v3956
      %v4460 = vunpack.c.h.b16 %v3956
      %v4461 = vunpack.c.l.b16 %v3957
      %v4462 = vunpack.c.l.b16 %v3958
      %v4463 = vunpack.c.h.b16 %v3958
      %v4464 = vunpack.c.l.b16 %v3959
      %v4465 = vpack.c.b16 %v4456, %v4453
      %v4466 = vpack.c.b16 %v4457, %v4454
      %v4467 = vpack.c.b16 %v4458, %v4455
      %v4468 = vpack.c.b16 %v4462, %v4459
      %v4469 = vpack.c.b16 %v4463, %v4460
      %v4470 = vpack.c.b16 %v4464, %v4461
      %v4476 = vsel %vm1003, %v4467, 0
      %v4479 = vsel %vm1003, %v4470, 0
      %4481 = vmatprep.subr.bf16.mxu0 %v4390
      %4482 = vmatpush1.bf16.msra.mxu0 %v4389
      %4483 = vmatprep.subr.bf16.mxu0 %v4392
      %4484 = vmatpush1.bf16.msra.mxu0 %v4391
      %4485 = vmatprep.subr.bf16.mxu0 %v4394
      %4486 = vmatpush1.bf16.msra.mxu0 %v4393
      %4487 = vmatprep.subr.bf16.mxu0 %v4396
      %4488 = vmatpush1.bf16.msra.mxu0 %v4395
      %4489 = vmatprep.subr.bf16.mxu0 %v4398
      %4490 = vmatpush1.bf16.msra.mxu0 %v4397
      %4491 = vmatprep.subr.bf16.mxu0 %v4400
      %4492 = vmatpush1.bf16.msra.mxu0 %v4399
      %4493 = vmatprep.subr.bf16.mxu0 %v4402
      %4494 = vmatpush1.bf16.msra.mxu0 %v4401
      %4495 = vmatprep.subr.bf16.mxu0 %v4404
      %4496 = vmatpush1.bf16.msra.mxu0 %v4403
      %4497 = vmatprep.subr.bf16.mxu0 %v4406
      %4498 = vmatpush1.bf16.msra.mxu0 %v4405
      %4499 = vmatprep.subr.bf16.mxu0 %v4408
      %4500 = vmatpush1.bf16.msra.mxu0 %v4407
      %4501 = vmatprep.subr.bf16.mxu0 %v4410
      %4502 = vmatpush1.bf16.msra.mxu0 %v4409
      %4503 = vmatprep.subr.bf16.mxu0 %v4412
      %4504 = vmatpush1.bf16.msra.mxu0 %v4411
      %4505 = vmatprep.subr.bf16.mxu0 %v4414
      %4506 = vmatpush1.bf16.msra.mxu0 %v4413
      %4507 = vmatprep.subr.bf16.mxu0 %v4416
      %4508 = vmatpush1.bf16.msra.mxu0 %v4415
      %4509 = vmatprep.subr.bf16.mxu0 %v4418
      %4510 = vmatpush1.bf16.msra.mxu0 %v4417
      %4511 = vmatprep.subr.bf16.mxu0 %v4420
      %4512 = vmatpush1.bf16.msra.mxu0 %v4419
      %4513 = vmatprep.mubr.bf16.mxu0 %v4466
      %4514 = vmatmul.mubr.bf16.gmra.mrb[0].mxu0 %v4465
      %v4515 = vpop.f32.mrb[0].mxu0
      %v4516 = vadd.f32 %v4428, %v4515
      %v4517 = vpop.f32.mrb[0].mxu0
      %v4518 = vadd.f32 %v4428, %v4517
      %v4519 = vpop.f32.mrb[0].mxu0
      %v4520 = vadd.f32 %v4433, %v4519
      %v4521 = vpop.f32.mrb[0].mxu0
      %v4522 = vadd.f32 %v4433, %v4521
      %4523 = vmatprep.mubr.bf16.mxu0 %v4469
      %4524 = vmatmul.mubr.bf16.gmra.mrb[0].mxu0 %v4468
      %v4525 = vpop.f32.mrb[0].mxu0
      %v4526 = vadd.f32 %v4438, %v4525
      %v4527 = vpop.f32.mrb[0].mxu0
      %v4528 = vadd.f32 %v4438, %v4527
      %v4529 = vpop.f32.mrb[0].mxu0
      %v4530 = vadd.f32 %v4443, %v4529
      %v4531 = vpop.f32.mrb[0].mxu0
      %v4532 = vadd.f32 %v4443, %v4531
      %4533 = vdwg.mxu0
      %4534 = vmatprep.subr.bf16.mxu0 %v4422
      %4535 = vmatpush1.bf16.msra.mxu0 %v4421
      %4536 = vmatprep.subr.bf16.mxu0 %v4424
      %4537 = vmatpush1.bf16.msra.mxu0 %v4423
      %4538 = vmatprep.subr.bf16.mxu0 0
      %4539 = vmatpush1.bf16.msra.mxu0 0
      %4540 = vmatprep.subr.bf16.mxu0 0
      %4541 = vmatpush1.bf16.msra.mxu0 0
      %4542 = vmatprep.subr.bf16.mxu0 0
      %4543 = vmatpush1.bf16.msra.mxu0 0
      %4544 = vmatprep.subr.bf16.mxu0 0
      %4545 = vmatpush1.bf16.msra.mxu0 0
      %4546 = vmatprep.subr.bf16.mxu0 0
      %4547 = vmatpush1.bf16.msra.mxu0 0
      %4548 = vmatprep.subr.bf16.mxu0 0
      %4549 = vmatpush1.bf16.msra.mxu0 0
      %4550 = vmatprep.subr.bf16.mxu0 0
      %4551 = vmatpush1.bf16.msra.mxu0 0
      %4552 = vmatprep.subr.bf16.mxu0 0
      %4553 = vmatpush1.bf16.msra.mxu0 0
      %4554 = vmatprep.subr.bf16.mxu0 0
      %4555 = vmatpush1.bf16.msra.mxu0 0
      %4556 = vmatprep.subr.bf16.mxu0 0
      %4557 = vmatpush1.bf16.msra.mxu0 0
      %4558 = vmatprep.subr.bf16.mxu0 0
      %4559 = vmatpush1.bf16.msra.mxu0 0
      %4560 = vmatprep.subr.bf16.mxu0 0
      %4561 = vmatpush1.bf16.msra.mxu0 0
      %4562 = vmatprep.subr.bf16.mxu0 0
      %4563 = vmatpush1.bf16.msra.mxu0 0
      %4564 = vmatprep.subr.bf16.mxu0 0
      %4565 = vmatpush1.bf16.msra.mxu0 0
      %4566 = vmatprep.mubr.bf16.mxu0 0
      %4567 = vmatmul.mubr.bf16.gmra.mrb[0].mxu0 %v4476
      %v4568 = vpop.f32.mrb[0].mxu0
      %v4569 = vadd.f32 %v4516, %v4568
      %v4570 = vpop.f32.mrb[0].mxu0
      %v4571 = vadd.f32 %v4518, %v4570
      %v4572 = vpop.f32.mrb[0].mxu0
      %v4573 = vadd.f32 %v4520, %v4572
      %v4574 = vpop.f32.mrb[0].mxu0
      %v4575 = vadd.f32 %v4522, %v4574
      %4576 = vmatprep.mubr.bf16.mxu0 0
      %4577 = vmatmul.mubr.bf16.gmra.mrb[0].mxu0 %v4479
      %v4578 = vpop.f32.mrb[0].mxu0
      %v4579 = vadd.f32 %v4526, %v4578
      %v4580 = vpop.f32.mrb[0].mxu0
      %v4581 = vadd.f32 %v4528, %v4580
      %v4582 = vpop.f32.mrb[0].mxu0
      %v4583 = vadd.f32 %v4530, %v4582
      %v4584 = vpop.f32.mrb[0].mxu0
      %v4585 = vadd.f32 %v4532, %v4584
      %4586 = vdwg.mxu0
      %v4587 = vadd.f32 %v456, %v4569
      %v4588 = vadd.f32 %v457, %v4571
      %v4589 = vadd.f32 %v458, %v4573
      %v4590 = vadd.f32 %v459, %v4575
      %v4591 = vadd.f32 %v460, %v4579
      %v4592 = vadd.f32 %v461, %v4581
      %v4593 = vadd.f32 %v462, %v4583
      %v4594 = vadd.f32 %v463, %v4585
      %s4595 = scalar_lea.vmem %s3, 288
      %v4596 = vld [vmem:[%s4595] sm:$0xff]
      %v4597 = vld [vmem:[%s4595 + $0x8] sm:$0xf]
      %v4598 = vld [vmem:[%s4595 + $0xc] sm:$0xff]
      %v4599 = vld [vmem:[%s4595 + $0x14] sm:$0xf]
      %v4600 = vld [vmem:[%s4595 + $0x18] sm:$0xff]
      %v4601 = vld [vmem:[%s4595 + $0x20] sm:$0xf]
      %v4602 = vld [vmem:[%s4595 + $0x24] sm:$0xff]
      %v4603 = vld [vmem:[%s4595 + $0x2c] sm:$0xf]
      %s4604 = scalar_lea.vmem %s4, 192
      %v4605 = vld [vmem:[%s4604] sm:$0xff]
      %v4606 = vld [vmem:[%s4604 + $0x8] sm:$0xff]
      %v4607 = vld [vmem:[%s4604 + $0x10] sm:$0xff]
      %v4608 = vld [vmem:[%s4604 + $0x18] sm:$0xff]
      %4609 = vrot.lane.b32.xlu0 %v4587, 17
      %v4610 = vpop.permute.xlu0 %4609
      %4611 = vrot.lane.b32.xlu0 %v4589, 17
      %v4612 = vpop.permute.xlu0 %4611
      %4613 = vrot.lane.b32.xlu0 %v4591, 17
      %v4614 = vpop.permute.xlu0 %4613
      %4615 = vrot.lane.b32.xlu0 %v4593, 17
      %v4616 = vpop.permute.xlu0 %4615
      %4617 = vrot.lane.b32.xlu0 %v4588, 17
      %v4618 = vpop.permute.xlu0 %4617
      %4619 = vrot.lane.b32.xlu0 %v4590, 17
      %v4620 = vpop.permute.xlu0 %4619
      %4621 = vrot.lane.b32.xlu0 %v4592, 17
      %v4622 = vpop.permute.xlu0 %4621
      %4623 = vrot.lane.b32.xlu0 %v4594, 17
      %v4624 = vpop.permute.xlu0 %4623
      %v4625 = vsel %vm494, %v4610, %v4618
      %v4626 = vsel %vm494, %v4612, %v4620
      %v4627 = vsel %vm494, %v4614, %v4622
      %v4628 = vsel %vm494, %v4616, %v4624
      %v4629 = vsel %vm494, %v4618, %v4610
      %v4630 = vsel %vm494, %v4620, %v4612
      %v4631 = vsel %vm494, %v4622, %v4614
      %v4632 = vsel %vm494, %v4624, %v4616
      %v4633 = vld [vmem:[%s2] sm:$0x3]
      %v4635 = vlaneseq
      %v4636 = vshrl.u32 %v4635, 7
      %v4637 = vsub.s32 0, %v4636
      %v4638 = vrot.slane %v4633, %v4637
      %v4639 = vlaneseq
      %v4640 = vshrl.u32 %v4639, 7
      %v4641 = vsub.s32 1, %v4640
      %v4642 = vrot.slane %v4633, %v4641
      %v4645 = vmul.f32 %v4629, %v4638
      %v4646 = vmul.f32 %v4625, %v4642
      %v4647 = vmul.f32 %v4630, %v4638
      %v4648 = vmul.f32 %v4626, %v4642
      %v4649 = vmul.f32 %v4631, %v4638
      %v4650 = vmul.f32 %v4627, %v4642
      %v4651 = vmul.f32 %v4632, %v4638
      %v4652 = vmul.f32 %v4628, %v4642
      %v4653 = vpack.c.bf16 %v4647, %v4645
      %v4654 = vpack.c.bf16 %v4648, %v4646
      %v4655 = vpack.c.bf16 %v4651, %v4649
      %v4656 = vpack.c.bf16 %v4652, %v4650
      %4657 = vst [vmem:[#allocation2] sm:$0xff] %v4653
      %4658 = vst [vmem:[#allocation2 + $0x8] sm:$0xff] %v4654
      %4659 = vst [vmem:[#allocation2 + $0x10] sm:$0xff] %v4655
      %4660 = vst [vmem:[#allocation2 + $0x18] sm:$0xff] %v4656
      %4661 = vrot.lane.b32.xlu0 %v4587, 16
      %v4662 = vpop.permute.xlu0 %4661
      %4663 = vrot.lane.b32.xlu0 %v4589, 16
      %v4664 = vpop.permute.xlu0 %4663
      %4665 = vrot.lane.b32.xlu0 %v4591, 16
      %v4666 = vpop.permute.xlu0 %4665
      %4667 = vrot.lane.b32.xlu0 %v4593, 16
      %v4668 = vpop.permute.xlu0 %4667
      %4669 = vrot.lane.b32.xlu0 %v4588, 16
      %v4670 = vpop.permute.xlu0 %4669
      %4671 = vrot.lane.b32.xlu0 %v4590, 16
      %v4672 = vpop.permute.xlu0 %4671
      %4673 = vrot.lane.b32.xlu0 %v4592, 16
      %v4674 = vpop.permute.xlu0 %4673
      %4675 = vrot.lane.b32.xlu0 %v4594, 16
      %v4676 = vpop.permute.xlu0 %4675
      %v4677 = vsel %vm547, %v4662, %v4670
      %v4678 = vsel %vm547, %v4664, %v4672
      %v4679 = vsel %vm547, %v4666, %v4674
      %v4680 = vsel %vm547, %v4668, %v4676
      %v4681 = vsel %vm547, %v4670, %v4662
      %v4682 = vsel %vm547, %v4672, %v4664
      %v4683 = vsel %vm547, %v4674, %v4666
      %v4684 = vsel %vm547, %v4676, %v4668
      %v4685 = vld [vmem:[%s556] sm:$0x3]
      %v4687 = vlaneseq
      %v4688 = vshrl.u32 %v4687, 7
      %v4689 = vsub.s32 0, %v4688
      %v4690 = vrot.slane %v4685, %v4689
      %v4691 = vlaneseq
      %v4692 = vshrl.u32 %v4691, 7
      %v4693 = vsub.s32 1, %v4692
      %v4694 = vrot.slane %v4685, %v4693
      %v4697 = vmul.f32 %v4681, %v4690
      %v4698 = vmul.f32 %v4677, %v4694
      %v4699 = vmul.f32 %v4682, %v4690
      %v4700 = vmul.f32 %v4678, %v4694
      %v4701 = vmul.f32 %v4683, %v4690
      %v4702 = vmul.f32 %v4679, %v4694
      %v4703 = vmul.f32 %v4684, %v4690
      %v4704 = vmul.f32 %v4680, %v4694
      %v4705 = vpack.c.bf16 %v4699, %v4697
      %v4706 = vpack.c.bf16 %v4700, %v4698
      %v4707 = vpack.c.bf16 %v4703, %v4701
      %v4708 = vpack.c.bf16 %v4704, %v4702
      %4709 = vst [vmem:[#allocation2 + $0x20] sm:$0xff] %v4705
      %4710 = vst [vmem:[#allocation2 + $0x28] sm:$0xff] %v4706
      %4711 = vst [vmem:[#allocation2 + $0x30] sm:$0xff] %v4707
      %4712 = vst [vmem:[#allocation2 + $0x38] sm:$0xff] %v4708
      %4713 = vrot.lane.b32.xlu0 %v4587, 15
      %v4714 = vpop.permute.xlu0 %4713
      %4715 = vrot.lane.b32.xlu0 %v4589, 15
      %v4716 = vpop.permute.xlu0 %4715
      %4717 = vrot.lane.b32.xlu0 %v4591, 15
      %v4718 = vpop.permute.xlu0 %4717
      %4719 = vrot.lane.b32.xlu0 %v4593, 15
      %v4720 = vpop.permute.xlu0 %4719
      %4721 = vrot.lane.b32.xlu0 %v4588, 15
      %v4722 = vpop.permute.xlu0 %4721
      %4723 = vrot.lane.b32.xlu0 %v4590, 15
      %v4724 = vpop.permute.xlu0 %4723
      %4725 = vrot.lane.b32.xlu0 %v4592, 15
      %v4726 = vpop.permute.xlu0 %4725
      %4727 = vrot.lane.b32.xlu0 %v4594, 15
      %v4728 = vpop.permute.xlu0 %4727
      %v4729 = vsel %vm601, %v4714, %v4722
      %v4730 = vsel %vm601, %v4716, %v4724
      %v4731 = vsel %vm601, %v4718, %v4726
      %v4732 = vsel %vm601, %v4720, %v4728
      %v4733 = vsel %vm601, %v4722, %v4714
      %v4734 = vsel %vm601, %v4724, %v4716
      %v4735 = vsel %vm601, %v4726, %v4718
      %v4736 = vsel %vm601, %v4728, %v4720
      %v4737 = vld [vmem:[%s610] sm:$0x3]
      %v4739 = vlaneseq
      %v4740 = vshrl.u32 %v4739, 7
      %v4741 = vsub.s32 0, %v4740
      %v4742 = vrot.slane %v4737, %v4741
      %v4743 = vlaneseq
      %v4744 = vshrl.u32 %v4743, 7
      %v4745 = vsub.s32 1, %v4744
      %v4746 = vrot.slane %v4737, %v4745
      %v4749 = vmul.f32 %v4733, %v4742
      %v4750 = vmul.f32 %v4729, %v4746
      %v4751 = vmul.f32 %v4734, %v4742
      %v4752 = vmul.f32 %v4730, %v4746
      %v4753 = vmul.f32 %v4735, %v4742
      %v4754 = vmul.f32 %v4731, %v4746
      %v4755 = vmul.f32 %v4736, %v4742
      %v4756 = vmul.f32 %v4732, %v4746
      %v4757 = vpack.c.bf16 %v4751, %v4749
      %v4758 = vpack.c.bf16 %v4752, %v4750
      %v4759 = vpack.c.bf16 %v4755, %v4753
      %v4760 = vpack.c.bf16 %v4756, %v4754
      %4761 = vst [vmem:[#allocation2 + $0x40] sm:$0xff] %v4757
      %4762 = vst [vmem:[#allocation2 + $0x48] sm:$0xff] %v4758
      %4763 = vst [vmem:[#allocation2 + $0x50] sm:$0xff] %v4759
      %4764 = vst [vmem:[#allocation2 + $0x58] sm:$0xff] %v4760
      %4765 = vrot.lane.b32.xlu0 %v4587, 1
      %v4766 = vpop.permute.xlu0 %4765
      %4767 = vrot.lane.b32.xlu0 %v4589, 1
      %v4768 = vpop.permute.xlu0 %4767
      %4769 = vrot.lane.b32.xlu0 %v4591, 1
      %v4770 = vpop.permute.xlu0 %4769
      %4771 = vrot.lane.b32.xlu0 %v4593, 1
      %v4772 = vpop.permute.xlu0 %4771
      %4773 = vrot.lane.b32.xlu0 %v4588, 1
      %v4774 = vpop.permute.xlu0 %4773
      %4775 = vrot.lane.b32.xlu0 %v4590, 1
      %v4776 = vpop.permute.xlu0 %4775
      %4777 = vrot.lane.b32.xlu0 %v4592, 1
      %v4778 = vpop.permute.xlu0 %4777
      %4779 = vrot.lane.b32.xlu0 %v4594, 1
      %v4780 = vpop.permute.xlu0 %4779
      %v4781 = vsel %vm655, %v4766, %v4774
      %v4782 = vsel %vm655, %v4768, %v4776
      %v4783 = vsel %vm655, %v4770, %v4778
      %v4784 = vsel %vm655, %v4772, %v4780
      %v4785 = vsel %vm655, %v4774, %v4766
      %v4786 = vsel %vm655, %v4776, %v4768
      %v4787 = vsel %vm655, %v4778, %v4770
      %v4788 = vsel %vm655, %v4780, %v4772
      %v4789 = vld [vmem:[%s664] sm:$0x3]
      %v4791 = vlaneseq
      %v4792 = vshrl.u32 %v4791, 7
      %v4793 = vsub.s32 0, %v4792
      %v4794 = vrot.slane %v4789, %v4793
      %v4795 = vlaneseq
      %v4796 = vshrl.u32 %v4795, 7
      %v4797 = vsub.s32 1, %v4796
      %v4798 = vrot.slane %v4789, %v4797
      %v4801 = vmul.f32 %v4785, %v4794
      %v4802 = vmul.f32 %v4781, %v4798
      %v4803 = vmul.f32 %v4786, %v4794
      %v4804 = vmul.f32 %v4782, %v4798
      %v4805 = vmul.f32 %v4787, %v4794
      %v4806 = vmul.f32 %v4783, %v4798
      %v4807 = vmul.f32 %v4788, %v4794
      %v4808 = vmul.f32 %v4784, %v4798
      %v4809 = vpack.c.bf16 %v4803, %v4801
      %v4810 = vpack.c.bf16 %v4804, %v4802
      %v4811 = vpack.c.bf16 %v4807, %v4805
      %v4812 = vpack.c.bf16 %v4808, %v4806
      %4813 = vst [vmem:[#allocation2 + $0x60] sm:$0xff] %v4809
      %4814 = vst [vmem:[#allocation2 + $0x68] sm:$0xff] %v4810
      %4815 = vst [vmem:[#allocation2 + $0x70] sm:$0xff] %v4811
      %4816 = vst [vmem:[#allocation2 + $0x78] sm:$0xff] %v4812
      %v4817 = vpack.c.bf16 %v4589, %v4587
      %v4818 = vpack.c.bf16 %v4590, %v4588
      %v4819 = vpack.c.bf16 %v4593, %v4591
      %v4820 = vpack.c.bf16 %v4594, %v4592
      %4821 = vst [vmem:[#allocation2 + $0x80] sm:$0xff] %v4817
      %4822 = vst [vmem:[#allocation2 + $0x88] sm:$0xff] %v4818
      %4823 = vst [vmem:[#allocation2 + $0x90] sm:$0xff] %v4819
      %4824 = vst [vmem:[#allocation2 + $0x98] sm:$0xff] %v4820
      %4825 = vrot.lane.b32.xlu0 %v4587, 127
      %v4826 = vpop.permute.xlu0 %4825
      %4827 = vrot.lane.b32.xlu0 %v4589, 127
      %v4828 = vpop.permute.xlu0 %4827
      %4829 = vrot.lane.b32.xlu0 %v4591, 127
      %v4830 = vpop.permute.xlu0 %4829
      %4831 = vrot.lane.b32.xlu0 %v4593, 127
      %v4832 = vpop.permute.xlu0 %4831
      %4833 = vrot.lane.b32.xlu0 %v4588, 127
      %v4834 = vpop.permute.xlu0 %4833
      %4835 = vrot.lane.b32.xlu0 %v4590, 127
      %v4836 = vpop.permute.xlu0 %4835
      %4837 = vrot.lane.b32.xlu0 %v4592, 127
      %v4838 = vpop.permute.xlu0 %4837
      %4839 = vrot.lane.b32.xlu0 %v4594, 127
      %v4840 = vpop.permute.xlu0 %4839
      %v4841 = vsel %vm717, %v4826, %v4834
      %v4842 = vsel %vm717, %v4828, %v4836
      %v4843 = vsel %vm717, %v4830, %v4838
      %v4844 = vsel %vm717, %v4832, %v4840
      %v4845 = vsel %vm717, %v4834, %v4826
      %v4846 = vsel %vm717, %v4836, %v4828
      %v4847 = vsel %vm717, %v4838, %v4830
      %v4848 = vsel %vm717, %v4840, %v4832
      %v4849 = vld [vmem:[%s726] sm:$0x3]
      %v4851 = vlaneseq
      %v4852 = vshrl.u32 %v4851, 7
      %v4853 = vsub.s32 0, %v4852
      %v4854 = vrot.slane %v4849, %v4853
      %v4855 = vlaneseq
      %v4856 = vshrl.u32 %v4855, 7
      %v4857 = vsub.s32 1, %v4856
      %v4858 = vrot.slane %v4849, %v4857
      %v4861 = vmul.f32 %v4841, %v4854
      %v4862 = vmul.f32 %v4845, %v4858
      %v4863 = vmul.f32 %v4842, %v4854
      %v4864 = vmul.f32 %v4846, %v4858
      %v4865 = vmul.f32 %v4843, %v4854
      %v4866 = vmul.f32 %v4847, %v4858
      %v4867 = vmul.f32 %v4844, %v4854
      %v4868 = vmul.f32 %v4848, %v4858
      %v4869 = vpack.c.bf16 %v4863, %v4861
      %v4870 = vpack.c.bf16 %v4864, %v4862
      %v4871 = vpack.c.bf16 %v4867, %v4865
      %v4872 = vpack.c.bf16 %v4868, %v4866
      %4873 = vst [vmem:[#allocation2 + $0xa0] sm:$0xff] %v4869
      %4874 = vst [vmem:[#allocation2 + $0xa8] sm:$0xff] %v4870
      %4875 = vst [vmem:[#allocation2 + $0xb0] sm:$0xff] %v4871
      %4876 = vst [vmem:[#allocation2 + $0xb8] sm:$0xff] %v4872
      %4877 = vrot.lane.b32.xlu0 %v4587, 113
      %v4878 = vpop.permute.xlu0 %4877
      %4879 = vrot.lane.b32.xlu0 %v4589, 113
      %v4880 = vpop.permute.xlu0 %4879
      %4881 = vrot.lane.b32.xlu0 %v4591, 113
      %v4882 = vpop.permute.xlu0 %4881
      %4883 = vrot.lane.b32.xlu0 %v4593, 113
      %v4884 = vpop.permute.xlu0 %4883
      %4885 = vrot.lane.b32.xlu0 %v4588, 113
      %v4886 = vpop.permute.xlu0 %4885
      %4887 = vrot.lane.b32.xlu0 %v4590, 113
      %v4888 = vpop.permute.xlu0 %4887
      %4889 = vrot.lane.b32.xlu0 %v4592, 113
      %v4890 = vpop.permute.xlu0 %4889
      %4891 = vrot.lane.b32.xlu0 %v4594, 113
      %v4892 = vpop.permute.xlu0 %4891
      %v4893 = vsel %vm771, %v4878, %v4886
      %v4894 = vsel %vm771, %v4880, %v4888
      %v4895 = vsel %vm771, %v4882, %v4890
      %v4896 = vsel %vm771, %v4884, %v4892
      %v4897 = vsel %vm771, %v4886, %v4878
      %v4898 = vsel %vm771, %v4888, %v4880
      %v4899 = vsel %vm771, %v4890, %v4882
      %v4900 = vsel %vm771, %v4892, %v4884
      %v4901 = vld [vmem:[%s780] sm:$0x3]
      %v4903 = vlaneseq
      %v4904 = vshrl.u32 %v4903, 7
      %v4905 = vsub.s32 0, %v4904
      %v4906 = vrot.slane %v4901, %v4905
      %v4907 = vlaneseq
      %v4908 = vshrl.u32 %v4907, 7
      %v4909 = vsub.s32 1, %v4908
      %v4910 = vrot.slane %v4901, %v4909
      %v4913 = vmul.f32 %v4893, %v4906
      %v4914 = vmul.f32 %v4897, %v4910
      %v4915 = vmul.f32 %v4894, %v4906
      %v4916 = vmul.f32 %v4898, %v4910
      %v4917 = vmul.f32 %v4895, %v4906
      %v4918 = vmul.f32 %v4899, %v4910
      %v4919 = vmul.f32 %v4896, %v4906
      %v4920 = vmul.f32 %v4900, %v4910
      %v4921 = vpack.c.bf16 %v4915, %v4913
      %v4922 = vpack.c.bf16 %v4916, %v4914
      %v4923 = vpack.c.bf16 %v4919, %v4917
      %v4924 = vpack.c.bf16 %v4920, %v4918
      %4925 = vst [vmem:[#allocation2 + $0xc0] sm:$0xff] %v4921
      %4926 = vst [vmem:[#allocation2 + $0xc8] sm:$0xff] %v4922
      %4927 = vst [vmem:[#allocation2 + $0xd0] sm:$0xff] %v4923
      %4928 = vst [vmem:[#allocation2 + $0xd8] sm:$0xff] %v4924
      %4929 = vrot.lane.b32.xlu0 %v4587, 112
      %v4930 = vpop.permute.xlu0 %4929
      %4931 = vrot.lane.b32.xlu0 %v4589, 112
      %v4932 = vpop.permute.xlu0 %4931
      %4933 = vrot.lane.b32.xlu0 %v4591, 112
      %v4934 = vpop.permute.xlu0 %4933
      %4935 = vrot.lane.b32.xlu0 %v4593, 112
      %v4936 = vpop.permute.xlu0 %4935
      %4937 = vrot.lane.b32.xlu0 %v4588, 112
      %v4938 = vpop.permute.xlu0 %4937
      %4939 = vrot.lane.b32.xlu0 %v4590, 112
      %v4940 = vpop.permute.xlu0 %4939
      %4941 = vrot.lane.b32.xlu0 %v4592, 112
      %v4942 = vpop.permute.xlu0 %4941
      %4943 = vrot.lane.b32.xlu0 %v4594, 112
      %v4944 = vpop.permute.xlu0 %4943
      %v4945 = vsel %vm825, %v4930, %v4938
      %v4946 = vsel %vm825, %v4932, %v4940
      %v4947 = vsel %vm825, %v4934, %v4942
      %v4948 = vsel %vm825, %v4936, %v4944
      %v4949 = vsel %vm825, %v4938, %v4930
      %v4950 = vsel %vm825, %v4940, %v4932
      %v4951 = vsel %vm825, %v4942, %v4934
      %v4952 = vsel %vm825, %v4944, %v4936
      %v4953 = vld [vmem:[%s834] sm:$0x3]
      %v4955 = vlaneseq
      %v4956 = vshrl.u32 %v4955, 7
      %v4957 = vsub.s32 0, %v4956
      %v4958 = vrot.slane %v4953, %v4957
      %v4959 = vlaneseq
      %v4960 = vshrl.u32 %v4959, 7
      %v4961 = vsub.s32 1, %v4960
      %v4962 = vrot.slane %v4953, %v4961
      %v4965 = vmul.f32 %v4945, %v4958
      %v4966 = vmul.f32 %v4949, %v4962
      %v4967 = vmul.f32 %v4946, %v4958
      %v4968 = vmul.f32 %v4950, %v4962
      %v4969 = vmul.f32 %v4947, %v4958
      %v4970 = vmul.f32 %v4951, %v4962
      %v4971 = vmul.f32 %v4948, %v4958
      %v4972 = vmul.f32 %v4952, %v4962
      %v4973 = vpack.c.bf16 %v4967, %v4965
      %v4974 = vpack.c.bf16 %v4968, %v4966
      %v4975 = vpack.c.bf16 %v4971, %v4969
      %v4976 = vpack.c.bf16 %v4972, %v4970
      %4977 = vst [vmem:[#allocation2 + $0xe0] sm:$0xff] %v4973
      %4978 = vst [vmem:[#allocation2 + $0xe8] sm:$0xff] %v4974
      %4979 = vst [vmem:[#allocation2 + $0xf0] sm:$0xff] %v4975
      %4980 = vst [vmem:[#allocation2 + $0xf8] sm:$0xff] %v4976
      %4981 = vrot.lane.b32.xlu0 %v4587, 111
      %v4982 = vpop.permute.xlu0 %4981
      %4983 = vrot.lane.b32.xlu0 %v4589, 111
      %v4984 = vpop.permute.xlu0 %4983
      %4985 = vrot.lane.b32.xlu0 %v4591, 111
      %v4986 = vpop.permute.xlu0 %4985
      %4987 = vrot.lane.b32.xlu0 %v4593, 111
      %v4988 = vpop.permute.xlu0 %4987
      %4989 = vrot.lane.b32.xlu0 %v4588, 111
      %v4990 = vpop.permute.xlu0 %4989
      %4991 = vrot.lane.b32.xlu0 %v4590, 111
      %v4992 = vpop.permute.xlu0 %4991
      %4993 = vrot.lane.b32.xlu0 %v4592, 111
      %v4994 = vpop.permute.xlu0 %4993
      %4995 = vrot.lane.b32.xlu0 %v4594, 111
      %v4996 = vpop.permute.xlu0 %4995
      %v4997 = vsel %vm879, %v4982, %v4990
      %v4998 = vsel %vm879, %v4984, %v4992
      %v4999 = vsel %vm879, %v4986, %v4994
      %v5000 = vsel %vm879, %v4988, %v4996
      %v5001 = vsel %vm879, %v4990, %v4982
      %v5002 = vsel %vm879, %v4992, %v4984
      %v5003 = vsel %vm879, %v4994, %v4986
      %v5004 = vsel %vm879, %v4996, %v4988
      %v5005 = vld [vmem:[%s888] sm:$0x3]
      %v5007 = vlaneseq
      %v5008 = vshrl.u32 %v5007, 7
      %v5009 = vsub.s32 0, %v5008
      %v5010 = vrot.slane %v5005, %v5009
      %v5011 = vlaneseq
      %v5012 = vshrl.u32 %v5011, 7
      %v5013 = vsub.s32 1, %v5012
      %v5014 = vrot.slane %v5005, %v5013
      %v5017 = vmul.f32 %v4997, %v5010
      %v5018 = vmul.f32 %v5001, %v5014
      %v5019 = vmul.f32 %v4998, %v5010
      %v5020 = vmul.f32 %v5002, %v5014
      %v5021 = vmul.f32 %v4999, %v5010
      %v5022 = vmul.f32 %v5003, %v5014
      %v5023 = vmul.f32 %v5000, %v5010
      %v5024 = vmul.f32 %v5004, %v5014
      %v5025 = vpack.c.bf16 %v5019, %v5017
      %v5026 = vpack.c.bf16 %v5020, %v5018
      %v5027 = vpack.c.bf16 %v5023, %v5021
      %v5028 = vpack.c.bf16 %v5024, %v5022
      %5029 = vst [vmem:[#allocation2 + $0x100] sm:$0xff] %v5025
      %5030 = vst [vmem:[#allocation2 + $0x108] sm:$0xff] %v5026
      %5031 = vst [vmem:[#allocation2 + $0x110] sm:$0xff] %v5027
      %5032 = vst [vmem:[#allocation2 + $0x118] sm:$0xff] %v5028
      %v5033 = vld [vmem:[#allocation2] sm:$0xff]
      %v5034 = vld [vmem:[#allocation2 + $0x8] sm:$0xff]
      %v5035 = vld [vmem:[#allocation2 + $0x10] sm:$0xff]
      %v5036 = vld [vmem:[#allocation2 + $0x18] sm:$0xff]
      %v5037 = vld [vmem:[#allocation2 + $0x20] sm:$0xff]
      %v5038 = vld [vmem:[#allocation2 + $0x28] sm:$0xff]
      %v5039 = vld [vmem:[#allocation2 + $0x30] sm:$0xff]
      %v5040 = vld [vmem:[#allocation2 + $0x38] sm:$0xff]
      %v5041 = vld [vmem:[#allocation2 + $0x40] sm:$0xff]
      %v5042 = vld [vmem:[#allocation2 + $0x48] sm:$0xff]
      %v5043 = vld [vmem:[#allocation2 + $0x50] sm:$0xff]
      %v5044 = vld [vmem:[#allocation2 + $0x58] sm:$0xff]
      %v5045 = vld [vmem:[#allocation2 + $0x60] sm:$0xff]
      %v5046 = vld [vmem:[#allocation2 + $0x68] sm:$0xff]
      %v5047 = vld [vmem:[#allocation2 + $0x70] sm:$0xff]
      %v5048 = vld [vmem:[#allocation2 + $0x78] sm:$0xff]
      %v5049 = vld [vmem:[#allocation2 + $0x80] sm:$0xff]
      %v5050 = vld [vmem:[#allocation2 + $0x88] sm:$0xff]
      %v5051 = vld [vmem:[#allocation2 + $0x90] sm:$0xff]
      %v5052 = vld [vmem:[#allocation2 + $0x98] sm:$0xff]
      %v5053 = vld [vmem:[#allocation2 + $0xa0] sm:$0xff]
      %v5054 = vld [vmem:[#allocation2 + $0xa8] sm:$0xff]
      %v5055 = vld [vmem:[#allocation2 + $0xb0] sm:$0xff]
      %v5056 = vld [vmem:[#allocation2 + $0xb8] sm:$0xff]
      %v5057 = vld [vmem:[#allocation2 + $0xc0] sm:$0xff]
      %v5058 = vld [vmem:[#allocation2 + $0xc8] sm:$0xff]
      %v5059 = vld [vmem:[#allocation2 + $0xd0] sm:$0xff]
      %v5060 = vld [vmem:[#allocation2 + $0xd8] sm:$0xff]
      %v5061 = vld [vmem:[#allocation2 + $0xe0] sm:$0xff]
      %v5062 = vld [vmem:[#allocation2 + $0xe8] sm:$0xff]
      %v5063 = vld [vmem:[#allocation2 + $0xf0] sm:$0xff]
      %v5064 = vld [vmem:[#allocation2 + $0xf8] sm:$0xff]
      %v5065 = vld [vmem:[#allocation2 + $0x100] sm:$0xff]
      %v5066 = vld [vmem:[#allocation2 + $0x108] sm:$0xff]
      %v5067 = vld [vmem:[#allocation2 + $0x110] sm:$0xff]
      %v5068 = vld [vmem:[#allocation2 + $0x118] sm:$0xff]
      %5070 = vset.pattern.permute.xlu0 0
      %5071 = vperm.xlu0 %5070, %v4605
      %v5072 = vpop.permute.xlu0 %5071
      %5075 = vset.pattern.permute.xlu0 0
      %5076 = vperm.xlu0 %5075, %v4606
      %v5077 = vpop.permute.xlu0 %5076
      %5080 = vset.pattern.permute.xlu0 0
      %5081 = vperm.xlu0 %5080, %v4607
      %v5082 = vpop.permute.xlu0 %5081
      %5085 = vset.pattern.permute.xlu0 0
      %5086 = vperm.xlu0 %5085, %v4608
      %v5087 = vpop.permute.xlu0 %5086
      %v5097 = vunpack.c.l.b16 %v4596
      %v5098 = vunpack.c.h.b16 %v4596
      %v5099 = vunpack.c.l.b16 %v4597
      %v5100 = vunpack.c.l.b16 %v4598
      %v5101 = vunpack.c.h.b16 %v4598
      %v5102 = vunpack.c.l.b16 %v4599
      %v5103 = vunpack.c.l.b16 %v4600
      %v5104 = vunpack.c.h.b16 %v4600
      %v5105 = vunpack.c.l.b16 %v4601
      %v5106 = vunpack.c.l.b16 %v4602
      %v5107 = vunpack.c.h.b16 %v4602
      %v5108 = vunpack.c.l.b16 %v4603
      %v5109 = vpack.c.b16 %v5100, %v5097
      %v5110 = vpack.c.b16 %v5101, %v5098
      %v5111 = vpack.c.b16 %v5102, %v5099
      %v5112 = vpack.c.b16 %v5106, %v5103
      %v5113 = vpack.c.b16 %v5107, %v5104
      %v5114 = vpack.c.b16 %v5108, %v5105
      %v5120 = vsel %vm1003, %v5111, 0
      %v5123 = vsel %vm1003, %v5114, 0
      %5125 = vmatprep.subr.bf16.mxu0 %v5034
      %5126 = vmatpush1.bf16.msra.mxu0 %v5033
      %5127 = vmatprep.subr.bf16.mxu0 %v5036
      %5128 = vmatpush1.bf16.msra.mxu0 %v5035
      %5129 = vmatprep.subr.bf16.mxu0 %v5038
      %5130 = vmatpush1.bf16.msra.mxu0 %v5037
      %5131 = vmatprep.subr.bf16.mxu0 %v5040
      %5132 = vmatpush1.bf16.msra.mxu0 %v5039
      %5133 = vmatprep.subr.bf16.mxu0 %v5042
      %5134 = vmatpush1.bf16.msra.mxu0 %v5041
      %5135 = vmatprep.subr.bf16.mxu0 %v5044
      %5136 = vmatpush1.bf16.msra.mxu0 %v5043
      %5137 = vmatprep.subr.bf16.mxu0 %v5046
      %5138 = vmatpush1.bf16.msra.mxu0 %v5045
      %5139 = vmatprep.subr.bf16.mxu0 %v5048
      %5140 = vmatpush1.bf16.msra.mxu0 %v5047
      %5141 = vmatprep.subr.bf16.mxu0 %v5050
      %5142 = vmatpush1.bf16.msra.mxu0 %v5049
      %5143 = vmatprep.subr.bf16.mxu0 %v5052
      %5144 = vmatpush1.bf16.msra.mxu0 %v5051
      %5145 = vmatprep.subr.bf16.mxu0 %v5054
      %5146 = vmatpush1.bf16.msra.mxu0 %v5053
      %5147 = vmatprep.subr.bf16.mxu0 %v5056
      %5148 = vmatpush1.bf16.msra.mxu0 %v5055
      %5149 = vmatprep.subr.bf16.mxu0 %v5058
      %5150 = vmatpush1.bf16.msra.mxu0 %v5057
      %5151 = vmatprep.subr.bf16.mxu0 %v5060
      %5152 = vmatpush1.bf16.msra.mxu0 %v5059
      %5153 = vmatprep.subr.bf16.mxu0 %v5062
      %5154 = vmatpush1.bf16.msra.mxu0 %v5061
      %5155 = vmatprep.subr.bf16.mxu0 %v5064
      %5156 = vmatpush1.bf16.msra.mxu0 %v5063
      %5157 = vmatprep.mubr.bf16.mxu0 %v5110
      %5158 = vmatmul.mubr.bf16.gmra.mrb[0].mxu0 %v5109
      %v5159 = vpop.f32.mrb[0].mxu0
      %v5160 = vadd.f32 %v5072, %v5159
      %v5161 = vpop.f32.mrb[0].mxu0
      %v5162 = vadd.f32 %v5072, %v5161
      %v5163 = vpop.f32.mrb[0].mxu0
      %v5164 = vadd.f32 %v5077, %v5163
      %v5165 = vpop.f32.mrb[0].mxu0
      %v5166 = vadd.f32 %v5077, %v5165
      %5167 = vmatprep.mubr.bf16.mxu0 %v5113
      %5168 = vmatmul.mubr.bf16.gmra.mrb[0].mxu0 %v5112
      %v5169 = vpop.f32.mrb[0].mxu0
      %v5170 = vadd.f32 %v5082, %v5169
      %v5171 = vpop.f32.mrb[0].mxu0
      %v5172 = vadd.f32 %v5082, %v5171
      %v5173 = vpop.f32.mrb[0].mxu0
      %v5174 = vadd.f32 %v5087, %v5173
      %v5175 = vpop.f32.mrb[0].mxu0
      %v5176 = vadd.f32 %v5087, %v5175
      %5177 = vdwg.mxu0
      %5178 = vmatprep.subr.bf16.mxu0 %v5066
      %5179 = vmatpush1.bf16.msra.mxu0 %v5065
      %5180 = vmatprep.subr.bf16.mxu0 %v5068
      %5181 = vmatpush1.bf16.msra.mxu0 %v5067
      %5182 = vmatprep.subr.bf16.mxu0 0
      %5183 = vmatpush1.bf16.msra.mxu0 0
      %5184 = vmatprep.subr.bf16.mxu0 0
      %5185 = vmatpush1.bf16.msra.mxu0 0
      %5186 = vmatprep.subr.bf16.mxu0 0
      %5187 = vmatpush1.bf16.msra.mxu0 0
      %5188 = vmatprep.subr.bf16.mxu0 0
      %5189 = vmatpush1.bf16.msra.mxu0 0
      %5190 = vmatprep.subr.bf16.mxu0 0
      %5191 = vmatpush1.bf16.msra.mxu0 0
      %5192 = vmatprep.subr.bf16.mxu0 0
      %5193 = vmatpush1.bf16.msra.mxu0 0
      %5194 = vmatprep.subr.bf16.mxu0 0
      %5195 = vmatpush1.bf16.msra.mxu0 0
      %5196 = vmatprep.subr.bf16.mxu0 0
      %5197 = vmatpush1.bf16.msra.mxu0 0
      %5198 = vmatprep.subr.bf16.mxu0 0
      %5199 = vmatpush1.bf16.msra.mxu0 0
      %5200 = vmatprep.subr.bf16.mxu0 0
      %5201 = vmatpush1.bf16.msra.mxu0 0
      %5202 = vmatprep.subr.bf16.mxu0 0
      %5203 = vmatpush1.bf16.msra.mxu0 0
      %5204 = vmatprep.subr.bf16.mxu0 0
      %5205 = vmatpush1.bf16.msra.mxu0 0
      %5206 = vmatprep.subr.bf16.mxu0 0
      %5207 = vmatpush1.bf16.msra.mxu0 0
      %5208 = vmatprep.subr.bf16.mxu0 0
      %5209 = vmatpush1.bf16.msra.mxu0 0
      %5210 = vmatprep.mubr.bf16.mxu0 0
      %5211 = vmatmul.mubr.bf16.gmra.mrb[0].mxu0 %v5120
      %v5212 = vpop.f32.mrb[0].mxu0
      %v5213 = vadd.f32 %v5160, %v5212
      %v5214 = vpop.f32.mrb[0].mxu0
      %v5215 = vadd.f32 %v5162, %v5214
      %v5216 = vpop.f32.mrb[0].mxu0
      %v5217 = vadd.f32 %v5164, %v5216
      %v5218 = vpop.f32.mrb[0].mxu0
      %v5219 = vadd.f32 %v5166, %v5218
      %5220 = vmatprep.mubr.bf16.mxu0 0
      %5221 = vmatmul.mubr.bf16.gmra.mrb[0].mxu0 %v5123
      %v5222 = vpop.f32.mrb[0].mxu0
      %v5223 = vadd.f32 %v5170, %v5222
      %v5224 = vpop.f32.mrb[0].mxu0
      %v5225 = vadd.f32 %v5172, %v5224
      %v5226 = vpop.f32.mrb[0].mxu0
      %v5227 = vadd.f32 %v5174, %v5226
      %v5228 = vpop.f32.mrb[0].mxu0
      %v5229 = vadd.f32 %v5176, %v5228
      %5230 = vdwg.mxu0
      %v5231 = vmax.f32 %v5213, 0.0
      %v5232 = vmax.f32 %v5215, 0.0
      %v5233 = vmax.f32 %v5217, 0.0
      %v5234 = vmax.f32 %v5219, 0.0
      %v5235 = vmax.f32 %v5223, 0.0
      %v5236 = vmax.f32 %v5225, 0.0
      %v5237 = vmax.f32 %v5227, 0.0
      %v5238 = vmax.f32 %v5229, 0.0
      %s5239 = scalar_lea.vmem %s3, 336
      %v5240 = vld [vmem:[%s5239] sm:$0xff]
      %v5241 = vld [vmem:[%s5239 + $0x8] sm:$0xf]
      %v5242 = vld [vmem:[%s5239 + $0xc] sm:$0xff]
      %v5243 = vld [vmem:[%s5239 + $0x14] sm:$0xf]
      %v5244 = vld [vmem:[%s5239 + $0x18] sm:$0xff]
      %v5245 = vld [vmem:[%s5239 + $0x20] sm:$0xf]
      %v5246 = vld [vmem:[%s5239 + $0x24] sm:$0xff]
      %v5247 = vld [vmem:[%s5239 + $0x2c] sm:$0xf]
      %s5248 = scalar_lea.vmem %s4, 224
      %v5249 = vld [vmem:[%s5248] sm:$0xff]
      %v5250 = vld [vmem:[%s5248 + $0x8] sm:$0xff]
      %v5251 = vld [vmem:[%s5248 + $0x10] sm:$0xff]
      %v5252 = vld [vmem:[%s5248 + $0x18] sm:$0xff]
      %5253 = vrot.lane.b32.xlu0 %v5231, 17
      %v5254 = vpop.permute.xlu0 %5253
      %5255 = vrot.lane.b32.xlu0 %v5233, 17
      %v5256 = vpop.permute.xlu0 %5255
      %5257 = vrot.lane.b32.xlu0 %v5235, 17
      %v5258 = vpop.permute.xlu0 %5257
      %5259 = vrot.lane.b32.xlu0 %v5237, 17
      %v5260 = vpop.permute.xlu0 %5259
      %5261 = vrot.lane.b32.xlu0 %v5232, 17
      %v5262 = vpop.permute.xlu0 %5261
      %5263 = vrot.lane.b32.xlu0 %v5234, 17
      %v5264 = vpop.permute.xlu0 %5263
      %5265 = vrot.lane.b32.xlu0 %v5236, 17
      %v5266 = vpop.permute.xlu0 %5265
      %5267 = vrot.lane.b32.xlu0 %v5238, 17
      %v5268 = vpop.permute.xlu0 %5267
      %v5269 = vsel %vm494, %v5254, %v5262
      %v5270 = vsel %vm494, %v5256, %v5264
      %v5271 = vsel %vm494, %v5258, %v5266
      %v5272 = vsel %vm494, %v5260, %v5268
      %v5273 = vsel %vm494, %v5262, %v5254
      %v5274 = vsel %vm494, %v5264, %v5256
      %v5275 = vsel %vm494, %v5266, %v5258
      %v5276 = vsel %vm494, %v5268, %v5260
      %v5277 = vld [vmem:[%s2] sm:$0x3]
      %v5279 = vlaneseq
      %v5280 = vshrl.u32 %v5279, 7
      %v5281 = vsub.s32 0, %v5280
      %v5282 = vrot.slane %v5277, %v5281
      %v5283 = vlaneseq
      %v5284 = vshrl.u32 %v5283, 7
      %v5285 = vsub.s32 1, %v5284
      %v5286 = vrot.slane %v5277, %v5285
      %v5289 = vmul.f32 %v5273, %v5282
      %v5290 = vmul.f32 %v5269, %v5286
      %v5291 = vmul.f32 %v5274, %v5282
      %v5292 = vmul.f32 %v5270, %v5286
      %v5293 = vmul.f32 %v5275, %v5282
      %v5294 = vmul.f32 %v5271, %v5286
      %v5295 = vmul.f32 %v5276, %v5282
      %v5296 = vmul.f32 %v5272, %v5286
      %v5297 = vpack.c.bf16 %v5291, %v5289
      %v5298 = vpack.c.bf16 %v5292, %v5290
      %v5299 = vpack.c.bf16 %v5295, %v5293
      %v5300 = vpack.c.bf16 %v5296, %v5294
      %5301 = vst [vmem:[#allocation2] sm:$0xff] %v5297
      %5302 = vst [vmem:[#allocation2 + $0x8] sm:$0xff] %v5298
      %5303 = vst [vmem:[#allocation2 + $0x10] sm:$0xff] %v5299
      %5304 = vst [vmem:[#allocation2 + $0x18] sm:$0xff] %v5300
      %5305 = vrot.lane.b32.xlu0 %v5231, 16
      %v5306 = vpop.permute.xlu0 %5305
      %5307 = vrot.lane.b32.xlu0 %v5233, 16
      %v5308 = vpop.permute.xlu0 %5307
      %5309 = vrot.lane.b32.xlu0 %v5235, 16
      %v5310 = vpop.permute.xlu0 %5309
      %5311 = vrot.lane.b32.xlu0 %v5237, 16
      %v5312 = vpop.permute.xlu0 %5311
      %5313 = vrot.lane.b32.xlu0 %v5232, 16
      %v5314 = vpop.permute.xlu0 %5313
      %5315 = vrot.lane.b32.xlu0 %v5234, 16
      %v5316 = vpop.permute.xlu0 %5315
      %5317 = vrot.lane.b32.xlu0 %v5236, 16
      %v5318 = vpop.permute.xlu0 %5317
      %5319 = vrot.lane.b32.xlu0 %v5238, 16
      %v5320 = vpop.permute.xlu0 %5319
      %v5321 = vsel %vm547, %v5306, %v5314
      %v5322 = vsel %vm547, %v5308, %v5316
      %v5323 = vsel %vm547, %v5310, %v5318
      %v5324 = vsel %vm547, %v5312, %v5320
      %v5325 = vsel %vm547, %v5314, %v5306
      %v5326 = vsel %vm547, %v5316, %v5308
      %v5327 = vsel %vm547, %v5318, %v5310
      %v5328 = vsel %vm547, %v5320, %v5312
      %v5329 = vld [vmem:[%s556] sm:$0x3]
      %v5331 = vlaneseq
      %v5332 = vshrl.u32 %v5331, 7
      %v5333 = vsub.s32 0, %v5332
      %v5334 = vrot.slane %v5329, %v5333
      %v5335 = vlaneseq
      %v5336 = vshrl.u32 %v5335, 7
      %v5337 = vsub.s32 1, %v5336
      %v5338 = vrot.slane %v5329, %v5337
      %v5341 = vmul.f32 %v5325, %v5334
      %v5342 = vmul.f32 %v5321, %v5338
      %v5343 = vmul.f32 %v5326, %v5334
      %v5344 = vmul.f32 %v5322, %v5338
      %v5345 = vmul.f32 %v5327, %v5334
      %v5346 = vmul.f32 %v5323, %v5338
      %v5347 = vmul.f32 %v5328, %v5334
      %v5348 = vmul.f32 %v5324, %v5338
      %v5349 = vpack.c.bf16 %v5343, %v5341
      %v5350 = vpack.c.bf16 %v5344, %v5342
      %v5351 = vpack.c.bf16 %v5347, %v5345
      %v5352 = vpack.c.bf16 %v5348, %v5346
      %5353 = vst [vmem:[#allocation2 + $0x20] sm:$0xff] %v5349
      %5354 = vst [vmem:[#allocation2 + $0x28] sm:$0xff] %v5350
      %5355 = vst [vmem:[#allocation2 + $0x30] sm:$0xff] %v5351
      %5356 = vst [vmem:[#allocation2 + $0x38] sm:$0xff] %v5352
      %5357 = vrot.lane.b32.xlu0 %v5231, 15
      %v5358 = vpop.permute.xlu0 %5357
      %5359 = vrot.lane.b32.xlu0 %v5233, 15
      %v5360 = vpop.permute.xlu0 %5359
      %5361 = vrot.lane.b32.xlu0 %v5235, 15
      %v5362 = vpop.permute.xlu0 %5361
      %5363 = vrot.lane.b32.xlu0 %v5237, 15
      %v5364 = vpop.permute.xlu0 %5363
      %5365 = vrot.lane.b32.xlu0 %v5232, 15
      %v5366 = vpop.permute.xlu0 %5365
      %5367 = vrot.lane.b32.xlu0 %v5234, 15
      %v5368 = vpop.permute.xlu0 %5367
      %5369 = vrot.lane.b32.xlu0 %v5236, 15
      %v5370 = vpop.permute.xlu0 %5369
      %5371 = vrot.lane.b32.xlu0 %v5238, 15
      %v5372 = vpop.permute.xlu0 %5371
      %v5373 = vsel %vm601, %v5358, %v5366
      %v5374 = vsel %vm601, %v5360, %v5368
      %v5375 = vsel %vm601, %v5362, %v5370
      %v5376 = vsel %vm601, %v5364, %v5372
      %v5377 = vsel %vm601, %v5366, %v5358
      %v5378 = vsel %vm601, %v5368, %v5360
      %v5379 = vsel %vm601, %v5370, %v5362
      %v5380 = vsel %vm601, %v5372, %v5364
      %v5381 = vld [vmem:[%s610] sm:$0x3]
      %v5383 = vlaneseq
      %v5384 = vshrl.u32 %v5383, 7
      %v5385 = vsub.s32 0, %v5384
      %v5386 = vrot.slane %v5381, %v5385
      %v5387 = vlaneseq
      %v5388 = vshrl.u32 %v5387, 7
      %v5389 = vsub.s32 1, %v5388
      %v5390 = vrot.slane %v5381, %v5389
      %v5393 = vmul.f32 %v5377, %v5386
      %v5394 = vmul.f32 %v5373, %v5390
      %v5395 = vmul.f32 %v5378, %v5386
      %v5396 = vmul.f32 %v5374, %v5390
      %v5397 = vmul.f32 %v5379, %v5386
      %v5398 = vmul.f32 %v5375, %v5390
      %v5399 = vmul.f32 %v5380, %v5386
      %v5400 = vmul.f32 %v5376, %v5390
      %v5401 = vpack.c.bf16 %v5395, %v5393
      %v5402 = vpack.c.bf16 %v5396, %v5394
      %v5403 = vpack.c.bf16 %v5399, %v5397
      %v5404 = vpack.c.bf16 %v5400, %v5398
      %5405 = vst [vmem:[#allocation2 + $0x40] sm:$0xff] %v5401
      %5406 = vst [vmem:[#allocation2 + $0x48] sm:$0xff] %v5402
      %5407 = vst [vmem:[#allocation2 + $0x50] sm:$0xff] %v5403
      %5408 = vst [vmem:[#allocation2 + $0x58] sm:$0xff] %v5404
      %5409 = vrot.lane.b32.xlu0 %v5231, 1
      %v5410 = vpop.permute.xlu0 %5409
      %5411 = vrot.lane.b32.xlu0 %v5233, 1
      %v5412 = vpop.permute.xlu0 %5411
      %5413 = vrot.lane.b32.xlu0 %v5235, 1
      %v5414 = vpop.permute.xlu0 %5413
      %5415 = vrot.lane.b32.xlu0 %v5237, 1
      %v5416 = vpop.permute.xlu0 %5415
      %5417 = vrot.lane.b32.xlu0 %v5232, 1
      %v5418 = vpop.permute.xlu0 %5417
      %5419 = vrot.lane.b32.xlu0 %v5234, 1
      %v5420 = vpop.permute.xlu0 %5419
      %5421 = vrot.lane.b32.xlu0 %v5236, 1
      %v5422 = vpop.permute.xlu0 %5421
      %5423 = vrot.lane.b32.xlu0 %v5238, 1
      %v5424 = vpop.permute.xlu0 %5423
      %v5425 = vsel %vm655, %v5410, %v5418
      %v5426 = vsel %vm655, %v5412, %v5420
      %v5427 = vsel %vm655, %v5414, %v5422
      %v5428 = vsel %vm655, %v5416, %v5424
      %v5429 = vsel %vm655, %v5418, %v5410
      %v5430 = vsel %vm655, %v5420, %v5412
      %v5431 = vsel %vm655, %v5422, %v5414
      %v5432 = vsel %vm655, %v5424, %v5416
      %v5433 = vld [vmem:[%s664] sm:$0x3]
      %v5435 = vlaneseq
      %v5436 = vshrl.u32 %v5435, 7
      %v5437 = vsub.s32 0, %v5436
      %v5438 = vrot.slane %v5433, %v5437
      %v5439 = vlaneseq
      %v5440 = vshrl.u32 %v5439, 7
      %v5441 = vsub.s32 1, %v5440
      %v5442 = vrot.slane %v5433, %v5441
      %v5445 = vmul.f32 %v5429, %v5438
      %v5446 = vmul.f32 %v5425, %v5442
      %v5447 = vmul.f32 %v5430, %v5438
      %v5448 = vmul.f32 %v5426, %v5442
      %v5449 = vmul.f32 %v5431, %v5438
      %v5450 = vmul.f32 %v5427, %v5442
      %v5451 = vmul.f32 %v5432, %v5438
      %v5452 = vmul.f32 %v5428, %v5442
      %v5453 = vpack.c.bf16 %v5447, %v5445
      %v5454 = vpack.c.bf16 %v5448, %v5446
      %v5455 = vpack.c.bf16 %v5451, %v5449
      %v5456 = vpack.c.bf16 %v5452, %v5450
      %5457 = vst [vmem:[#allocation2 + $0x60] sm:$0xff] %v5453
      %5458 = vst [vmem:[#allocation2 + $0x68] sm:$0xff] %v5454
      %5459 = vst [vmem:[#allocation2 + $0x70] sm:$0xff] %v5455
      %5460 = vst [vmem:[#allocation2 + $0x78] sm:$0xff] %v5456
      %v5461 = vpack.c.bf16 %v5233, %v5231
      %v5462 = vpack.c.bf16 %v5234, %v5232
      %v5463 = vpack.c.bf16 %v5237, %v5235
      %v5464 = vpack.c.bf16 %v5238, %v5236
      %5465 = vst [vmem:[#allocation2 + $0x80] sm:$0xff] %v5461
      %5466 = vst [vmem:[#allocation2 + $0x88] sm:$0xff] %v5462
      %5467 = vst [vmem:[#allocation2 + $0x90] sm:$0xff] %v5463
      %5468 = vst [vmem:[#allocation2 + $0x98] sm:$0xff] %v5464
      %5469 = vrot.lane.b32.xlu0 %v5231, 127
      %v5470 = vpop.permute.xlu0 %5469
      %5471 = vrot.lane.b32.xlu0 %v5233, 127
      %v5472 = vpop.permute.xlu0 %5471
      %5473 = vrot.lane.b32.xlu0 %v5235, 127
      %v5474 = vpop.permute.xlu0 %5473
      %5475 = vrot.lane.b32.xlu0 %v5237, 127
      %v5476 = vpop.permute.xlu0 %5475
      %5477 = vrot.lane.b32.xlu0 %v5232, 127
      %v5478 = vpop.permute.xlu0 %5477
      %5479 = vrot.lane.b32.xlu0 %v5234, 127
      %v5480 = vpop.permute.xlu0 %5479
      %5481 = vrot.lane.b32.xlu0 %v5236, 127
      %v5482 = vpop.permute.xlu0 %5481
      %5483 = vrot.lane.b32.xlu0 %v5238, 127
      %v5484 = vpop.permute.xlu0 %5483
      %v5485 = vsel %vm717, %v5470, %v5478
      %v5486 = vsel %vm717, %v5472, %v5480
      %v5487 = vsel %vm717, %v5474, %v5482
      %v5488 = vsel %vm717, %v5476, %v5484
      %v5489 = vsel %vm717, %v5478, %v5470
      %v5490 = vsel %vm717, %v5480, %v5472
      %v5491 = vsel %vm717, %v5482, %v5474
      %v5492 = vsel %vm717, %v5484, %v5476
      %v5493 = vld [vmem:[%s726] sm:$0x3]
      %v5495 = vlaneseq
      %v5496 = vshrl.u32 %v5495, 7
      %v5497 = vsub.s32 0, %v5496
      %v5498 = vrot.slane %v5493, %v5497
      %v5499 = vlaneseq
      %v5500 = vshrl.u32 %v5499, 7
      %v5501 = vsub.s32 1, %v5500
      %v5502 = vrot.slane %v5493, %v5501
      %v5505 = vmul.f32 %v5485, %v5498
      %v5506 = vmul.f32 %v5489, %v5502
      %v5507 = vmul.f32 %v5486, %v5498
      %v5508 = vmul.f32 %v5490, %v5502
      %v5509 = vmul.f32 %v5487, %v5498
      %v5510 = vmul.f32 %v5491, %v5502
      %v5511 = vmul.f32 %v5488, %v5498
      %v5512 = vmul.f32 %v5492, %v5502
      %v5513 = vpack.c.bf16 %v5507, %v5505
      %v5514 = vpack.c.bf16 %v5508, %v5506
      %v5515 = vpack.c.bf16 %v5511, %v5509
      %v5516 = vpack.c.bf16 %v5512, %v5510
      %5517 = vst [vmem:[#allocation2 + $0xa0] sm:$0xff] %v5513
      %5518 = vst [vmem:[#allocation2 + $0xa8] sm:$0xff] %v5514
      %5519 = vst [vmem:[#allocation2 + $0xb0] sm:$0xff] %v5515
      %5520 = vst [vmem:[#allocation2 + $0xb8] sm:$0xff] %v5516
      %5521 = vrot.lane.b32.xlu0 %v5231, 113
      %v5522 = vpop.permute.xlu0 %5521
      %5523 = vrot.lane.b32.xlu0 %v5233, 113
      %v5524 = vpop.permute.xlu0 %5523
      %5525 = vrot.lane.b32.xlu0 %v5235, 113
      %v5526 = vpop.permute.xlu0 %5525
      %5527 = vrot.lane.b32.xlu0 %v5237, 113
      %v5528 = vpop.permute.xlu0 %5527
      %5529 = vrot.lane.b32.xlu0 %v5232, 113
      %v5530 = vpop.permute.xlu0 %5529
      %5531 = vrot.lane.b32.xlu0 %v5234, 113
      %v5532 = vpop.permute.xlu0 %5531
      %5533 = vrot.lane.b32.xlu0 %v5236, 113
      %v5534 = vpop.permute.xlu0 %5533
      %5535 = vrot.lane.b32.xlu0 %v5238, 113
      %v5536 = vpop.permute.xlu0 %5535
      %v5537 = vsel %vm771, %v5522, %v5530
      %v5538 = vsel %vm771, %v5524, %v5532
      %v5539 = vsel %vm771, %v5526, %v5534
      %v5540 = vsel %vm771, %v5528, %v5536
      %v5541 = vsel %vm771, %v5530, %v5522
      %v5542 = vsel %vm771, %v5532, %v5524
      %v5543 = vsel %vm771, %v5534, %v5526
      %v5544 = vsel %vm771, %v5536, %v5528
      %v5545 = vld [vmem:[%s780] sm:$0x3]
      %v5547 = vlaneseq
      %v5548 = vshrl.u32 %v5547, 7
      %v5549 = vsub.s32 0, %v5548
      %v5550 = vrot.slane %v5545, %v5549
      %v5551 = vlaneseq
      %v5552 = vshrl.u32 %v5551, 7
      %v5553 = vsub.s32 1, %v5552
      %v5554 = vrot.slane %v5545, %v5553
      %v5557 = vmul.f32 %v5537, %v5550
      %v5558 = vmul.f32 %v5541, %v5554
      %v5559 = vmul.f32 %v5538, %v5550
      %v5560 = vmul.f32 %v5542, %v5554
      %v5561 = vmul.f32 %v5539, %v5550
      %v5562 = vmul.f32 %v5543, %v5554
      %v5563 = vmul.f32 %v5540, %v5550
      %v5564 = vmul.f32 %v5544, %v5554
      %v5565 = vpack.c.bf16 %v5559, %v5557
      %v5566 = vpack.c.bf16 %v5560, %v5558
      %v5567 = vpack.c.bf16 %v5563, %v5561
      %v5568 = vpack.c.bf16 %v5564, %v5562
      %5569 = vst [vmem:[#allocation2 + $0xc0] sm:$0xff] %v5565
      %5570 = vst [vmem:[#allocation2 + $0xc8] sm:$0xff] %v5566
      %5571 = vst [vmem:[#allocation2 + $0xd0] sm:$0xff] %v5567
      %5572 = vst [vmem:[#allocation2 + $0xd8] sm:$0xff] %v5568
      %5573 = vrot.lane.b32.xlu0 %v5231, 112
      %v5574 = vpop.permute.xlu0 %5573
      %5575 = vrot.lane.b32.xlu0 %v5233, 112
      %v5576 = vpop.permute.xlu0 %5575
      %5577 = vrot.lane.b32.xlu0 %v5235, 112
      %v5578 = vpop.permute.xlu0 %5577
      %5579 = vrot.lane.b32.xlu0 %v5237, 112
      %v5580 = vpop.permute.xlu0 %5579
      %5581 = vrot.lane.b32.xlu0 %v5232, 112
      %v5582 = vpop.permute.xlu0 %5581
      %5583 = vrot.lane.b32.xlu0 %v5234, 112
      %v5584 = vpop.permute.xlu0 %5583
      %5585 = vrot.lane.b32.xlu0 %v5236, 112
      %v5586 = vpop.permute.xlu0 %5585
      %5587 = vrot.lane.b32.xlu0 %v5238, 112
      %v5588 = vpop.permute.xlu0 %5587
      %v5589 = vsel %vm825, %v5574, %v5582
      %v5590 = vsel %vm825, %v5576, %v5584
      %v5591 = vsel %vm825, %v5578, %v5586
      %v5592 = vsel %vm825, %v5580, %v5588
      %v5593 = vsel %vm825, %v5582, %v5574
      %v5594 = vsel %vm825, %v5584, %v5576
      %v5595 = vsel %vm825, %v5586, %v5578
      %v5596 = vsel %vm825, %v5588, %v5580
      %v5597 = vld [vmem:[%s834] sm:$0x3]
      %v5599 = vlaneseq
      %v5600 = vshrl.u32 %v5599, 7
      %v5601 = vsub.s32 0, %v5600
      %v5602 = vrot.slane %v5597, %v5601
      %v5603 = vlaneseq
      %v5604 = vshrl.u32 %v5603, 7
      %v5605 = vsub.s32 1, %v5604
      %v5606 = vrot.slane %v5597, %v5605
      %v5609 = vmul.f32 %v5589, %v5602
      %v5610 = vmul.f32 %v5593, %v5606
      %v5611 = vmul.f32 %v5590, %v5602
      %v5612 = vmul.f32 %v5594, %v5606
      %v5613 = vmul.f32 %v5591, %v5602
      %v5614 = vmul.f32 %v5595, %v5606
      %v5615 = vmul.f32 %v5592, %v5602
      %v5616 = vmul.f32 %v5596, %v5606
      %v5617 = vpack.c.bf16 %v5611, %v5609
      %v5618 = vpack.c.bf16 %v5612, %v5610
      %v5619 = vpack.c.bf16 %v5615, %v5613
      %v5620 = vpack.c.bf16 %v5616, %v5614
      %5621 = vst [vmem:[#allocation2 + $0xe0] sm:$0xff] %v5617
      %5622 = vst [vmem:[#allocation2 + $0xe8] sm:$0xff] %v5618
      %5623 = vst [vmem:[#allocation2 + $0xf0] sm:$0xff] %v5619
      %5624 = vst [vmem:[#allocation2 + $0xf8] sm:$0xff] %v5620
      %5625 = vrot.lane.b32.xlu0 %v5231, 111
      %v5626 = vpop.permute.xlu0 %5625
      %5627 = vrot.lane.b32.xlu0 %v5233, 111
      %v5628 = vpop.permute.xlu0 %5627
      %5629 = vrot.lane.b32.xlu0 %v5235, 111
      %v5630 = vpop.permute.xlu0 %5629
      %5631 = vrot.lane.b32.xlu0 %v5237, 111
      %v5632 = vpop.permute.xlu0 %5631
      %5633 = vrot.lane.b32.xlu0 %v5232, 111
      %v5634 = vpop.permute.xlu0 %5633
      %5635 = vrot.lane.b32.xlu0 %v5234, 111
      %v5636 = vpop.permute.xlu0 %5635
      %5637 = vrot.lane.b32.xlu0 %v5236, 111
      %v5638 = vpop.permute.xlu0 %5637
      %5639 = vrot.lane.b32.xlu0 %v5238, 111
      %v5640 = vpop.permute.xlu0 %5639
      %v5641 = vsel %vm879, %v5626, %v5634
      %v5642 = vsel %vm879, %v5628, %v5636
      %v5643 = vsel %vm879, %v5630, %v5638
      %v5644 = vsel %vm879, %v5632, %v5640
      %v5645 = vsel %vm879, %v5634, %v5626
      %v5646 = vsel %vm879, %v5636, %v5628
      %v5647 = vsel %vm879, %v5638, %v5630
      %v5648 = vsel %vm879, %v5640, %v5632
      %v5649 = vld [vmem:[%s888] sm:$0x3]
      %v5651 = vlaneseq
      %v5652 = vshrl.u32 %v5651, 7
      %v5653 = vsub.s32 0, %v5652
      %v5654 = vrot.slane %v5649, %v5653
      %v5655 = vlaneseq
      %v5656 = vshrl.u32 %v5655, 7
      %v5657 = vsub.s32 1, %v5656
      %v5658 = vrot.slane %v5649, %v5657
      %v5661 = vmul.f32 %v5641, %v5654
      %v5662 = vmul.f32 %v5645, %v5658
      %v5663 = vmul.f32 %v5642, %v5654
      %v5664 = vmul.f32 %v5646, %v5658
      %v5665 = vmul.f32 %v5643, %v5654
      %v5666 = vmul.f32 %v5647, %v5658
      %v5667 = vmul.f32 %v5644, %v5654
      %v5668 = vmul.f32 %v5648, %v5658
      %v5669 = vpack.c.bf16 %v5663, %v5661
      %v5670 = vpack.c.bf16 %v5664, %v5662
      %v5671 = vpack.c.bf16 %v5667, %v5665
      %v5672 = vpack.c.bf16 %v5668, %v5666
      %5673 = vst [vmem:[#allocation2 + $0x100] sm:$0xff] %v5669
      %5674 = vst [vmem:[#allocation2 + $0x108] sm:$0xff] %v5670
      %5675 = vst [vmem:[#allocation2 + $0x110] sm:$0xff] %v5671
      %5676 = vst [vmem:[#allocation2 + $0x118] sm:$0xff] %v5672
      %v5677 = vld [vmem:[#allocation2] sm:$0xff]
      %v5678 = vld [vmem:[#allocation2 + $0x8] sm:$0xff]
      %v5679 = vld [vmem:[#allocation2 + $0x10] sm:$0xff]
      %v5680 = vld [vmem:[#allocation2 + $0x18] sm:$0xff]
      %v5681 = vld [vmem:[#allocation2 + $0x20] sm:$0xff]
      %v5682 = vld [vmem:[#allocation2 + $0x28] sm:$0xff]
      %v5683 = vld [vmem:[#allocation2 + $0x30] sm:$0xff]
      %v5684 = vld [vmem:[#allocation2 + $0x38] sm:$0xff]
      %v5685 = vld [vmem:[#allocation2 + $0x40] sm:$0xff]
      %v5686 = vld [vmem:[#allocation2 + $0x48] sm:$0xff]
      %v5687 = vld [vmem:[#allocation2 + $0x50] sm:$0xff]
      %v5688 = vld [vmem:[#allocation2 + $0x58] sm:$0xff]
      %v5689 = vld [vmem:[#allocation2 + $0x60] sm:$0xff]
      %v5690 = vld [vmem:[#allocation2 + $0x68] sm:$0xff]
      %v5691 = vld [vmem:[#allocation2 + $0x70] sm:$0xff]
      %v5692 = vld [vmem:[#allocation2 + $0x78] sm:$0xff]
      %v5693 = vld [vmem:[#allocation2 + $0x80] sm:$0xff]
      %v5694 = vld [vmem:[#allocation2 + $0x88] sm:$0xff]
      %v5695 = vld [vmem:[#allocation2 + $0x90] sm:$0xff]
      %v5696 = vld [vmem:[#allocation2 + $0x98] sm:$0xff]
      %v5697 = vld [vmem:[#allocation2 + $0xa0] sm:$0xff]
      %v5698 = vld [vmem:[#allocation2 + $0xa8] sm:$0xff]
      %v5699 = vld [vmem:[#allocation2 + $0xb0] sm:$0xff]
      %v5700 = vld [vmem:[#allocation2 + $0xb8] sm:$0xff]
      %v5701 = vld [vmem:[#allocation2 + $0xc0] sm:$0xff]
      %v5702 = vld [vmem:[#allocation2 + $0xc8] sm:$0xff]
      %v5703 = vld [vmem:[#allocation2 + $0xd0] sm:$0xff]
      %v5704 = vld [vmem:[#allocation2 + $0xd8] sm:$0xff]
      %v5705 = vld [vmem:[#allocation2 + $0xe0] sm:$0xff]
      %v5706 = vld [vmem:[#allocation2 + $0xe8] sm:$0xff]
      %v5707 = vld [vmem:[#allocation2 + $0xf0] sm:$0xff]
      %v5708 = vld [vmem:[#allocation2 + $0xf8] sm:$0xff]
      %v5709 = vld [vmem:[#allocation2 + $0x100] sm:$0xff]
      %v5710 = vld [vmem:[#allocation2 + $0x108] sm:$0xff]
      %v5711 = vld [vmem:[#allocation2 + $0x110] sm:$0xff]
      %v5712 = vld [vmem:[#allocation2 + $0x118] sm:$0xff]
      %5714 = vset.pattern.permute.xlu0 0
      %5715 = vperm.xlu0 %5714, %v5249
      %v5716 = vpop.permute.xlu0 %5715
      %5719 = vset.pattern.permute.xlu0 0
      %5720 = vperm.xlu0 %5719, %v5250
      %v5721 = vpop.permute.xlu0 %5720
      %5724 = vset.pattern.permute.xlu0 0
      %5725 = vperm.xlu0 %5724, %v5251
      %v5726 = vpop.permute.xlu0 %5725
      %5729 = vset.pattern.permute.xlu0 0
      %5730 = vperm.xlu0 %5729, %v5252
      %v5731 = vpop.permute.xlu0 %5730
      %v5741 = vunpack.c.l.b16 %v5240
      %v5742 = vunpack.c.h.b16 %v5240
      %v5743 = vunpack.c.l.b16 %v5241
      %v5744 = vunpack.c.l.b16 %v5242
      %v5745 = vunpack.c.h.b16 %v5242
      %v5746 = vunpack.c.l.b16 %v5243
      %v5747 = vunpack.c.l.b16 %v5244
      %v5748 = vunpack.c.h.b16 %v5244
      %v5749 = vunpack.c.l.b16 %v5245
      %v5750 = vunpack.c.l.b16 %v5246
      %v5751 = vunpack.c.h.b16 %v5246
      %v5752 = vunpack.c.l.b16 %v5247
      %v5753 = vpack.c.b16 %v5744, %v5741
      %v5754 = vpack.c.b16 %v5745, %v5742
      %v5755 = vpack.c.b16 %v5746, %v5743
      %v5756 = vpack.c.b16 %v5750, %v5747
      %v5757 = vpack.c.b16 %v5751, %v5748
      %v5758 = vpack.c.b16 %v5752, %v5749
      %v5764 = vsel %vm1003, %v5755, 0
      %v5767 = vsel %vm1003, %v5758, 0
      %5769 = vmatprep.subr.bf16.mxu0 %v5678
      %5770 = vmatpush1.bf16.msra.mxu0 %v5677
      %5771 = vmatprep.subr.bf16.mxu0 %v5680
      %5772 = vmatpush1.bf16.msra.mxu0 %v5679
      %5773 = vmatprep.subr.bf16.mxu0 %v5682
      %5774 = vmatpush1.bf16.msra.mxu0 %v5681
      %5775 = vmatprep.subr.bf16.mxu0 %v5684
      %5776 = vmatpush1.bf16.msra.mxu0 %v5683
      %5777 = vmatprep.subr.bf16.mxu0 %v5686
      %5778 = vmatpush1.bf16.msra.mxu0 %v5685
      %5779 = vmatprep.subr.bf16.mxu0 %v5688
      %5780 = vmatpush1.bf16.msra.mxu0 %v5687
      %5781 = vmatprep.subr.bf16.mxu0 %v5690
      %5782 = vmatpush1.bf16.msra.mxu0 %v5689
      %5783 = vmatprep.subr.bf16.mxu0 %v5692
      %5784 = vmatpush1.bf16.msra.mxu0 %v5691
      %5785 = vmatprep.subr.bf16.mxu0 %v5694
      %5786 = vmatpush1.bf16.msra.mxu0 %v5693
      %5787 = vmatprep.subr.bf16.mxu0 %v5696
      %5788 = vmatpush1.bf16.msra.mxu0 %v5695
      %5789 = vmatprep.subr.bf16.mxu0 %v5698
      %5790 = vmatpush1.bf16.msra.mxu0 %v5697
      %5791 = vmatprep.subr.bf16.mxu0 %v5700
      %5792 = vmatpush1.bf16.msra.mxu0 %v5699
      %5793 = vmatprep.subr.bf16.mxu0 %v5702
      %5794 = vmatpush1.bf16.msra.mxu0 %v5701
      %5795 = vmatprep.subr.bf16.mxu0 %v5704
      %5796 = vmatpush1.bf16.msra.mxu0 %v5703
      %5797 = vmatprep.subr.bf16.mxu0 %v5706
      %5798 = vmatpush1.bf16.msra.mxu0 %v5705
      %5799 = vmatprep.subr.bf16.mxu0 %v5708
      %5800 = vmatpush1.bf16.msra.mxu0 %v5707
      %5801 = vmatprep.mubr.bf16.mxu0 %v5754
      %5802 = vmatmul.mubr.bf16.gmra.mrb[0].mxu0 %v5753
      %v5803 = vpop.f32.mrb[0].mxu0
      %v5804 = vadd.f32 %v5716, %v5803
      %v5805 = vpop.f32.mrb[0].mxu0
      %v5806 = vadd.f32 %v5716, %v5805
      %v5807 = vpop.f32.mrb[0].mxu0
      %v5808 = vadd.f32 %v5721, %v5807
      %v5809 = vpop.f32.mrb[0].mxu0
      %v5810 = vadd.f32 %v5721, %v5809
      %5811 = vmatprep.mubr.bf16.mxu0 %v5757
      %5812 = vmatmul.mubr.bf16.gmra.mrb[0].mxu0 %v5756
      %v5813 = vpop.f32.mrb[0].mxu0
      %v5814 = vadd.f32 %v5726, %v5813
      %v5815 = vpop.f32.mrb[0].mxu0
      %v5816 = vadd.f32 %v5726, %v5815
      %v5817 = vpop.f32.mrb[0].mxu0
      %v5818 = vadd.f32 %v5731, %v5817
      %v5819 = vpop.f32.mrb[0].mxu0
      %v5820 = vadd.f32 %v5731, %v5819
      %5821 = vdwg.mxu0
      %5822 = vmatprep.subr.bf16.mxu0 %v5710
      %5823 = vmatpush1.bf16.msra.mxu0 %v5709
      %5824 = vmatprep.subr.bf16.mxu0 %v5712
      %5825 = vmatpush1.bf16.msra.mxu0 %v5711
      %5826 = vmatprep.subr.bf16.mxu0 0
      %5827 = vmatpush1.bf16.msra.mxu0 0
      %5828 = vmatprep.subr.bf16.mxu0 0
      %5829 = vmatpush1.bf16.msra.mxu0 0
      %5830 = vmatprep.subr.bf16.mxu0 0
      %5831 = vmatpush1.bf16.msra.mxu0 0
      %5832 = vmatprep.subr.bf16.mxu0 0
      %5833 = vmatpush1.bf16.msra.mxu0 0
      %5834 = vmatprep.subr.bf16.mxu0 0
      %5835 = vmatpush1.bf16.msra.mxu0 0
      %5836 = vmatprep.subr.bf16.mxu0 0
      %5837 = vmatpush1.bf16.msra.mxu0 0
      %5838 = vmatprep.subr.bf16.mxu0 0
      %5839 = vmatpush1.bf16.msra.mxu0 0
      %5840 = vmatprep.subr.bf16.mxu0 0
      %5841 = vmatpush1.bf16.msra.mxu0 0
      %5842 = vmatprep.subr.bf16.mxu0 0
      %5843 = vmatpush1.bf16.msra.mxu0 0
      %5844 = vmatprep.subr.bf16.mxu0 0
      %5845 = vmatpush1.bf16.msra.mxu0 0
      %5846 = vmatprep.subr.bf16.mxu0 0
      %5847 = vmatpush1.bf16.msra.mxu0 0
      %5848 = vmatprep.subr.bf16.mxu0 0
      %5849 = vmatpush1.bf16.msra.mxu0 0
      %5850 = vmatprep.subr.bf16.mxu0 0
      %5851 = vmatpush1.bf16.msra.mxu0 0
      %5852 = vmatprep.subr.bf16.mxu0 0
      %5853 = vmatpush1.bf16.msra.mxu0 0
      %5854 = vmatprep.mubr.bf16.mxu0 0
      %5855 = vmatmul.mubr.bf16.gmra.mrb[0].mxu0 %v5764
      %v5856 = vpop.f32.mrb[0].mxu0
      %v5857 = vadd.f32 %v5804, %v5856
      %v5858 = vpop.f32.mrb[0].mxu0
      %v5859 = vadd.f32 %v5806, %v5858
      %v5860 = vpop.f32.mrb[0].mxu0
      %v5861 = vadd.f32 %v5808, %v5860
      %v5862 = vpop.f32.mrb[0].mxu0
      %v5863 = vadd.f32 %v5810, %v5862
      %5864 = vmatprep.mubr.bf16.mxu0 0
      %5865 = vmatmul.mubr.bf16.gmra.mrb[0].mxu0 %v5767
      %v5866 = vpop.f32.mrb[0].mxu0
      %v5867 = vadd.f32 %v5814, %v5866
      %v5868 = vpop.f32.mrb[0].mxu0
      %v5869 = vadd.f32 %v5816, %v5868
      %v5870 = vpop.f32.mrb[0].mxu0
      %v5871 = vadd.f32 %v5818, %v5870
      %v5872 = vpop.f32.mrb[0].mxu0
      %v5873 = vadd.f32 %v5820, %v5872
      %5874 = vdwg.mxu0
      %v5875 = vadd.f32 %v5857, %v5859
      %5876 = vadd.xlane.f32.xlu0 %v5875
      %v5877 = vpop.xlane.xlu0 %5876
      %v5878 = vadd.f32 %v5861, %v5863
      %5879 = vadd.xlane.f32.xlu0 %v5878
      %v5880 = vpop.xlane.xlu0 %5879
      %v5881 = vadd.f32 %v5867, %v5869
      %5882 = vadd.xlane.f32.xlu0 %v5881
      %v5883 = vpop.xlane.xlu0 %5882
      %v5884 = vadd.f32 %v5871, %v5873
      %5885 = vadd.xlane.f32.xlu0 %v5884
      %v5886 = vpop.xlane.xlu0 %5885
      %v5887 = vmul.f32 %v5877, %v3060
      %v5888 = vmul.f32 %v5880, %v3060
      %v5889 = vmul.f32 %v5883, %v3060
      %v5890 = vmul.f32 %v5886, %v3060
      %s5891 = scalar_lea.vmem %s5, 8
      %v5892 = vld [vmem:[%s5891] sm:$0xff]
      %s5893 = scalar_lea.vmem %s6, 8
      %v5894 = vld [vmem:[%s5893] sm:$0xff]
      %v5896 = vsel %vm1003, %v5892, 0
      %5898 = vmatprep.subr.mxu0 0.0
      %5899 = vmatpush1.msra.mxu0 %v5887
      %5900 = vmatprep.subr.mxu0 0.0
      %5901 = vmatpush1.msra.mxu0 %v5888
      %5902 = vmatprep.subr.mxu0 0.0
      %5903 = vmatpush1.msra.mxu0 %v5889
      %5904 = vmatprep.subr.mxu0 0.0
      %5905 = vmatpush1.msra.mxu0 %v5890
      %5906 = vmatprep.subr.mxu0 0.0
      %5907 = vmatpush1.msra.mxu0 0.0
      %5908 = vmatprep.subr.mxu0 0.0
      %5909 = vmatpush1.msra.mxu0 0.0
      %5910 = vmatprep.subr.mxu0 0.0
      %5911 = vmatpush1.msra.mxu0 0.0
      %5912 = vmatprep.subr.mxu0 0.0
      %5913 = vmatpush1.msra.mxu0 0.0
      %5914 = vmatprep.subr.mxu0 0.0
      %5915 = vmatpush1.msra.mxu0 0.0
      %5916 = vmatprep.subr.mxu0 0.0
      %5917 = vmatpush1.msra.mxu0 0.0
      %5918 = vmatprep.subr.mxu0 0.0
      %5919 = vmatpush1.msra.mxu0 0.0
      %5920 = vmatprep.subr.mxu0 0.0
      %5921 = vmatpush1.msra.mxu0 0.0
      %5922 = vmatprep.subr.mxu0 0.0
      %5923 = vmatpush1.msra.mxu0 0.0
      %5924 = vmatprep.subr.mxu0 0.0
      %5925 = vmatpush1.msra.mxu0 0.0
      %5926 = vmatprep.subr.mxu0 0.0
      %5927 = vmatpush1.msra.mxu0 0.0
      %5928 = vmatprep.subr.mxu0 0.0
      %5929 = vmatpush1.msra.mxu0 0.0
      %5930 = vmatprep.subr.mxu0 0.0
      %5931 = vmatpush1.msra.mxu0 0.0
      %5932 = vmatprep.subr.mxu0 0.0
      %5933 = vmatpush1.msra.mxu0 0.0
      %5934 = vmatprep.subr.mxu0 0.0
      %5935 = vmatpush1.msra.mxu0 0.0
      %5936 = vmatprep.subr.mxu0 0.0
      %5937 = vmatpush1.msra.mxu0 0.0
      %5938 = vmatprep.subr.mxu0 0.0
      %5939 = vmatpush1.msra.mxu0 0.0
      %5940 = vmatprep.subr.mxu0 0.0
      %5941 = vmatpush1.msra.mxu0 0.0
      %5942 = vmatprep.subr.mxu0 0.0
      %5943 = vmatpush1.msra.mxu0 0.0
      %5944 = vmatprep.subr.mxu0 0.0
      %5945 = vmatpush1.msra.mxu0 0.0
      %5946 = vmatprep.subr.mxu0 0.0
      %5947 = vmatpush1.msra.mxu0 0.0
      %5948 = vmatprep.subr.mxu0 0.0
      %5949 = vmatpush1.msra.mxu0 0.0
      %5950 = vmatprep.subr.mxu0 0.0
      %5951 = vmatpush1.msra.mxu0 0.0
      %5952 = vmatprep.subr.mxu0 0.0
      %5953 = vmatpush1.msra.mxu0 0.0
      %5954 = vmatprep.subr.mxu0 0.0
      %5955 = vmatpush1.msra.mxu0 0.0
      %5956 = vmatprep.subr.mxu0 0.0
      %5957 = vmatpush1.msra.mxu0 0.0
      %5958 = vmatprep.subr.mxu0 0.0
      %5959 = vmatpush1.msra.mxu0 0.0
      %5960 = vmatprep.subr.mxu0 0.0
      %5961 = vmatpush1.msra.mxu0 0.0
      %5962 = vmatprep.mubr.f32.mxu0 0.0
      %5963 = vmatmul.mubr.f32.gmra.mrb[0].mxu0 %v5896
      %v5964 = vpop.f32.mrb[0].mxu0
      %v5965 = vadd.f32 %v5894, %v5964
      %v5966 = vpop.f32.mrb[0].mxu0
      %5967 = vdwg.mxu0
      %v5968 = vmax.f32 %v5965, 0.0
      %s5969 = scalar_lea.vmem %s7, 32
      %v5970 = vld [vmem:[%s5969] sm:$0xff]
      %v5971 = vld [vmem:[%s5969 + $0x8] sm:$0xff]
      %v5972 = vld [vmem:[%s5969 + $0x10] sm:$0xff]
      %v5973 = vld [vmem:[%s5969 + $0x18] sm:$0xff]
      %s5974 = scalar_lea.vmem %s8, 32
      %v5975 = vld [vmem:[%s5974] sm:$0xff]
      %v5976 = vld [vmem:[%s5974 + $0x8] sm:$0xff]
      %v5977 = vld [vmem:[%s5974 + $0x10] sm:$0xff]
      %v5978 = vld [vmem:[%s5974 + $0x18] sm:$0xff]
      %v5980 = vsel %vm3149, %v5970, 0
      %v5983 = vsel %vm3149, %v5971, 0
      %v5986 = vsel %vm3149, %v5972, 0
      %v5989 = vsel %vm3149, %v5973, 0
      %5991 = vmatprep.subr.mxu0 0.0
      %5992 = vmatpush1.msra.mxu0 %v5968
      %5993 = vmatprep.subr.mxu0 0.0
      %5994 = vmatpush1.msra.mxu0 0.0
      %5995 = vmatprep.subr.mxu0 0.0
      %5996 = vmatpush1.msra.mxu0 0.0
      %5997 = vmatprep.subr.mxu0 0.0
      %5998 = vmatpush1.msra.mxu0 0.0
      %5999 = vmatprep.subr.mxu0 0.0
      %6000 = vmatpush1.msra.mxu0 0.0
      %6001 = vmatprep.subr.mxu0 0.0
      %6002 = vmatpush1.msra.mxu0 0.0
      %6003 = vmatprep.subr.mxu0 0.0
      %6004 = vmatpush1.msra.mxu0 0.0
      %6005 = vmatprep.subr.mxu0 0.0
      %6006 = vmatpush1.msra.mxu0 0.0
      %6007 = vmatprep.subr.mxu0 0.0
      %6008 = vmatpush1.msra.mxu0 0.0
      %6009 = vmatprep.subr.mxu0 0.0
      %6010 = vmatpush1.msra.mxu0 0.0
      %6011 = vmatprep.subr.mxu0 0.0
      %6012 = vmatpush1.msra.mxu0 0.0
      %6013 = vmatprep.subr.mxu0 0.0
      %6014 = vmatpush1.msra.mxu0 0.0
      %6015 = vmatprep.subr.mxu0 0.0
      %6016 = vmatpush1.msra.mxu0 0.0
      %6017 = vmatprep.subr.mxu0 0.0
      %6018 = vmatpush1.msra.mxu0 0.0
      %6019 = vmatprep.subr.mxu0 0.0
      %6020 = vmatpush1.msra.mxu0 0.0
      %6021 = vmatprep.subr.mxu0 0.0
      %6022 = vmatpush1.msra.mxu0 0.0
      %6023 = vmatprep.subr.mxu0 0.0
      %6024 = vmatpush1.msra.mxu0 0.0
      %6025 = vmatprep.subr.mxu0 0.0
      %6026 = vmatpush1.msra.mxu0 0.0
      %6027 = vmatprep.subr.mxu0 0.0
      %6028 = vmatpush1.msra.mxu0 0.0
      %6029 = vmatprep.subr.mxu0 0.0
      %6030 = vmatpush1.msra.mxu0 0.0
      %6031 = vmatprep.subr.mxu0 0.0
      %6032 = vmatpush1.msra.mxu0 0.0
      %6033 = vmatprep.subr.mxu0 0.0
      %6034 = vmatpush1.msra.mxu0 0.0
      %6035 = vmatprep.subr.mxu0 0.0
      %6036 = vmatpush1.msra.mxu0 0.0
      %6037 = vmatprep.subr.mxu0 0.0
      %6038 = vmatpush1.msra.mxu0 0.0
      %6039 = vmatprep.subr.mxu0 0.0
      %6040 = vmatpush1.msra.mxu0 0.0
      %6041 = vmatprep.subr.mxu0 0.0
      %6042 = vmatpush1.msra.mxu0 0.0
      %6043 = vmatprep.subr.mxu0 0.0
      %6044 = vmatpush1.msra.mxu0 0.0
      %6045 = vmatprep.subr.mxu0 0.0
      %6046 = vmatpush1.msra.mxu0 0.0
      %6047 = vmatprep.subr.mxu0 0.0
      %6048 = vmatpush1.msra.mxu0 0.0
      %6049 = vmatprep.subr.mxu0 0.0
      %6050 = vmatpush1.msra.mxu0 0.0
      %6051 = vmatprep.subr.mxu0 0.0
      %6052 = vmatpush1.msra.mxu0 0.0
      %6053 = vmatprep.subr.mxu0 0.0
      %6054 = vmatpush1.msra.mxu0 0.0
      %6055 = vmatprep.mubr.f32.mxu0 0.0
      %6056 = vmatmul.mubr.f32.gmra.mrb[0].mxu0 %v5980
      %v6057 = vpop.f32.mrb[0].mxu0
      %v6058 = vadd.f32 %v5975, %v6057
      %v6059 = vpop.f32.mrb[0].mxu0
      %6060 = vmatprep.mubr.f32.mxu0 0.0
      %6061 = vmatmul.mubr.f32.gmra.mrb[0].mxu0 %v5983
      %v6062 = vpop.f32.mrb[0].mxu0
      %v6063 = vadd.f32 %v5976, %v6062
      %v6064 = vpop.f32.mrb[0].mxu0
      %6065 = vmatprep.mubr.f32.mxu0 0.0
      %6066 = vmatmul.mubr.f32.gmra.mrb[0].mxu0 %v5986
      %v6067 = vpop.f32.mrb[0].mxu0
      %v6068 = vadd.f32 %v5977, %v6067
      %v6069 = vpop.f32.mrb[0].mxu0
      %6070 = vmatprep.mubr.f32.mxu0 0.0
      %6071 = vmatmul.mubr.f32.gmra.mrb[0].mxu0 %v5989
      %v6072 = vpop.f32.mrb[0].mxu0
      %v6073 = vadd.f32 %v5978, %v6072
      %v6074 = vpop.f32.mrb[0].mxu0
      %6075 = vdwg.mxu0
      %v6076 = vxor.u32 %v6058, 2147483648
      %v6077 = vxor.u32 %v6063, 2147483648
      %v6078 = vxor.u32 %v6068, 2147483648
      %v6079 = vxor.u32 %v6073, 2147483648
      %v6080 = vmul.f32 %v6076, 1.442695
      %v6081 = vpow.pop %v6080
      %v6082 = vmul.f32 %v6077, 1.442695
      %v6083 = vpow.pop %v6082
      %v6084 = vmul.f32 %v6078, 1.442695
      %v6085 = vpow.pop %v6084
      %v6086 = vmul.f32 %v6079, 1.442695
      %v6087 = vpow.pop %v6086
      %v6088 = vadd.f32 %v6081, 1.0
      %v6089 = vadd.f32 %v6083, 1.0
      %v6090 = vadd.f32 %v6085, 1.0
      %v6091 = vadd.f32 %v6087, 1.0
      %v6092 = vrcp.pop %v6088
      %v6093 = vmul.f32 1.0, %v6092
      %v6094 = vrcp.pop %v6089
      %v6095 = vmul.f32 1.0, %v6094
      %v6096 = vrcp.pop %v6090
      %v6097 = vmul.f32 1.0, %v6096
      %v6098 = vrcp.pop %v6091
      %v6099 = vmul.f32 1.0, %v6098
      %6101 = vset.pattern.permute.xlu0 0
      %6102 = vperm.xlu0 %6101, %v6093
      %v6103 = vpop.permute.xlu0 %6102
      %6106 = vset.pattern.permute.xlu0 0
      %6107 = vperm.xlu0 %6106, %v6095
      %v6108 = vpop.permute.xlu0 %6107
      %6111 = vset.pattern.permute.xlu0 0
      %6112 = vperm.xlu0 %6111, %v6097
      %v6113 = vpop.permute.xlu0 %6112
      %6116 = vset.pattern.permute.xlu0 0
      %6117 = vperm.xlu0 %6116, %v6099
      %v6118 = vpop.permute.xlu0 %6117
      %v6120 = vmul.f32 %v5857, %v6103
      %v6121 = vmul.f32 %v5859, %v6103
      %v6122 = vmul.f32 %v5861, %v6108
      %v6123 = vmul.f32 %v5863, %v6108
      %v6124 = vmul.f32 %v5867, %v6113
      %v6125 = vmul.f32 %v5869, %v6113
      %v6126 = vmul.f32 %v5871, %v6118
      %v6127 = vmul.f32 %v5873, %v6118
      %v6128 = vadd.f32 %v4587, %v6120
      %v6129 = vadd.f32 %v4588, %v6121
      %v6130 = vadd.f32 %v4589, %v6122
      %v6131 = vadd.f32 %v4590, %v6123
      %v6132 = vadd.f32 %v4591, %v6124
      %v6133 = vadd.f32 %v4592, %v6125
      %v6134 = vadd.f32 %v4593, %v6126
      %v6135 = vadd.f32 %v4594, %v6127
      %6136 = vst [vmem:[%s446] sm:$0xff] %v6128
      %6137 = vst [vmem:[%s446 + $0x8] sm:$0xff] %v6129
      %6138 = vst [vmem:[%s446 + $0x10] sm:$0xff] %v6130
      %6139 = vst [vmem:[%s446 + $0x18] sm:$0xff] %v6131
      %6140 = vst [vmem:[%s446 + $0x20] sm:$0xff] %v6132
      %6141 = vst [vmem:[%s446 + $0x28] sm:$0xff] %v6133
      %6142 = vst [vmem:[%s446 + $0x30] sm:$0xff] %v6134
      %6143 = vst [vmem:[%s446 + $0x38] sm:$0xff] %v6135
      %v6144 = vpack.c.bf16 %v3301, %v3299
      %v6145 = vpack.c.bf16 %v3302, %v3300
      %v6146 = vpack.c.bf16 %v3305, %v3303
      %v6147 = vpack.c.bf16 %v3306, %v3304
      %v6148 = vpack.c.bf16 %v6130, %v6128
      %v6149 = vpack.c.bf16 %v6131, %v6129
      %v6150 = vpack.c.bf16 %v6134, %v6132
      %v6151 = vpack.c.bf16 %v6135, %v6133
      %v6152 = vld [vmem:[%s9] sm:$0xf]
      %v6153 = vld [vmem:[%s9 + $0x4] sm:$0xf]
      %v6154 = vld [vmem:[%s9 + $0x8] sm:$0xf]
      %v6155 = vld [vmem:[%s9 + $0xc] sm:$0xf]
      %v6156 = vld [vmem:[%s9 + $0x10] sm:$0xf]
      %v6157 = vld [vmem:[%s9 + $0x14] sm:$0xf]
      %v6158 = vld [vmem:[%s9 + $0x18] sm:$0xf]
      %v6159 = vld [vmem:[%s9 + $0x1c] sm:$0xf]
      %v6160 = vld [vmem:[%s9 + $0x20] sm:$0xf]
      %v6161 = vld [vmem:[%s9 + $0x24] sm:$0xf]
      %v6162 = vld [vmem:[%s9 + $0x28] sm:$0xf]
      %v6163 = vld [vmem:[%s9 + $0x2c] sm:$0xf]
      %v6176 = vunpack.c.l.b16 %v6152
      %v6177 = vunpack.c.l.b16 %v6153
      %v6178 = vunpack.c.l.b16 %v6154
      %v6179 = vunpack.c.l.b16 %v6155
      %v6180 = vunpack.c.l.b16 %v6156
      %v6181 = vunpack.c.l.b16 %v6157
      %v6182 = vunpack.c.l.b16 %v6158
      %v6183 = vunpack.c.l.b16 %v6159
      %v6184 = vunpack.c.l.b16 %v6160
      %v6185 = vunpack.c.l.b16 %v6161
      %v6186 = vunpack.c.l.b16 %v6162
      %v6187 = vunpack.c.l.b16 %v6163
      %v6188 = vpack.c.b16 %v6177, %v6176
      %v6189 = vpack.c.b16 %v6179, %v6178
      %v6190 = vpack.c.b16 %v6181, %v6180
      %v6191 = vpack.c.b16 %v6183, %v6182
      %v6192 = vpack.c.b16 %v6185, %v6184
      %v6193 = vpack.c.b16 %v6187, %v6186
      %vm6194 = vcmask 523264
      %v6196 = vsel %vm6194, %v6188, 0
      %v6199 = vsel %vm6194, %v6189, 0
      %v6202 = vsel %vm6194, %v6190, 0
      %v6205 = vsel %vm6194, %v6191, 0
      %v6208 = vsel %vm6194, %v6192, 0
      %v6211 = vsel %vm6194, %v6193, 0
      %6213 = vmatprep.subr.bf16.mxu0 %v6145
      %6214 = vmatpush1.bf16.msra.mxu0 %v6144
      %6215 = vmatprep.subr.bf16.mxu0 %v6147
      %6216 = vmatpush1.bf16.msra.mxu0 %v6146
      %6217 = vmatprep.subr.bf16.mxu0 %v6149
      %6218 = vmatpush1.bf16.msra.mxu0 %v6148
      %6219 = vmatprep.subr.bf16.mxu0 %v6151
      %6220 = vmatpush1.bf16.msra.mxu0 %v6150
      %6221 = vmatprep.subr.bf16.mxu0 0
      %6222 = vmatpush1.bf16.msra.mxu0 0
      %6223 = vmatprep.subr.bf16.mxu0 0
      %6224 = vmatpush1.bf16.msra.mxu0 0
      %6225 = vmatprep.subr.bf16.mxu0 0
      %6226 = vmatpush1.bf16.msra.mxu0 0
      %6227 = vmatprep.subr.bf16.mxu0 0
      %6228 = vmatpush1.bf16.msra.mxu0 0
      %6229 = vmatprep.subr.bf16.mxu0 0
      %6230 = vmatpush1.bf16.msra.mxu0 0
      %6231 = vmatprep.subr.bf16.mxu0 0
      %6232 = vmatpush1.bf16.msra.mxu0 0
      %6233 = vmatprep.subr.bf16.mxu0 0
      %6234 = vmatpush1.bf16.msra.mxu0 0
      %6235 = vmatprep.subr.bf16.mxu0 0
      %6236 = vmatpush1.bf16.msra.mxu0 0
      %6237 = vmatprep.subr.bf16.mxu0 0
      %6238 = vmatpush1.bf16.msra.mxu0 0
      %6239 = vmatprep.subr.bf16.mxu0 0
      %6240 = vmatpush1.bf16.msra.mxu0 0
      %6241 = vmatprep.subr.bf16.mxu0 0
      %6242 = vmatpush1.bf16.msra.mxu0 0
      %6243 = vmatprep.subr.bf16.mxu0 0
      %6244 = vmatpush1.bf16.msra.mxu0 0
      %6245 = vmatprep.mubr.bf16.mxu0 0
      %6246 = vmatmul.mubr.bf16.gmra.mrb[0].mxu0 %v6196
      %v6247 = vpop.f32.mrb[0].mxu0
      %v6248 = vadd.f32 0.0, %v6247
      %v6249 = vpop.f32.mrb[0].mxu0
      %v6250 = vadd.f32 0.0, %v6249
      %v6251 = vpop.f32.mrb[0].mxu0
      %v6252 = vadd.f32 0.0, %v6251
      %v6253 = vpop.f32.mrb[0].mxu0
      %v6254 = vadd.f32 0.0, %v6253
      %6255 = vmatprep.mubr.bf16.mxu0 0
      %6256 = vmatmul.mubr.bf16.gmra.mrb[0].mxu0 %v6199
      %v6257 = vpop.f32.mrb[0].mxu0
      %v6258 = vadd.f32 0.0, %v6257
      %v6259 = vpop.f32.mrb[0].mxu0
      %v6260 = vadd.f32 0.0, %v6259
      %v6261 = vpop.f32.mrb[0].mxu0
      %v6262 = vadd.f32 0.0, %v6261
      %v6263 = vpop.f32.mrb[0].mxu0
      %v6264 = vadd.f32 0.0, %v6263
      %6265 = vmatprep.mubr.bf16.mxu0 0
      %6266 = vmatmul.mubr.bf16.gmra.mrb[0].mxu0 %v6202
      %v6267 = vpop.f32.mrb[0].mxu0
      %v6268 = vadd.f32 0.0, %v6267
      %v6269 = vpop.f32.mrb[0].mxu0
      %v6270 = vadd.f32 0.0, %v6269
      %v6271 = vpop.f32.mrb[0].mxu0
      %v6272 = vadd.f32 0.0, %v6271
      %v6273 = vpop.f32.mrb[0].mxu0
      %v6274 = vadd.f32 0.0, %v6273
      %6275 = vmatprep.mubr.bf16.mxu0 0
      %6276 = vmatmul.mubr.bf16.gmra.mrb[0].mxu0 %v6205
      %v6277 = vpop.f32.mrb[0].mxu0
      %v6278 = vadd.f32 0.0, %v6277
      %v6279 = vpop.f32.mrb[0].mxu0
      %v6280 = vadd.f32 0.0, %v6279
      %v6281 = vpop.f32.mrb[0].mxu0
      %v6282 = vadd.f32 0.0, %v6281
      %v6283 = vpop.f32.mrb[0].mxu0
      %v6284 = vadd.f32 0.0, %v6283
      %6285 = vmatprep.mubr.bf16.mxu0 0
      %6286 = vmatmul.mubr.bf16.gmra.mrb[0].mxu0 %v6208
      %v6287 = vpop.f32.mrb[0].mxu0
      %v6288 = vadd.f32 0.0, %v6287
      %v6289 = vpop.f32.mrb[0].mxu0
      %v6290 = vadd.f32 0.0, %v6289
      %v6291 = vpop.f32.mrb[0].mxu0
      %v6292 = vadd.f32 0.0, %v6291
      %v6293 = vpop.f32.mrb[0].mxu0
      %v6294 = vadd.f32 0.0, %v6293
      %6295 = vmatprep.mubr.bf16.mxu0 0
      %6296 = vmatmul.mubr.bf16.gmra.mrb[0].mxu0 %v6211
      %v6297 = vpop.f32.mrb[0].mxu0
      %v6298 = vadd.f32 0.0, %v6297
      %v6299 = vpop.f32.mrb[0].mxu0
      %v6300 = vadd.f32 0.0, %v6299
      %v6301 = vpop.f32.mrb[0].mxu0
      %v6302 = vadd.f32 0.0, %v6301
      %v6303 = vpop.f32.mrb[0].mxu0
      %v6304 = vadd.f32 0.0, %v6303
      %6305 = vdwg.mxu0
      %v6306 = vpack.c.bf16 %v6252, %v6248
      %v6307 = vpack.c.bf16 %v6254, %v6250
      %v6308 = vpack.c.bf16 %v6262, %v6258
      %v6309 = vpack.c.bf16 %v6264, %v6260
      %6310 = vst [vmem:[#allocation3] sm:$0xff] %v6306
      %6311 = vst [vmem:[#allocation3 + $0x8] sm:$0xff] %v6307
      %6312 = vst [vmem:[#allocation3 + $0x10] sm:$0xff] %v6308
      %6313 = vst [vmem:[#allocation3 + $0x18] sm:$0xff] %v6309
      %v6314 = vpack.c.bf16 %v6272, %v6268
      %v6315 = vpack.c.bf16 %v6274, %v6270
      %v6316 = vpack.c.bf16 %v6282, %v6278
      %v6317 = vpack.c.bf16 %v6284, %v6280
      %6318 = vst [vmem:[#allocation4] sm:$0xff] %v6314
      %6319 = vst [vmem:[#allocation4 + $0x8] sm:$0xff] %v6315
      %6320 = vst [vmem:[#allocation4 + $0x10] sm:$0xff] %v6316
      %6321 = vst [vmem:[#allocation4 + $0x18] sm:$0xff] %v6317
      %v6322 = vpack.c.bf16 %v6292, %v6288
      %v6323 = vpack.c.bf16 %v6294, %v6290
      %v6324 = vpack.c.bf16 %v6302, %v6298
      %v6325 = vpack.c.bf16 %v6304, %v6300
      %6326 = vst [vmem:[#allocation5] sm:$0xff] %v6322
      %6327 = vst [vmem:[#allocation5 + $0x8] sm:$0xff] %v6323
      %6328 = vst [vmem:[#allocation5 + $0x10] sm:$0xff] %v6324
      %6329 = vst [vmem:[#allocation5 + $0x18] sm:$0xff] %v6325
      loop: start=0, step=1, limit=2
      $region65: #{sf_gpg_forward.1} parent=63 // loop_pre_header
        _
      $region66: #{sf_gpg_forward.1} parent=63 // loop_header
        %s6331 = sphi 0, %s6335
        %p6332 = scmp.ge.s32.totalorder %s6331, 2
      $region67: #{sf_gpg_forward.1} parent=63 // loop_header_branch
        %6334 = sbr.rel (%p6332) target = $region71
      $region68: #{sf_gpg_forward.1} parent=63 // loop_body
        %s6336 = smul.u32 %s6331, 128
        %s6337 = sshra.s32 %s6336, 7
        %s6338 = sand.u32 %s6336, 127
        %s6339 = smul.addr %s6337, 8
        %s6340 = scalar_lea.vmem [#allocation3], %s6339
        %v6341 = vld [vmem:[%s6340] sm:$0xff]
        %v6342 = vld [vmem:[%s6340 + $0x10] sm:$0xff]
        %v6343 = vld [vmem:[#allocation4] sm:$0xff]
        %v6344 = vld [vmem:[#allocation4 + $0x8] sm:$0xff]
        %v6345 = vld [vmem:[#allocation4 + $0x10] sm:$0xff]
        %v6346 = vld [vmem:[#allocation4 + $0x18] sm:$0xff]
        %6347 = vxpose.xlu0.c.b16.start [1/8] %v6341, 128
        %6348 = vxpose.xlu0.c.b16.cont [2/8] %v6342, 128
        %6349 = vxpose.xlu0.c.b16.cont [3/8] 0, 128
        %6350 = vxpose.xlu0.c.b16.cont [4/8] 0, 128
        %6351 = vxpose.xlu0.c.b16.cont [5/8] 0, 128
        %6352 = vxpose.xlu0.c.b16.cont [6/8] 0, 128
        %6353 = vxpose.xlu0.c.b16.cont [7/8] 0, 128
        %6354 = vxpose.xlu0.c.b16.end [8/8] 0, 128
        %v6355 = vpop.trf.xlu0
        %v6356 = vpop.trf.xlu0
        %v6357 = vpop.trf.xlu0
        %v6358 = vpop.trf.xlu0
        %v6359 = vpop.trf.xlu0
        %v6360 = vpop.trf.xlu0
        %v6361 = vpop.trf.xlu0
        %v6362 = vpop.trf.xlu0
        %v6364 = vsel %vm1003, %v6355, 0
        %v6367 = vsel %vm1003, %v6356, 0
        %v6370 = vsel %vm1003, %v6357, 0
        %v6373 = vsel %vm1003, %v6358, 0
        %v6376 = vsel %vm1003, %v6359, 0
        %v6379 = vsel %vm1003, %v6360, 0
        %v6382 = vsel %vm1003, %v6361, 0
        %v6385 = vsel %vm1003, %v6362, 0
        %6387 = vmatprep.subr.bf16.mxu0 %v6344
        %6388 = vmatpush1.bf16.msra.mxu0 %v6343
        %6389 = vmatprep.subr.bf16.mxu0 %v6346
        %6390 = vmatpush1.bf16.msra.mxu0 %v6345
        %6391 = vmatprep.subr.bf16.mxu0 0
        %6392 = vmatpush1.bf16.msra.mxu0 0
        %6393 = vmatprep.subr.bf16.mxu0 0
        %6394 = vmatpush1.bf16.msra.mxu0 0
        %6395 = vmatprep.subr.bf16.mxu0 0
        %6396 = vmatpush1.bf16.msra.mxu0 0
        %6397 = vmatprep.subr.bf16.mxu0 0
        %6398 = vmatpush1.bf16.msra.mxu0 0
        %6399 = vmatprep.subr.bf16.mxu0 0
        %6400 = vmatpush1.bf16.msra.mxu0 0
        %6401 = vmatprep.subr.bf16.mxu0 0
        %6402 = vmatpush1.bf16.msra.mxu0 0
        %6403 = vmatprep.subr.bf16.mxu0 0
        %6404 = vmatpush1.bf16.msra.mxu0 0
        %6405 = vmatprep.subr.bf16.mxu0 0
        %6406 = vmatpush1.bf16.msra.mxu0 0
        %6407 = vmatprep.subr.bf16.mxu0 0
        %6408 = vmatpush1.bf16.msra.mxu0 0
        %6409 = vmatprep.subr.bf16.mxu0 0
        %6410 = vmatpush1.bf16.msra.mxu0 0
        %6411 = vmatprep.subr.bf16.mxu0 0
        %6412 = vmatpush1.bf16.msra.mxu0 0
        %6413 = vmatprep.subr.bf16.mxu0 0
        %6414 = vmatpush1.bf16.msra.mxu0 0
        %6415 = vmatprep.subr.bf16.mxu0 0
        %6416 = vmatpush1.bf16.msra.mxu0 0
        %6417 = vmatprep.subr.bf16.mxu0 0
        %6418 = vmatpush1.bf16.msra.mxu0 0
        %6419 = vmatprep.mubr.bf16.mxu0 0
        %6420 = vmatmul.mubr.bf16.gmra.mrb[0].mxu0 %v6364
        %v6421 = vpop.f32.mrb[0].mxu0
        %v6422 = vadd.f32 0.0, %v6421
        %v6423 = vpop.f32.mrb[0].mxu0
        %v6424 = vadd.f32 0.0, %v6423
        %v6425 = vpop.f32.mrb[0].mxu0
        %v6426 = vadd.f32 0.0, %v6425
        %v6427 = vpop.f32.mrb[0].mxu0
        %v6428 = vadd.f32 0.0, %v6427
        %6429 = vmatprep.mubr.bf16.mxu0 0
        %6430 = vmatmul.mubr.bf16.gmra.mrb[0].mxu0 %v6367
        %v6431 = vpop.f32.mrb[0].mxu0
        %v6432 = vadd.f32 0.0, %v6431
        %v6433 = vpop.f32.mrb[0].mxu0
        %v6434 = vadd.f32 0.0, %v6433
        %v6435 = vpop.f32.mrb[0].mxu0
        %v6436 = vadd.f32 0.0, %v6435
        %v6437 = vpop.f32.mrb[0].mxu0
        %v6438 = vadd.f32 0.0, %v6437
        %6439 = vmatprep.mubr.bf16.mxu0 0
        %6440 = vmatmul.mubr.bf16.gmra.mrb[0].mxu0 %v6370
        %v6441 = vpop.f32.mrb[0].mxu0
        %v6442 = vadd.f32 0.0, %v6441
        %v6443 = vpop.f32.mrb[0].mxu0
        %v6444 = vadd.f32 0.0, %v6443
        %v6445 = vpop.f32.mrb[0].mxu0
        %v6446 = vadd.f32 0.0, %v6445
        %v6447 = vpop.f32.mrb[0].mxu0
        %v6448 = vadd.f32 0.0, %v6447
        %6449 = vmatprep.mubr.bf16.mxu0 0
        %6450 = vmatmul.mubr.bf16.gmra.mrb[0].mxu0 %v6373
        %v6451 = vpop.f32.mrb[0].mxu0
        %v6452 = vadd.f32 0.0, %v6451
        %v6453 = vpop.f32.mrb[0].mxu0
        %v6454 = vadd.f32 0.0, %v6453
        %v6455 = vpop.f32.mrb[0].mxu0
        %v6456 = vadd.f32 0.0, %v6455
        %v6457 = vpop.f32.mrb[0].mxu0
        %v6458 = vadd.f32 0.0, %v6457
        %6459 = vmatprep.mubr.bf16.mxu0 0
        %6460 = vmatmul.mubr.bf16.gmra.mrb[0].mxu0 %v6376
        %v6461 = vpop.f32.mrb[0].mxu0
        %v6462 = vadd.f32 0.0, %v6461
        %v6463 = vpop.f32.mrb[0].mxu0
        %v6464 = vadd.f32 0.0, %v6463
        %v6465 = vpop.f32.mrb[0].mxu0
        %v6466 = vadd.f32 0.0, %v6465
        %v6467 = vpop.f32.mrb[0].mxu0
        %v6468 = vadd.f32 0.0, %v6467
        %6469 = vmatprep.mubr.bf16.mxu0 0
        %6470 = vmatmul.mubr.bf16.gmra.mrb[0].mxu0 %v6379
        %v6471 = vpop.f32.mrb[0].mxu0
        %v6472 = vadd.f32 0.0, %v6471
        %v6473 = vpop.f32.mrb[0].mxu0
        %v6474 = vadd.f32 0.0, %v6473
        %v6475 = vpop.f32.mrb[0].mxu0
        %v6476 = vadd.f32 0.0, %v6475
        %v6477 = vpop.f32.mrb[0].mxu0
        %v6478 = vadd.f32 0.0, %v6477
        %6479 = vmatprep.mubr.bf16.mxu0 0
        %6480 = vmatmul.mubr.bf16.gmra.mrb[0].mxu0 %v6382
        %v6481 = vpop.f32.mrb[0].mxu0
        %v6482 = vadd.f32 0.0, %v6481
        %v6483 = vpop.f32.mrb[0].mxu0
        %v6484 = vadd.f32 0.0, %v6483
        %v6485 = vpop.f32.mrb[0].mxu0
        %v6486 = vadd.f32 0.0, %v6485
        %v6487 = vpop.f32.mrb[0].mxu0
        %v6488 = vadd.f32 0.0, %v6487
        %6489 = vmatprep.mubr.bf16.mxu0 0
        %6490 = vmatmul.mubr.bf16.gmra.mrb[0].mxu0 %v6385
        %v6491 = vpop.f32.mrb[0].mxu0
        %v6492 = vadd.f32 0.0, %v6491
        %v6493 = vpop.f32.mrb[0].mxu0
        %v6494 = vadd.f32 0.0, %v6493
        %v6495 = vpop.f32.mrb[0].mxu0
        %v6496 = vadd.f32 0.0, %v6495
        %v6497 = vpop.f32.mrb[0].mxu0
        %v6498 = vadd.f32 0.0, %v6497
        %6499 = vdwg.mxu0
        %v6500 = vmax.f32 %v6422, %v6424
        %6501 = vmax.xlane.f32.xlu0 %v6500
        %v6502 = vpop.xlane.xlu0 %6501
        %v6503 = vmax.f32 %v6426, %v6428
        %6504 = vmax.xlane.f32.xlu0 %v6503
        %v6505 = vpop.xlane.xlu0 %6504
        %v6506 = vmax.f32 %v6432, %v6434
        %6507 = vmax.xlane.f32.xlu0 %v6506
        %v6508 = vpop.xlane.xlu0 %6507
        %v6509 = vmax.f32 %v6436, %v6438
        %6510 = vmax.xlane.f32.xlu0 %v6509
        %v6511 = vpop.xlane.xlu0 %6510
        %v6512 = vmax.f32 %v6442, %v6444
        %6513 = vmax.xlane.f32.xlu0 %v6512
        %v6514 = vpop.xlane.xlu0 %6513
        %v6515 = vmax.f32 %v6446, %v6448
        %6516 = vmax.xlane.f32.xlu0 %v6515
        %v6517 = vpop.xlane.xlu0 %6516
        %v6518 = vmax.f32 %v6452, %v6454
        %6519 = vmax.xlane.f32.xlu0 %v6518
        %v6520 = vpop.xlane.xlu0 %6519
        %v6521 = vmax.f32 %v6456, %v6458
        %6522 = vmax.xlane.f32.xlu0 %v6521
        %v6523 = vpop.xlane.xlu0 %6522
        %v6524 = vmax.f32 %v6462, %v6464
        %6525 = vmax.xlane.f32.xlu0 %v6524
        %v6526 = vpop.xlane.xlu0 %6525
        %v6527 = vmax.f32 %v6466, %v6468
        %6528 = vmax.xlane.f32.xlu0 %v6527
        %v6529 = vpop.xlane.xlu0 %6528
        %v6530 = vmax.f32 %v6472, %v6474
        %6531 = vmax.xlane.f32.xlu0 %v6530
        %v6532 = vpop.xlane.xlu0 %6531
        %v6533 = vmax.f32 %v6476, %v6478
        %6534 = vmax.xlane.f32.xlu0 %v6533
        %v6535 = vpop.xlane.xlu0 %6534
        %v6536 = vmax.f32 %v6482, %v6484
        %6537 = vmax.xlane.f32.xlu0 %v6536
        %v6538 = vpop.xlane.xlu0 %6537
        %v6539 = vmax.f32 %v6486, %v6488
        %6540 = vmax.xlane.f32.xlu0 %v6539
        %v6541 = vpop.xlane.xlu0 %6540
        %v6542 = vmax.f32 %v6492, %v6494
        %6543 = vmax.xlane.f32.xlu0 %v6542
        %v6544 = vpop.xlane.xlu0 %6543
        %v6545 = vmax.f32 %v6496, %v6498
        %6546 = vmax.xlane.f32.xlu0 %v6545
        %v6547 = vpop.xlane.xlu0 %6546
        %v6548 = vsub.f32 %v6422, %v6502
        %v6549 = vsub.f32 %v6424, %v6502
        %v6550 = vsub.f32 %v6426, %v6505
        %v6551 = vsub.f32 %v6428, %v6505
        %v6552 = vsub.f32 %v6432, %v6508
        %v6553 = vsub.f32 %v6434, %v6508
        %v6554 = vsub.f32 %v6436, %v6511
        %v6555 = vsub.f32 %v6438, %v6511
        %v6556 = vsub.f32 %v6442, %v6514
        %v6557 = vsub.f32 %v6444, %v6514
        %v6558 = vsub.f32 %v6446, %v6517
        %v6559 = vsub.f32 %v6448, %v6517
        %v6560 = vsub.f32 %v6452, %v6520
        %v6561 = vsub.f32 %v6454, %v6520
        %v6562 = vsub.f32 %v6456, %v6523
        %v6563 = vsub.f32 %v6458, %v6523
        %v6564 = vsub.f32 %v6462, %v6526
        %v6565 = vsub.f32 %v6464, %v6526
        %v6566 = vsub.f32 %v6466, %v6529
        %v6567 = vsub.f32 %v6468, %v6529
        %v6568 = vsub.f32 %v6472, %v6532
        %v6569 = vsub.f32 %v6474, %v6532
        %v6570 = vsub.f32 %v6476, %v6535
        %v6571 = vsub.f32 %v6478, %v6535
        %v6572 = vsub.f32 %v6482, %v6538
        %v6573 = vsub.f32 %v6484, %v6538
        %v6574 = vsub.f32 %v6486, %v6541
        %v6575 = vsub.f32 %v6488, %v6541
        %v6576 = vsub.f32 %v6492, %v6544
        %v6577 = vsub.f32 %v6494, %v6544
        %v6578 = vsub.f32 %v6496, %v6547
        %v6579 = vsub.f32 %v6498, %v6547
        %v6580 = vmul.f32 %v6548, 1.442695
        %v6581 = vpow.pop %v6580
        %v6582 = vmul.f32 %v6549, 1.442695
        %v6583 = vpow.pop %v6582
        %v6584 = vmul.f32 %v6550, 1.442695
        %v6585 = vpow.pop %v6584
        %v6586 = vmul.f32 %v6551, 1.442695
        %v6587 = vpow.pop %v6586
        %v6588 = vmul.f32 %v6552, 1.442695
        %v6589 = vpow.pop %v6588
        %v6590 = vmul.f32 %v6553, 1.442695
        %v6591 = vpow.pop %v6590
        %v6592 = vmul.f32 %v6554, 1.442695
        %v6593 = vpow.pop %v6592
        %v6594 = vmul.f32 %v6555, 1.442695
        %v6595 = vpow.pop %v6594
        %v6596 = vmul.f32 %v6556, 1.442695
        %v6597 = vpow.pop %v6596
        %v6598 = vmul.f32 %v6557, 1.442695
        %v6599 = vpow.pop %v6598
        %v6600 = vmul.f32 %v6558, 1.442695
        %v6601 = vpow.pop %v6600
        %v6602 = vmul.f32 %v6559, 1.442695
        %v6603 = vpow.pop %v6602
        %v6604 = vmul.f32 %v6560, 1.442695
        %v6605 = vpow.pop %v6604
        %v6606 = vmul.f32 %v6561, 1.442695
        %v6607 = vpow.pop %v6606
        %v6608 = vmul.f32 %v6562, 1.442695
        %v6609 = vpow.pop %v6608
        %v6610 = vmul.f32 %v6563, 1.442695
        %v6611 = vpow.pop %v6610
        %v6612 = vmul.f32 %v6564, 1.442695
        %v6613 = vpow.pop %v6612
        %v6614 = vmul.f32 %v6565, 1.442695
        %v6615 = vpow.pop %v6614
        %v6616 = vmul.f32 %v6566, 1.442695
        %v6617 = vpow.pop %v6616
        %v6618 = vmul.f32 %v6567, 1.442695
        %v6619 = vpow.pop %v6618
        %v6620 = vmul.f32 %v6568, 1.442695
        %v6621 = vpow.pop %v6620
        %v6622 = vmul.f32 %v6569, 1.442695
        %v6623 = vpow.pop %v6622
        %v6624 = vmul.f32 %v6570, 1.442695
        %v6625 = vpow.pop %v6624
        %v6626 = vmul.f32 %v6571, 1.442695
        %v6627 = vpow.pop %v6626
        %v6628 = vmul.f32 %v6572, 1.442695
        %v6629 = vpow.pop %v6628
        %v6630 = vmul.f32 %v6573, 1.442695
        %v6631 = vpow.pop %v6630
        %v6632 = vmul.f32 %v6574, 1.442695
        %v6633 = vpow.pop %v6632
        %v6634 = vmul.f32 %v6575, 1.442695
        %v6635 = vpow.pop %v6634
        %v6636 = vmul.f32 %v6576, 1.442695
        %v6637 = vpow.pop %v6636
        %v6638 = vmul.f32 %v6577, 1.442695
        %v6639 = vpow.pop %v6638
        %v6640 = vmul.f32 %v6578, 1.442695
        %v6641 = vpow.pop %v6640
        %v6642 = vmul.f32 %v6579, 1.442695
        %v6643 = vpow.pop %v6642
        %v6644 = vadd.f32 %v6581, %v6583
        %6645 = vadd.xlane.f32.xlu0 %v6644
        %v6646 = vpop.xlane.xlu0 %6645
        %v6647 = vadd.f32 %v6585, %v6587
        %6648 = vadd.xlane.f32.xlu0 %v6647
        %v6649 = vpop.xlane.xlu0 %6648
        %v6650 = vadd.f32 %v6589, %v6591
        %6651 = vadd.xlane.f32.xlu0 %v6650
        %v6652 = vpop.xlane.xlu0 %6651
        %v6653 = vadd.f32 %v6593, %v6595
        %6654 = vadd.xlane.f32.xlu0 %v6653
        %v6655 = vpop.xlane.xlu0 %6654
        %v6656 = vadd.f32 %v6597, %v6599
        %6657 = vadd.xlane.f32.xlu0 %v6656
        %v6658 = vpop.xlane.xlu0 %6657
        %v6659 = vadd.f32 %v6601, %v6603
        %6660 = vadd.xlane.f32.xlu0 %v6659
        %v6661 = vpop.xlane.xlu0 %6660
        %v6662 = vadd.f32 %v6605, %v6607
        %6663 = vadd.xlane.f32.xlu0 %v6662
        %v6664 = vpop.xlane.xlu0 %6663
        %v6665 = vadd.f32 %v6609, %v6611
        %6666 = vadd.xlane.f32.xlu0 %v6665
        %v6667 = vpop.xlane.xlu0 %6666
        %v6668 = vadd.f32 %v6613, %v6615
        %6669 = vadd.xlane.f32.xlu0 %v6668
        %v6670 = vpop.xlane.xlu0 %6669
        %v6671 = vadd.f32 %v6617, %v6619
        %6672 = vadd.xlane.f32.xlu0 %v6671
        %v6673 = vpop.xlane.xlu0 %6672
        %v6674 = vadd.f32 %v6621, %v6623
        %6675 = vadd.xlane.f32.xlu0 %v6674
        %v6676 = vpop.xlane.xlu0 %6675
        %v6677 = vadd.f32 %v6625, %v6627
        %6678 = vadd.xlane.f32.xlu0 %v6677
        %v6679 = vpop.xlane.xlu0 %6678
        %v6680 = vadd.f32 %v6629, %v6631
        %6681 = vadd.xlane.f32.xlu0 %v6680
        %v6682 = vpop.xlane.xlu0 %6681
        %v6683 = vadd.f32 %v6633, %v6635
        %6684 = vadd.xlane.f32.xlu0 %v6683
        %v6685 = vpop.xlane.xlu0 %6684
        %v6686 = vadd.f32 %v6637, %v6639
        %6687 = vadd.xlane.f32.xlu0 %v6686
        %v6688 = vpop.xlane.xlu0 %6687
        %v6689 = vadd.f32 %v6641, %v6643
        %6690 = vadd.xlane.f32.xlu0 %v6689
        %v6691 = vpop.xlane.xlu0 %6690
        %v6692 = vrcp.pop %v6646
        %v6693 = vrcp.pop %v6649
        %v6694 = vrcp.pop %v6652
        %v6695 = vrcp.pop %v6655
        %v6696 = vrcp.pop %v6658
        %v6697 = vrcp.pop %v6661
        %v6698 = vrcp.pop %v6664
        %v6699 = vrcp.pop %v6667
        %v6700 = vrcp.pop %v6670
        %v6701 = vrcp.pop %v6673
        %v6702 = vrcp.pop %v6676
        %v6703 = vrcp.pop %v6679
        %v6704 = vrcp.pop %v6682
        %v6705 = vrcp.pop %v6685
        %v6706 = vrcp.pop %v6688
        %v6707 = vrcp.pop %v6691
        %v6708 = vmul.f32 %v6581, %v6692
        %v6709 = vmul.f32 %v6583, %v6692
        %v6710 = vmul.f32 %v6585, %v6693
        %v6711 = vmul.f32 %v6587, %v6693
        %v6712 = vmul.f32 %v6589, %v6694
        %v6713 = vmul.f32 %v6591, %v6694
        %v6714 = vmul.f32 %v6593, %v6695
        %v6715 = vmul.f32 %v6595, %v6695
        %v6716 = vmul.f32 %v6597, %v6696
        %v6717 = vmul.f32 %v6599, %v6696
        %v6718 = vmul.f32 %v6601, %v6697
        %v6719 = vmul.f32 %v6603, %v6697
        %v6720 = vmul.f32 %v6605, %v6698
        %v6721 = vmul.f32 %v6607, %v6698
        %v6722 = vmul.f32 %v6609, %v6699
        %v6723 = vmul.f32 %v6611, %v6699
        %v6724 = vmul.f32 %v6613, %v6700
        %v6725 = vmul.f32 %v6615, %v6700
        %v6726 = vmul.f32 %v6617, %v6701
        %v6727 = vmul.f32 %v6619, %v6701
        %v6728 = vmul.f32 %v6621, %v6702
        %v6729 = vmul.f32 %v6623, %v6702
        %v6730 = vmul.f32 %v6625, %v6703
        %v6731 = vmul.f32 %v6627, %v6703
        %v6732 = vmul.f32 %v6629, %v6704
        %v6733 = vmul.f32 %v6631, %v6704
        %v6734 = vmul.f32 %v6633, %v6705
        %v6735 = vmul.f32 %v6635, %v6705
        %v6736 = vmul.f32 %v6637, %v6706
        %v6737 = vmul.f32 %v6639, %v6706
        %v6738 = vmul.f32 %v6641, %v6707
        %v6739 = vmul.f32 %v6643, %v6707
        %v6740 = vld [vmem:[#allocation5] sm:$0xff]
        %v6741 = vld [vmem:[#allocation5 + $0x8] sm:$0xff]
        %v6742 = vld [vmem:[#allocation5 + $0x10] sm:$0xff]
        %v6743 = vld [vmem:[#allocation5 + $0x18] sm:$0xff]
        %v6744 = vpack.c.bf16 %v6710, %v6708
        %v6745 = vpack.c.bf16 %v6711, %v6709
        %v6746 = vpack.c.bf16 %v6714, %v6712
        %v6747 = vpack.c.bf16 %v6715, %v6713
        %v6748 = vpack.c.bf16 %v6718, %v6716
        %v6749 = vpack.c.bf16 %v6719, %v6717
        %v6750 = vpack.c.bf16 %v6722, %v6720
        %v6751 = vpack.c.bf16 %v6723, %v6721
        %v6752 = vpack.c.bf16 %v6726, %v6724
        %v6753 = vpack.c.bf16 %v6727, %v6725
        %v6754 = vpack.c.bf16 %v6730, %v6728
        %v6755 = vpack.c.bf16 %v6731, %v6729
        %v6756 = vpack.c.bf16 %v6734, %v6732
        %v6757 = vpack.c.bf16 %v6735, %v6733
        %v6758 = vpack.c.bf16 %v6738, %v6736
        %v6759 = vpack.c.bf16 %v6739, %v6737
        %6760 = vmatprep.subr.bf16.mxu0 %v6745
        %6761 = vmatpush1.bf16.xpose.msra.mxu0 %v6744
        %6762 = vmatprep.subr.bf16.mxu0 %v6747
        %6763 = vmatpush1.bf16.xpose.msra.mxu0 %v6746
        %6764 = vmatprep.subr.bf16.mxu0 %v6749
        %6765 = vmatpush1.bf16.xpose.msra.mxu0 %v6748
        %6766 = vmatprep.subr.bf16.mxu0 %v6751
        %6767 = vmatpush1.bf16.xpose.msra.mxu0 %v6750
        %6768 = vmatprep.subr.bf16.mxu0 %v6753
        %6769 = vmatpush1.bf16.xpose.msra.mxu0 %v6752
        %6770 = vmatprep.subr.bf16.mxu0 %v6755
        %6771 = vmatpush1.bf16.xpose.msra.mxu0 %v6754
        %6772 = vmatprep.subr.bf16.mxu0 %v6757
        %6773 = vmatpush1.bf16.xpose.msra.mxu0 %v6756
        %6774 = vmatprep.subr.bf16.mxu0 %v6759
        %6775 = vmatpush1.bf16.xpose.msra.mxu0 %v6758
        %6776 = vmatprep.subr.bf16.mxu0 0
        %6777 = vmatpush1.bf16.xpose.msra.mxu0 0
        %6778 = vmatprep.subr.bf16.mxu0 0
        %6779 = vmatpush1.bf16.xpose.msra.mxu0 0
        %6780 = vmatprep.subr.bf16.mxu0 0
        %6781 = vmatpush1.bf16.xpose.msra.mxu0 0
        %6782 = vmatprep.subr.bf16.mxu0 0
        %6783 = vmatpush1.bf16.xpose.msra.mxu0 0
        %6784 = vmatprep.subr.bf16.mxu0 0
        %6785 = vmatpush1.bf16.xpose.msra.mxu0 0
        %6786 = vmatprep.subr.bf16.mxu0 0
        %6787 = vmatpush1.bf16.xpose.msra.mxu0 0
        %6788 = vmatprep.subr.bf16.mxu0 0
        %6789 = vmatpush1.bf16.xpose.msra.mxu0 0
        %6790 = vmatprep.subr.bf16.mxu0 0
        %6791 = vmatpush1.bf16.xpose.msra.mxu0 0
        %6792 = vmatprep.mubr.bf16.mxu0 %v6741
        %6793 = vmatmul.mubr.bf16.gmra.mrb[0].mxu0 %v6740
        %v6794 = vpop.f32.mrb[0].mxu0
        %v6795 = vadd.f32 0.0, %v6794
        %v6796 = vpop.f32.mrb[0].mxu0
        %v6797 = vpop.f32.mrb[0].mxu0
        %v6798 = vadd.f32 0.0, %v6797
        %v6799 = vpop.f32.mrb[0].mxu0
        %6800 = vmatprep.mubr.bf16.mxu0 %v6743
        %6801 = vmatmul.mubr.bf16.gmra.mrb[0].mxu0 %v6742
        %v6802 = vpop.f32.mrb[0].mxu0
        %v6803 = vadd.f32 0.0, %v6802
        %v6804 = vpop.f32.mrb[0].mxu0
        %v6805 = vpop.f32.mrb[0].mxu0
        %v6806 = vadd.f32 0.0, %v6805
        %v6807 = vpop.f32.mrb[0].mxu0
        %6808 = vdwg.mxu0
        %v6809 = vpack.c.bf16 %v6798, %v6795
        %v6810 = vpack.c.bf16 %v6806, %v6803
        %s6811 = smul.addr %s6337, 8
        %s6812 = scalar_lea.vmem [#allocation6], %s6811
        %6813 = vst [vmem:[%s6812] sm:$0xff] %v6809
        %6814 = vst [vmem:[%s6812 + $0x10] sm:$0xff] %v6810
      $region69: #{sf_gpg_forward.1} parent=63 // loop_footer
        %s6335 = sadd.s32 1, %s6331
      $region70: #{sf_gpg_forward.1} parent=63 // loop_footer_branch
        %6330 = sbr.rel target = $region66
      $region71: #{sf_gpg_forward.1} parent=63 // loop_exit
        _
      %v6815 = vld [vmem:[%s10] sm:$0xf]
      %v6816 = vld [vmem:[%s10 + $0x4] sm:$0xf]
      %v6817 = vld [vmem:[%s10 + $0x8] sm:$0xf]
      %v6818 = vld [vmem:[%s10 + $0xc] sm:$0xf]
      %v6819 = vld [vmem:[#allocation6] sm:$0xff]
      %v6820 = vld [vmem:[#allocation6 + $0x8] sm:$0xff]
      %v6821 = vld [vmem:[#allocation6 + $0x10] sm:$0xff]
      %v6822 = vld [vmem:[#allocation6 + $0x18] sm:$0xff]
      %v6827 = vunpack.c.l.b16 %v6815
      %v6828 = vunpack.c.l.b16 %v6816
      %v6829 = vunpack.c.l.b16 %v6817
      %v6830 = vunpack.c.l.b16 %v6818
      %v6831 = vpack.c.b16 %v6828, %v6827
      %v6832 = vpack.c.b16 %v6830, %v6829
      %v6834 = vsel %vm1003, %v6831, 0
      %v6837 = vsel %vm1003, %v6832, 0
      %6839 = vmatprep.subr.bf16.mxu0 %v6820
      %6840 = vmatpush1.bf16.msra.mxu0 %v6819
      %6841 = vmatprep.subr.bf16.mxu0 %v6822
      %6842 = vmatpush1.bf16.msra.mxu0 %v6821
      %6843 = vmatprep.subr.bf16.mxu0 0
      %6844 = vmatpush1.bf16.msra.mxu0 0
      %6845 = vmatprep.subr.bf16.mxu0 0
      %6846 = vmatpush1.bf16.msra.mxu0 0
      %6847 = vmatprep.subr.bf16.mxu0 0
      %6848 = vmatpush1.bf16.msra.mxu0 0
      %6849 = vmatprep.subr.bf16.mxu0 0
      %6850 = vmatpush1.bf16.msra.mxu0 0
      %6851 = vmatprep.subr.bf16.mxu0 0
      %6852 = vmatpush1.bf16.msra.mxu0 0
      %6853 = vmatprep.subr.bf16.mxu0 0
      %6854 = vmatpush1.bf16.msra.mxu0 0
      %6855 = vmatprep.subr.bf16.mxu0 0
      %6856 = vmatpush1.bf16.msra.mxu0 0
      %6857 = vmatprep.subr.bf16.mxu0 0
      %6858 = vmatpush1.bf16.msra.mxu0 0
      %6859 = vmatprep.subr.bf16.mxu0 0
      %6860 = vmatpush1.bf16.msra.mxu0 0
      %6861 = vmatprep.subr.bf16.mxu0 0
      %6862 = vmatpush1.bf16.msra.mxu0 0
      %6863 = vmatprep.subr.bf16.mxu0 0
      %6864 = vmatpush1.bf16.msra.mxu0 0
      %6865 = vmatprep.subr.bf16.mxu0 0
      %6866 = vmatpush1.bf16.msra.mxu0 0
      %6867 = vmatprep.subr.bf16.mxu0 0
      %6868 = vmatpush1.bf16.msra.mxu0 0
      %6869 = vmatprep.subr.bf16.mxu0 0
      %6870 = vmatpush1.bf16.msra.mxu0 0
      %6871 = vmatprep.mubr.bf16.mxu0 0
      %6872 = vmatmul.mubr.bf16.gmra.mrb[0].mxu0 %v6834
      %v6873 = vpop.f32.mrb[0].mxu0
      %v6874 = vadd.f32 0.0, %v6873
      %v6875 = vpop.f32.mrb[0].mxu0
      %v6876 = vadd.f32 0.0, %v6875
      %v6877 = vpop.f32.mrb[0].mxu0
      %v6878 = vadd.f32 0.0, %v6877
      %v6879 = vpop.f32.mrb[0].mxu0
      %v6880 = vadd.f32 0.0, %v6879
      %6881 = vmatprep.mubr.bf16.mxu0 0
      %6882 = vmatmul.mubr.bf16.gmra.mrb[0].mxu0 %v6837
      %v6883 = vpop.f32.mrb[0].mxu0
      %v6884 = vadd.f32 0.0, %v6883
      %v6885 = vpop.f32.mrb[0].mxu0
      %v6886 = vadd.f32 0.0, %v6885
      %v6887 = vpop.f32.mrb[0].mxu0
      %v6888 = vadd.f32 0.0, %v6887
      %v6889 = vpop.f32.mrb[0].mxu0
      %v6890 = vadd.f32 0.0, %v6889
      %6891 = vdwg.mxu0
      %v6892 = vadd.f32 %v3299, %v6874
      %v6893 = vadd.f32 %v3300, %v6876
      %v6894 = vadd.f32 %v3301, %v6878
      %v6895 = vadd.f32 %v3302, %v6880
      %v6896 = vadd.f32 %v3303, %v6884
      %v6897 = vadd.f32 %v3304, %v6886
      %v6898 = vadd.f32 %v3305, %v6888
      %v6899 = vadd.f32 %v3306, %v6890
      %6900 = vst [vmem:[%s441] sm:$0xff] %v6892
      %6901 = vst [vmem:[%s441 + $0x8] sm:$0xff] %v6893
      %6902 = vst [vmem:[%s441 + $0x10] sm:$0xff] %v6894
      %6903 = vst [vmem:[%s441 + $0x18] sm:$0xff] %v6895
      %6904 = vst [vmem:[%s441 + $0x20] sm:$0xff] %v6896
      %6905 = vst [vmem:[%s441 + $0x28] sm:$0xff] %v6897
      %6906 = vst [vmem:[%s441 + $0x30] sm:$0xff] %v6898
      %6907 = vst [vmem:[%s441 + $0x38] sm:$0xff] %v6899
      %p6908 = scmp.lt.s32.totalorder %s24, 1
      %s6909 = scalar_select %p6908, %s24, 1
      %s6910 = smul.addr %s6909, 8
      %s6911 = smul.addr %s6910, 8
      %s6912 = scalar_lea.vmem %s11, %s6911
      %p6913 = scmp.lt.s32.totalorder %s24, 1
      %s6914 = scalar_select %p6913, %s24, 1
      %s6915 = smul.addr %s6914, 8
      %s6916 = smul.addr %s6915, 8
      %s6917 = scalar_lea.vmem %s12, %s6916
      // Predicated region
      $region72: #{sf_gpg_forward.1} parent=63 // pred_check
        %p6918 = pneg %p283
      $region73: #{sf_gpg_forward.1} parent=63 // pred_check_branch
        %6920 = sbr.rel (%p6918) target = $region75
      $region74: #{sf_gpg_forward.1} parent=63 // pred_region
        _
      $region75: #{sf_gpg_forward.1} parent=63 // pred_fallthru
        _
      // Predicated region
      $region76: #{sf_gpg_forward.1} parent=63 // pred_check
        %p6921 = pneg %p309
      $region77: #{sf_gpg_forward.1} parent=63 // pred_check_branch
        %6923 = sbr.rel (%p6921) target = $region79
      $region78: #{sf_gpg_forward.1} parent=63 // pred_region
        _
      $region79: #{sf_gpg_forward.1} parent=63 // pred_fallthru
        _
    $region64: #{sf_gpg_forward.1} parent=5 // pred_fallthru
      _
    %p6924 = scmp.le.s32.totalorder 2, %s19
    // Predicated region
    $region80: #{sf_gpg_forward.1} parent=5 // pred_check
      %p6925 = pneg %p6924
    $region81: #{sf_gpg_forward.1} parent=5 // pred_check_branch
      %6927 = sbr.rel (%p6925) target = $region83
    $region82: #{sf_gpg_forward.1} parent=5 // pred_region
      %s6928 = ssub.s32 %s19, 2
      // Predicated region
      $region84: #{sf_gpg_forward.1} parent=82 // pred_check
        %p6929 = pneg %p289
      $region85: #{sf_gpg_forward.1} parent=82 // pred_check_branch
        %6931 = sbr.rel (%p6929) target = $region87
      $region86: #{sf_gpg_forward.1} parent=82 // pred_region
        %p6932 = scmp.lt.s32.totalorder %s25, 1
        %s6933 = scalar_select %p6932, %s25, 1
        %s6934 = smul.addr %s6933, 8
        %s6935 = smul.addr %s6934, 8
        %s6936 = scalar_lea.vmem %s11, %s6935
      $region87: #{sf_gpg_forward.1} parent=82 // pred_fallthru
        _
      // Predicated region
      $region88: #{sf_gpg_forward.1} parent=82 // pred_check
        %p6937 = pneg %p315
      $region89: #{sf_gpg_forward.1} parent=82 // pred_check_branch
        %6939 = sbr.rel (%p6937) target = $region91
      $region90: #{sf_gpg_forward.1} parent=82 // pred_region
        %p6940 = scmp.lt.s32.totalorder %s25, 1
        %s6941 = scalar_select %p6940, %s25, 1
        %s6942 = smul.addr %s6941, 8
        %s6943 = smul.addr %s6942, 8
        %s6944 = scalar_lea.vmem %s12, %s6943
      $region91: #{sf_gpg_forward.1} parent=82 // pred_fallthru
        _
    $region83: #{sf_gpg_forward.1} parent=5 // pred_fallthru
      _
  $region6: #{sf_gpg_forward.1} parent=0 // loop_footer
    %s23 = sadd.s32 1, %s19
  $region7: #{sf_gpg_forward.1} parent=0 // loop_footer_branch
    %18 = sbr.rel target = $region3
  $region8: #{sf_gpg_forward.1} parent=0 // loop_exit
    _

</llo_original>
